<compile_context>
chip_gen: v7x
topology: tpu7x:2x2x1
jax: 0.10.0
libtpu: 0.0.40
codegen_flags: <defaults>
</compile_context>

<pallas_src>
import jax
import jax.numpy as jnp
from jax.experimental import pallas as pl
from jax.experimental.pallas import tpu as pltpu


def _mcwnet_kernel(x_ref, w_ref, bns_ref, bnb_ref, fc1_ref, fc2_ref,
                   prelu_ref, out_ref, pad_ref, cols_ref):
    """Fused 3x SEBlock forward for a single batch element.

    x_ref    : (1, H, W, C)        input activation (NHWC, f32)
    w_ref    : (3, 9*C, C)  bf16   conv weights per block, im2col layout
    bns_ref  : (3, 1, C)           folded BN scale (gamma / sqrt(var + eps))
    bnb_ref  : (3, 1, C)           folded BN bias  (beta - mean * scale)
    fc1_ref  : (3, C, C//r)        SE first linear  (in x out)
    fc2_ref  : (3, C//r, C)        SE second linear (in x out)
    prelu_ref: (3,)        [SMEM]  PReLU slope per block (single-param PReLU)
    out_ref  : (1, H, W, C)        output activation (NHWC, f32)
    pad_ref  : (H+2, W+2, C) f32   VMEM scratch: zero-padded current activation
    cols_ref : (H*W, 9*C)   bf16   VMEM scratch: im2col patches
    """
    _, H, W, C = x_ref.shape

    # Zero the halo and place the input into the interior of the padded buffer.
    pad_ref[...] = jnp.zeros_like(pad_ref)
    pad_ref[1:H + 1, 1:W + 1, :] = x_ref[0]

    for blk in range(3):
        # ---- im2col: gather the 9 shifted taps into one (H*W, 9C) matrix ----
        for t in range(9):
            ky, kx = t // 3, t % 3
            patch = pad_ref[ky:ky + H, kx:kx + W, :].reshape(H * W, C)
            cols_ref[:, t * C:(t + 1) * C] = patch.astype(jnp.bfloat16)

        # ---- conv3x3 (stride 1, pad 1, no bias) as one MXU matmul, K = 9C ----
        y = jnp.dot(cols_ref[...], w_ref[blk],
                    preferred_element_type=jnp.float32)            # (H*W, C)

        # ---- BatchNorm (inference mode, folded per-channel affine) ----
        y = y * bns_ref[blk] + bnb_ref[blk]

        # ---- Squeeze-and-Excitation channel gate ----
        pooled = jnp.mean(y, axis=0, keepdims=True)                # (1, C)
        hidden = jnp.maximum(
            jnp.dot(pooled, fc1_ref[blk], preferred_element_type=jnp.float32),
            0.0)
        gate = jax.nn.sigmoid(
            jnp.dot(hidden, fc2_ref[blk], preferred_element_type=jnp.float32))

        # ---- gate, residual add, PReLU ----
        resid = pad_ref[1:H + 1, 1:W + 1, :].reshape(H * W, C)
        y = y * gate + resid
        slope = prelu_ref[blk]                                     # SMEM scalar
        y = jnp.where(y >= 0.0, y, slope * y)

        if blk < 2:
            # Feed the next SEBlock: write back into the padded VMEM buffer.
            pad_ref[1:H + 1, 1:W + 1, :] = y.reshape(H, W, C)
        else:
            out_ref[0] = y.reshape(H, W, C)


def _mcwnet_pallas(x_nhwc, conv_w, bn_s, bn_b, fc1, fc2, prelu):
    """x_nhwc: (B, H, W, C) f32. Fused 3-block forward via one pallas_call."""
    B, H, W, C = x_nhwc.shape
    Cr = fc1.shape[-1]
    return pl.pallas_call(
        _mcwnet_kernel,
        out_shape=jax.ShapeDtypeStruct((B, H, W, C), jnp.float32),
        grid_spec=pltpu.PrefetchScalarGridSpec(
            num_scalar_prefetch=0,
            grid=(B,),
            in_specs=[
                pl.BlockSpec((1, H, W, C), lambda b: (b, 0, 0, 0)),
                pl.BlockSpec((3, 9 * C, C), lambda b: (0, 0, 0)),
                pl.BlockSpec((3, 1, C), lambda b: (0, 0, 0)),
                pl.BlockSpec((3, 1, C), lambda b: (0, 0, 0)),
                pl.BlockSpec((3, C, Cr), lambda b: (0, 0, 0)),
                pl.BlockSpec((3, Cr, C), lambda b: (0, 0, 0)),
                pl.BlockSpec(memory_space=pltpu.MemorySpace.SMEM),
            ],
            out_specs=pl.BlockSpec((1, H, W, C), lambda b: (b, 0, 0, 0)),
            scratch_shapes=[
                pltpu.VMEM((H + 2, W + 2, C), jnp.float32),   # padded activation
                pltpu.VMEM((H * W, 9 * C), jnp.bfloat16),     # im2col columns
            ],
        ),
        compiler_params=pltpu.CompilerParams(
            dimension_semantics=("parallel",),
            vmem_limit_bytes=32 * 1024 * 1024,
        ),
    )(x_nhwc, conv_w, bn_s, bn_b, fc1, fc2, prelu)


def make_seblock_params(key, channels, reduction=16):
    """Deterministic synthetic parameters for one SEBlock."""
    cr = max(channels // reduction, 1)
    k = jax.random.split(key, 7)
    conv_w = 0.05 * jax.random.normal(k[0], (3, 3, channels, channels), jnp.float32)
    gamma = 1.0 + 0.1 * jax.random.normal(k[1], (channels,), jnp.float32)
    beta = 0.1 * jax.random.normal(k[2], (channels,), jnp.float32)
    running_mean = 0.1 * jax.random.normal(k[3], (channels,), jnp.float32)
    running_var = 1.0 + 0.5 * jax.random.uniform(k[4], (channels,), jnp.float32)
    eps = 1e-5
    bn_scale = gamma / jnp.sqrt(running_var + eps)
    bn_bias = beta - running_mean * bn_scale
    fc1 = 0.2 * jax.random.normal(k[5], (channels, cr), jnp.float32)
    fc2 = 0.2 * jax.random.normal(k[6], (cr, channels), jnp.float32)
    prelu = jnp.full((), 0.25, jnp.float32)   # PyTorch nn.PReLU() default init
    return {"conv_w": conv_w, "bn_scale": bn_scale, "bn_bias": bn_bias,
            "fc1": fc1, "fc2": fc2, "prelu": prelu}


@jax.jit
def mcwnet_forward(x_nchw, params1, params2, params3):
    """MCWNet forward: 3 fused SEBlocks. Input/output in NCHW (PyTorch)."""
    C = x_nchw.shape[1]
    ps = (params1, params2, params3)
    x = jnp.transpose(x_nchw, (0, 2, 3, 1))                      # NCHW -> NHWC
    # Stack per-block params; conv weights in bf16 / im2col (9C, C) layout.
    conv_w = jnp.stack([p["conv_w"].reshape(9 * C, C) for p in ps]
                       ).astype(jnp.bfloat16)
    bn_s = jnp.stack([p["bn_scale"].reshape(1, C) for p in ps])
    bn_b = jnp.stack([p["bn_bias"].reshape(1, C) for p in ps])
    fc1 = jnp.stack([p["fc1"] for p in ps])
    fc2 = jnp.stack([p["fc2"] for p in ps])
    prelu = jnp.stack([p["prelu"] for p in ps])                   # (3,)
    y = _mcwnet_pallas(x, conv_w, bn_s, bn_b, fc1, fc2, prelu)
    return jnp.transpose(y, (0, 3, 1, 2))                        # NHWC -> NCHW


# ----------------------------- pure-JAX reference -----------------------------
def _seblock_ref(x_nhwc, p):
    # Mirror the kernel's precision: bf16 conv operands, f32 accumulation.
    y = jax.lax.conv_general_dilated(
        x_nhwc.astype(jnp.bfloat16), p["conv_w"].astype(jnp.bfloat16),
        window_strides=(1, 1), padding="SAME",
        dimension_numbers=("NHWC", "HWIO", "NHWC"),
        preferred_element_type=jnp.float32)
    y = y * p["bn_scale"] + p["bn_bias"]
    pooled = jnp.mean(y, axis=(1, 2))
    hidden = jnp.maximum(pooled @ p["fc1"], 0.0)
    gate = jax.nn.sigmoid(hidden @ p["fc2"])
    y = y * gate[:, None, None, :]
    y = y + x_nhwc
    return jnp.where(y >= 0.0, y, p["prelu"] * y)


def _mcwnet_ref(x_nchw, p1, p2, p3):
    x = jnp.transpose(x_nchw, (0, 2, 3, 1))
    for p in (p1, p2, p3):
        x = _seblock_ref(x, p)
    return jnp.transpose(x, (0, 3, 1, 2))


if __name__ == "__main__":
    key = jax.random.PRNGKey(0)
    kx, k1, k2, k3 = jax.random.split(key, 4)

    # C chosen lane-dense (128) per perf review; reduction=16 -> SE hidden = 8.
    B, C, H, W = 2, 128, 16, 16
    x = jax.random.normal(kx, (B, C, H, W), jnp.float32)   # NCHW like PyTorch

    p1 = make_seblock_params(k1, C)
    p2 = make_seblock_params(k2, C)
    p3 = make_seblock_params(k3, C)

    out = mcwnet_forward(x, p1, p2, p3)
    out = jax.block_until_ready(out)

    ref = _mcwnet_ref(x, p1, p2, p3)
    assert out.shape == (B, C, H, W)
    max_err = float(jnp.max(jnp.abs(out - ref)))
    assert jnp.allclose(out, ref, atol=5e-2, rtol=5e-2), max_err

    print("KERNEL_OK")
</pallas_src>

<mosaic_0001>
module attributes {stable_mosaic.version = 11 : i64} {
  func.func @_mcwnet_kernel(%arg0: i32, %arg1: memref<1x16x16x128xf32, #tpu.memory_space<vmem>>, %arg2: memref<3x1152x128xbf16, #tpu.memory_space<vmem>>, %arg3: memref<3x1x128xf32, #tpu.memory_space<vmem>>, %arg4: memref<3x1x128xf32, #tpu.memory_space<vmem>>, %arg5: memref<3x128x8xf32, #tpu.memory_space<vmem>>, %arg6: memref<3x8x128xf32, #tpu.memory_space<vmem>>, %arg7: memref<3xf32, #tpu.memory_space<smem>>, %arg8: memref<1x16x16x128xf32, #tpu.memory_space<vmem>>, %arg9: memref<18x18x128xf32, #tpu.memory_space<vmem>>, %arg10: memref<256x1152xbf16, #tpu.memory_space<vmem>>) attributes {dimension_semantics = [#tpu.dimension_semantics<parallel>], iteration_bounds = array<i64: 2>, scalar_prefetch = 0 : i64, scratch_operands = 2 : i64, tpu.core_type = #tpu.core_type<tc>, window_params = [{transform_indices = @transform_0, window_bounds = array<i64: 1, 16, 16, 128>}, {pipeline_mode = #tpu.pipeline_mode<synchronous>, transform_indices = @transform_1, window_bounds = array<i64: 3, 1152, 128>}, {pipeline_mode = #tpu.pipeline_mode<synchronous>, transform_indices = @transform_2, window_bounds = array<i64: 3, 1, 128>}, {pipeline_mode = #tpu.pipeline_mode<synchronous>, transform_indices = @transform_3, window_bounds = array<i64: 3, 1, 128>}, {pipeline_mode = #tpu.pipeline_mode<synchronous>, transform_indices = @transform_4, window_bounds = array<i64: 3, 128, 8>}, {pipeline_mode = #tpu.pipeline_mode<synchronous>, transform_indices = @transform_5, window_bounds = array<i64: 3, 8, 128>}, {transform_indices = @transform_6, window_bounds = array<i64: 3>}, {transform_indices = @transform_7, window_bounds = array<i64: 1, 16, 16, 128>}]} {
    %cst = arith.constant 0.000000e+00 : f32
    %0 = vector.broadcast %cst : f32 to vector<18x18x128xf32>
    %c0 = arith.constant 0 : index
    %c0_0 = arith.constant 0 : index
    %c0_1 = arith.constant 0 : index
    %1 = vector.load %arg9[%c0, %c0_0, %c0_1] : memref<18x18x128xf32, #tpu.memory_space<vmem>>, vector<18x18x128xf32>
    tpu.vector_store %arg9[%c0, %c0_0, %c0_1], %0 {strides = array<i32>} : memref<18x18x128xf32, #tpu.memory_space<vmem>>, vector<18x18x128xf32>,
    %c0_2 = arith.constant 0 : index
    %c0_3 = arith.constant 0 : index
    %c0_4 = arith.constant 0 : index
    %c0_5 = arith.constant 0 : index
    %2 = vector.load %arg1[%c0_2, %c0_3, %c0_4, %c0_5] : memref<1x16x16x128xf32, #tpu.memory_space<vmem>>, vector<1x16x16x128xf32>
    %3 = vector.shape_cast %2 : vector<1x16x16x128xf32> to vector<16x16x128xf32>
    %c1 = arith.constant 1 : index
    %c1_6 = arith.constant 1 : index
    %c0_7 = arith.constant 0 : index
    %4 = vector.load %arg9[%c1, %c1_6, %c0_7] : memref<18x18x128xf32, #tpu.memory_space<vmem>>, vector<16x16x128xf32>
    tpu.vector_store %arg9[%c1, %c1_6, %c0_7], %3 {strides = array<i32>} : memref<18x18x128xf32, #tpu.memory_space<vmem>>, vector<16x16x128xf32>,
    %c0_8 = arith.constant 0 : index
    %c0_9 = arith.constant 0 : index
    %c0_10 = arith.constant 0 : index
    %5 = vector.load %arg9[%c0_8, %c0_9, %c0_10] : memref<18x18x128xf32, #tpu.memory_space<vmem>>, vector<16x16x128xf32>
    %6 = vector.shape_cast %5 : vector<16x16x128xf32> to vector<256x128xf32>
    %7 = arith.truncf %6 : vector<256x128xf32> to vector<256x128xbf16>
    %c0_11 = arith.constant 0 : index
    %c0_12 = arith.constant 0 : index
    %8 = vector.load %arg10[%c0_11, %c0_12] : memref<256x1152xbf16, #tpu.memory_space<vmem>>, vector<256x128xbf16>
    tpu.vector_store %arg10[%c0_11, %c0_12], %7 {strides = array<i32>} : memref<256x1152xbf16, #tpu.memory_space<vmem>>, vector<256x128xbf16>,
    %c0_13 = arith.constant 0 : index
    %c1_14 = arith.constant 1 : index
    %c0_15 = arith.constant 0 : index
    %9 = vector.load %arg9[%c0_13, %c1_14, %c0_15] : memref<18x18x128xf32, #tpu.memory_space<vmem>>, vector<16x16x128xf32>
    %10 = vector.shape_cast %9 : vector<16x16x128xf32> to vector<256x128xf32>
    %11 = arith.truncf %10 : vector<256x128xf32> to vector<256x128xbf16>
    %c0_16 = arith.constant 0 : index
    %c128 = arith.constant 128 : index
    %12 = vector.load %arg10[%c0_16, %c128] : memref<256x1152xbf16, #tpu.memory_space<vmem>>, vector<256x128xbf16>
    tpu.vector_store %arg10[%c0_16, %c128], %11 {strides = array<i32>} : memref<256x1152xbf16, #tpu.memory_space<vmem>>, vector<256x128xbf16>,
    %c0_17 = arith.constant 0 : index
    %c2 = arith.constant 2 : index
    %c0_18 = arith.constant 0 : index
    %13 = vector.load %arg9[%c0_17, %c2, %c0_18] : memref<18x18x128xf32, #tpu.memory_space<vmem>>, vector<16x16x128xf32>
    %14 = vector.shape_cast %13 : vector<16x16x128xf32> to vector<256x128xf32>
    %15 = arith.truncf %14 : vector<256x128xf32> to vector<256x128xbf16>
    %c0_19 = arith.constant 0 : index
    %c256 = arith.constant 256 : index
    %16 = vector.load %arg10[%c0_19, %c256] : memref<256x1152xbf16, #tpu.memory_space<vmem>>, vector<256x128xbf16>
    tpu.vector_store %arg10[%c0_19, %c256], %15 {strides = array<i32>} : memref<256x1152xbf16, #tpu.memory_space<vmem>>, vector<256x128xbf16>,
    %c1_20 = arith.constant 1 : index
    %c0_21 = arith.constant 0 : index
    %c0_22 = arith.constant 0 : index
    %17 = vector.load %arg9[%c1_20, %c0_21, %c0_22] : memref<18x18x128xf32, #tpu.memory_space<vmem>>, vector<16x16x128xf32>
    %18 = vector.shape_cast %17 : vector<16x16x128xf32> to vector<256x128xf32>
    %19 = arith.truncf %18 : vector<256x128xf32> to vector<256x128xbf16>
    %c0_23 = arith.constant 0 : index
    %c384 = arith.constant 384 : index
    %20 = vector.load %arg10[%c0_23, %c384] : memref<256x1152xbf16, #tpu.memory_space<vmem>>, vector<256x128xbf16>
    tpu.vector_store %arg10[%c0_23, %c384], %19 {strides = array<i32>} : memref<256x1152xbf16, #tpu.memory_space<vmem>>, vector<256x128xbf16>,
    %c1_24 = arith.constant 1 : index
    %c1_25 = arith.constant 1 : index
    %c0_26 = arith.constant 0 : index
    %21 = vector.load %arg9[%c1_24, %c1_25, %c0_26] : memref<18x18x128xf32, #tpu.memory_space<vmem>>, vector<16x16x128xf32>
    %22 = vector.shape_cast %21 : vector<16x16x128xf32> to vector<256x128xf32>
    %23 = arith.truncf %22 : vector<256x128xf32> to vector<256x128xbf16>
    %c0_27 = arith.constant 0 : index
    %c512 = arith.constant 512 : index
    %24 = vector.load %arg10[%c0_27, %c512] : memref<256x1152xbf16, #tpu.memory_space<vmem>>, vector<256x128xbf16>
    tpu.vector_store %arg10[%c0_27, %c512], %23 {strides = array<i32>} : memref<256x1152xbf16, #tpu.memory_space<vmem>>, vector<256x128xbf16>,
    %c1_28 = arith.constant 1 : index
    %c2_29 = arith.constant 2 : index
    %c0_30 = arith.constant 0 : index
    %25 = vector.load %arg9[%c1_28, %c2_29, %c0_30] : memref<18x18x128xf32, #tpu.memory_space<vmem>>, vector<16x16x128xf32>
    %26 = vector.shape_cast %25 : vector<16x16x128xf32> to vector<256x128xf32>
    %27 = arith.truncf %26 : vector<256x128xf32> to vector<256x128xbf16>
    %c0_31 = arith.constant 0 : index
    %c640 = arith.constant 640 : index
    %28 = vector.load %arg10[%c0_31, %c640] : memref<256x1152xbf16, #tpu.memory_space<vmem>>, vector<256x128xbf16>
    tpu.vector_store %arg10[%c0_31, %c640], %27 {strides = array<i32>} : memref<256x1152xbf16, #tpu.memory_space<vmem>>, vector<256x128xbf16>,
    %c2_32 = arith.constant 2 : index
    %c0_33 = arith.constant 0 : index
    %c0_34 = arith.constant 0 : index
    %29 = vector.load %arg9[%c2_32, %c0_33, %c0_34] : memref<18x18x128xf32, #tpu.memory_space<vmem>>, vector<16x16x128xf32>
    %30 = vector.shape_cast %29 : vector<16x16x128xf32> to vector<256x128xf32>
    %31 = arith.truncf %30 : vector<256x128xf32> to vector<256x128xbf16>
    %c0_35 = arith.constant 0 : index
    %c768 = arith.constant 768 : index
    %32 = vector.load %arg10[%c0_35, %c768] : memref<256x1152xbf16, #tpu.memory_space<vmem>>, vector<256x128xbf16>
    tpu.vector_store %arg10[%c0_35, %c768], %31 {strides = array<i32>} : memref<256x1152xbf16, #tpu.memory_space<vmem>>, vector<256x128xbf16>,
    %c2_36 = arith.constant 2 : index
    %c1_37 = arith.constant 1 : index
    %c0_38 = arith.constant 0 : index
    %33 = vector.load %arg9[%c2_36, %c1_37, %c0_38] : memref<18x18x128xf32, #tpu.memory_space<vmem>>, vector<16x16x128xf32>
    %34 = vector.shape_cast %33 : vector<16x16x128xf32> to vector<256x128xf32>
    %35 = arith.truncf %34 : vector<256x128xf32> to vector<256x128xbf16>
    %c0_39 = arith.constant 0 : index
    %c896 = arith.constant 896 : index
    %36 = vector.load %arg10[%c0_39, %c896] : memref<256x1152xbf16, #tpu.memory_space<vmem>>, vector<256x128xbf16>
    tpu.vector_store %arg10[%c0_39, %c896], %35 {strides = array<i32>} : memref<256x1152xbf16, #tpu.memory_space<vmem>>, vector<256x128xbf16>,
    %c2_40 = arith.constant 2 : index
    %c2_41 = arith.constant 2 : index
    %c0_42 = arith.constant 0 : index
    %37 = vector.load %arg9[%c2_40, %c2_41, %c0_42] : memref<18x18x128xf32, #tpu.memory_space<vmem>>, vector<16x16x128xf32>
    %38 = vector.shape_cast %37 : vector<16x16x128xf32> to vector<256x128xf32>
    %39 = arith.truncf %38 : vector<256x128xf32> to vector<256x128xbf16>
    %c0_43 = arith.constant 0 : index
    %c1024 = arith.constant 1024 : index
    %40 = vector.load %arg10[%c0_43, %c1024] : memref<256x1152xbf16, #tpu.memory_space<vmem>>, vector<256x128xbf16>
    tpu.vector_store %arg10[%c0_43, %c1024], %39 {strides = array<i32>} : memref<256x1152xbf16, #tpu.memory_space<vmem>>, vector<256x128xbf16>,
    %c0_44 = arith.constant 0 : index
    %c0_45 = arith.constant 0 : index
    %41 = vector.load %arg10[%c0_44, %c0_45] : memref<256x1152xbf16, #tpu.memory_space<vmem>>, vector<256x1152xbf16>
    %c0_46 = arith.constant 0 : index
    %c0_47 = arith.constant 0 : index
    %c0_48 = arith.constant 0 : index
    %42 = vector.load %arg2[%c0_46, %c0_47, %c0_48] : memref<3x1152x128xbf16, #tpu.memory_space<vmem>>, vector<1x1152x128xbf16>
    %43 = vector.shape_cast %42 : vector<1x1152x128xbf16> to vector<1152x128xbf16>
    %cst_49 = arith.constant dense<0.000000e+00> : vector<256x128xf32>
    %44 = tpu.matmul %41, %43, %cst_49 {dimension_numbers = #tpu.dot_dimension_numbers<[1], [0], [0], [1], [0, 0, 1, 1], [], []>} : vector<256x1152xbf16>, vector<1152x128xbf16>, vector<256x128xf32> -> vector<256x128xf32>
    %c0_50 = arith.constant 0 : index
    %c0_51 = arith.constant 0 : index
    %c0_52 = arith.constant 0 : index
    %45 = vector.load %arg3[%c0_50, %c0_51, %c0_52] : memref<3x1x128xf32, #tpu.memory_space<vmem>>, vector<1x1x128xf32>
    %46 = vector.shape_cast %45 : vector<1x1x128xf32> to vector<1x128xf32>
    %47 = vector.broadcast %46 : vector<1x128xf32> to vector<256x128xf32>
    %48 = arith.mulf %44, %47 : vector<256x128xf32>
    %c0_53 = arith.constant 0 : index
    %c0_54 = arith.constant 0 : index
    %c0_55 = arith.constant 0 : index
    %49 = vector.load %arg4[%c0_53, %c0_54, %c0_55] : memref<3x1x128xf32, #tpu.memory_space<vmem>>, vector<1x1x128xf32>
    %50 = vector.shape_cast %49 : vector<1x1x128xf32> to vector<1x128xf32>
    %51 = vector.broadcast %50 : vector<1x128xf32> to vector<256x128xf32>
    %52 = arith.addf %48, %51 : vector<256x128xf32>
    %cst_56 = arith.constant dense<0.000000e+00> : vector<128xf32>
    %53 = vector.multi_reduction <add>, %52, %cst_56 [0] : vector<256x128xf32> to vector<128xf32>
    %54 = vector.shape_cast %53 : vector<128xf32> to vector<1x128xf32>
    %cst_57 = arith.constant 2.560000e+02 : f32
    %55 = vector.broadcast %cst_57 : f32 to vector<1x128xf32>
    %56 = arith.divf %54, %55 : vector<1x128xf32>
    %c0_58 = arith.constant 0 : index
    %c0_59 = arith.constant 0 : index
    %c0_60 = arith.constant 0 : index
    %57 = vector.load %arg5[%c0_58, %c0_59, %c0_60] : memref<3x128x8xf32, #tpu.memory_space<vmem>>, vector<1x128x8xf32>
    %58 = vector.shape_cast %57 : vector<1x128x8xf32> to vector<128x8xf32>
    %cst_61 = arith.constant dense<0.000000e+00> : vector<1x8xf32>
    %59 = tpu.matmul %56, %58, %cst_61 {dimension_numbers = #tpu.dot_dimension_numbers<[1], [0], [0], [1], [0, 0, 1, 1], [], []>} : vector<1x128xf32>, vector<128x8xf32>, vector<1x8xf32> -> vector<1x8xf32>
    %cst_62 = arith.constant 0.000000e+00 : f32
    %60 = vector.broadcast %cst_62 : f32 to vector<1x8xf32>
    %61 = arith.maximumf %59, %60 : vector<1x8xf32>
    %c0_63 = arith.constant 0 : index
    %c0_64 = arith.constant 0 : index
    %c0_65 = arith.constant 0 : index
    %62 = vector.load %arg6[%c0_63, %c0_64, %c0_65] : memref<3x8x128xf32, #tpu.memory_space<vmem>>, vector<1x8x128xf32>
    %63 = vector.shape_cast %62 : vector<1x8x128xf32> to vector<8x128xf32>
    %cst_66 = arith.constant dense<0.000000e+00> : vector<1x128xf32>
    %64 = tpu.matmul %61, %63, %cst_66 {dimension_numbers = #tpu.dot_dimension_numbers<[1], [0], [0], [1], [0, 0, 1, 1], [], []>} : vector<1x8xf32>, vector<8x128xf32>, vector<1x128xf32> -> vector<1x128xf32>
    %65 = arith.negf %64 : vector<1x128xf32>
    %66 = math.exp %65 : vector<1x128xf32>
    %cst_67 = arith.constant 1.000000e+00 : f32
    %67 = vector.broadcast %cst_67 : f32 to vector<1x128xf32>
    %68 = arith.addf %67, %66 : vector<1x128xf32>
    %69 = arith.divf %67, %68 : vector<1x128xf32>
    %c1_68 = arith.constant 1 : index
    %c1_69 = arith.constant 1 : index
    %c0_70 = arith.constant 0 : index
    %70 = vector.load %arg9[%c1_68, %c1_69, %c0_70] : memref<18x18x128xf32, #tpu.memory_space<vmem>>, vector<16x16x128xf32>
    %71 = vector.shape_cast %70 : vector<16x16x128xf32> to vector<256x128xf32>
    %72 = vector.broadcast %69 : vector<1x128xf32> to vector<256x128xf32>
    %73 = arith.mulf %52, %72 : vector<256x128xf32>
    %74 = arith.addf %73, %71 : vector<256x128xf32>
    %c0_71 = arith.constant 0 : index
    %75 = memref.load %arg7[%c0_71] : memref<3xf32, #tpu.memory_space<smem>>
    %cst_72 = arith.constant 0.000000e+00 : f32
    %76 = vector.broadcast %cst_72 : f32 to vector<256x128xf32>
    %77 = arith.cmpf oge, %74, %76 : vector<256x128xf32>
    %78 = vector.broadcast %75 : f32 to vector<256x128xf32>
    %79 = arith.mulf %78, %74 : vector<256x128xf32>
    %80 = arith.select %77, %74, %79 : vector<256x128xi1>, vector<256x128xf32>
    %81 = vector.shape_cast %80 : vector<256x128xf32> to vector<16x16x128xf32>
    %c1_73 = arith.constant 1 : index
    %c1_74 = arith.constant 1 : index
    %c0_75 = arith.constant 0 : index
    %82 = vector.load %arg9[%c1_73, %c1_74, %c0_75] : memref<18x18x128xf32, #tpu.memory_space<vmem>>, vector<16x16x128xf32>
    tpu.vector_store %arg9[%c1_73, %c1_74, %c0_75], %81 {strides = array<i32>} : memref<18x18x128xf32, #tpu.memory_space<vmem>>, vector<16x16x128xf32>,
    %c0_76 = arith.constant 0 : index
    %c0_77 = arith.constant 0 : index
    %c0_78 = arith.constant 0 : index
    %83 = vector.load %arg9[%c0_76, %c0_77, %c0_78] : memref<18x18x128xf32, #tpu.memory_space<vmem>>, vector<16x16x128xf32>
    %84 = vector.shape_cast %83 : vector<16x16x128xf32> to vector<256x128xf32>
    %85 = arith.truncf %84 : vector<256x128xf32> to vector<256x128xbf16>
    %c0_79 = arith.constant 0 : index
    %c0_80 = arith.constant 0 : index
    %86 = vector.load %arg10[%c0_79, %c0_80] : memref<256x1152xbf16, #tpu.memory_space<vmem>>, vector<256x128xbf16>
    tpu.vector_store %arg10[%c0_79, %c0_80], %85 {strides = array<i32>} : memref<256x1152xbf16, #tpu.memory_space<vmem>>, vector<256x128xbf16>,
    %c0_81 = arith.constant 0 : index
    %c1_82 = arith.constant 1 : index
    %c0_83 = arith.constant 0 : index
    %87 = vector.load %arg9[%c0_81, %c1_82, %c0_83] : memref<18x18x128xf32, #tpu.memory_space<vmem>>, vector<16x16x128xf32>
    %88 = vector.shape_cast %87 : vector<16x16x128xf32> to vector<256x128xf32>
    %89 = arith.truncf %88 : vector<256x128xf32> to vector<256x128xbf16>
    %c0_84 = arith.constant 0 : index
    %c128_85 = arith.constant 128 : index
    %90 = vector.load %arg10[%c0_84, %c128_85] : memref<256x1152xbf16, #tpu.memory_space<vmem>>, vector<256x128xbf16>
    tpu.vector_store %arg10[%c0_84, %c128_85], %89 {strides = array<i32>} : memref<256x1152xbf16, #tpu.memory_space<vmem>>, vector<256x128xbf16>,
    %c0_86 = arith.constant 0 : index
    %c2_87 = arith.constant 2 : index
    %c0_88 = arith.constant 0 : index
    %91 = vector.load %arg9[%c0_86, %c2_87, %c0_88] : memref<18x18x128xf32, #tpu.memory_space<vmem>>, vector<16x16x128xf32>
    %92 = vector.shape_cast %91 : vector<16x16x128xf32> to vector<256x128xf32>
    %93 = arith.truncf %92 : vector<256x128xf32> to vector<256x128xbf16>
    %c0_89 = arith.constant 0 : index
    %c256_90 = arith.constant 256 : index
    %94 = vector.load %arg10[%c0_89, %c256_90] : memref<256x1152xbf16, #tpu.memory_space<vmem>>, vector<256x128xbf16>
    tpu.vector_store %arg10[%c0_89, %c256_90], %93 {strides = array<i32>} : memref<256x1152xbf16, #tpu.memory_space<vmem>>, vector<256x128xbf16>,
    %c1_91 = arith.constant 1 : index
    %c0_92 = arith.constant 0 : index
    %c0_93 = arith.constant 0 : index
    %95 = vector.load %arg9[%c1_91, %c0_92, %c0_93] : memref<18x18x128xf32, #tpu.memory_space<vmem>>, vector<16x16x128xf32>
    %96 = vector.shape_cast %95 : vector<16x16x128xf32> to vector<256x128xf32>
    %97 = arith.truncf %96 : vector<256x128xf32> to vector<256x128xbf16>
    %c0_94 = arith.constant 0 : index
    %c384_95 = arith.constant 384 : index
    %98 = vector.load %arg10[%c0_94, %c384_95] : memref<256x1152xbf16, #tpu.memory_space<vmem>>, vector<256x128xbf16>
    tpu.vector_store %arg10[%c0_94, %c384_95], %97 {strides = array<i32>} : memref<256x1152xbf16, #tpu.memory_space<vmem>>, vector<256x128xbf16>,
    %c1_96 = arith.constant 1 : index
    %c1_97 = arith.constant 1 : index
    %c0_98 = arith.constant 0 : index
    %99 = vector.load %arg9[%c1_96, %c1_97, %c0_98] : memref<18x18x128xf32, #tpu.memory_space<vmem>>, vector<16x16x128xf32>
    %100 = vector.shape_cast %99 : vector<16x16x128xf32> to vector<256x128xf32>
    %101 = arith.truncf %100 : vector<256x128xf32> to vector<256x128xbf16>
    %c0_99 = arith.constant 0 : index
    %c512_100 = arith.constant 512 : index
    %102 = vector.load %arg10[%c0_99, %c512_100] : memref<256x1152xbf16, #tpu.memory_space<vmem>>, vector<256x128xbf16>
    tpu.vector_store %arg10[%c0_99, %c512_100], %101 {strides = array<i32>} : memref<256x1152xbf16, #tpu.memory_space<vmem>>, vector<256x128xbf16>,
    %c1_101 = arith.constant 1 : index
    %c2_102 = arith.constant 2 : index
    %c0_103 = arith.constant 0 : index
    %103 = vector.load %arg9[%c1_101, %c2_102, %c0_103] : memref<18x18x128xf32, #tpu.memory_space<vmem>>, vector<16x16x128xf32>
    %104 = vector.shape_cast %103 : vector<16x16x128xf32> to vector<256x128xf32>
    %105 = arith.truncf %104 : vector<256x128xf32> to vector<256x128xbf16>
    %c0_104 = arith.constant 0 : index
    %c640_105 = arith.constant 640 : index
    %106 = vector.load %arg10[%c0_104, %c640_105] : memref<256x1152xbf16, #tpu.memory_space<vmem>>, vector<256x128xbf16>
    tpu.vector_store %arg10[%c0_104, %c640_105], %105 {strides = array<i32>} : memref<256x1152xbf16, #tpu.memory_space<vmem>>, vector<256x128xbf16>,
    %c2_106 = arith.constant 2 : index
    %c0_107 = arith.constant 0 : index
    %c0_108 = arith.constant 0 : index
    %107 = vector.load %arg9[%c2_106, %c0_107, %c0_108] : memref<18x18x128xf32, #tpu.memory_space<vmem>>, vector<16x16x128xf32>
    %108 = vector.shape_cast %107 : vector<16x16x128xf32> to vector<256x128xf32>
    %109 = arith.truncf %108 : vector<256x128xf32> to vector<256x128xbf16>
    %c0_109 = arith.constant 0 : index
    %c768_110 = arith.constant 768 : index
    %110 = vector.load %arg10[%c0_109, %c768_110] : memref<256x1152xbf16, #tpu.memory_space<vmem>>, vector<256x128xbf16>
    tpu.vector_store %arg10[%c0_109, %c768_110], %109 {strides = array<i32>} : memref<256x1152xbf16, #tpu.memory_space<vmem>>, vector<256x128xbf16>,
    %c2_111 = arith.constant 2 : index
    %c1_112 = arith.constant 1 : index
    %c0_113 = arith.constant 0 : index
    %111 = vector.load %arg9[%c2_111, %c1_112, %c0_113] : memref<18x18x128xf32, #tpu.memory_space<vmem>>, vector<16x16x128xf32>
    %112 = vector.shape_cast %111 : vector<16x16x128xf32> to vector<256x128xf32>
    %113 = arith.truncf %112 : vector<256x128xf32> to vector<256x128xbf16>
    %c0_114 = arith.constant 0 : index
    %c896_115 = arith.constant 896 : index
    %114 = vector.load %arg10[%c0_114, %c896_115] : memref<256x1152xbf16, #tpu.memory_space<vmem>>, vector<256x128xbf16>
    tpu.vector_store %arg10[%c0_114, %c896_115], %113 {strides = array<i32>} : memref<256x1152xbf16, #tpu.memory_space<vmem>>, vector<256x128xbf16>,
    %c2_116 = arith.constant 2 : index
    %c2_117 = arith.constant 2 : index
    %c0_118 = arith.constant 0 : index
    %115 = vector.load %arg9[%c2_116, %c2_117, %c0_118] : memref<18x18x128xf32, #tpu.memory_space<vmem>>, vector<16x16x128xf32>
    %116 = vector.shape_cast %115 : vector<16x16x128xf32> to vector<256x128xf32>
    %117 = arith.truncf %116 : vector<256x128xf32> to vector<256x128xbf16>
    %c0_119 = arith.constant 0 : index
    %c1024_120 = arith.constant 1024 : index
    %118 = vector.load %arg10[%c0_119, %c1024_120] : memref<256x1152xbf16, #tpu.memory_space<vmem>>, vector<256x128xbf16>
    tpu.vector_store %arg10[%c0_119, %c1024_120], %117 {strides = array<i32>} : memref<256x1152xbf16, #tpu.memory_space<vmem>>, vector<256x128xbf16>,
    %c0_121 = arith.constant 0 : index
    %c0_122 = arith.constant 0 : index
    %119 = vector.load %arg10[%c0_121, %c0_122] : memref<256x1152xbf16, #tpu.memory_space<vmem>>, vector<256x1152xbf16>
    %c1_123 = arith.constant 1 : index
    %c0_124 = arith.constant 0 : index
    %c0_125 = arith.constant 0 : index
    %120 = vector.load %arg2[%c1_123, %c0_124, %c0_125] : memref<3x1152x128xbf16, #tpu.memory_space<vmem>>, vector<1x1152x128xbf16>
    %121 = vector.shape_cast %120 : vector<1x1152x128xbf16> to vector<1152x128xbf16>
    %cst_126 = arith.constant dense<0.000000e+00> : vector<256x128xf32>
    %122 = tpu.matmul %119, %121, %cst_126 {dimension_numbers = #tpu.dot_dimension_numbers<[1], [0], [0], [1], [0, 0, 1, 1], [], []>} : vector<256x1152xbf16>, vector<1152x128xbf16>, vector<256x128xf32> -> vector<256x128xf32>
    %c1_127 = arith.constant 1 : index
    %c0_128 = arith.constant 0 : index
    %c0_129 = arith.constant 0 : index
    %123 = vector.load %arg3[%c1_127, %c0_128, %c0_129] : memref<3x1x128xf32, #tpu.memory_space<vmem>>, vector<1x1x128xf32>
    %124 = vector.shape_cast %123 : vector<1x1x128xf32> to vector<1x128xf32>
    %125 = vector.broadcast %124 : vector<1x128xf32> to vector<256x128xf32>
    %126 = arith.mulf %122, %125 : vector<256x128xf32>
    %c1_130 = arith.constant 1 : index
    %c0_131 = arith.constant 0 : index
    %c0_132 = arith.constant 0 : index
    %127 = vector.load %arg4[%c1_130, %c0_131, %c0_132] : memref<3x1x128xf32, #tpu.memory_space<vmem>>, vector<1x1x128xf32>
    %128 = vector.shape_cast %127 : vector<1x1x128xf32> to vector<1x128xf32>
    %129 = vector.broadcast %128 : vector<1x128xf32> to vector<256x128xf32>
    %130 = arith.addf %126, %129 : vector<256x128xf32>
    %cst_133 = arith.constant dense<0.000000e+00> : vector<128xf32>
    %131 = vector.multi_reduction <add>, %130, %cst_133 [0] : vector<256x128xf32> to vector<128xf32>
    %132 = vector.shape_cast %131 : vector<128xf32> to vector<1x128xf32>
    %cst_134 = arith.constant 2.560000e+02 : f32
    %133 = vector.broadcast %cst_134 : f32 to vector<1x128xf32>
    %134 = arith.divf %132, %133 : vector<1x128xf32>
    %c1_135 = arith.constant 1 : index
    %c0_136 = arith.constant 0 : index
    %c0_137 = arith.constant 0 : index
    %135 = vector.load %arg5[%c1_135, %c0_136, %c0_137] : memref<3x128x8xf32, #tpu.memory_space<vmem>>, vector<1x128x8xf32>
    %136 = vector.shape_cast %135 : vector<1x128x8xf32> to vector<128x8xf32>
    %cst_138 = arith.constant dense<0.000000e+00> : vector<1x8xf32>
    %137 = tpu.matmul %134, %136, %cst_138 {dimension_numbers = #tpu.dot_dimension_numbers<[1], [0], [0], [1], [0, 0, 1, 1], [], []>} : vector<1x128xf32>, vector<128x8xf32>, vector<1x8xf32> -> vector<1x8xf32>
    %cst_139 = arith.constant 0.000000e+00 : f32
    %138 = vector.broadcast %cst_139 : f32 to vector<1x8xf32>
    %139 = arith.maximumf %137, %138 : vector<1x8xf32>
    %c1_140 = arith.constant 1 : index
    %c0_141 = arith.constant 0 : index
    %c0_142 = arith.constant 0 : index
    %140 = vector.load %arg6[%c1_140, %c0_141, %c0_142] : memref<3x8x128xf32, #tpu.memory_space<vmem>>, vector<1x8x128xf32>
    %141 = vector.shape_cast %140 : vector<1x8x128xf32> to vector<8x128xf32>
    %cst_143 = arith.constant dense<0.000000e+00> : vector<1x128xf32>
    %142 = tpu.matmul %139, %141, %cst_143 {dimension_numbers = #tpu.dot_dimension_numbers<[1], [0], [0], [1], [0, 0, 1, 1], [], []>} : vector<1x8xf32>, vector<8x128xf32>, vector<1x128xf32> -> vector<1x128xf32>
    %143 = arith.negf %142 : vector<1x128xf32>
    %144 = math.exp %143 : vector<1x128xf32>
    %cst_144 = arith.constant 1.000000e+00 : f32
    %145 = vector.broadcast %cst_144 : f32 to vector<1x128xf32>
    %146 = arith.addf %145, %144 : vector<1x128xf32>
    %147 = arith.divf %145, %146 : vector<1x128xf32>
    %c1_145 = arith.constant 1 : index
    %c1_146 = arith.constant 1 : index
    %c0_147 = arith.constant 0 : index
    %148 = vector.load %arg9[%c1_145, %c1_146, %c0_147] : memref<18x18x128xf32, #tpu.memory_space<vmem>>, vector<16x16x128xf32>
    %149 = vector.shape_cast %148 : vector<16x16x128xf32> to vector<256x128xf32>
    %150 = vector.broadcast %147 : vector<1x128xf32> to vector<256x128xf32>
    %151 = arith.mulf %130, %150 : vector<256x128xf32>
    %152 = arith.addf %151, %149 : vector<256x128xf32>
    %c1_148 = arith.constant 1 : index
    %153 = memref.load %arg7[%c1_148] : memref<3xf32, #tpu.memory_space<smem>>
    %cst_149 = arith.constant 0.000000e+00 : f32
    %154 = vector.broadcast %cst_149 : f32 to vector<256x128xf32>
    %155 = arith.cmpf oge, %152, %154 : vector<256x128xf32>
    %156 = vector.broadcast %153 : f32 to vector<256x128xf32>
    %157 = arith.mulf %156, %152 : vector<256x128xf32>
    %158 = arith.select %155, %152, %157 : vector<256x128xi1>, vector<256x128xf32>
    %159 = vector.shape_cast %158 : vector<256x128xf32> to vector<16x16x128xf32>
    %c1_150 = arith.constant 1 : index
    %c1_151 = arith.constant 1 : index
    %c0_152 = arith.constant 0 : index
    %160 = vector.load %arg9[%c1_150, %c1_151, %c0_152] : memref<18x18x128xf32, #tpu.memory_space<vmem>>, vector<16x16x128xf32>
    tpu.vector_store %arg9[%c1_150, %c1_151, %c0_152], %159 {strides = array<i32>} : memref<18x18x128xf32, #tpu.memory_space<vmem>>, vector<16x16x128xf32>,
    %c0_153 = arith.constant 0 : index
    %c0_154 = arith.constant 0 : index
    %c0_155 = arith.constant 0 : index
    %161 = vector.load %arg9[%c0_153, %c0_154, %c0_155] : memref<18x18x128xf32, #tpu.memory_space<vmem>>, vector<16x16x128xf32>
    %162 = vector.shape_cast %161 : vector<16x16x128xf32> to vector<256x128xf32>
    %163 = arith.truncf %162 : vector<256x128xf32> to vector<256x128xbf16>
    %c0_156 = arith.constant 0 : index
    %c0_157 = arith.constant 0 : index
    %164 = vector.load %arg10[%c0_156, %c0_157] : memref<256x1152xbf16, #tpu.memory_space<vmem>>, vector<256x128xbf16>
    tpu.vector_store %arg10[%c0_156, %c0_157], %163 {strides = array<i32>} : memref<256x1152xbf16, #tpu.memory_space<vmem>>, vector<256x128xbf16>,
    %c0_158 = arith.constant 0 : index
    %c1_159 = arith.constant 1 : index
    %c0_160 = arith.constant 0 : index
    %165 = vector.load %arg9[%c0_158, %c1_159, %c0_160] : memref<18x18x128xf32, #tpu.memory_space<vmem>>, vector<16x16x128xf32>
    %166 = vector.shape_cast %165 : vector<16x16x128xf32> to vector<256x128xf32>
    %167 = arith.truncf %166 : vector<256x128xf32> to vector<256x128xbf16>
    %c0_161 = arith.constant 0 : index
    %c128_162 = arith.constant 128 : index
    %168 = vector.load %arg10[%c0_161, %c128_162] : memref<256x1152xbf16, #tpu.memory_space<vmem>>, vector<256x128xbf16>
    tpu.vector_store %arg10[%c0_161, %c128_162], %167 {strides = array<i32>} : memref<256x1152xbf16, #tpu.memory_space<vmem>>, vector<256x128xbf16>,
    %c0_163 = arith.constant 0 : index
    %c2_164 = arith.constant 2 : index
    %c0_165 = arith.constant 0 : index
    %169 = vector.load %arg9[%c0_163, %c2_164, %c0_165] : memref<18x18x128xf32, #tpu.memory_space<vmem>>, vector<16x16x128xf32>
    %170 = vector.shape_cast %169 : vector<16x16x128xf32> to vector<256x128xf32>
    %171 = arith.truncf %170 : vector<256x128xf32> to vector<256x128xbf16>
    %c0_166 = arith.constant 0 : index
    %c256_167 = arith.constant 256 : index
    %172 = vector.load %arg10[%c0_166, %c256_167] : memref<256x1152xbf16, #tpu.memory_space<vmem>>, vector<256x128xbf16>
    tpu.vector_store %arg10[%c0_166, %c256_167], %171 {strides = array<i32>} : memref<256x1152xbf16, #tpu.memory_space<vmem>>, vector<256x128xbf16>,
    %c1_168 = arith.constant 1 : index
    %c0_169 = arith.constant 0 : index
    %c0_170 = arith.constant 0 : index
    %173 = vector.load %arg9[%c1_168, %c0_169, %c0_170] : memref<18x18x128xf32, #tpu.memory_space<vmem>>, vector<16x16x128xf32>
    %174 = vector.shape_cast %173 : vector<16x16x128xf32> to vector<256x128xf32>
    %175 = arith.truncf %174 : vector<256x128xf32> to vector<256x128xbf16>
    %c0_171 = arith.constant 0 : index
    %c384_172 = arith.constant 384 : index
    %176 = vector.load %arg10[%c0_171, %c384_172] : memref<256x1152xbf16, #tpu.memory_space<vmem>>, vector<256x128xbf16>
    tpu.vector_store %arg10[%c0_171, %c384_172], %175 {strides = array<i32>} : memref<256x1152xbf16, #tpu.memory_space<vmem>>, vector<256x128xbf16>,
    %c1_173 = arith.constant 1 : index
    %c1_174 = arith.constant 1 : index
    %c0_175 = arith.constant 0 : index
    %177 = vector.load %arg9[%c1_173, %c1_174, %c0_175] : memref<18x18x128xf32, #tpu.memory_space<vmem>>, vector<16x16x128xf32>
    %178 = vector.shape_cast %177 : vector<16x16x128xf32> to vector<256x128xf32>
    %179 = arith.truncf %178 : vector<256x128xf32> to vector<256x128xbf16>
    %c0_176 = arith.constant 0 : index
    %c512_177 = arith.constant 512 : index
    %180 = vector.load %arg10[%c0_176, %c512_177] : memref<256x1152xbf16, #tpu.memory_space<vmem>>, vector<256x128xbf16>
    tpu.vector_store %arg10[%c0_176, %c512_177], %179 {strides = array<i32>} : memref<256x1152xbf16, #tpu.memory_space<vmem>>, vector<256x128xbf16>,
    %c1_178 = arith.constant 1 : index
    %c2_179 = arith.constant 2 : index
    %c0_180 = arith.constant 0 : index
    %181 = vector.load %arg9[%c1_178, %c2_179, %c0_180] : memref<18x18x128xf32, #tpu.memory_space<vmem>>, vector<16x16x128xf32>
    %182 = vector.shape_cast %181 : vector<16x16x128xf32> to vector<256x128xf32>
    %183 = arith.truncf %182 : vector<256x128xf32> to vector<256x128xbf16>
    %c0_181 = arith.constant 0 : index
    %c640_182 = arith.constant 640 : index
    %184 = vector.load %arg10[%c0_181, %c640_182] : memref<256x1152xbf16, #tpu.memory_space<vmem>>, vector<256x128xbf16>
    tpu.vector_store %arg10[%c0_181, %c640_182], %183 {strides = array<i32>} : memref<256x1152xbf16, #tpu.memory_space<vmem>>, vector<256x128xbf16>,
    %c2_183 = arith.constant 2 : index
    %c0_184 = arith.constant 0 : index
    %c0_185 = arith.constant 0 : index
    %185 = vector.load %arg9[%c2_183, %c0_184, %c0_185] : memref<18x18x128xf32, #tpu.memory_space<vmem>>, vector<16x16x128xf32>
    %186 = vector.shape_cast %185 : vector<16x16x128xf32> to vector<256x128xf32>
    %187 = arith.truncf %186 : vector<256x128xf32> to vector<256x128xbf16>
    %c0_186 = arith.constant 0 : index
    %c768_187 = arith.constant 768 : index
    %188 = vector.load %arg10[%c0_186, %c768_187] : memref<256x1152xbf16, #tpu.memory_space<vmem>>, vector<256x128xbf16>
    tpu.vector_store %arg10[%c0_186, %c768_187], %187 {strides = array<i32>} : memref<256x1152xbf16, #tpu.memory_space<vmem>>, vector<256x128xbf16>,
    %c2_188 = arith.constant 2 : index
    %c1_189 = arith.constant 1 : index
    %c0_190 = arith.constant 0 : index
    %189 = vector.load %arg9[%c2_188, %c1_189, %c0_190] : memref<18x18x128xf32, #tpu.memory_space<vmem>>, vector<16x16x128xf32>
    %190 = vector.shape_cast %189 : vector<16x16x128xf32> to vector<256x128xf32>
    %191 = arith.truncf %190 : vector<256x128xf32> to vector<256x128xbf16>
    %c0_191 = arith.constant 0 : index
    %c896_192 = arith.constant 896 : index
    %192 = vector.load %arg10[%c0_191, %c896_192] : memref<256x1152xbf16, #tpu.memory_space<vmem>>, vector<256x128xbf16>
    tpu.vector_store %arg10[%c0_191, %c896_192], %191 {strides = array<i32>} : memref<256x1152xbf16, #tpu.memory_space<vmem>>, vector<256x128xbf16>,
    %c2_193 = arith.constant 2 : index
    %c2_194 = arith.constant 2 : index
    %c0_195 = arith.constant 0 : index
    %193 = vector.load %arg9[%c2_193, %c2_194, %c0_195] : memref<18x18x128xf32, #tpu.memory_space<vmem>>, vector<16x16x128xf32>
    %194 = vector.shape_cast %193 : vector<16x16x128xf32> to vector<256x128xf32>
    %195 = arith.truncf %194 : vector<256x128xf32> to vector<256x128xbf16>
    %c0_196 = arith.constant 0 : index
    %c1024_197 = arith.constant 1024 : index
    %196 = vector.load %arg10[%c0_196, %c1024_197] : memref<256x1152xbf16, #tpu.memory_space<vmem>>, vector<256x128xbf16>
    tpu.vector_store %arg10[%c0_196, %c1024_197], %195 {strides = array<i32>} : memref<256x1152xbf16, #tpu.memory_space<vmem>>, vector<256x128xbf16>,
    %c0_198 = arith.constant 0 : index
    %c0_199 = arith.constant 0 : index
    %197 = vector.load %arg10[%c0_198, %c0_199] : memref<256x1152xbf16, #tpu.memory_space<vmem>>, vector<256x1152xbf16>
    %c2_200 = arith.constant 2 : index
    %c0_201 = arith.constant 0 : index
    %c0_202 = arith.constant 0 : index
    %198 = vector.load %arg2[%c2_200, %c0_201, %c0_202] : memref<3x1152x128xbf16, #tpu.memory_space<vmem>>, vector<1x1152x128xbf16>
    %199 = vector.shape_cast %198 : vector<1x1152x128xbf16> to vector<1152x128xbf16>
    %cst_203 = arith.constant dense<0.000000e+00> : vector<256x128xf32>
    %200 = tpu.matmul %197, %199, %cst_203 {dimension_numbers = #tpu.dot_dimension_numbers<[1], [0], [0], [1], [0, 0, 1, 1], [], []>} : vector<256x1152xbf16>, vector<1152x128xbf16>, vector<256x128xf32> -> vector<256x128xf32>
    %c2_204 = arith.constant 2 : index
    %c0_205 = arith.constant 0 : index
    %c0_206 = arith.constant 0 : index
    %201 = vector.load %arg3[%c2_204, %c0_205, %c0_206] : memref<3x1x128xf32, #tpu.memory_space<vmem>>, vector<1x1x128xf32>
    %202 = vector.shape_cast %201 : vector<1x1x128xf32> to vector<1x128xf32>
    %203 = vector.broadcast %202 : vector<1x128xf32> to vector<256x128xf32>
    %204 = arith.mulf %200, %203 : vector<256x128xf32>
    %c2_207 = arith.constant 2 : index
    %c0_208 = arith.constant 0 : index
    %c0_209 = arith.constant 0 : index
    %205 = vector.load %arg4[%c2_207, %c0_208, %c0_209] : memref<3x1x128xf32, #tpu.memory_space<vmem>>, vector<1x1x128xf32>
    %206 = vector.shape_cast %205 : vector<1x1x128xf32> to vector<1x128xf32>
    %207 = vector.broadcast %206 : vector<1x128xf32> to vector<256x128xf32>
    %208 = arith.addf %204, %207 : vector<256x128xf32>
    %cst_210 = arith.constant dense<0.000000e+00> : vector<128xf32>
    %209 = vector.multi_reduction <add>, %208, %cst_210 [0] : vector<256x128xf32> to vector<128xf32>
    %210 = vector.shape_cast %209 : vector<128xf32> to vector<1x128xf32>
    %cst_211 = arith.constant 2.560000e+02 : f32
    %211 = vector.broadcast %cst_211 : f32 to vector<1x128xf32>
    %212 = arith.divf %210, %211 : vector<1x128xf32>
    %c2_212 = arith.constant 2 : index
    %c0_213 = arith.constant 0 : index
    %c0_214 = arith.constant 0 : index
    %213 = vector.load %arg5[%c2_212, %c0_213, %c0_214] : memref<3x128x8xf32, #tpu.memory_space<vmem>>, vector<1x128x8xf32>
    %214 = vector.shape_cast %213 : vector<1x128x8xf32> to vector<128x8xf32>
    %cst_215 = arith.constant dense<0.000000e+00> : vector<1x8xf32>
    %215 = tpu.matmul %212, %214, %cst_215 {dimension_numbers = #tpu.dot_dimension_numbers<[1], [0], [0], [1], [0, 0, 1, 1], [], []>} : vector<1x128xf32>, vector<128x8xf32>, vector<1x8xf32> -> vector<1x8xf32>
    %cst_216 = arith.constant 0.000000e+00 : f32
    %216 = vector.broadcast %cst_216 : f32 to vector<1x8xf32>
    %217 = arith.maximumf %215, %216 : vector<1x8xf32>
    %c2_217 = arith.constant 2 : index
    %c0_218 = arith.constant 0 : index
    %c0_219 = arith.constant 0 : index
    %218 = vector.load %arg6[%c2_217, %c0_218, %c0_219] : memref<3x8x128xf32, #tpu.memory_space<vmem>>, vector<1x8x128xf32>
    %219 = vector.shape_cast %218 : vector<1x8x128xf32> to vector<8x128xf32>
    %cst_220 = arith.constant dense<0.000000e+00> : vector<1x128xf32>
    %220 = tpu.matmul %217, %219, %cst_220 {dimension_numbers = #tpu.dot_dimension_numbers<[1], [0], [0], [1], [0, 0, 1, 1], [], []>} : vector<1x8xf32>, vector<8x128xf32>, vector<1x128xf32> -> vector<1x128xf32>
    %221 = arith.negf %220 : vector<1x128xf32>
    %222 = math.exp %221 : vector<1x128xf32>
    %cst_221 = arith.constant 1.000000e+00 : f32
    %223 = vector.broadcast %cst_221 : f32 to vector<1x128xf32>
    %224 = arith.addf %223, %222 : vector<1x128xf32>
    %225 = arith.divf %223, %224 : vector<1x128xf32>
    %c1_222 = arith.constant 1 : index
    %c1_223 = arith.constant 1 : index
    %c0_224 = arith.constant 0 : index
    %226 = vector.load %arg9[%c1_222, %c1_223, %c0_224] : memref<18x18x128xf32, #tpu.memory_space<vmem>>, vector<16x16x128xf32>
    %227 = vector.shape_cast %226 : vector<16x16x128xf32> to vector<256x128xf32>
    %228 = vector.broadcast %225 : vector<1x128xf32> to vector<256x128xf32>
    %229 = arith.mulf %208, %228 : vector<256x128xf32>
    %230 = arith.addf %229, %227 : vector<256x128xf32>
    %c2_225 = arith.constant 2 : index
    %231 = memref.load %arg7[%c2_225] : memref<3xf32, #tpu.memory_space<smem>>
    %cst_226 = arith.constant 0.000000e+00 : f32
    %232 = vector.broadcast %cst_226 : f32 to vector<256x128xf32>
    %233 = arith.cmpf oge, %230, %232 : vector<256x128xf32>
    %234 = vector.broadcast %231 : f32 to vector<256x128xf32>
    %235 = arith.mulf %234, %230 : vector<256x128xf32>
    %236 = arith.select %233, %230, %235 : vector<256x128xi1>, vector<256x128xf32>
    %237 = vector.shape_cast %236 : vector<256x128xf32> to vector<16x16x128xf32>
    %c0_227 = arith.constant 0 : index
    %c0_228 = arith.constant 0 : index
    %c0_229 = arith.constant 0 : index
    %c0_230 = arith.constant 0 : index
    %238 = vector.load %arg8[%c0_227, %c0_228, %c0_229, %c0_230] : memref<1x16x16x128xf32, #tpu.memory_space<vmem>>, vector<1x16x16x128xf32>
    %239 = vector.shape_cast %238 : vector<1x16x16x128xf32> to vector<16x16x128xf32>
    %240 = vector.shape_cast %237 : vector<16x16x128xf32> to vector<1x16x16x128xf32>
    tpu.vector_store %arg8[%c0_227, %c0_228, %c0_229, %c0_230], %240 {strides = array<i32>} : memref<1x16x16x128xf32, #tpu.memory_space<vmem>>, vector<1x16x16x128xf32>,
    return
  }
  func.func @transform_0(%arg0: i32) -> (i32, i32, i32, i32) {
    %c0_i32 = arith.constant 0 : i32
    %c0_i32_0 = arith.constant 0 : i32
    %c0_i32_1 = arith.constant 0 : i32
    %c0_i32_2 = arith.constant 0 : i32
    return %arg0, %c0_i32, %c0_i32_0, %c0_i32_1 : i32, i32, i32, i32
  }
  func.func @transform_1(%arg0: i32) -> (i32, i32, i32) {
    %c0_i32 = arith.constant 0 : i32
    %c0_i32_0 = arith.constant 0 : i32
    %c0_i32_1 = arith.constant 0 : i32
    %c0_i32_2 = arith.constant 0 : i32
    return %c0_i32, %c0_i32_0, %c0_i32_1 : i32, i32, i32
  }
  func.func @transform_2(%arg0: i32) -> (i32, i32, i32) {
    %c0_i32 = arith.constant 0 : i32
    %c0_i32_0 = arith.constant 0 : i32
    %c0_i32_1 = arith.constant 0 : i32
    %c0_i32_2 = arith.constant 0 : i32
    return %c0_i32, %c0_i32_0, %c0_i32_1 : i32, i32, i32
  }
  func.func @transform_3(%arg0: i32) -> (i32, i32, i32) {
    %c0_i32 = arith.constant 0 : i32
    %c0_i32_0 = arith.constant 0 : i32
    %c0_i32_1 = arith.constant 0 : i32
    %c0_i32_2 = arith.constant 0 : i32
    return %c0_i32, %c0_i32_0, %c0_i32_1 : i32, i32, i32
  }
  func.func @transform_4(%arg0: i32) -> (i32, i32, i32) {
    %c0_i32 = arith.constant 0 : i32
    %c0_i32_0 = arith.constant 0 : i32
    %c0_i32_1 = arith.constant 0 : i32
    %c0_i32_2 = arith.constant 0 : i32
    return %c0_i32, %c0_i32_0, %c0_i32_1 : i32, i32, i32
  }
  func.func @transform_5(%arg0: i32) -> (i32, i32, i32) {
    %c0_i32 = arith.constant 0 : i32
    %c0_i32_0 = arith.constant 0 : i32
    %c0_i32_1 = arith.constant 0 : i32
    %c0_i32_2 = arith.constant 0 : i32
    return %c0_i32, %c0_i32_0, %c0_i32_1 : i32, i32, i32
  }
  func.func @transform_6(%arg0: i32) -> i32 {
    %c0_i32 = arith.constant 0 : i32
    %c0_i32_0 = arith.constant 0 : i32
    return %c0_i32 : i32
  }
  func.func @transform_7(%arg0: i32) -> (i32, i32, i32, i32) {
    %c0_i32 = arith.constant 0 : i32
    %c0_i32_0 = arith.constant 0 : i32
    %c0_i32_1 = arith.constant 0 : i32
    %c0_i32_2 = arith.constant 0 : i32
    return %arg0, %c0_i32, %c0_i32_0, %c0_i32_1 : i32, i32, i32, i32
  }
}

</mosaic_0001>

<llo_original>
// kernel: mcwnet_forward.1
$region0: #{mcwnet_forward.1}
  #allocation0 [shape = 'u32[]', space=smem, size = 0x4, offset = 0x4, fixed_abs, tag = 'smem constant byte address 0x4 - core index']
  #allocation1 [shape = 'u32[144,128]{1,0:T(1,128)}', space=vmem, size = 0x12000, scoped, tag = 'internal scratch']
  #allocation2 [shape = 'f32[18,18,128]{2,1,0:T(8,128)}', space=vmem, size = 0x36000, scoped, tag = 'scratch operand']
  #allocation3 [shape = 'bf16[256,1152]{1,0:T(16,128)(2,1)}', space=vmem, size = 0x90000, scoped, tag = 'scratch operand']
  %s0 = inlined_call_operand.vmem [shape: f32[2,16,16,128], index: 0, kind: input, shape index: {}]
  %s1 = inlined_call_operand.vmem [shape: bf16[3,1152,128], index: 1, kind: input, shape index: {}]
  %s2 = inlined_call_operand.vmem [shape: f32[3,1,128], index: 2, kind: input, shape index: {}]
  %s3 = inlined_call_operand.vmem [shape: f32[3,1,128], index: 3, kind: input, shape index: {}]
  %s4 = inlined_call_operand.vmem [shape: f32[3,128,8], index: 4, kind: input, shape index: {}]
  %s5 = inlined_call_operand.vmem [shape: f32[3,8,128], index: 5, kind: input, shape index: {}]
  %s6 = inlined_call_operand.vmem [shape: f32[3], index: 6, kind: input, shape index: {}]
  %s7 = inlined_call_operand.hbm [shape: f32[2,16,16,128], index: 7, kind: output, shape index: {}]
  %s8 = sld [smem:[#allocation0]]
  $region65: #{mcwnet_forward.1} parent=0
    _
  %s10 = ssub.s32 1, %s8
  %s11 = scalar_select 0, %s10, %s8
  $region1: #{mcwnet_forward.1} parent=0
    #allocation4 [shape = 'u8[512]{0}', space=smem, size = 0x200, scoped, tag = 'input window, operand 6, single buffered']
    #allocation5 [shape = 's32[2]{0}', space=sflag, size = 0x8, scoped, tag = 'scoped memory for mcwnet_forward.1']
    #allocation6 [shape = 's32[2]{0}', space=sflag, size = 0x8, scoped, tag = 'scoped memory for mcwnet_forward.1']
    #allocation7 [shape = 'u8[262144]{0}', space=vmem, size = 0x40000, scoped, tag = 'output window, operand 0']
    %12 = vsyncpa [#allocation6], 0
    %13 = vsyncpa [#allocation5], 0
    %s14 = scalar_lea.sflag [#allocation5], 1
    %15 = vsyncpa %s14, 0
    loop: start=0, step=1, limit=4
    $region2: #{mcwnet_forward.1} parent=1 // loop_pre_header
      _
    $region3: #{mcwnet_forward.1} parent=1 // loop_header
      %s17 = sphi 0, %s21
      %p18 = scmp.ge.s32.totalorder %s17, 4
      %s27 = sphi 0, %s29
      %s30 = sphi 0, %s27
      %s31 = sphi 0, %s30
      %s47 = sphi 0, %s31
      %s51 = sphi 0, %s51
      %s53 = sphi 0, %s51
      %s54 = sphi 0, %s53
      %s68 = sphi 0, %s54
      %s72 = sphi 0, %s72
      %s74 = sphi 0, %s72
      %s75 = sphi 0, %s74
      %s89 = sphi 0, %s75
      %s93 = sphi 0, %s93
      %s95 = sphi 0, %s93
      %s96 = sphi 0, %s95
      %s110 = sphi 0, %s96
      %s114 = sphi 0, %s114
      %s116 = sphi 0, %s114
      %s117 = sphi 0, %s116
      %s131 = sphi 0, %s117
      %s135 = sphi 0, %s135
      %s137 = sphi 0, %s135
      %s138 = sphi 0, %s137
      %s152 = sphi 0, %s138
      %s156 = sphi 0, %s156
      %s158 = sphi 0, %s156
      %s159 = sphi 0, %s158
      %s173 = sphi 0, %s159
      %s179 = sphi 0, %s181
      %s182 = sphi 0, %s179
      %s183 = sphi 0, %s182
      %s199 = sphi 0, %s183
    $region4: #{mcwnet_forward.1} parent=1 // loop_header_branch
      %20 = sbr.rel (%p18) target = $region8
    $region5: #{mcwnet_forward.1} parent=1 // loop_body
      %s22 = ssub.s32 %s17, 1
      %s23 = ssub.s32 %s17, 2
      %s24 = sadd.s32 %s17, 1
      %s25 = ssub.s32 %s17, %s24
      %p26 = scmp.eq.s32.totalorder %s25, 0
      %s28 = sadd.s32 %s27, 1
      %s29 = scalar_select %p26, %s27, %s28
      %p32 = pneg %p26
      %p33 = scmp.eq.s32.totalorder %s17, 1
      %p34 = por %p32, %p33
      %p35 = scmp.ne.s32.totalorder %s27, %s30
      %p36 = scmp.eq.s32.totalorder %s17, 0
      %p37 = por %p35, %p36
      %p38 = scmp.ne.s32.totalorder %s27, %s30
      %p39 = scmp.eq.s32.totalorder %s22, 1
      %p40 = por %p38, %p39
      %p41 = scmp.ne.s32.totalorder %s30, %s31
      %p42 = scmp.eq.s32.totalorder %s22, 0
      %p43 = por %p41, %p42
      %p44 = scmp.ne.s32.totalorder %s30, %s31
      %p45 = scmp.eq.s32.totalorder %s23, 1
      %p46 = por %p44, %p45
      %p48 = scmp.ne.s32.totalorder %s31, %s47
      %p49 = scmp.eq.s32.totalorder %s23, 0
      %p50 = por %p48, %p49
      %s52 = sadd.s32 %s51, 1
      %p55 = scmp.eq.s32.totalorder %s17, 1
      %p56 = scmp.ne.s32.totalorder %s51, %s53
      %p57 = scmp.eq.s32.totalorder %s17, 0
      %p58 = por %p56, %p57
      %p59 = scmp.ne.s32.totalorder %s51, %s53
      %p60 = scmp.eq.s32.totalorder %s22, 1
      %p61 = por %p59, %p60
      %p62 = scmp.ne.s32.totalorder %s53, %s54
      %p63 = scmp.eq.s32.totalorder %s22, 0
      %p64 = por %p62, %p63
      %p65 = scmp.ne.s32.totalorder %s53, %s54
      %p66 = scmp.eq.s32.totalorder %s23, 1
      %p67 = por %p65, %p66
      %p69 = scmp.ne.s32.totalorder %s54, %s68
      %p70 = scmp.eq.s32.totalorder %s23, 0
      %p71 = por %p69, %p70
      %s73 = sadd.s32 %s72, 1
      %p76 = scmp.eq.s32.totalorder %s17, 1
      %p77 = scmp.ne.s32.totalorder %s72, %s74
      %p78 = scmp.eq.s32.totalorder %s17, 0
      %p79 = por %p77, %p78
      %p80 = scmp.ne.s32.totalorder %s72, %s74
      %p81 = scmp.eq.s32.totalorder %s22, 1
      %p82 = por %p80, %p81
      %p83 = scmp.ne.s32.totalorder %s74, %s75
      %p84 = scmp.eq.s32.totalorder %s22, 0
      %p85 = por %p83, %p84
      %p86 = scmp.ne.s32.totalorder %s74, %s75
      %p87 = scmp.eq.s32.totalorder %s23, 1
      %p88 = por %p86, %p87
      %p90 = scmp.ne.s32.totalorder %s75, %s89
      %p91 = scmp.eq.s32.totalorder %s23, 0
      %p92 = por %p90, %p91
      %s94 = sadd.s32 %s93, 1
      %p97 = scmp.eq.s32.totalorder %s17, 1
      %p98 = scmp.ne.s32.totalorder %s93, %s95
      %p99 = scmp.eq.s32.totalorder %s17, 0
      %p100 = por %p98, %p99
      %p101 = scmp.ne.s32.totalorder %s93, %s95
      %p102 = scmp.eq.s32.totalorder %s22, 1
      %p103 = por %p101, %p102
      %p104 = scmp.ne.s32.totalorder %s95, %s96
      %p105 = scmp.eq.s32.totalorder %s22, 0
      %p106 = por %p104, %p105
      %p107 = scmp.ne.s32.totalorder %s95, %s96
      %p108 = scmp.eq.s32.totalorder %s23, 1
      %p109 = por %p107, %p108
      %p111 = scmp.ne.s32.totalorder %s96, %s110
      %p112 = scmp.eq.s32.totalorder %s23, 0
      %p113 = por %p111, %p112
      %s115 = sadd.s32 %s114, 1
      %p118 = scmp.eq.s32.totalorder %s17, 1
      %p119 = scmp.ne.s32.totalorder %s114, %s116
      %p120 = scmp.eq.s32.totalorder %s17, 0
      %p121 = por %p119, %p120
      %p122 = scmp.ne.s32.totalorder %s114, %s116
      %p123 = scmp.eq.s32.totalorder %s22, 1
      %p124 = por %p122, %p123
      %p125 = scmp.ne.s32.totalorder %s116, %s117
      %p126 = scmp.eq.s32.totalorder %s22, 0
      %p127 = por %p125, %p126
      %p128 = scmp.ne.s32.totalorder %s116, %s117
      %p129 = scmp.eq.s32.totalorder %s23, 1
      %p130 = por %p128, %p129
      %p132 = scmp.ne.s32.totalorder %s117, %s131
      %p133 = scmp.eq.s32.totalorder %s23, 0
      %p134 = por %p132, %p133
      %s136 = sadd.s32 %s135, 1
      %p139 = scmp.eq.s32.totalorder %s17, 1
      %p140 = scmp.ne.s32.totalorder %s135, %s137
      %p141 = scmp.eq.s32.totalorder %s17, 0
      %p142 = por %p140, %p141
      %p143 = scmp.ne.s32.totalorder %s135, %s137
      %p144 = scmp.eq.s32.totalorder %s22, 1
      %p145 = por %p143, %p144
      %p146 = scmp.ne.s32.totalorder %s137, %s138
      %p147 = scmp.eq.s32.totalorder %s22, 0
      %p148 = por %p146, %p147
      %p149 = scmp.ne.s32.totalorder %s137, %s138
      %p150 = scmp.eq.s32.totalorder %s23, 1
      %p151 = por %p149, %p150
      %p153 = scmp.ne.s32.totalorder %s138, %s152
      %p154 = scmp.eq.s32.totalorder %s23, 0
      %p155 = por %p153, %p154
      %s157 = sadd.s32 %s156, 1
      %p160 = scmp.eq.s32.totalorder %s17, 1
      %p161 = scmp.ne.s32.totalorder %s156, %s158
      %p162 = scmp.eq.s32.totalorder %s17, 0
      %p163 = por %p161, %p162
      %p164 = scmp.ne.s32.totalorder %s156, %s158
      %p165 = scmp.eq.s32.totalorder %s22, 1
      %p166 = por %p164, %p165
      %p167 = scmp.ne.s32.totalorder %s158, %s159
      %p168 = scmp.eq.s32.totalorder %s22, 0
      %p169 = por %p167, %p168
      %p170 = scmp.ne.s32.totalorder %s158, %s159
      %p171 = scmp.eq.s32.totalorder %s23, 1
      %p172 = por %p170, %p171
      %p174 = scmp.ne.s32.totalorder %s159, %s173
      %p175 = scmp.eq.s32.totalorder %s23, 0
      %p176 = por %p174, %p175
      %s177 = ssub.s32 %s17, %s24
      %p178 = scmp.eq.s32.totalorder %s177, 0
      %s180 = sadd.s32 %s179, 1
      %s181 = scalar_select %p178, %s179, %s180
      %p184 = pneg %p178
      %p185 = scmp.eq.s32.totalorder %s17, 1
      %p186 = por %p184, %p185
      %p187 = scmp.ne.s32.totalorder %s179, %s182
      %p188 = scmp.eq.s32.totalorder %s17, 0
      %p189 = por %p187, %p188
      %p190 = scmp.ne.s32.totalorder %s179, %s182
      %p191 = scmp.eq.s32.totalorder %s22, 1
      %p192 = por %p190, %p191
      %p193 = scmp.ne.s32.totalorder %s182, %s183
      %p194 = scmp.eq.s32.totalorder %s22, 0
      %p195 = por %p193, %p194
      %p196 = scmp.ne.s32.totalorder %s182, %s183
      %p197 = scmp.eq.s32.totalorder %s23, 1
      %p198 = por %p196, %p197
      %p200 = scmp.ne.s32.totalorder %s183, %s199
      %p201 = scmp.eq.s32.totalorder %s23, 0
      %p202 = por %p200, %p201
      %p203 = scmp.le.s32.totalorder 1, %s17
      %p204 = scmp.lt.s32.totalorder %s17, 3
      %p205 = pnand %p203, %p204
      %p206 = pneg %p205
      // Predicated region
      $region9: #{mcwnet_forward.1} parent=5 // pred_check
        _
      $region10: #{mcwnet_forward.1} parent=5 // pred_check_branch
        %208 = sbr.rel (%p205) target = $region12
      $region11: #{mcwnet_forward.1} parent=5 // pred_region
        %s209 = ssub.s32 %s17, 1
        // Predicated region
        $region13: #{mcwnet_forward.1} parent=11 // pred_check
          %p210 = pneg %p64
        $region14: #{mcwnet_forward.1} parent=11 // pred_check_branch
          %212 = sbr.rel (%p210) target = $region16
        $region15: #{mcwnet_forward.1} parent=11 // pred_region
          _
        $region16: #{mcwnet_forward.1} parent=11 // pred_fallthru
          _
        // Predicated region
        $region17: #{mcwnet_forward.1} parent=11 // pred_check
          %p213 = pneg %p85
        $region18: #{mcwnet_forward.1} parent=11 // pred_check_branch
          %215 = sbr.rel (%p213) target = $region20
        $region19: #{mcwnet_forward.1} parent=11 // pred_region
          _
        $region20: #{mcwnet_forward.1} parent=11 // pred_fallthru
          _
        // Predicated region
        $region21: #{mcwnet_forward.1} parent=11 // pred_check
          %p216 = pneg %p106
        $region22: #{mcwnet_forward.1} parent=11 // pred_check_branch
          %218 = sbr.rel (%p216) target = $region24
        $region23: #{mcwnet_forward.1} parent=11 // pred_region
          _
        $region24: #{mcwnet_forward.1} parent=11 // pred_fallthru
          _
        // Predicated region
        $region25: #{mcwnet_forward.1} parent=11 // pred_check
          %p219 = pneg %p127
        $region26: #{mcwnet_forward.1} parent=11 // pred_check_branch
          %221 = sbr.rel (%p219) target = $region28
        $region27: #{mcwnet_forward.1} parent=11 // pred_region
          _
        $region28: #{mcwnet_forward.1} parent=11 // pred_fallthru
          _
        // Predicated region
        $region29: #{mcwnet_forward.1} parent=11 // pred_check
          %p222 = pneg %p148
        $region30: #{mcwnet_forward.1} parent=11 // pred_check_branch
          %224 = sbr.rel (%p222) target = $region32
        $region31: #{mcwnet_forward.1} parent=11 // pred_region
          _
        $region32: #{mcwnet_forward.1} parent=11 // pred_fallthru
          _
        // Predicated region
        $region33: #{mcwnet_forward.1} parent=11 // pred_check
          %p225 = pneg %p169
        $region34: #{mcwnet_forward.1} parent=11 // pred_check_branch
          %227 = sbr.rel (%p225) target = $region36
        $region35: #{mcwnet_forward.1} parent=11 // pred_region
          %s229 = ssub.s32 16, 16
          %230 = vsyncadd [#allocation6], %s229
          %s232 = sshll.u32 %s6, 4
          %s233 = int_to_ptr.vmem [resolvable:$true] %s232
          %235 = dma.vmem_to_smem %s233, 16, [#allocation4], [#allocation6]
        $region36: #{mcwnet_forward.1} parent=11 // pred_fallthru
          _
      $region12: #{mcwnet_forward.1} parent=5 // pred_fallthru
        _
      %p236 = scmp.lt.s32.totalorder %s17, 2
      // Predicated region
      $region37: #{mcwnet_forward.1} parent=5 // pred_check
        %p237 = pneg %p236
      $region38: #{mcwnet_forward.1} parent=5 // pred_check_branch
        %239 = sbr.rel (%p237) target = $region40
      $region39: #{mcwnet_forward.1} parent=5 // pred_region
        // Predicated region
        $region41: #{mcwnet_forward.1} parent=39 // pred_check
          %p240 = pneg %p37
        $region42: #{mcwnet_forward.1} parent=39 // pred_check_branch
          %242 = sbr.rel (%p240) target = $region44
        $region43: #{mcwnet_forward.1} parent=39 // pred_region
          %p243 = scmp.lt.s32.totalorder %s17, 1
          %s244 = scalar_select %p243, %s17, 1
          %s245 = smul.addr %s244, 32
          %s246 = smul.addr %s245, 8
          %s247 = scalar_lea.vmem %s0, %s246
        $region44: #{mcwnet_forward.1} parent=39 // pred_fallthru
          _
      $region40: #{mcwnet_forward.1} parent=5 // pred_fallthru
        _
      %p248 = scmp.le.s32.totalorder 1, %s17
      %p249 = scmp.lt.s32.totalorder %s17, 3
      %p250 = pnand %p248, %p249
      %p251 = pneg %p250
      // Predicated region
      $region45: #{mcwnet_forward.1} parent=5 // pred_check
        _
      $region46: #{mcwnet_forward.1} parent=5 // pred_check_branch
        %253 = sbr.rel (%p250) target = $region48
      $region47: #{mcwnet_forward.1} parent=5 // pred_region
        %s254 = ssub.s32 %s17, 1
        // Predicated region
        $region49: #{mcwnet_forward.1} parent=47 // pred_check
          %p255 = pneg %p169
        $region50: #{mcwnet_forward.1} parent=47 // pred_check_branch
          %257 = sbr.rel (%p255) target = $region52
        $region51: #{mcwnet_forward.1} parent=47 // pred_region
          %258 = dma.done [#allocation6], 16
        $region52: #{mcwnet_forward.1} parent=47 // pred_fallthru
          _
        %259 = sfence
        %p260 = scmp.lt.s32.totalorder %s22, 1
        %s261 = scalar_select %p260, %s22, 1
        %s262 = smul.addr %s261, 32
        %s263 = smul.addr %s262, 8
        %s264 = scalar_lea.vmem %s0, %s263
        %p265 = pneg %p43
        %p266 = pneg %p40
        %p267 = pneg %p64
        %p268 = pneg %p61
        %p269 = pneg %p85
        %p270 = pneg %p82
        %p271 = pneg %p106
        %p272 = pneg %p103
        %p273 = pneg %p127
        %p274 = pneg %p124
        %p275 = pneg %p148
        %p276 = pneg %p145
        %p277 = pneg %p169
        %p278 = pneg %p166
        %p279 = pneg %p195
        %p280 = pneg %p192
        %s281 = sand.u32 %s182, 1
        %s282 = scalar_lea.sflag [#allocation5], %s281
        %s283 = sand.u32 %s182, 1
        %s284 = smul.addr %s283, 256
        %s285 = scalar_lea.vmem [#allocation7], %s284
        %p286 = scmp.lt.s32.totalorder %s22, 1
        %s287 = scalar_select %p286, %s22, 1
        %s288 = smul.addr %s287, 32
        %s289 = smul.addr %s288, 8
        %s290 = scalar_lea.vmem %s0, %s289
        %292 = vst [vmem:[#allocation2] sm:$0xff] 0.0
        %293 = vst [vmem:[#allocation2 + $0x8] sm:$0xff] 0.0
        %294 = vst [vmem:[#allocation2 + $0x10] sm:$0x3] 0.0
        %295 = vst [vmem:[#allocation2 + $0x18] sm:$0xff] 0.0
        %296 = vst [vmem:[#allocation2 + $0x20] sm:$0xff] 0.0
        %297 = vst [vmem:[#allocation2 + $0x28] sm:$0x3] 0.0
        %298 = vst [vmem:[#allocation2 + $0x30] sm:$0xff] 0.0
        %299 = vst [vmem:[#allocation2 + $0x38] sm:$0xff] 0.0
        %300 = vst [vmem:[#allocation2 + $0x40] sm:$0x3] 0.0
        %301 = vst [vmem:[#allocation2 + $0x48] sm:$0xff] 0.0
        %302 = vst [vmem:[#allocation2 + $0x50] sm:$0xff] 0.0
        %303 = vst [vmem:[#allocation2 + $0x58] sm:$0x3] 0.0
        %304 = vst [vmem:[#allocation2 + $0x60] sm:$0xff] 0.0
        %305 = vst [vmem:[#allocation2 + $0x68] sm:$0xff] 0.0
        %306 = vst [vmem:[#allocation2 + $0x70] sm:$0x3] 0.0
        %307 = vst [vmem:[#allocation2 + $0x78] sm:$0xff] 0.0
        %308 = vst [vmem:[#allocation2 + $0x80] sm:$0xff] 0.0
        %309 = vst [vmem:[#allocation2 + $0x88] sm:$0x3] 0.0
        %310 = vst [vmem:[#allocation2 + $0x90] sm:$0xff] 0.0
        %311 = vst [vmem:[#allocation2 + $0x98] sm:$0xff] 0.0
        %312 = vst [vmem:[#allocation2 + $0xa0] sm:$0x3] 0.0
        %313 = vst [vmem:[#allocation2 + $0xa8] sm:$0xff] 0.0
        %314 = vst [vmem:[#allocation2 + $0xb0] sm:$0xff] 0.0
        %315 = vst [vmem:[#allocation2 + $0xb8] sm:$0x3] 0.0
        %316 = vst [vmem:[#allocation2 + $0xc0] sm:$0xff] 0.0
        %317 = vst [vmem:[#allocation2 + $0xc8] sm:$0xff] 0.0
        %318 = vst [vmem:[#allocation2 + $0xd0] sm:$0x3] 0.0
        %319 = vst [vmem:[#allocation2 + $0xd8] sm:$0xff] 0.0
        %320 = vst [vmem:[#allocation2 + $0xe0] sm:$0xff] 0.0
        %321 = vst [vmem:[#allocation2 + $0xe8] sm:$0x3] 0.0
        %322 = vst [vmem:[#allocation2 + $0xf0] sm:$0xff] 0.0
        %323 = vst [vmem:[#allocation2 + $0xf8] sm:$0xff] 0.0
        %324 = vst [vmem:[#allocation2 + $0x100] sm:$0x3] 0.0
        %325 = vst [vmem:[#allocation2 + $0x108] sm:$0xff] 0.0
        %326 = vst [vmem:[#allocation2 + $0x110] sm:$0xff] 0.0
        %327 = vst [vmem:[#allocation2 + $0x118] sm:$0x3] 0.0
        %328 = vst [vmem:[#allocation2 + $0x120] sm:$0xff] 0.0
        %329 = vst [vmem:[#allocation2 + $0x128] sm:$0xff] 0.0
        %330 = vst [vmem:[#allocation2 + $0x130] sm:$0x3] 0.0
        %331 = vst [vmem:[#allocation2 + $0x138] sm:$0xff] 0.0
        %332 = vst [vmem:[#allocation2 + $0x140] sm:$0xff] 0.0
        %333 = vst [vmem:[#allocation2 + $0x148] sm:$0x3] 0.0
        %334 = vst [vmem:[#allocation2 + $0x150] sm:$0xff] 0.0
        %335 = vst [vmem:[#allocation2 + $0x158] sm:$0xff] 0.0
        %336 = vst [vmem:[#allocation2 + $0x160] sm:$0x3] 0.0
        %337 = vst [vmem:[#allocation2 + $0x168] sm:$0xff] 0.0
        %338 = vst [vmem:[#allocation2 + $0x170] sm:$0xff] 0.0
        %339 = vst [vmem:[#allocation2 + $0x178] sm:$0x3] 0.0
        %340 = vst [vmem:[#allocation2 + $0x180] sm:$0xff] 0.0
        %341 = vst [vmem:[#allocation2 + $0x188] sm:$0xff] 0.0
        %342 = vst [vmem:[#allocation2 + $0x190] sm:$0x3] 0.0
        %343 = vst [vmem:[#allocation2 + $0x198] sm:$0xff] 0.0
        %344 = vst [vmem:[#allocation2 + $0x1a0] sm:$0xff] 0.0
        %345 = vst [vmem:[#allocation2 + $0x1a8] sm:$0x3] 0.0
        %v346 = vld [vmem:[%s290] sm:$0xff]
        %v347 = vld [vmem:[%s290 + $0x8] sm:$0xff]
        %v348 = vld [vmem:[%s290 + $0x10] sm:$0xff]
        %v349 = vld [vmem:[%s290 + $0x18] sm:$0xff]
        %v350 = vld [vmem:[%s290 + $0x20] sm:$0xff]
        %v351 = vld [vmem:[%s290 + $0x28] sm:$0xff]
        %v352 = vld [vmem:[%s290 + $0x30] sm:$0xff]
        %v353 = vld [vmem:[%s290 + $0x38] sm:$0xff]
        %v354 = vld [vmem:[%s290 + $0x40] sm:$0xff]
        %v355 = vld [vmem:[%s290 + $0x48] sm:$0xff]
        %v356 = vld [vmem:[%s290 + $0x50] sm:$0xff]
        %v357 = vld [vmem:[%s290 + $0x58] sm:$0xff]
        %v358 = vld [vmem:[%s290 + $0x60] sm:$0xff]
        %v359 = vld [vmem:[%s290 + $0x68] sm:$0xff]
        %v360 = vld [vmem:[%s290 + $0x70] sm:$0xff]
        %v361 = vld [vmem:[%s290 + $0x78] sm:$0xff]
        %v362 = vld [vmem:[%s290 + $0x80] sm:$0xff]
        %v363 = vld [vmem:[%s290 + $0x88] sm:$0xff]
        %v364 = vld [vmem:[%s290 + $0x90] sm:$0xff]
        %v365 = vld [vmem:[%s290 + $0x98] sm:$0xff]
        %v366 = vld [vmem:[%s290 + $0xa0] sm:$0xff]
        %v367 = vld [vmem:[%s290 + $0xa8] sm:$0xff]
        %v368 = vld [vmem:[%s290 + $0xb0] sm:$0xff]
        %v369 = vld [vmem:[%s290 + $0xb8] sm:$0xff]
        %v370 = vld [vmem:[%s290 + $0xc0] sm:$0xff]
        %v371 = vld [vmem:[%s290 + $0xc8] sm:$0xff]
        %v372 = vld [vmem:[%s290 + $0xd0] sm:$0xff]
        %v373 = vld [vmem:[%s290 + $0xd8] sm:$0xff]
        %v374 = vld [vmem:[%s290 + $0xe0] sm:$0xff]
        %v375 = vld [vmem:[%s290 + $0xe8] sm:$0xff]
        %v376 = vld [vmem:[%s290 + $0xf0] sm:$0xff]
        %v377 = vld [vmem:[%s290 + $0xf8] sm:$0xff]
        %s378 = scalar_lea.vmem [#allocation2], 24
        %379 = vst [vmem:[%s378 + $0x1] sm:$0xff] %v346
        %380 = vst [vmem:[%s378 + $0x9] sm:$0xff] %v347
        %381 = vst [vmem:[%s378 + $0x19] sm:$0xff] %v348
        %382 = vst [vmem:[%s378 + $0x21] sm:$0xff] %v349
        %383 = vst [vmem:[%s378 + $0x31] sm:$0xff] %v350
        %384 = vst [vmem:[%s378 + $0x39] sm:$0xff] %v351
        %385 = vst [vmem:[%s378 + $0x49] sm:$0xff] %v352
        %386 = vst [vmem:[%s378 + $0x51] sm:$0xff] %v353
        %387 = vst [vmem:[%s378 + $0x61] sm:$0xff] %v354
        %388 = vst [vmem:[%s378 + $0x69] sm:$0xff] %v355
        %389 = vst [vmem:[%s378 + $0x79] sm:$0xff] %v356
        %390 = vst [vmem:[%s378 + $0x81] sm:$0xff] %v357
        %391 = vst [vmem:[%s378 + $0x91] sm:$0xff] %v358
        %392 = vst [vmem:[%s378 + $0x99] sm:$0xff] %v359
        %393 = vst [vmem:[%s378 + $0xa9] sm:$0xff] %v360
        %394 = vst [vmem:[%s378 + $0xb1] sm:$0xff] %v361
        %395 = vst [vmem:[%s378 + $0xc1] sm:$0xff] %v362
        %396 = vst [vmem:[%s378 + $0xc9] sm:$0xff] %v363
        %397 = vst [vmem:[%s378 + $0xd9] sm:$0xff] %v364
        %398 = vst [vmem:[%s378 + $0xe1] sm:$0xff] %v365
        %399 = vst [vmem:[%s378 + $0xf1] sm:$0xff] %v366
        %400 = vst [vmem:[%s378 + $0xf9] sm:$0xff] %v367
        %401 = vst [vmem:[%s378 + $0x109] sm:$0xff] %v368
        %402 = vst [vmem:[%s378 + $0x111] sm:$0xff] %v369
        %403 = vst [vmem:[%s378 + $0x121] sm:$0xff] %v370
        %404 = vst [vmem:[%s378 + $0x129] sm:$0xff] %v371
        %405 = vst [vmem:[%s378 + $0x139] sm:$0xff] %v372
        %406 = vst [vmem:[%s378 + $0x141] sm:$0xff] %v373
        %407 = vst [vmem:[%s378 + $0x151] sm:$0xff] %v374
        %408 = vst [vmem:[%s378 + $0x159] sm:$0xff] %v375
        %409 = vst [vmem:[%s378 + $0x169] sm:$0xff] %v376
        %410 = vst [vmem:[%s378 + $0x171] sm:$0xff] %v377
        %v411 = vld [vmem:[#allocation2] sm:$0xff]
        %v412 = vld [vmem:[#allocation2 + $0x8] sm:$0xff]
        %v413 = vld [vmem:[#allocation2 + $0x18] sm:$0xff]
        %v414 = vld [vmem:[#allocation2 + $0x20] sm:$0xff]
        %v415 = vld [vmem:[#allocation2 + $0x30] sm:$0xff]
        %v416 = vld [vmem:[#allocation2 + $0x38] sm:$0xff]
        %v417 = vld [vmem:[#allocation2 + $0x48] sm:$0xff]
        %v418 = vld [vmem:[#allocation2 + $0x50] sm:$0xff]
        %v419 = vld [vmem:[#allocation2 + $0x60] sm:$0xff]
        %v420 = vld [vmem:[#allocation2 + $0x68] sm:$0xff]
        %v421 = vld [vmem:[#allocation2 + $0x78] sm:$0xff]
        %v422 = vld [vmem:[#allocation2 + $0x80] sm:$0xff]
        %v423 = vld [vmem:[#allocation2 + $0x90] sm:$0xff]
        %v424 = vld [vmem:[#allocation2 + $0x98] sm:$0xff]
        %v425 = vld [vmem:[#allocation2 + $0xa8] sm:$0xff]
        %v426 = vld [vmem:[#allocation2 + $0xb0] sm:$0xff]
        %v427 = vld [vmem:[#allocation2 + $0xc0] sm:$0xff]
        %v428 = vld [vmem:[#allocation2 + $0xc8] sm:$0xff]
        %v429 = vld [vmem:[#allocation2 + $0xd8] sm:$0xff]
        %v430 = vld [vmem:[#allocation2 + $0xe0] sm:$0xff]
        %v431 = vld [vmem:[#allocation2 + $0xf0] sm:$0xff]
        %v432 = vld [vmem:[#allocation2 + $0xf8] sm:$0xff]
        %v433 = vld [vmem:[#allocation2 + $0x108] sm:$0xff]
        %v434 = vld [vmem:[#allocation2 + $0x110] sm:$0xff]
        %v435 = vld [vmem:[#allocation2 + $0x120] sm:$0xff]
        %v436 = vld [vmem:[#allocation2 + $0x128] sm:$0xff]
        %v437 = vld [vmem:[#allocation2 + $0x138] sm:$0xff]
        %v438 = vld [vmem:[#allocation2 + $0x140] sm:$0xff]
        %v439 = vld [vmem:[#allocation2 + $0x150] sm:$0xff]
        %v440 = vld [vmem:[#allocation2 + $0x158] sm:$0xff]
        %v441 = vld [vmem:[#allocation2 + $0x168] sm:$0xff]
        %v442 = vld [vmem:[#allocation2 + $0x170] sm:$0xff]
        %v443 = vpack.c.bf16 %v412, %v411
        %v444 = vpack.c.bf16 %v414, %v413
        %v445 = vpack.c.bf16 %v416, %v415
        %v446 = vpack.c.bf16 %v418, %v417
        %v447 = vpack.c.bf16 %v420, %v419
        %v448 = vpack.c.bf16 %v422, %v421
        %v449 = vpack.c.bf16 %v424, %v423
        %v450 = vpack.c.bf16 %v426, %v425
        %v451 = vpack.c.bf16 %v428, %v427
        %v452 = vpack.c.bf16 %v430, %v429
        %v453 = vpack.c.bf16 %v432, %v431
        %v454 = vpack.c.bf16 %v434, %v433
        %v455 = vpack.c.bf16 %v436, %v435
        %v456 = vpack.c.bf16 %v438, %v437
        %v457 = vpack.c.bf16 %v440, %v439
        %v458 = vpack.c.bf16 %v442, %v441
        %459 = vst [vmem:[#allocation3] sm:$0xff] %v443
        %460 = vst [vmem:[#allocation3 + $0x48] sm:$0xff] %v444
        %461 = vst [vmem:[#allocation3 + $0x90] sm:$0xff] %v445
        %462 = vst [vmem:[#allocation3 + $0xd8] sm:$0xff] %v446
        %463 = vst [vmem:[#allocation3 + $0x120] sm:$0xff] %v447
        %464 = vst [vmem:[#allocation3 + $0x168] sm:$0xff] %v448
        %465 = vst [vmem:[#allocation3 + $0x1b0] sm:$0xff] %v449
        %466 = vst [vmem:[#allocation3 + $0x1f8] sm:$0xff] %v450
        %467 = vst [vmem:[#allocation3 + $0x240] sm:$0xff] %v451
        %468 = vst [vmem:[#allocation3 + $0x288] sm:$0xff] %v452
        %469 = vst [vmem:[#allocation3 + $0x2d0] sm:$0xff] %v453
        %470 = vst [vmem:[#allocation3 + $0x318] sm:$0xff] %v454
        %471 = vst [vmem:[#allocation3 + $0x360] sm:$0xff] %v455
        %472 = vst [vmem:[#allocation3 + $0x3a8] sm:$0xff] %v456
        %473 = vst [vmem:[#allocation3 + $0x3f0] sm:$0xff] %v457
        %474 = vst [vmem:[#allocation3 + $0x438] sm:$0xff] %v458
        %v475 = vld [vmem:[#allocation2 + $0x1] sm:$0xff]
        %v476 = vld [vmem:[#allocation2 + $0x9] sm:$0xff]
        %v477 = vld [vmem:[#allocation2 + $0x19] sm:$0xff]
        %v478 = vld [vmem:[#allocation2 + $0x21] sm:$0xff]
        %v479 = vld [vmem:[#allocation2 + $0x31] sm:$0xff]
        %v480 = vld [vmem:[#allocation2 + $0x39] sm:$0xff]
        %v481 = vld [vmem:[#allocation2 + $0x49] sm:$0xff]
        %v482 = vld [vmem:[#allocation2 + $0x51] sm:$0xff]
        %v483 = vld [vmem:[#allocation2 + $0x61] sm:$0xff]
        %v484 = vld [vmem:[#allocation2 + $0x69] sm:$0xff]
        %v485 = vld [vmem:[#allocation2 + $0x79] sm:$0xff]
        %v486 = vld [vmem:[#allocation2 + $0x81] sm:$0xff]
        %v487 = vld [vmem:[#allocation2 + $0x91] sm:$0xff]
        %v488 = vld [vmem:[#allocation2 + $0x99] sm:$0xff]
        %v489 = vld [vmem:[#allocation2 + $0xa9] sm:$0xff]
        %v490 = vld [vmem:[#allocation2 + $0xb1] sm:$0xff]
        %v491 = vld [vmem:[#allocation2 + $0xc1] sm:$0xff]
        %v492 = vld [vmem:[#allocation2 + $0xc9] sm:$0xff]
        %v493 = vld [vmem:[#allocation2 + $0xd9] sm:$0xff]
        %v494 = vld [vmem:[#allocation2 + $0xe1] sm:$0xff]
        %v495 = vld [vmem:[#allocation2 + $0xf1] sm:$0xff]
        %v496 = vld [vmem:[#allocation2 + $0xf9] sm:$0xff]
        %v497 = vld [vmem:[#allocation2 + $0x109] sm:$0xff]
        %v498 = vld [vmem:[#allocation2 + $0x111] sm:$0xff]
        %v499 = vld [vmem:[#allocation2 + $0x121] sm:$0xff]
        %v500 = vld [vmem:[#allocation2 + $0x129] sm:$0xff]
        %v501 = vld [vmem:[#allocation2 + $0x139] sm:$0xff]
        %v502 = vld [vmem:[#allocation2 + $0x141] sm:$0xff]
        %v503 = vld [vmem:[#allocation2 + $0x151] sm:$0xff]
        %v504 = vld [vmem:[#allocation2 + $0x159] sm:$0xff]
        %v505 = vld [vmem:[#allocation2 + $0x169] sm:$0xff]
        %v506 = vld [vmem:[#allocation2 + $0x171] sm:$0xff]
        %v507 = vpack.c.bf16 %v476, %v475
        %v508 = vpack.c.bf16 %v478, %v477
        %v509 = vpack.c.bf16 %v480, %v479
        %v510 = vpack.c.bf16 %v482, %v481
        %v511 = vpack.c.bf16 %v484, %v483
        %v512 = vpack.c.bf16 %v486, %v485
        %v513 = vpack.c.bf16 %v488, %v487
        %v514 = vpack.c.bf16 %v490, %v489
        %v515 = vpack.c.bf16 %v492, %v491
        %v516 = vpack.c.bf16 %v494, %v493
        %v517 = vpack.c.bf16 %v496, %v495
        %v518 = vpack.c.bf16 %v498, %v497
        %v519 = vpack.c.bf16 %v500, %v499
        %v520 = vpack.c.bf16 %v502, %v501
        %v521 = vpack.c.bf16 %v504, %v503
        %v522 = vpack.c.bf16 %v506, %v505
        %523 = vst [vmem:[#allocation3 + $0x8] sm:$0xff] %v507
        %524 = vst [vmem:[#allocation3 + $0x50] sm:$0xff] %v508
        %525 = vst [vmem:[#allocation3 + $0x98] sm:$0xff] %v509
        %526 = vst [vmem:[#allocation3 + $0xe0] sm:$0xff] %v510
        %527 = vst [vmem:[#allocation3 + $0x128] sm:$0xff] %v511
        %528 = vst [vmem:[#allocation3 + $0x170] sm:$0xff] %v512
        %529 = vst [vmem:[#allocation3 + $0x1b8] sm:$0xff] %v513
        %530 = vst [vmem:[#allocation3 + $0x200] sm:$0xff] %v514
        %531 = vst [vmem:[#allocation3 + $0x248] sm:$0xff] %v515
        %532 = vst [vmem:[#allocation3 + $0x290] sm:$0xff] %v516
        %533 = vst [vmem:[#allocation3 + $0x2d8] sm:$0xff] %v517
        %534 = vst [vmem:[#allocation3 + $0x320] sm:$0xff] %v518
        %535 = vst [vmem:[#allocation3 + $0x368] sm:$0xff] %v519
        %536 = vst [vmem:[#allocation3 + $0x3b0] sm:$0xff] %v520
        %537 = vst [vmem:[#allocation3 + $0x3f8] sm:$0xff] %v521
        %538 = vst [vmem:[#allocation3 + $0x440] sm:$0xff] %v522
        %v539 = vld [vmem:[#allocation2 + $0x2] sm:$0xff]
        %v540 = vld [vmem:[#allocation2 + $0xa] sm:$0xff]
        %v541 = vld [vmem:[#allocation2 + $0x1a] sm:$0xff]
        %v542 = vld [vmem:[#allocation2 + $0x22] sm:$0xff]
        %v543 = vld [vmem:[#allocation2 + $0x32] sm:$0xff]
        %v544 = vld [vmem:[#allocation2 + $0x3a] sm:$0xff]
        %v545 = vld [vmem:[#allocation2 + $0x4a] sm:$0xff]
        %v546 = vld [vmem:[#allocation2 + $0x52] sm:$0xff]
        %v547 = vld [vmem:[#allocation2 + $0x62] sm:$0xff]
        %v548 = vld [vmem:[#allocation2 + $0x6a] sm:$0xff]
        %v549 = vld [vmem:[#allocation2 + $0x7a] sm:$0xff]
        %v550 = vld [vmem:[#allocation2 + $0x82] sm:$0xff]
        %v551 = vld [vmem:[#allocation2 + $0x92] sm:$0xff]
        %v552 = vld [vmem:[#allocation2 + $0x9a] sm:$0xff]
        %v553 = vld [vmem:[#allocation2 + $0xaa] sm:$0xff]
        %v554 = vld [vmem:[#allocation2 + $0xb2] sm:$0xff]
        %v555 = vld [vmem:[#allocation2 + $0xc2] sm:$0xff]
        %v556 = vld [vmem:[#allocation2 + $0xca] sm:$0xff]
        %v557 = vld [vmem:[#allocation2 + $0xda] sm:$0xff]
        %v558 = vld [vmem:[#allocation2 + $0xe2] sm:$0xff]
        %v559 = vld [vmem:[#allocation2 + $0xf2] sm:$0xff]
        %v560 = vld [vmem:[#allocation2 + $0xfa] sm:$0xff]
        %v561 = vld [vmem:[#allocation2 + $0x10a] sm:$0xff]
        %v562 = vld [vmem:[#allocation2 + $0x112] sm:$0xff]
        %v563 = vld [vmem:[#allocation2 + $0x122] sm:$0xff]
        %v564 = vld [vmem:[#allocation2 + $0x12a] sm:$0xff]
        %v565 = vld [vmem:[#allocation2 + $0x13a] sm:$0xff]
        %v566 = vld [vmem:[#allocation2 + $0x142] sm:$0xff]
        %v567 = vld [vmem:[#allocation2 + $0x152] sm:$0xff]
        %v568 = vld [vmem:[#allocation2 + $0x15a] sm:$0xff]
        %v569 = vld [vmem:[#allocation2 + $0x16a] sm:$0xff]
        %v570 = vld [vmem:[#allocation2 + $0x172] sm:$0xff]
        %v571 = vpack.c.bf16 %v540, %v539
        %v572 = vpack.c.bf16 %v542, %v541
        %v573 = vpack.c.bf16 %v544, %v543
        %v574 = vpack.c.bf16 %v546, %v545
        %v575 = vpack.c.bf16 %v548, %v547
        %v576 = vpack.c.bf16 %v550, %v549
        %v577 = vpack.c.bf16 %v552, %v551
        %v578 = vpack.c.bf16 %v554, %v553
        %v579 = vpack.c.bf16 %v556, %v555
        %v580 = vpack.c.bf16 %v558, %v557
        %v581 = vpack.c.bf16 %v560, %v559
        %v582 = vpack.c.bf16 %v562, %v561
        %v583 = vpack.c.bf16 %v564, %v563
        %v584 = vpack.c.bf16 %v566, %v565
        %v585 = vpack.c.bf16 %v568, %v567
        %v586 = vpack.c.bf16 %v570, %v569
        %587 = vst [vmem:[#allocation3 + $0x10] sm:$0xff] %v571
        %588 = vst [vmem:[#allocation3 + $0x58] sm:$0xff] %v572
        %589 = vst [vmem:[#allocation3 + $0xa0] sm:$0xff] %v573
        %590 = vst [vmem:[#allocation3 + $0xe8] sm:$0xff] %v574
        %591 = vst [vmem:[#allocation3 + $0x130] sm:$0xff] %v575
        %592 = vst [vmem:[#allocation3 + $0x178] sm:$0xff] %v576
        %593 = vst [vmem:[#allocation3 + $0x1c0] sm:$0xff] %v577
        %594 = vst [vmem:[#allocation3 + $0x208] sm:$0xff] %v578
        %595 = vst [vmem:[#allocation3 + $0x250] sm:$0xff] %v579
        %596 = vst [vmem:[#allocation3 + $0x298] sm:$0xff] %v580
        %597 = vst [vmem:[#allocation3 + $0x2e0] sm:$0xff] %v581
        %598 = vst [vmem:[#allocation3 + $0x328] sm:$0xff] %v582
        %599 = vst [vmem:[#allocation3 + $0x370] sm:$0xff] %v583
        %600 = vst [vmem:[#allocation3 + $0x3b8] sm:$0xff] %v584
        %601 = vst [vmem:[#allocation3 + $0x400] sm:$0xff] %v585
        %602 = vst [vmem:[#allocation3 + $0x448] sm:$0xff] %v586
        %v603 = vld [vmem:[%s378] sm:$0xff]
        %v604 = vld [vmem:[%s378 + $0x8] sm:$0xff]
        %v605 = vld [vmem:[%s378 + $0x18] sm:$0xff]
        %v606 = vld [vmem:[%s378 + $0x20] sm:$0xff]
        %v607 = vld [vmem:[%s378 + $0x30] sm:$0xff]
        %v608 = vld [vmem:[%s378 + $0x38] sm:$0xff]
        %v609 = vld [vmem:[%s378 + $0x48] sm:$0xff]
        %v610 = vld [vmem:[%s378 + $0x50] sm:$0xff]
        %v611 = vld [vmem:[%s378 + $0x60] sm:$0xff]
        %v612 = vld [vmem:[%s378 + $0x68] sm:$0xff]
        %v613 = vld [vmem:[%s378 + $0x78] sm:$0xff]
        %v614 = vld [vmem:[%s378 + $0x80] sm:$0xff]
        %v615 = vld [vmem:[%s378 + $0x90] sm:$0xff]
        %v616 = vld [vmem:[%s378 + $0x98] sm:$0xff]
        %v617 = vld [vmem:[%s378 + $0xa8] sm:$0xff]
        %v618 = vld [vmem:[%s378 + $0xb0] sm:$0xff]
        %v619 = vld [vmem:[%s378 + $0xc0] sm:$0xff]
        %v620 = vld [vmem:[%s378 + $0xc8] sm:$0xff]
        %v621 = vld [vmem:[%s378 + $0xd8] sm:$0xff]
        %v622 = vld [vmem:[%s378 + $0xe0] sm:$0xff]
        %v623 = vld [vmem:[%s378 + $0xf0] sm:$0xff]
        %v624 = vld [vmem:[%s378 + $0xf8] sm:$0xff]
        %v625 = vld [vmem:[%s378 + $0x108] sm:$0xff]
        %v626 = vld [vmem:[%s378 + $0x110] sm:$0xff]
        %v627 = vld [vmem:[%s378 + $0x120] sm:$0xff]
        %v628 = vld [vmem:[%s378 + $0x128] sm:$0xff]
        %v629 = vld [vmem:[%s378 + $0x138] sm:$0xff]
        %v630 = vld [vmem:[%s378 + $0x140] sm:$0xff]
        %v631 = vld [vmem:[%s378 + $0x150] sm:$0xff]
        %v632 = vld [vmem:[%s378 + $0x158] sm:$0xff]
        %v633 = vld [vmem:[%s378 + $0x168] sm:$0xff]
        %v634 = vld [vmem:[%s378 + $0x170] sm:$0xff]
        %v635 = vpack.c.bf16 %v604, %v603
        %v636 = vpack.c.bf16 %v606, %v605
        %v637 = vpack.c.bf16 %v608, %v607
        %v638 = vpack.c.bf16 %v610, %v609
        %v639 = vpack.c.bf16 %v612, %v611
        %v640 = vpack.c.bf16 %v614, %v613
        %v641 = vpack.c.bf16 %v616, %v615
        %v642 = vpack.c.bf16 %v618, %v617
        %v643 = vpack.c.bf16 %v620, %v619
        %v644 = vpack.c.bf16 %v622, %v621
        %v645 = vpack.c.bf16 %v624, %v623
        %v646 = vpack.c.bf16 %v626, %v625
        %v647 = vpack.c.bf16 %v628, %v627
        %v648 = vpack.c.bf16 %v630, %v629
        %v649 = vpack.c.bf16 %v632, %v631
        %v650 = vpack.c.bf16 %v634, %v633
        %651 = vst [vmem:[#allocation3 + $0x18] sm:$0xff] %v635
        %652 = vst [vmem:[#allocation3 + $0x60] sm:$0xff] %v636
        %653 = vst [vmem:[#allocation3 + $0xa8] sm:$0xff] %v637
        %654 = vst [vmem:[#allocation3 + $0xf0] sm:$0xff] %v638
        %655 = vst [vmem:[#allocation3 + $0x138] sm:$0xff] %v639
        %656 = vst [vmem:[#allocation3 + $0x180] sm:$0xff] %v640
        %657 = vst [vmem:[#allocation3 + $0x1c8] sm:$0xff] %v641
        %658 = vst [vmem:[#allocation3 + $0x210] sm:$0xff] %v642
        %659 = vst [vmem:[#allocation3 + $0x258] sm:$0xff] %v643
        %660 = vst [vmem:[#allocation3 + $0x2a0] sm:$0xff] %v644
        %661 = vst [vmem:[#allocation3 + $0x2e8] sm:$0xff] %v645
        %662 = vst [vmem:[#allocation3 + $0x330] sm:$0xff] %v646
        %663 = vst [vmem:[#allocation3 + $0x378] sm:$0xff] %v647
        %664 = vst [vmem:[#allocation3 + $0x3c0] sm:$0xff] %v648
        %665 = vst [vmem:[#allocation3 + $0x408] sm:$0xff] %v649
        %666 = vst [vmem:[#allocation3 + $0x450] sm:$0xff] %v650
        %v667 = vld [vmem:[%s378 + $0x1] sm:$0xff]
        %v668 = vld [vmem:[%s378 + $0x9] sm:$0xff]
        %v669 = vld [vmem:[%s378 + $0x19] sm:$0xff]
        %v670 = vld [vmem:[%s378 + $0x21] sm:$0xff]
        %v671 = vld [vmem:[%s378 + $0x31] sm:$0xff]
        %v672 = vld [vmem:[%s378 + $0x39] sm:$0xff]
        %v673 = vld [vmem:[%s378 + $0x49] sm:$0xff]
        %v674 = vld [vmem:[%s378 + $0x51] sm:$0xff]
        %v675 = vld [vmem:[%s378 + $0x61] sm:$0xff]
        %v676 = vld [vmem:[%s378 + $0x69] sm:$0xff]
        %v677 = vld [vmem:[%s378 + $0x79] sm:$0xff]
        %v678 = vld [vmem:[%s378 + $0x81] sm:$0xff]
        %v679 = vld [vmem:[%s378 + $0x91] sm:$0xff]
        %v680 = vld [vmem:[%s378 + $0x99] sm:$0xff]
        %v681 = vld [vmem:[%s378 + $0xa9] sm:$0xff]
        %v682 = vld [vmem:[%s378 + $0xb1] sm:$0xff]
        %v683 = vld [vmem:[%s378 + $0xc1] sm:$0xff]
        %v684 = vld [vmem:[%s378 + $0xc9] sm:$0xff]
        %v685 = vld [vmem:[%s378 + $0xd9] sm:$0xff]
        %v686 = vld [vmem:[%s378 + $0xe1] sm:$0xff]
        %v687 = vld [vmem:[%s378 + $0xf1] sm:$0xff]
        %v688 = vld [vmem:[%s378 + $0xf9] sm:$0xff]
        %v689 = vld [vmem:[%s378 + $0x109] sm:$0xff]
        %v690 = vld [vmem:[%s378 + $0x111] sm:$0xff]
        %v691 = vld [vmem:[%s378 + $0x121] sm:$0xff]
        %v692 = vld [vmem:[%s378 + $0x129] sm:$0xff]
        %v693 = vld [vmem:[%s378 + $0x139] sm:$0xff]
        %v694 = vld [vmem:[%s378 + $0x141] sm:$0xff]
        %v695 = vld [vmem:[%s378 + $0x151] sm:$0xff]
        %v696 = vld [vmem:[%s378 + $0x159] sm:$0xff]
        %v697 = vld [vmem:[%s378 + $0x169] sm:$0xff]
        %v698 = vld [vmem:[%s378 + $0x171] sm:$0xff]
        %v699 = vpack.c.bf16 %v668, %v667
        %v700 = vpack.c.bf16 %v670, %v669
        %v701 = vpack.c.bf16 %v672, %v671
        %v702 = vpack.c.bf16 %v674, %v673
        %v703 = vpack.c.bf16 %v676, %v675
        %v704 = vpack.c.bf16 %v678, %v677
        %v705 = vpack.c.bf16 %v680, %v679
        %v706 = vpack.c.bf16 %v682, %v681
        %v707 = vpack.c.bf16 %v684, %v683
        %v708 = vpack.c.bf16 %v686, %v685
        %v709 = vpack.c.bf16 %v688, %v687
        %v710 = vpack.c.bf16 %v690, %v689
        %v711 = vpack.c.bf16 %v692, %v691
        %v712 = vpack.c.bf16 %v694, %v693
        %v713 = vpack.c.bf16 %v696, %v695
        %v714 = vpack.c.bf16 %v698, %v697
        %715 = vst [vmem:[#allocation3 + $0x20] sm:$0xff] %v699
        %716 = vst [vmem:[#allocation3 + $0x68] sm:$0xff] %v700
        %717 = vst [vmem:[#allocation3 + $0xb0] sm:$0xff] %v701
        %718 = vst [vmem:[#allocation3 + $0xf8] sm:$0xff] %v702
        %719 = vst [vmem:[#allocation3 + $0x140] sm:$0xff] %v703
        %720 = vst [vmem:[#allocation3 + $0x188] sm:$0xff] %v704
        %721 = vst [vmem:[#allocation3 + $0x1d0] sm:$0xff] %v705
        %722 = vst [vmem:[#allocation3 + $0x218] sm:$0xff] %v706
        %723 = vst [vmem:[#allocation3 + $0x260] sm:$0xff] %v707
        %724 = vst [vmem:[#allocation3 + $0x2a8] sm:$0xff] %v708
        %725 = vst [vmem:[#allocation3 + $0x2f0] sm:$0xff] %v709
        %726 = vst [vmem:[#allocation3 + $0x338] sm:$0xff] %v710
        %727 = vst [vmem:[#allocation3 + $0x380] sm:$0xff] %v711
        %728 = vst [vmem:[#allocation3 + $0x3c8] sm:$0xff] %v712
        %729 = vst [vmem:[#allocation3 + $0x410] sm:$0xff] %v713
        %730 = vst [vmem:[#allocation3 + $0x458] sm:$0xff] %v714
        %v731 = vld [vmem:[%s378 + $0x2] sm:$0xff]
        %v732 = vld [vmem:[%s378 + $0xa] sm:$0xff]
        %v733 = vld [vmem:[%s378 + $0x1a] sm:$0xff]
        %v734 = vld [vmem:[%s378 + $0x22] sm:$0xff]
        %v735 = vld [vmem:[%s378 + $0x32] sm:$0xff]
        %v736 = vld [vmem:[%s378 + $0x3a] sm:$0xff]
        %v737 = vld [vmem:[%s378 + $0x4a] sm:$0xff]
        %v738 = vld [vmem:[%s378 + $0x52] sm:$0xff]
        %v739 = vld [vmem:[%s378 + $0x62] sm:$0xff]
        %v740 = vld [vmem:[%s378 + $0x6a] sm:$0xff]
        %v741 = vld [vmem:[%s378 + $0x7a] sm:$0xff]
        %v742 = vld [vmem:[%s378 + $0x82] sm:$0xff]
        %v743 = vld [vmem:[%s378 + $0x92] sm:$0xff]
        %v744 = vld [vmem:[%s378 + $0x9a] sm:$0xff]
        %v745 = vld [vmem:[%s378 + $0xaa] sm:$0xff]
        %v746 = vld [vmem:[%s378 + $0xb2] sm:$0xff]
        %v747 = vld [vmem:[%s378 + $0xc2] sm:$0xff]
        %v748 = vld [vmem:[%s378 + $0xca] sm:$0xff]
        %v749 = vld [vmem:[%s378 + $0xda] sm:$0xff]
        %v750 = vld [vmem:[%s378 + $0xe2] sm:$0xff]
        %v751 = vld [vmem:[%s378 + $0xf2] sm:$0xff]
        %v752 = vld [vmem:[%s378 + $0xfa] sm:$0xff]
        %v753 = vld [vmem:[%s378 + $0x10a] sm:$0xff]
        %v754 = vld [vmem:[%s378 + $0x112] sm:$0xff]
        %v755 = vld [vmem:[%s378 + $0x122] sm:$0xff]
        %v756 = vld [vmem:[%s378 + $0x12a] sm:$0xff]
        %v757 = vld [vmem:[%s378 + $0x13a] sm:$0xff]
        %v758 = vld [vmem:[%s378 + $0x142] sm:$0xff]
        %v759 = vld [vmem:[%s378 + $0x152] sm:$0xff]
        %v760 = vld [vmem:[%s378 + $0x15a] sm:$0xff]
        %v761 = vld [vmem:[%s378 + $0x16a] sm:$0xff]
        %v762 = vld [vmem:[%s378 + $0x172] sm:$0xff]
        %v763 = vpack.c.bf16 %v732, %v731
        %v764 = vpack.c.bf16 %v734, %v733
        %v765 = vpack.c.bf16 %v736, %v735
        %v766 = vpack.c.bf16 %v738, %v737
        %v767 = vpack.c.bf16 %v740, %v739
        %v768 = vpack.c.bf16 %v742, %v741
        %v769 = vpack.c.bf16 %v744, %v743
        %v770 = vpack.c.bf16 %v746, %v745
        %v771 = vpack.c.bf16 %v748, %v747
        %v772 = vpack.c.bf16 %v750, %v749
        %v773 = vpack.c.bf16 %v752, %v751
        %v774 = vpack.c.bf16 %v754, %v753
        %v775 = vpack.c.bf16 %v756, %v755
        %v776 = vpack.c.bf16 %v758, %v757
        %v777 = vpack.c.bf16 %v760, %v759
        %v778 = vpack.c.bf16 %v762, %v761
        %779 = vst [vmem:[#allocation3 + $0x28] sm:$0xff] %v763
        %780 = vst [vmem:[#allocation3 + $0x70] sm:$0xff] %v764
        %781 = vst [vmem:[#allocation3 + $0xb8] sm:$0xff] %v765
        %782 = vst [vmem:[#allocation3 + $0x100] sm:$0xff] %v766
        %783 = vst [vmem:[#allocation3 + $0x148] sm:$0xff] %v767
        %784 = vst [vmem:[#allocation3 + $0x190] sm:$0xff] %v768
        %785 = vst [vmem:[#allocation3 + $0x1d8] sm:$0xff] %v769
        %786 = vst [vmem:[#allocation3 + $0x220] sm:$0xff] %v770
        %787 = vst [vmem:[#allocation3 + $0x268] sm:$0xff] %v771
        %788 = vst [vmem:[#allocation3 + $0x2b0] sm:$0xff] %v772
        %789 = vst [vmem:[#allocation3 + $0x2f8] sm:$0xff] %v773
        %790 = vst [vmem:[#allocation3 + $0x340] sm:$0xff] %v774
        %791 = vst [vmem:[#allocation3 + $0x388] sm:$0xff] %v775
        %792 = vst [vmem:[#allocation3 + $0x3d0] sm:$0xff] %v776
        %793 = vst [vmem:[#allocation3 + $0x418] sm:$0xff] %v777
        %794 = vst [vmem:[#allocation3 + $0x460] sm:$0xff] %v778
        %s795 = scalar_lea.vmem [#allocation2], 48
        %v796 = vld [vmem:[%s795] sm:$0xff]
        %v797 = vld [vmem:[%s795 + $0x8] sm:$0xff]
        %v798 = vld [vmem:[%s795 + $0x18] sm:$0xff]
        %v799 = vld [vmem:[%s795 + $0x20] sm:$0xff]
        %v800 = vld [vmem:[%s795 + $0x30] sm:$0xff]
        %v801 = vld [vmem:[%s795 + $0x38] sm:$0xff]
        %v802 = vld [vmem:[%s795 + $0x48] sm:$0xff]
        %v803 = vld [vmem:[%s795 + $0x50] sm:$0xff]
        %v804 = vld [vmem:[%s795 + $0x60] sm:$0xff]
        %v805 = vld [vmem:[%s795 + $0x68] sm:$0xff]
        %v806 = vld [vmem:[%s795 + $0x78] sm:$0xff]
        %v807 = vld [vmem:[%s795 + $0x80] sm:$0xff]
        %v808 = vld [vmem:[%s795 + $0x90] sm:$0xff]
        %v809 = vld [vmem:[%s795 + $0x98] sm:$0xff]
        %v810 = vld [vmem:[%s795 + $0xa8] sm:$0xff]
        %v811 = vld [vmem:[%s795 + $0xb0] sm:$0xff]
        %v812 = vld [vmem:[%s795 + $0xc0] sm:$0xff]
        %v813 = vld [vmem:[%s795 + $0xc8] sm:$0xff]
        %v814 = vld [vmem:[%s795 + $0xd8] sm:$0xff]
        %v815 = vld [vmem:[%s795 + $0xe0] sm:$0xff]
        %v816 = vld [vmem:[%s795 + $0xf0] sm:$0xff]
        %v817 = vld [vmem:[%s795 + $0xf8] sm:$0xff]
        %v818 = vld [vmem:[%s795 + $0x108] sm:$0xff]
        %v819 = vld [vmem:[%s795 + $0x110] sm:$0xff]
        %v820 = vld [vmem:[%s795 + $0x120] sm:$0xff]
        %v821 = vld [vmem:[%s795 + $0x128] sm:$0xff]
        %v822 = vld [vmem:[%s795 + $0x138] sm:$0xff]
        %v823 = vld [vmem:[%s795 + $0x140] sm:$0xff]
        %v824 = vld [vmem:[%s795 + $0x150] sm:$0xff]
        %v825 = vld [vmem:[%s795 + $0x158] sm:$0xff]
        %v826 = vld [vmem:[%s795 + $0x168] sm:$0xff]
        %v827 = vld [vmem:[%s795 + $0x170] sm:$0xff]
        %v828 = vpack.c.bf16 %v797, %v796
        %v829 = vpack.c.bf16 %v799, %v798
        %v830 = vpack.c.bf16 %v801, %v800
        %v831 = vpack.c.bf16 %v803, %v802
        %v832 = vpack.c.bf16 %v805, %v804
        %v833 = vpack.c.bf16 %v807, %v806
        %v834 = vpack.c.bf16 %v809, %v808
        %v835 = vpack.c.bf16 %v811, %v810
        %v836 = vpack.c.bf16 %v813, %v812
        %v837 = vpack.c.bf16 %v815, %v814
        %v838 = vpack.c.bf16 %v817, %v816
        %v839 = vpack.c.bf16 %v819, %v818
        %v840 = vpack.c.bf16 %v821, %v820
        %v841 = vpack.c.bf16 %v823, %v822
        %v842 = vpack.c.bf16 %v825, %v824
        %v843 = vpack.c.bf16 %v827, %v826
        %844 = vst [vmem:[#allocation3 + $0x30] sm:$0xff] %v828
        %845 = vst [vmem:[#allocation3 + $0x78] sm:$0xff] %v829
        %846 = vst [vmem:[#allocation3 + $0xc0] sm:$0xff] %v830
        %847 = vst [vmem:[#allocation3 + $0x108] sm:$0xff] %v831
        %848 = vst [vmem:[#allocation3 + $0x150] sm:$0xff] %v832
        %849 = vst [vmem:[#allocation3 + $0x198] sm:$0xff] %v833
        %850 = vst [vmem:[#allocation3 + $0x1e0] sm:$0xff] %v834
        %851 = vst [vmem:[#allocation3 + $0x228] sm:$0xff] %v835
        %852 = vst [vmem:[#allocation3 + $0x270] sm:$0xff] %v836
        %853 = vst [vmem:[#allocation3 + $0x2b8] sm:$0xff] %v837
        %854 = vst [vmem:[#allocation3 + $0x300] sm:$0xff] %v838
        %855 = vst [vmem:[#allocation3 + $0x348] sm:$0xff] %v839
        %856 = vst [vmem:[#allocation3 + $0x390] sm:$0xff] %v840
        %857 = vst [vmem:[#allocation3 + $0x3d8] sm:$0xff] %v841
        %858 = vst [vmem:[#allocation3 + $0x420] sm:$0xff] %v842
        %859 = vst [vmem:[#allocation3 + $0x468] sm:$0xff] %v843
        %v860 = vld [vmem:[%s795 + $0x1] sm:$0xff]
        %v861 = vld [vmem:[%s795 + $0x9] sm:$0xff]
        %v862 = vld [vmem:[%s795 + $0x19] sm:$0xff]
        %v863 = vld [vmem:[%s795 + $0x21] sm:$0xff]
        %v864 = vld [vmem:[%s795 + $0x31] sm:$0xff]
        %v865 = vld [vmem:[%s795 + $0x39] sm:$0xff]
        %v866 = vld [vmem:[%s795 + $0x49] sm:$0xff]
        %v867 = vld [vmem:[%s795 + $0x51] sm:$0xff]
        %v868 = vld [vmem:[%s795 + $0x61] sm:$0xff]
        %v869 = vld [vmem:[%s795 + $0x69] sm:$0xff]
        %v870 = vld [vmem:[%s795 + $0x79] sm:$0xff]
        %v871 = vld [vmem:[%s795 + $0x81] sm:$0xff]
        %v872 = vld [vmem:[%s795 + $0x91] sm:$0xff]
        %v873 = vld [vmem:[%s795 + $0x99] sm:$0xff]
        %v874 = vld [vmem:[%s795 + $0xa9] sm:$0xff]
        %v875 = vld [vmem:[%s795 + $0xb1] sm:$0xff]
        %v876 = vld [vmem:[%s795 + $0xc1] sm:$0xff]
        %v877 = vld [vmem:[%s795 + $0xc9] sm:$0xff]
        %v878 = vld [vmem:[%s795 + $0xd9] sm:$0xff]
        %v879 = vld [vmem:[%s795 + $0xe1] sm:$0xff]
        %v880 = vld [vmem:[%s795 + $0xf1] sm:$0xff]
        %v881 = vld [vmem:[%s795 + $0xf9] sm:$0xff]
        %v882 = vld [vmem:[%s795 + $0x109] sm:$0xff]
        %v883 = vld [vmem:[%s795 + $0x111] sm:$0xff]
        %v884 = vld [vmem:[%s795 + $0x121] sm:$0xff]
        %v885 = vld [vmem:[%s795 + $0x129] sm:$0xff]
        %v886 = vld [vmem:[%s795 + $0x139] sm:$0xff]
        %v887 = vld [vmem:[%s795 + $0x141] sm:$0xff]
        %v888 = vld [vmem:[%s795 + $0x151] sm:$0xff]
        %v889 = vld [vmem:[%s795 + $0x159] sm:$0xff]
        %v890 = vld [vmem:[%s795 + $0x169] sm:$0xff]
        %v891 = vld [vmem:[%s795 + $0x171] sm:$0xff]
        %v892 = vpack.c.bf16 %v861, %v860
        %v893 = vpack.c.bf16 %v863, %v862
        %v894 = vpack.c.bf16 %v865, %v864
        %v895 = vpack.c.bf16 %v867, %v866
        %v896 = vpack.c.bf16 %v869, %v868
        %v897 = vpack.c.bf16 %v871, %v870
        %v898 = vpack.c.bf16 %v873, %v872
        %v899 = vpack.c.bf16 %v875, %v874
        %v900 = vpack.c.bf16 %v877, %v876
        %v901 = vpack.c.bf16 %v879, %v878
        %v902 = vpack.c.bf16 %v881, %v880
        %v903 = vpack.c.bf16 %v883, %v882
        %v904 = vpack.c.bf16 %v885, %v884
        %v905 = vpack.c.bf16 %v887, %v886
        %v906 = vpack.c.bf16 %v889, %v888
        %v907 = vpack.c.bf16 %v891, %v890
        %908 = vst [vmem:[#allocation3 + $0x38] sm:$0xff] %v892
        %909 = vst [vmem:[#allocation3 + $0x80] sm:$0xff] %v893
        %910 = vst [vmem:[#allocation3 + $0xc8] sm:$0xff] %v894
        %911 = vst [vmem:[#allocation3 + $0x110] sm:$0xff] %v895
        %912 = vst [vmem:[#allocation3 + $0x158] sm:$0xff] %v896
        %913 = vst [vmem:[#allocation3 + $0x1a0] sm:$0xff] %v897
        %914 = vst [vmem:[#allocation3 + $0x1e8] sm:$0xff] %v898
        %915 = vst [vmem:[#allocation3 + $0x230] sm:$0xff] %v899
        %916 = vst [vmem:[#allocation3 + $0x278] sm:$0xff] %v900
        %917 = vst [vmem:[#allocation3 + $0x2c0] sm:$0xff] %v901
        %918 = vst [vmem:[#allocation3 + $0x308] sm:$0xff] %v902
        %919 = vst [vmem:[#allocation3 + $0x350] sm:$0xff] %v903
        %920 = vst [vmem:[#allocation3 + $0x398] sm:$0xff] %v904
        %921 = vst [vmem:[#allocation3 + $0x3e0] sm:$0xff] %v905
        %922 = vst [vmem:[#allocation3 + $0x428] sm:$0xff] %v906
        %923 = vst [vmem:[#allocation3 + $0x470] sm:$0xff] %v907
        %v924 = vld [vmem:[%s795 + $0x2] sm:$0xff]
        %v925 = vld [vmem:[%s795 + $0xa] sm:$0xff]
        %v926 = vld [vmem:[%s795 + $0x1a] sm:$0xff]
        %v927 = vld [vmem:[%s795 + $0x22] sm:$0xff]
        %v928 = vld [vmem:[%s795 + $0x32] sm:$0xff]
        %v929 = vld [vmem:[%s795 + $0x3a] sm:$0xff]
        %v930 = vld [vmem:[%s795 + $0x4a] sm:$0xff]
        %v931 = vld [vmem:[%s795 + $0x52] sm:$0xff]
        %v932 = vld [vmem:[%s795 + $0x62] sm:$0xff]
        %v933 = vld [vmem:[%s795 + $0x6a] sm:$0xff]
        %v934 = vld [vmem:[%s795 + $0x7a] sm:$0xff]
        %v935 = vld [vmem:[%s795 + $0x82] sm:$0xff]
        %v936 = vld [vmem:[%s795 + $0x92] sm:$0xff]
        %v937 = vld [vmem:[%s795 + $0x9a] sm:$0xff]
        %v938 = vld [vmem:[%s795 + $0xaa] sm:$0xff]
        %v939 = vld [vmem:[%s795 + $0xb2] sm:$0xff]
        %v940 = vld [vmem:[%s795 + $0xc2] sm:$0xff]
        %v941 = vld [vmem:[%s795 + $0xca] sm:$0xff]
        %v942 = vld [vmem:[%s795 + $0xda] sm:$0xff]
        %v943 = vld [vmem:[%s795 + $0xe2] sm:$0xff]
        %v944 = vld [vmem:[%s795 + $0xf2] sm:$0xff]
        %v945 = vld [vmem:[%s795 + $0xfa] sm:$0xff]
        %v946 = vld [vmem:[%s795 + $0x10a] sm:$0xff]
        %v947 = vld [vmem:[%s795 + $0x112] sm:$0xff]
        %v948 = vld [vmem:[%s795 + $0x122] sm:$0xff]
        %v949 = vld [vmem:[%s795 + $0x12a] sm:$0xff]
        %v950 = vld [vmem:[%s795 + $0x13a] sm:$0xff]
        %v951 = vld [vmem:[%s795 + $0x142] sm:$0xff]
        %v952 = vld [vmem:[%s795 + $0x152] sm:$0xff]
        %v953 = vld [vmem:[%s795 + $0x15a] sm:$0xff]
        %v954 = vld [vmem:[%s795 + $0x16a] sm:$0xff]
        %v955 = vld [vmem:[%s795 + $0x172] sm:$0xff]
        %v956 = vpack.c.bf16 %v925, %v924
        %v957 = vpack.c.bf16 %v927, %v926
        %v958 = vpack.c.bf16 %v929, %v928
        %v959 = vpack.c.bf16 %v931, %v930
        %v960 = vpack.c.bf16 %v933, %v932
        %v961 = vpack.c.bf16 %v935, %v934
        %v962 = vpack.c.bf16 %v937, %v936
        %v963 = vpack.c.bf16 %v939, %v938
        %v964 = vpack.c.bf16 %v941, %v940
        %v965 = vpack.c.bf16 %v943, %v942
        %v966 = vpack.c.bf16 %v945, %v944
        %v967 = vpack.c.bf16 %v947, %v946
        %v968 = vpack.c.bf16 %v949, %v948
        %v969 = vpack.c.bf16 %v951, %v950
        %v970 = vpack.c.bf16 %v953, %v952
        %v971 = vpack.c.bf16 %v955, %v954
        %972 = vst [vmem:[#allocation3 + $0x40] sm:$0xff] %v956
        %973 = vst [vmem:[#allocation3 + $0x88] sm:$0xff] %v957
        %974 = vst [vmem:[#allocation3 + $0xd0] sm:$0xff] %v958
        %975 = vst [vmem:[#allocation3 + $0x118] sm:$0xff] %v959
        %976 = vst [vmem:[#allocation3 + $0x160] sm:$0xff] %v960
        %977 = vst [vmem:[#allocation3 + $0x1a8] sm:$0xff] %v961
        %978 = vst [vmem:[#allocation3 + $0x1f0] sm:$0xff] %v962
        %979 = vst [vmem:[#allocation3 + $0x238] sm:$0xff] %v963
        %980 = vst [vmem:[#allocation3 + $0x280] sm:$0xff] %v964
        %981 = vst [vmem:[#allocation3 + $0x2c8] sm:$0xff] %v965
        %982 = vst [vmem:[#allocation3 + $0x310] sm:$0xff] %v966
        %983 = vst [vmem:[#allocation3 + $0x358] sm:$0xff] %v967
        %984 = vst [vmem:[#allocation3 + $0x3a0] sm:$0xff] %v968
        %985 = vst [vmem:[#allocation3 + $0x3e8] sm:$0xff] %v969
        %986 = vst [vmem:[#allocation3 + $0x430] sm:$0xff] %v970
        %987 = vst [vmem:[#allocation3 + $0x478] sm:$0xff] %v971
        %v988 = vld [vmem:[#allocation3] sm:$0xff]
        %v989 = vld [vmem:[#allocation3 + $0x8] sm:$0xff]
        %v990 = vld [vmem:[#allocation3 + $0x10] sm:$0xff]
        %v991 = vld [vmem:[#allocation3 + $0x18] sm:$0xff]
        %v992 = vld [vmem:[#allocation3 + $0x20] sm:$0xff]
        %v993 = vld [vmem:[#allocation3 + $0x28] sm:$0xff]
        %v994 = vld [vmem:[#allocation3 + $0x30] sm:$0xff]
        %v995 = vld [vmem:[#allocation3 + $0x38] sm:$0xff]
        %v996 = vld [vmem:[#allocation3 + $0x40] sm:$0xff]
        %v997 = vld [vmem:[#allocation3 + $0x48] sm:$0xff]
        %v998 = vld [vmem:[#allocation3 + $0x50] sm:$0xff]
        %v999 = vld [vmem:[#allocation3 + $0x58] sm:$0xff]
        %v1000 = vld [vmem:[#allocation3 + $0x60] sm:$0xff]
        %v1001 = vld [vmem:[#allocation3 + $0x68] sm:$0xff]
        %v1002 = vld [vmem:[#allocation3 + $0x70] sm:$0xff]
        %v1003 = vld [vmem:[#allocation3 + $0x78] sm:$0xff]
        %v1004 = vld [vmem:[#allocation3 + $0x80] sm:$0xff]
        %v1005 = vld [vmem:[#allocation3 + $0x88] sm:$0xff]
        %v1006 = vld [vmem:[#allocation3 + $0x90] sm:$0xff]
        %v1007 = vld [vmem:[#allocation3 + $0x98] sm:$0xff]
        %v1008 = vld [vmem:[#allocation3 + $0xa0] sm:$0xff]
        %v1009 = vld [vmem:[#allocation3 + $0xa8] sm:$0xff]
        %v1010 = vld [vmem:[#allocation3 + $0xb0] sm:$0xff]
        %v1011 = vld [vmem:[#allocation3 + $0xb8] sm:$0xff]
        %v1012 = vld [vmem:[#allocation3 + $0xc0] sm:$0xff]
        %v1013 = vld [vmem:[#allocation3 + $0xc8] sm:$0xff]
        %v1014 = vld [vmem:[#allocation3 + $0xd0] sm:$0xff]
        %v1015 = vld [vmem:[#allocation3 + $0xd8] sm:$0xff]
        %v1016 = vld [vmem:[#allocation3 + $0xe0] sm:$0xff]
        %v1017 = vld [vmem:[#allocation3 + $0xe8] sm:$0xff]
        %v1018 = vld [vmem:[#allocation3 + $0xf0] sm:$0xff]
        %v1019 = vld [vmem:[#allocation3 + $0xf8] sm:$0xff]
        %v1020 = vld [vmem:[#allocation3 + $0x100] sm:$0xff]
        %v1021 = vld [vmem:[#allocation3 + $0x108] sm:$0xff]
        %v1022 = vld [vmem:[#allocation3 + $0x110] sm:$0xff]
        %v1023 = vld [vmem:[#allocation3 + $0x118] sm:$0xff]
        %v1024 = vld [vmem:[#allocation3 + $0x120] sm:$0xff]
        %v1025 = vld [vmem:[#allocation3 + $0x128] sm:$0xff]
        %v1026 = vld [vmem:[#allocation3 + $0x130] sm:$0xff]
        %v1027 = vld [vmem:[#allocation3 + $0x138] sm:$0xff]
        %v1028 = vld [vmem:[#allocation3 + $0x140] sm:$0xff]
        %v1029 = vld [vmem:[#allocation3 + $0x148] sm:$0xff]
        %v1030 = vld [vmem:[#allocation3 + $0x150] sm:$0xff]
        %v1031 = vld [vmem:[#allocation3 + $0x158] sm:$0xff]
        %v1032 = vld [vmem:[#allocation3 + $0x160] sm:$0xff]
        %v1033 = vld [vmem:[#allocation3 + $0x168] sm:$0xff]
        %v1034 = vld [vmem:[#allocation3 + $0x170] sm:$0xff]
        %v1035 = vld [vmem:[#allocation3 + $0x178] sm:$0xff]
        %v1036 = vld [vmem:[#allocation3 + $0x180] sm:$0xff]
        %v1037 = vld [vmem:[#allocation3 + $0x188] sm:$0xff]
        %v1038 = vld [vmem:[#allocation3 + $0x190] sm:$0xff]
        %v1039 = vld [vmem:[#allocation3 + $0x198] sm:$0xff]
        %v1040 = vld [vmem:[#allocation3 + $0x1a0] sm:$0xff]
        %v1041 = vld [vmem:[#allocation3 + $0x1a8] sm:$0xff]
        %v1042 = vld [vmem:[#allocation3 + $0x1b0] sm:$0xff]
        %v1043 = vld [vmem:[#allocation3 + $0x1b8] sm:$0xff]
        %v1044 = vld [vmem:[#allocation3 + $0x1c0] sm:$0xff]
        %v1045 = vld [vmem:[#allocation3 + $0x1c8] sm:$0xff]
        %v1046 = vld [vmem:[#allocation3 + $0x1d0] sm:$0xff]
        %v1047 = vld [vmem:[#allocation3 + $0x1d8] sm:$0xff]
        %v1048 = vld [vmem:[#allocation3 + $0x1e0] sm:$0xff]
        %v1049 = vld [vmem:[#allocation3 + $0x1e8] sm:$0xff]
        %v1050 = vld [vmem:[#allocation3 + $0x1f0] sm:$0xff]
        %v1051 = vld [vmem:[#allocation3 + $0x1f8] sm:$0xff]
        %v1052 = vld [vmem:[#allocation3 + $0x200] sm:$0xff]
        %v1053 = vld [vmem:[#allocation3 + $0x208] sm:$0xff]
        %v1054 = vld [vmem:[#allocation3 + $0x210] sm:$0xff]
        %v1055 = vld [vmem:[#allocation3 + $0x218] sm:$0xff]
        %v1056 = vld [vmem:[#allocation3 + $0x220] sm:$0xff]
        %v1057 = vld [vmem:[#allocation3 + $0x228] sm:$0xff]
        %v1058 = vld [vmem:[#allocation3 + $0x230] sm:$0xff]
        %v1059 = vld [vmem:[#allocation3 + $0x238] sm:$0xff]
        %v1060 = vld [vmem:[#allocation3 + $0x240] sm:$0xff]
        %v1061 = vld [vmem:[#allocation3 + $0x248] sm:$0xff]
        %v1062 = vld [vmem:[#allocation3 + $0x250] sm:$0xff]
        %v1063 = vld [vmem:[#allocation3 + $0x258] sm:$0xff]
        %v1064 = vld [vmem:[#allocation3 + $0x260] sm:$0xff]
        %v1065 = vld [vmem:[#allocation3 + $0x268] sm:$0xff]
        %v1066 = vld [vmem:[#allocation3 + $0x270] sm:$0xff]
        %v1067 = vld [vmem:[#allocation3 + $0x278] sm:$0xff]
        %v1068 = vld [vmem:[#allocation3 + $0x280] sm:$0xff]
        %v1069 = vld [vmem:[#allocation3 + $0x288] sm:$0xff]
        %v1070 = vld [vmem:[#allocation3 + $0x290] sm:$0xff]
        %v1071 = vld [vmem:[#allocation3 + $0x298] sm:$0xff]
        %v1072 = vld [vmem:[#allocation3 + $0x2a0] sm:$0xff]
        %v1073 = vld [vmem:[#allocation3 + $0x2a8] sm:$0xff]
        %v1074 = vld [vmem:[#allocation3 + $0x2b0] sm:$0xff]
        %v1075 = vld [vmem:[#allocation3 + $0x2b8] sm:$0xff]
        %v1076 = vld [vmem:[#allocation3 + $0x2c0] sm:$0xff]
        %v1077 = vld [vmem:[#allocation3 + $0x2c8] sm:$0xff]
        %v1078 = vld [vmem:[#allocation3 + $0x2d0] sm:$0xff]
        %v1079 = vld [vmem:[#allocation3 + $0x2d8] sm:$0xff]
        %v1080 = vld [vmem:[#allocation3 + $0x2e0] sm:$0xff]
        %v1081 = vld [vmem:[#allocation3 + $0x2e8] sm:$0xff]
        %v1082 = vld [vmem:[#allocation3 + $0x2f0] sm:$0xff]
        %v1083 = vld [vmem:[#allocation3 + $0x2f8] sm:$0xff]
        %v1084 = vld [vmem:[#allocation3 + $0x300] sm:$0xff]
        %v1085 = vld [vmem:[#allocation3 + $0x308] sm:$0xff]
        %v1086 = vld [vmem:[#allocation3 + $0x310] sm:$0xff]
        %v1087 = vld [vmem:[#allocation3 + $0x318] sm:$0xff]
        %v1088 = vld [vmem:[#allocation3 + $0x320] sm:$0xff]
        %v1089 = vld [vmem:[#allocation3 + $0x328] sm:$0xff]
        %v1090 = vld [vmem:[#allocation3 + $0x330] sm:$0xff]
        %v1091 = vld [vmem:[#allocation3 + $0x338] sm:$0xff]
        %v1092 = vld [vmem:[#allocation3 + $0x340] sm:$0xff]
        %v1093 = vld [vmem:[#allocation3 + $0x348] sm:$0xff]
        %v1094 = vld [vmem:[#allocation3 + $0x350] sm:$0xff]
        %v1095 = vld [vmem:[#allocation3 + $0x358] sm:$0xff]
        %v1096 = vld [vmem:[#allocation3 + $0x360] sm:$0xff]
        %v1097 = vld [vmem:[#allocation3 + $0x368] sm:$0xff]
        %v1098 = vld [vmem:[#allocation3 + $0x370] sm:$0xff]
        %v1099 = vld [vmem:[#allocation3 + $0x378] sm:$0xff]
        %v1100 = vld [vmem:[#allocation3 + $0x380] sm:$0xff]
        %v1101 = vld [vmem:[#allocation3 + $0x388] sm:$0xff]
        %v1102 = vld [vmem:[#allocation3 + $0x390] sm:$0xff]
        %v1103 = vld [vmem:[#allocation3 + $0x398] sm:$0xff]
        %v1104 = vld [vmem:[#allocation3 + $0x3a0] sm:$0xff]
        %v1105 = vld [vmem:[#allocation3 + $0x3a8] sm:$0xff]
        %v1106 = vld [vmem:[#allocation3 + $0x3b0] sm:$0xff]
        %v1107 = vld [vmem:[#allocation3 + $0x3b8] sm:$0xff]
        %v1108 = vld [vmem:[#allocation3 + $0x3c0] sm:$0xff]
        %v1109 = vld [vmem:[#allocation3 + $0x3c8] sm:$0xff]
        %v1110 = vld [vmem:[#allocation3 + $0x3d0] sm:$0xff]
        %v1111 = vld [vmem:[#allocation3 + $0x3d8] sm:$0xff]
        %v1112 = vld [vmem:[#allocation3 + $0x3e0] sm:$0xff]
        %v1113 = vld [vmem:[#allocation3 + $0x3e8] sm:$0xff]
        %v1114 = vld [vmem:[#allocation3 + $0x3f0] sm:$0xff]
        %v1115 = vld [vmem:[#allocation3 + $0x3f8] sm:$0xff]
        %v1116 = vld [vmem:[#allocation3 + $0x400] sm:$0xff]
        %v1117 = vld [vmem:[#allocation3 + $0x408] sm:$0xff]
        %v1118 = vld [vmem:[#allocation3 + $0x410] sm:$0xff]
        %v1119 = vld [vmem:[#allocation3 + $0x418] sm:$0xff]
        %v1120 = vld [vmem:[#allocation3 + $0x420] sm:$0xff]
        %v1121 = vld [vmem:[#allocation3 + $0x428] sm:$0xff]
        %v1122 = vld [vmem:[#allocation3 + $0x430] sm:$0xff]
        %v1123 = vld [vmem:[#allocation3 + $0x438] sm:$0xff]
        %v1124 = vld [vmem:[#allocation3 + $0x440] sm:$0xff]
        %v1125 = vld [vmem:[#allocation3 + $0x448] sm:$0xff]
        %v1126 = vld [vmem:[#allocation3 + $0x450] sm:$0xff]
        %v1127 = vld [vmem:[#allocation3 + $0x458] sm:$0xff]
        %v1128 = vld [vmem:[#allocation3 + $0x460] sm:$0xff]
        %v1129 = vld [vmem:[#allocation3 + $0x468] sm:$0xff]
        %v1130 = vld [vmem:[#allocation3 + $0x470] sm:$0xff]
        %v1131 = vld [vmem:[#allocation3 + $0x478] sm:$0xff]
        %v1132 = vld [vmem:[%s1] sm:$0xf]
        %v1133 = vld [vmem:[%s1 + $0x4] sm:$0xf]
        %v1134 = vld [vmem:[%s1 + $0x8] sm:$0xf]
        %v1135 = vld [vmem:[%s1 + $0xc] sm:$0xf]
        %v1136 = vld [vmem:[%s1 + $0x10] sm:$0xf]
        %v1137 = vld [vmem:[%s1 + $0x14] sm:$0xf]
        %v1138 = vld [vmem:[%s1 + $0x18] sm:$0xf]
        %v1139 = vld [vmem:[%s1 + $0x1c] sm:$0xf]
        %v1140 = vld [vmem:[%s1 + $0x20] sm:$0xf]
        %v1141 = vld [vmem:[%s1 + $0x24] sm:$0xf]
        %v1142 = vld [vmem:[%s1 + $0x28] sm:$0xf]
        %v1143 = vld [vmem:[%s1 + $0x2c] sm:$0xf]
        %v1144 = vld [vmem:[%s1 + $0x30] sm:$0xf]
        %v1145 = vld [vmem:[%s1 + $0x34] sm:$0xf]
        %v1146 = vld [vmem:[%s1 + $0x38] sm:$0xf]
        %v1147 = vld [vmem:[%s1 + $0x3c] sm:$0xf]
        %v1148 = vld [vmem:[%s1 + $0x40] sm:$0xf]
        %v1149 = vld [vmem:[%s1 + $0x44] sm:$0xf]
        %v1150 = vld [vmem:[%s1 + $0x48] sm:$0xf]
        %v1151 = vld [vmem:[%s1 + $0x4c] sm:$0xf]
        %v1152 = vld [vmem:[%s1 + $0x50] sm:$0xf]
        %v1153 = vld [vmem:[%s1 + $0x54] sm:$0xf]
        %v1154 = vld [vmem:[%s1 + $0x58] sm:$0xf]
        %v1155 = vld [vmem:[%s1 + $0x5c] sm:$0xf]
        %v1156 = vld [vmem:[%s1 + $0x60] sm:$0xf]
        %v1157 = vld [vmem:[%s1 + $0x64] sm:$0xf]
        %v1158 = vld [vmem:[%s1 + $0x68] sm:$0xf]
        %v1159 = vld [vmem:[%s1 + $0x6c] sm:$0xf]
        %v1160 = vld [vmem:[%s1 + $0x70] sm:$0xf]
        %v1161 = vld [vmem:[%s1 + $0x74] sm:$0xf]
        %v1162 = vld [vmem:[%s1 + $0x78] sm:$0xf]
        %v1163 = vld [vmem:[%s1 + $0x7c] sm:$0xf]
        %v1164 = vld [vmem:[%s1 + $0x80] sm:$0xf]
        %v1165 = vld [vmem:[%s1 + $0x84] sm:$0xf]
        %v1166 = vld [vmem:[%s1 + $0x88] sm:$0xf]
        %v1167 = vld [vmem:[%s1 + $0x8c] sm:$0xf]
        %v1168 = vld [vmem:[%s1 + $0x90] sm:$0xf]
        %v1169 = vld [vmem:[%s1 + $0x94] sm:$0xf]
        %v1170 = vld [vmem:[%s1 + $0x98] sm:$0xf]
        %v1171 = vld [vmem:[%s1 + $0x9c] sm:$0xf]
        %v1172 = vld [vmem:[%s1 + $0xa0] sm:$0xf]
        %v1173 = vld [vmem:[%s1 + $0xa4] sm:$0xf]
        %v1174 = vld [vmem:[%s1 + $0xa8] sm:$0xf]
        %v1175 = vld [vmem:[%s1 + $0xac] sm:$0xf]
        %v1176 = vld [vmem:[%s1 + $0xb0] sm:$0xf]
        %v1177 = vld [vmem:[%s1 + $0xb4] sm:$0xf]
        %v1178 = vld [vmem:[%s1 + $0xb8] sm:$0xf]
        %v1179 = vld [vmem:[%s1 + $0xbc] sm:$0xf]
        %v1180 = vld [vmem:[%s1 + $0xc0] sm:$0xf]
        %v1181 = vld [vmem:[%s1 + $0xc4] sm:$0xf]
        %v1182 = vld [vmem:[%s1 + $0xc8] sm:$0xf]
        %v1183 = vld [vmem:[%s1 + $0xcc] sm:$0xf]
        %v1184 = vld [vmem:[%s1 + $0xd0] sm:$0xf]
        %v1185 = vld [vmem:[%s1 + $0xd4] sm:$0xf]
        %v1186 = vld [vmem:[%s1 + $0xd8] sm:$0xf]
        %v1187 = vld [vmem:[%s1 + $0xdc] sm:$0xf]
        %v1188 = vld [vmem:[%s1 + $0xe0] sm:$0xf]
        %v1189 = vld [vmem:[%s1 + $0xe4] sm:$0xf]
        %v1190 = vld [vmem:[%s1 + $0xe8] sm:$0xf]
        %v1191 = vld [vmem:[%s1 + $0xec] sm:$0xf]
        %v1192 = vld [vmem:[%s1 + $0xf0] sm:$0xf]
        %v1193 = vld [vmem:[%s1 + $0xf4] sm:$0xf]
        %v1194 = vld [vmem:[%s1 + $0xf8] sm:$0xf]
        %v1195 = vld [vmem:[%s1 + $0xfc] sm:$0xf]
        %v1196 = vld [vmem:[%s1 + $0x100] sm:$0xf]
        %v1197 = vld [vmem:[%s1 + $0x104] sm:$0xf]
        %v1198 = vld [vmem:[%s1 + $0x108] sm:$0xf]
        %v1199 = vld [vmem:[%s1 + $0x10c] sm:$0xf]
        %v1200 = vld [vmem:[%s1 + $0x110] sm:$0xf]
        %v1201 = vld [vmem:[%s1 + $0x114] sm:$0xf]
        %v1202 = vld [vmem:[%s1 + $0x118] sm:$0xf]
        %v1203 = vld [vmem:[%s1 + $0x11c] sm:$0xf]
        %v1204 = vld [vmem:[%s1 + $0x120] sm:$0xf]
        %v1205 = vld [vmem:[%s1 + $0x124] sm:$0xf]
        %v1206 = vld [vmem:[%s1 + $0x128] sm:$0xf]
        %v1207 = vld [vmem:[%s1 + $0x12c] sm:$0xf]
        %v1208 = vld [vmem:[%s1 + $0x130] sm:$0xf]
        %v1209 = vld [vmem:[%s1 + $0x134] sm:$0xf]
        %v1210 = vld [vmem:[%s1 + $0x138] sm:$0xf]
        %v1211 = vld [vmem:[%s1 + $0x13c] sm:$0xf]
        %v1212 = vld [vmem:[%s1 + $0x140] sm:$0xf]
        %v1213 = vld [vmem:[%s1 + $0x144] sm:$0xf]
        %v1214 = vld [vmem:[%s1 + $0x148] sm:$0xf]
        %v1215 = vld [vmem:[%s1 + $0x14c] sm:$0xf]
        %v1216 = vld [vmem:[%s1 + $0x150] sm:$0xf]
        %v1217 = vld [vmem:[%s1 + $0x154] sm:$0xf]
        %v1218 = vld [vmem:[%s1 + $0x158] sm:$0xf]
        %v1219 = vld [vmem:[%s1 + $0x15c] sm:$0xf]
        %v1220 = vld [vmem:[%s1 + $0x160] sm:$0xf]
        %v1221 = vld [vmem:[%s1 + $0x164] sm:$0xf]
        %v1222 = vld [vmem:[%s1 + $0x168] sm:$0xf]
        %v1223 = vld [vmem:[%s1 + $0x16c] sm:$0xf]
        %v1224 = vld [vmem:[%s1 + $0x170] sm:$0xf]
        %v1225 = vld [vmem:[%s1 + $0x174] sm:$0xf]
        %v1226 = vld [vmem:[%s1 + $0x178] sm:$0xf]
        %v1227 = vld [vmem:[%s1 + $0x17c] sm:$0xf]
        %v1228 = vld [vmem:[%s1 + $0x180] sm:$0xf]
        %v1229 = vld [vmem:[%s1 + $0x184] sm:$0xf]
        %v1230 = vld [vmem:[%s1 + $0x188] sm:$0xf]
        %v1231 = vld [vmem:[%s1 + $0x18c] sm:$0xf]
        %v1232 = vld [vmem:[%s1 + $0x190] sm:$0xf]
        %v1233 = vld [vmem:[%s1 + $0x194] sm:$0xf]
        %v1234 = vld [vmem:[%s1 + $0x198] sm:$0xf]
        %v1235 = vld [vmem:[%s1 + $0x19c] sm:$0xf]
        %v1236 = vld [vmem:[%s1 + $0x1a0] sm:$0xf]
        %v1237 = vld [vmem:[%s1 + $0x1a4] sm:$0xf]
        %v1238 = vld [vmem:[%s1 + $0x1a8] sm:$0xf]
        %v1239 = vld [vmem:[%s1 + $0x1ac] sm:$0xf]
        %v1240 = vld [vmem:[%s1 + $0x1b0] sm:$0xf]
        %v1241 = vld [vmem:[%s1 + $0x1b4] sm:$0xf]
        %v1242 = vld [vmem:[%s1 + $0x1b8] sm:$0xf]
        %v1243 = vld [vmem:[%s1 + $0x1bc] sm:$0xf]
        %v1244 = vld [vmem:[%s1 + $0x1c0] sm:$0xf]
        %v1245 = vld [vmem:[%s1 + $0x1c4] sm:$0xf]
        %v1246 = vld [vmem:[%s1 + $0x1c8] sm:$0xf]
        %v1247 = vld [vmem:[%s1 + $0x1cc] sm:$0xf]
        %v1248 = vld [vmem:[%s1 + $0x1d0] sm:$0xf]
        %v1249 = vld [vmem:[%s1 + $0x1d4] sm:$0xf]
        %v1250 = vld [vmem:[%s1 + $0x1d8] sm:$0xf]
        %v1251 = vld [vmem:[%s1 + $0x1dc] sm:$0xf]
        %v1252 = vld [vmem:[%s1 + $0x1e0] sm:$0xf]
        %v1253 = vld [vmem:[%s1 + $0x1e4] sm:$0xf]
        %v1254 = vld [vmem:[%s1 + $0x1e8] sm:$0xf]
        %v1255 = vld [vmem:[%s1 + $0x1ec] sm:$0xf]
        %v1256 = vld [vmem:[%s1 + $0x1f0] sm:$0xf]
        %v1257 = vld [vmem:[%s1 + $0x1f4] sm:$0xf]
        %v1258 = vld [vmem:[%s1 + $0x1f8] sm:$0xf]
        %v1259 = vld [vmem:[%s1 + $0x1fc] sm:$0xf]
        %v1260 = vld [vmem:[%s1 + $0x200] sm:$0xf]
        %v1261 = vld [vmem:[%s1 + $0x204] sm:$0xf]
        %v1262 = vld [vmem:[%s1 + $0x208] sm:$0xf]
        %v1263 = vld [vmem:[%s1 + $0x20c] sm:$0xf]
        %v1264 = vld [vmem:[%s1 + $0x210] sm:$0xf]
        %v1265 = vld [vmem:[%s1 + $0x214] sm:$0xf]
        %v1266 = vld [vmem:[%s1 + $0x218] sm:$0xf]
        %v1267 = vld [vmem:[%s1 + $0x21c] sm:$0xf]
        %v1268 = vld [vmem:[%s1 + $0x220] sm:$0xf]
        %v1269 = vld [vmem:[%s1 + $0x224] sm:$0xf]
        %v1270 = vld [vmem:[%s1 + $0x228] sm:$0xf]
        %v1271 = vld [vmem:[%s1 + $0x22c] sm:$0xf]
        %v1272 = vld [vmem:[%s1 + $0x230] sm:$0xf]
        %v1273 = vld [vmem:[%s1 + $0x234] sm:$0xf]
        %v1274 = vld [vmem:[%s1 + $0x238] sm:$0xf]
        %v1275 = vld [vmem:[%s1 + $0x23c] sm:$0xf]
        %v1420 = vunpack.c.l.b16 %v1132
        %v1421 = vunpack.c.l.b16 %v1133
        %v1422 = vunpack.c.l.b16 %v1134
        %v1423 = vunpack.c.l.b16 %v1135
        %v1424 = vunpack.c.l.b16 %v1136
        %v1425 = vunpack.c.l.b16 %v1137
        %v1426 = vunpack.c.l.b16 %v1138
        %v1427 = vunpack.c.l.b16 %v1139
        %v1428 = vunpack.c.l.b16 %v1140
        %v1429 = vunpack.c.l.b16 %v1141
        %v1430 = vunpack.c.l.b16 %v1142
        %v1431 = vunpack.c.l.b16 %v1143
        %v1432 = vunpack.c.l.b16 %v1144
        %v1433 = vunpack.c.l.b16 %v1145
        %v1434 = vunpack.c.l.b16 %v1146
        %v1435 = vunpack.c.l.b16 %v1147
        %v1436 = vunpack.c.l.b16 %v1148
        %v1437 = vunpack.c.l.b16 %v1149
        %v1438 = vunpack.c.l.b16 %v1150
        %v1439 = vunpack.c.l.b16 %v1151
        %v1440 = vunpack.c.l.b16 %v1152
        %v1441 = vunpack.c.l.b16 %v1153
        %v1442 = vunpack.c.l.b16 %v1154
        %v1443 = vunpack.c.l.b16 %v1155
        %v1444 = vunpack.c.l.b16 %v1156
        %v1445 = vunpack.c.l.b16 %v1157
        %v1446 = vunpack.c.l.b16 %v1158
        %v1447 = vunpack.c.l.b16 %v1159
        %v1448 = vunpack.c.l.b16 %v1160
        %v1449 = vunpack.c.l.b16 %v1161
        %v1450 = vunpack.c.l.b16 %v1162
        %v1451 = vunpack.c.l.b16 %v1163
        %v1452 = vunpack.c.l.b16 %v1164
        %v1453 = vunpack.c.l.b16 %v1165
        %v1454 = vunpack.c.l.b16 %v1166
        %v1455 = vunpack.c.l.b16 %v1167
        %v1456 = vunpack.c.l.b16 %v1168
        %v1457 = vunpack.c.l.b16 %v1169
        %v1458 = vunpack.c.l.b16 %v1170
        %v1459 = vunpack.c.l.b16 %v1171
        %v1460 = vunpack.c.l.b16 %v1172
        %v1461 = vunpack.c.l.b16 %v1173
        %v1462 = vunpack.c.l.b16 %v1174
        %v1463 = vunpack.c.l.b16 %v1175
        %v1464 = vunpack.c.l.b16 %v1176
        %v1465 = vunpack.c.l.b16 %v1177
        %v1466 = vunpack.c.l.b16 %v1178
        %v1467 = vunpack.c.l.b16 %v1179
        %v1468 = vunpack.c.l.b16 %v1180
        %v1469 = vunpack.c.l.b16 %v1181
        %v1470 = vunpack.c.l.b16 %v1182
        %v1471 = vunpack.c.l.b16 %v1183
        %v1472 = vunpack.c.l.b16 %v1184
        %v1473 = vunpack.c.l.b16 %v1185
        %v1474 = vunpack.c.l.b16 %v1186
        %v1475 = vunpack.c.l.b16 %v1187
        %v1476 = vunpack.c.l.b16 %v1188
        %v1477 = vunpack.c.l.b16 %v1189
        %v1478 = vunpack.c.l.b16 %v1190
        %v1479 = vunpack.c.l.b16 %v1191
        %v1480 = vunpack.c.l.b16 %v1192
        %v1481 = vunpack.c.l.b16 %v1193
        %v1482 = vunpack.c.l.b16 %v1194
        %v1483 = vunpack.c.l.b16 %v1195
        %v1484 = vunpack.c.l.b16 %v1196
        %v1485 = vunpack.c.l.b16 %v1197
        %v1486 = vunpack.c.l.b16 %v1198
        %v1487 = vunpack.c.l.b16 %v1199
        %v1488 = vunpack.c.l.b16 %v1200
        %v1489 = vunpack.c.l.b16 %v1201
        %v1490 = vunpack.c.l.b16 %v1202
        %v1491 = vunpack.c.l.b16 %v1203
        %v1492 = vunpack.c.l.b16 %v1204
        %v1493 = vunpack.c.l.b16 %v1205
        %v1494 = vunpack.c.l.b16 %v1206
        %v1495 = vunpack.c.l.b16 %v1207
        %v1496 = vunpack.c.l.b16 %v1208
        %v1497 = vunpack.c.l.b16 %v1209
        %v1498 = vunpack.c.l.b16 %v1210
        %v1499 = vunpack.c.l.b16 %v1211
        %v1500 = vunpack.c.l.b16 %v1212
        %v1501 = vunpack.c.l.b16 %v1213
        %v1502 = vunpack.c.l.b16 %v1214
        %v1503 = vunpack.c.l.b16 %v1215
        %v1504 = vunpack.c.l.b16 %v1216
        %v1505 = vunpack.c.l.b16 %v1217
        %v1506 = vunpack.c.l.b16 %v1218
        %v1507 = vunpack.c.l.b16 %v1219
        %v1508 = vunpack.c.l.b16 %v1220
        %v1509 = vunpack.c.l.b16 %v1221
        %v1510 = vunpack.c.l.b16 %v1222
        %v1511 = vunpack.c.l.b16 %v1223
        %v1512 = vunpack.c.l.b16 %v1224
        %v1513 = vunpack.c.l.b16 %v1225
        %v1514 = vunpack.c.l.b16 %v1226
        %v1515 = vunpack.c.l.b16 %v1227
        %v1516 = vunpack.c.l.b16 %v1228
        %v1517 = vunpack.c.l.b16 %v1229
        %v1518 = vunpack.c.l.b16 %v1230
        %v1519 = vunpack.c.l.b16 %v1231
        %v1520 = vunpack.c.l.b16 %v1232
        %v1521 = vunpack.c.l.b16 %v1233
        %v1522 = vunpack.c.l.b16 %v1234
        %v1523 = vunpack.c.l.b16 %v1235
        %v1524 = vunpack.c.l.b16 %v1236
        %v1525 = vunpack.c.l.b16 %v1237
        %v1526 = vunpack.c.l.b16 %v1238
        %v1527 = vunpack.c.l.b16 %v1239
        %v1528 = vunpack.c.l.b16 %v1240
        %v1529 = vunpack.c.l.b16 %v1241
        %v1530 = vunpack.c.l.b16 %v1242
        %v1531 = vunpack.c.l.b16 %v1243
        %v1532 = vunpack.c.l.b16 %v1244
        %v1533 = vunpack.c.l.b16 %v1245
        %v1534 = vunpack.c.l.b16 %v1246
        %v1535 = vunpack.c.l.b16 %v1247
        %v1536 = vunpack.c.l.b16 %v1248
        %v1537 = vunpack.c.l.b16 %v1249
        %v1538 = vunpack.c.l.b16 %v1250
        %v1539 = vunpack.c.l.b16 %v1251
        %v1540 = vunpack.c.l.b16 %v1252
        %v1541 = vunpack.c.l.b16 %v1253
        %v1542 = vunpack.c.l.b16 %v1254
        %v1543 = vunpack.c.l.b16 %v1255
        %v1544 = vunpack.c.l.b16 %v1256
        %v1545 = vunpack.c.l.b16 %v1257
        %v1546 = vunpack.c.l.b16 %v1258
        %v1547 = vunpack.c.l.b16 %v1259
        %v1548 = vunpack.c.l.b16 %v1260
        %v1549 = vunpack.c.l.b16 %v1261
        %v1550 = vunpack.c.l.b16 %v1262
        %v1551 = vunpack.c.l.b16 %v1263
        %v1552 = vunpack.c.l.b16 %v1264
        %v1553 = vunpack.c.l.b16 %v1265
        %v1554 = vunpack.c.l.b16 %v1266
        %v1555 = vunpack.c.l.b16 %v1267
        %v1556 = vunpack.c.l.b16 %v1268
        %v1557 = vunpack.c.l.b16 %v1269
        %v1558 = vunpack.c.l.b16 %v1270
        %v1559 = vunpack.c.l.b16 %v1271
        %v1560 = vunpack.c.l.b16 %v1272
        %v1561 = vunpack.c.l.b16 %v1273
        %v1562 = vunpack.c.l.b16 %v1274
        %v1563 = vunpack.c.l.b16 %v1275
        %v1564 = vpack.c.b16 %v1421, %v1420
        %v1565 = vpack.c.b16 %v1423, %v1422
        %v1566 = vpack.c.b16 %v1425, %v1424
        %v1567 = vpack.c.b16 %v1427, %v1426
        %v1568 = vpack.c.b16 %v1429, %v1428
        %v1569 = vpack.c.b16 %v1431, %v1430
        %v1570 = vpack.c.b16 %v1433, %v1432
        %v1571 = vpack.c.b16 %v1435, %v1434
        %v1572 = vpack.c.b16 %v1437, %v1436
        %v1573 = vpack.c.b16 %v1439, %v1438
        %v1574 = vpack.c.b16 %v1441, %v1440
        %v1575 = vpack.c.b16 %v1443, %v1442
        %v1576 = vpack.c.b16 %v1445, %v1444
        %v1577 = vpack.c.b16 %v1447, %v1446
        %v1578 = vpack.c.b16 %v1449, %v1448
        %v1579 = vpack.c.b16 %v1451, %v1450
        %v1580 = vpack.c.b16 %v1453, %v1452
        %v1581 = vpack.c.b16 %v1455, %v1454
        %v1582 = vpack.c.b16 %v1457, %v1456
        %v1583 = vpack.c.b16 %v1459, %v1458
        %v1584 = vpack.c.b16 %v1461, %v1460
        %v1585 = vpack.c.b16 %v1463, %v1462
        %v1586 = vpack.c.b16 %v1465, %v1464
        %v1587 = vpack.c.b16 %v1467, %v1466
        %v1588 = vpack.c.b16 %v1469, %v1468
        %v1589 = vpack.c.b16 %v1471, %v1470
        %v1590 = vpack.c.b16 %v1473, %v1472
        %v1591 = vpack.c.b16 %v1475, %v1474
        %v1592 = vpack.c.b16 %v1477, %v1476
        %v1593 = vpack.c.b16 %v1479, %v1478
        %v1594 = vpack.c.b16 %v1481, %v1480
        %v1595 = vpack.c.b16 %v1483, %v1482
        %v1596 = vpack.c.b16 %v1485, %v1484
        %v1597 = vpack.c.b16 %v1487, %v1486
        %v1598 = vpack.c.b16 %v1489, %v1488
        %v1599 = vpack.c.b16 %v1491, %v1490
        %v1600 = vpack.c.b16 %v1493, %v1492
        %v1601 = vpack.c.b16 %v1495, %v1494
        %v1602 = vpack.c.b16 %v1497, %v1496
        %v1603 = vpack.c.b16 %v1499, %v1498
        %v1604 = vpack.c.b16 %v1501, %v1500
        %v1605 = vpack.c.b16 %v1503, %v1502
        %v1606 = vpack.c.b16 %v1505, %v1504
        %v1607 = vpack.c.b16 %v1507, %v1506
        %v1608 = vpack.c.b16 %v1509, %v1508
        %v1609 = vpack.c.b16 %v1511, %v1510
        %v1610 = vpack.c.b16 %v1513, %v1512
        %v1611 = vpack.c.b16 %v1515, %v1514
        %v1612 = vpack.c.b16 %v1517, %v1516
        %v1613 = vpack.c.b16 %v1519, %v1518
        %v1614 = vpack.c.b16 %v1521, %v1520
        %v1615 = vpack.c.b16 %v1523, %v1522
        %v1616 = vpack.c.b16 %v1525, %v1524
        %v1617 = vpack.c.b16 %v1527, %v1526
        %v1618 = vpack.c.b16 %v1529, %v1528
        %v1619 = vpack.c.b16 %v1531, %v1530
        %v1620 = vpack.c.b16 %v1533, %v1532
        %v1621 = vpack.c.b16 %v1535, %v1534
        %v1622 = vpack.c.b16 %v1537, %v1536
        %v1623 = vpack.c.b16 %v1539, %v1538
        %v1624 = vpack.c.b16 %v1541, %v1540
        %v1625 = vpack.c.b16 %v1543, %v1542
        %v1626 = vpack.c.b16 %v1545, %v1544
        %v1627 = vpack.c.b16 %v1547, %v1546
        %v1628 = vpack.c.b16 %v1549, %v1548
        %v1629 = vpack.c.b16 %v1551, %v1550
        %v1630 = vpack.c.b16 %v1553, %v1552
        %v1631 = vpack.c.b16 %v1555, %v1554
        %v1632 = vpack.c.b16 %v1557, %v1556
        %v1633 = vpack.c.b16 %v1559, %v1558
        %v1634 = vpack.c.b16 %v1561, %v1560
        %v1635 = vpack.c.b16 %v1563, %v1562
        %1708 = vmatprep.subr.bf16.mxu0 0
        %1709 = vmatpush1.bf16.msra.mxu0 %v1564
        %1710 = vmatprep.subr.bf16.mxu0 0
        %1711 = vmatpush1.bf16.msra.mxu0 %v1565
        %1712 = vmatprep.subr.bf16.mxu0 0
        %1713 = vmatpush1.bf16.msra.mxu0 %v1566
        %1714 = vmatprep.subr.bf16.mxu0 0
        %1715 = vmatpush1.bf16.msra.mxu0 %v1567
        %1716 = vmatprep.subr.bf16.mxu0 0
        %1717 = vmatpush1.bf16.msra.mxu0 %v1568
        %1718 = vmatprep.subr.bf16.mxu0 0
        %1719 = vmatpush1.bf16.msra.mxu0 %v1569
        %1720 = vmatprep.subr.bf16.mxu0 0
        %1721 = vmatpush1.bf16.msra.mxu0 %v1570
        %1722 = vmatprep.subr.bf16.mxu0 0
        %1723 = vmatpush1.bf16.msra.mxu0 %v1571
        %1724 = vmatprep.subr.bf16.mxu0 0
        %1725 = vmatpush1.bf16.msra.mxu0 %v1572
        %1726 = vmatprep.subr.bf16.mxu0 0
        %1727 = vmatpush1.bf16.msra.mxu0 %v1573
        %1728 = vmatprep.subr.bf16.mxu0 0
        %1729 = vmatpush1.bf16.msra.mxu0 %v1574
        %1730 = vmatprep.subr.bf16.mxu0 0
        %1731 = vmatpush1.bf16.msra.mxu0 %v1575
        %1732 = vmatprep.subr.bf16.mxu0 0
        %1733 = vmatpush1.bf16.msra.mxu0 %v1576
        %1734 = vmatprep.subr.bf16.mxu0 0
        %1735 = vmatpush1.bf16.msra.mxu0 %v1577
        %1736 = vmatprep.subr.bf16.mxu0 0
        %1737 = vmatpush1.bf16.msra.mxu0 %v1578
        %1738 = vmatprep.subr.bf16.mxu0 0
        %1739 = vmatpush1.bf16.msra.mxu0 %v1579
        %1740 = vmatprep.mubr.bf16.mxu0 %v989
        %1741 = vmatmul.mubr.bf16.gmra.mrb[0].mxu0 %v988
        %v1742 = vpop.f32.mrb[0].mxu0
        %v1743 = vadd.f32 0.0, %v1742
        %v1744 = vpop.f32.mrb[0].mxu0
        %v1745 = vpop.f32.mrb[0].mxu0
        %v1746 = vadd.f32 0.0, %v1745
        %v1747 = vpop.f32.mrb[0].mxu0
        %1748 = vmatprep.mubr.bf16.mxu0 %v998
        %1749 = vmatmul.mubr.bf16.gmra.mrb[0].mxu0 %v997
        %v1750 = vpop.f32.mrb[0].mxu0
        %v1751 = vadd.f32 0.0, %v1750
        %v1752 = vpop.f32.mrb[0].mxu0
        %v1753 = vpop.f32.mrb[0].mxu0
        %v1754 = vadd.f32 0.0, %v1753
        %v1755 = vpop.f32.mrb[0].mxu0
        %1756 = vmatprep.mubr.bf16.mxu0 %v1007
        %1757 = vmatmul.mubr.bf16.gmra.mrb[0].mxu0 %v1006
        %v1758 = vpop.f32.mrb[0].mxu0
        %v1759 = vadd.f32 0.0, %v1758
        %v1760 = vpop.f32.mrb[0].mxu0
        %v1761 = vpop.f32.mrb[0].mxu0
        %v1762 = vadd.f32 0.0, %v1761
        %v1763 = vpop.f32.mrb[0].mxu0
        %1764 = vmatprep.mubr.bf16.mxu0 %v1016
        %1765 = vmatmul.mubr.bf16.gmra.mrb[0].mxu0 %v1015
        %v1766 = vpop.f32.mrb[0].mxu0
        %v1767 = vadd.f32 0.0, %v1766
        %v1768 = vpop.f32.mrb[0].mxu0
        %v1769 = vpop.f32.mrb[0].mxu0
        %v1770 = vadd.f32 0.0, %v1769
        %v1771 = vpop.f32.mrb[0].mxu0
        %1772 = vmatprep.mubr.bf16.mxu0 %v1025
        %1773 = vmatmul.mubr.bf16.gmra.mrb[0].mxu0 %v1024
        %v1774 = vpop.f32.mrb[0].mxu0
        %v1775 = vadd.f32 0.0, %v1774
        %v1776 = vpop.f32.mrb[0].mxu0
        %v1777 = vpop.f32.mrb[0].mxu0
        %v1778 = vadd.f32 0.0, %v1777
        %v1779 = vpop.f32.mrb[0].mxu0
        %1780 = vmatprep.mubr.bf16.mxu0 %v1034
        %1781 = vmatmul.mubr.bf16.gmra.mrb[0].mxu0 %v1033
        %v1782 = vpop.f32.mrb[0].mxu0
        %v1783 = vadd.f32 0.0, %v1782
        %v1784 = vpop.f32.mrb[0].mxu0
        %v1785 = vpop.f32.mrb[0].mxu0
        %v1786 = vadd.f32 0.0, %v1785
        %v1787 = vpop.f32.mrb[0].mxu0
        %1788 = vmatprep.mubr.bf16.mxu0 %v1043
        %1789 = vmatmul.mubr.bf16.gmra.mrb[0].mxu0 %v1042
        %v1790 = vpop.f32.mrb[0].mxu0
        %v1791 = vadd.f32 0.0, %v1790
        %v1792 = vpop.f32.mrb[0].mxu0
        %v1793 = vpop.f32.mrb[0].mxu0
        %v1794 = vadd.f32 0.0, %v1793
        %v1795 = vpop.f32.mrb[0].mxu0
        %1796 = vmatprep.mubr.bf16.mxu0 %v1052
        %1797 = vmatmul.mubr.bf16.gmra.mrb[0].mxu0 %v1051
        %v1798 = vpop.f32.mrb[0].mxu0
        %v1799 = vadd.f32 0.0, %v1798
        %v1800 = vpop.f32.mrb[0].mxu0
        %v1801 = vpop.f32.mrb[0].mxu0
        %v1802 = vadd.f32 0.0, %v1801
        %v1803 = vpop.f32.mrb[0].mxu0
        %1804 = vmatprep.mubr.bf16.mxu0 %v1061
        %1805 = vmatmul.mubr.bf16.gmra.mrb[0].mxu0 %v1060
        %v1806 = vpop.f32.mrb[0].mxu0
        %v1807 = vadd.f32 0.0, %v1806
        %v1808 = vpop.f32.mrb[0].mxu0
        %v1809 = vpop.f32.mrb[0].mxu0
        %v1810 = vadd.f32 0.0, %v1809
        %v1811 = vpop.f32.mrb[0].mxu0
        %1812 = vmatprep.mubr.bf16.mxu0 %v1070
        %1813 = vmatmul.mubr.bf16.gmra.mrb[0].mxu0 %v1069
        %v1814 = vpop.f32.mrb[0].mxu0
        %v1815 = vadd.f32 0.0, %v1814
        %v1816 = vpop.f32.mrb[0].mxu0
        %v1817 = vpop.f32.mrb[0].mxu0
        %v1818 = vadd.f32 0.0, %v1817
        %v1819 = vpop.f32.mrb[0].mxu0
        %1820 = vmatprep.mubr.bf16.mxu0 %v1079
        %1821 = vmatmul.mubr.bf16.gmra.mrb[0].mxu0 %v1078
        %v1822 = vpop.f32.mrb[0].mxu0
        %v1823 = vadd.f32 0.0, %v1822
        %v1824 = vpop.f32.mrb[0].mxu0
        %v1825 = vpop.f32.mrb[0].mxu0
        %v1826 = vadd.f32 0.0, %v1825
        %v1827 = vpop.f32.mrb[0].mxu0
        %1828 = vmatprep.mubr.bf16.mxu0 %v1088
        %1829 = vmatmul.mubr.bf16.gmra.mrb[0].mxu0 %v1087
        %v1830 = vpop.f32.mrb[0].mxu0
        %v1831 = vadd.f32 0.0, %v1830
        %v1832 = vpop.f32.mrb[0].mxu0
        %v1833 = vpop.f32.mrb[0].mxu0
        %v1834 = vadd.f32 0.0, %v1833
        %v1835 = vpop.f32.mrb[0].mxu0
        %1836 = vmatprep.mubr.bf16.mxu0 %v1097
        %1837 = vmatmul.mubr.bf16.gmra.mrb[0].mxu0 %v1096
        %v1838 = vpop.f32.mrb[0].mxu0
        %v1839 = vadd.f32 0.0, %v1838
        %v1840 = vpop.f32.mrb[0].mxu0
        %v1841 = vpop.f32.mrb[0].mxu0
        %v1842 = vadd.f32 0.0, %v1841
        %v1843 = vpop.f32.mrb[0].mxu0
        %1844 = vmatprep.mubr.bf16.mxu0 %v1106
        %1845 = vmatmul.mubr.bf16.gmra.mrb[0].mxu0 %v1105
        %v1846 = vpop.f32.mrb[0].mxu0
        %v1847 = vadd.f32 0.0, %v1846
        %v1848 = vpop.f32.mrb[0].mxu0
        %v1849 = vpop.f32.mrb[0].mxu0
        %v1850 = vadd.f32 0.0, %v1849
        %v1851 = vpop.f32.mrb[0].mxu0
        %1852 = vmatprep.mubr.bf16.mxu0 %v1115
        %1853 = vmatmul.mubr.bf16.gmra.mrb[0].mxu0 %v1114
        %v1854 = vpop.f32.mrb[0].mxu0
        %v1855 = vadd.f32 0.0, %v1854
        %v1856 = vpop.f32.mrb[0].mxu0
        %v1857 = vpop.f32.mrb[0].mxu0
        %v1858 = vadd.f32 0.0, %v1857
        %v1859 = vpop.f32.mrb[0].mxu0
        %1860 = vmatprep.mubr.bf16.mxu0 %v1124
        %1861 = vmatmul.mubr.bf16.gmra.mrb[0].mxu0 %v1123
        %v1862 = vpop.f32.mrb[0].mxu0
        %v1863 = vadd.f32 0.0, %v1862
        %v1864 = vpop.f32.mrb[0].mxu0
        %v1865 = vpop.f32.mrb[0].mxu0
        %v1866 = vadd.f32 0.0, %v1865
        %v1867 = vpop.f32.mrb[0].mxu0
        %1868 = vdwg.mxu0
        %1869 = vmatprep.subr.bf16.mxu0 0
        %1870 = vmatpush1.bf16.msra.mxu0 %v1580
        %1871 = vmatprep.subr.bf16.mxu0 0
        %1872 = vmatpush1.bf16.msra.mxu0 %v1581
        %1873 = vmatprep.subr.bf16.mxu0 0
        %1874 = vmatpush1.bf16.msra.mxu0 %v1582
        %1875 = vmatprep.subr.bf16.mxu0 0
        %1876 = vmatpush1.bf16.msra.mxu0 %v1583
        %1877 = vmatprep.subr.bf16.mxu0 0
        %1878 = vmatpush1.bf16.msra.mxu0 %v1584
        %1879 = vmatprep.subr.bf16.mxu0 0
        %1880 = vmatpush1.bf16.msra.mxu0 %v1585
        %1881 = vmatprep.subr.bf16.mxu0 0
        %1882 = vmatpush1.bf16.msra.mxu0 %v1586
        %1883 = vmatprep.subr.bf16.mxu0 0
        %1884 = vmatpush1.bf16.msra.mxu0 %v1587
        %1885 = vmatprep.subr.bf16.mxu0 0
        %1886 = vmatpush1.bf16.msra.mxu0 %v1588
        %1887 = vmatprep.subr.bf16.mxu0 0
        %1888 = vmatpush1.bf16.msra.mxu0 %v1589
        %1889 = vmatprep.subr.bf16.mxu0 0
        %1890 = vmatpush1.bf16.msra.mxu0 %v1590
        %1891 = vmatprep.subr.bf16.mxu0 0
        %1892 = vmatpush1.bf16.msra.mxu0 %v1591
        %1893 = vmatprep.subr.bf16.mxu0 0
        %1894 = vmatpush1.bf16.msra.mxu0 %v1592
        %1895 = vmatprep.subr.bf16.mxu0 0
        %1896 = vmatpush1.bf16.msra.mxu0 %v1593
        %1897 = vmatprep.subr.bf16.mxu0 0
        %1898 = vmatpush1.bf16.msra.mxu0 %v1594
        %1899 = vmatprep.subr.bf16.mxu0 0
        %1900 = vmatpush1.bf16.msra.mxu0 %v1595
        %1901 = vmatprep.mubr.bf16.mxu0 %v991
        %1902 = vmatmul.mubr.bf16.gmra.mrb[0].mxu0 %v990
        %v1903 = vpop.f32.mrb[0].mxu0
        %v1904 = vadd.f32 %v1743, %v1903
        %v1905 = vpop.f32.mrb[0].mxu0
        %v1906 = vpop.f32.mrb[0].mxu0
        %v1907 = vadd.f32 %v1746, %v1906
        %v1908 = vpop.f32.mrb[0].mxu0
        %1909 = vmatprep.mubr.bf16.mxu0 %v1000
        %1910 = vmatmul.mubr.bf16.gmra.mrb[0].mxu0 %v999
        %v1911 = vpop.f32.mrb[0].mxu0
        %v1912 = vadd.f32 %v1751, %v1911
        %v1913 = vpop.f32.mrb[0].mxu0
        %v1914 = vpop.f32.mrb[0].mxu0
        %v1915 = vadd.f32 %v1754, %v1914
        %v1916 = vpop.f32.mrb[0].mxu0
        %1917 = vmatprep.mubr.bf16.mxu0 %v1009
        %1918 = vmatmul.mubr.bf16.gmra.mrb[0].mxu0 %v1008
        %v1919 = vpop.f32.mrb[0].mxu0
        %v1920 = vadd.f32 %v1759, %v1919
        %v1921 = vpop.f32.mrb[0].mxu0
        %v1922 = vpop.f32.mrb[0].mxu0
        %v1923 = vadd.f32 %v1762, %v1922
        %v1924 = vpop.f32.mrb[0].mxu0
        %1925 = vmatprep.mubr.bf16.mxu0 %v1018
        %1926 = vmatmul.mubr.bf16.gmra.mrb[0].mxu0 %v1017
        %v1927 = vpop.f32.mrb[0].mxu0
        %v1928 = vadd.f32 %v1767, %v1927
        %v1929 = vpop.f32.mrb[0].mxu0
        %v1930 = vpop.f32.mrb[0].mxu0
        %v1931 = vadd.f32 %v1770, %v1930
        %v1932 = vpop.f32.mrb[0].mxu0
        %1933 = vmatprep.mubr.bf16.mxu0 %v1027
        %1934 = vmatmul.mubr.bf16.gmra.mrb[0].mxu0 %v1026
        %v1935 = vpop.f32.mrb[0].mxu0
        %v1936 = vadd.f32 %v1775, %v1935
        %v1937 = vpop.f32.mrb[0].mxu0
        %v1938 = vpop.f32.mrb[0].mxu0
        %v1939 = vadd.f32 %v1778, %v1938
        %v1940 = vpop.f32.mrb[0].mxu0
        %1941 = vmatprep.mubr.bf16.mxu0 %v1036
        %1942 = vmatmul.mubr.bf16.gmra.mrb[0].mxu0 %v1035
        %v1943 = vpop.f32.mrb[0].mxu0
        %v1944 = vadd.f32 %v1783, %v1943
        %v1945 = vpop.f32.mrb[0].mxu0
        %v1946 = vpop.f32.mrb[0].mxu0
        %v1947 = vadd.f32 %v1786, %v1946
        %v1948 = vpop.f32.mrb[0].mxu0
        %1949 = vmatprep.mubr.bf16.mxu0 %v1045
        %1950 = vmatmul.mubr.bf16.gmra.mrb[0].mxu0 %v1044
        %v1951 = vpop.f32.mrb[0].mxu0
        %v1952 = vadd.f32 %v1791, %v1951
        %v1953 = vpop.f32.mrb[0].mxu0
        %v1954 = vpop.f32.mrb[0].mxu0
        %v1955 = vadd.f32 %v1794, %v1954
        %v1956 = vpop.f32.mrb[0].mxu0
        %1957 = vmatprep.mubr.bf16.mxu0 %v1054
        %1958 = vmatmul.mubr.bf16.gmra.mrb[0].mxu0 %v1053
        %v1959 = vpop.f32.mrb[0].mxu0
        %v1960 = vadd.f32 %v1799, %v1959
        %v1961 = vpop.f32.mrb[0].mxu0
        %v1962 = vpop.f32.mrb[0].mxu0
        %v1963 = vadd.f32 %v1802, %v1962
        %v1964 = vpop.f32.mrb[0].mxu0
        %1965 = vmatprep.mubr.bf16.mxu0 %v1063
        %1966 = vmatmul.mubr.bf16.gmra.mrb[0].mxu0 %v1062
        %v1967 = vpop.f32.mrb[0].mxu0
        %v1968 = vadd.f32 %v1807, %v1967
        %v1969 = vpop.f32.mrb[0].mxu0
        %v1970 = vpop.f32.mrb[0].mxu0
        %v1971 = vadd.f32 %v1810, %v1970
        %v1972 = vpop.f32.mrb[0].mxu0
        %1973 = vmatprep.mubr.bf16.mxu0 %v1072
        %1974 = vmatmul.mubr.bf16.gmra.mrb[0].mxu0 %v1071
        %v1975 = vpop.f32.mrb[0].mxu0
        %v1976 = vadd.f32 %v1815, %v1975
        %v1977 = vpop.f32.mrb[0].mxu0
        %v1978 = vpop.f32.mrb[0].mxu0
        %v1979 = vadd.f32 %v1818, %v1978
        %v1980 = vpop.f32.mrb[0].mxu0
        %1981 = vmatprep.mubr.bf16.mxu0 %v1081
        %1982 = vmatmul.mubr.bf16.gmra.mrb[0].mxu0 %v1080
        %v1983 = vpop.f32.mrb[0].mxu0
        %v1984 = vadd.f32 %v1823, %v1983
        %v1985 = vpop.f32.mrb[0].mxu0
        %v1986 = vpop.f32.mrb[0].mxu0
        %v1987 = vadd.f32 %v1826, %v1986
        %v1988 = vpop.f32.mrb[0].mxu0
        %1989 = vmatprep.mubr.bf16.mxu0 %v1090
        %1990 = vmatmul.mubr.bf16.gmra.mrb[0].mxu0 %v1089
        %v1991 = vpop.f32.mrb[0].mxu0
        %v1992 = vadd.f32 %v1831, %v1991
        %v1993 = vpop.f32.mrb[0].mxu0
        %v1994 = vpop.f32.mrb[0].mxu0
        %v1995 = vadd.f32 %v1834, %v1994
        %v1996 = vpop.f32.mrb[0].mxu0
        %1997 = vmatprep.mubr.bf16.mxu0 %v1099
        %1998 = vmatmul.mubr.bf16.gmra.mrb[0].mxu0 %v1098
        %v1999 = vpop.f32.mrb[0].mxu0
        %v2000 = vadd.f32 %v1839, %v1999
        %v2001 = vpop.f32.mrb[0].mxu0
        %v2002 = vpop.f32.mrb[0].mxu0
        %v2003 = vadd.f32 %v1842, %v2002
        %v2004 = vpop.f32.mrb[0].mxu0
        %2005 = vmatprep.mubr.bf16.mxu0 %v1108
        %2006 = vmatmul.mubr.bf16.gmra.mrb[0].mxu0 %v1107
        %v2007 = vpop.f32.mrb[0].mxu0
        %v2008 = vadd.f32 %v1847, %v2007
        %v2009 = vpop.f32.mrb[0].mxu0
        %v2010 = vpop.f32.mrb[0].mxu0
        %v2011 = vadd.f32 %v1850, %v2010
        %v2012 = vpop.f32.mrb[0].mxu0
        %2013 = vmatprep.mubr.bf16.mxu0 %v1117
        %2014 = vmatmul.mubr.bf16.gmra.mrb[0].mxu0 %v1116
        %v2015 = vpop.f32.mrb[0].mxu0
        %v2016 = vadd.f32 %v1855, %v2015
        %v2017 = vpop.f32.mrb[0].mxu0
        %v2018 = vpop.f32.mrb[0].mxu0
        %v2019 = vadd.f32 %v1858, %v2018
        %v2020 = vpop.f32.mrb[0].mxu0
        %2021 = vmatprep.mubr.bf16.mxu0 %v1126
        %2022 = vmatmul.mubr.bf16.gmra.mrb[0].mxu0 %v1125
        %v2023 = vpop.f32.mrb[0].mxu0
        %v2024 = vadd.f32 %v1863, %v2023
        %v2025 = vpop.f32.mrb[0].mxu0
        %v2026 = vpop.f32.mrb[0].mxu0
        %v2027 = vadd.f32 %v1866, %v2026
        %v2028 = vpop.f32.mrb[0].mxu0
        %2029 = vdwg.mxu0
        %2030 = vmatprep.subr.bf16.mxu0 0
        %2031 = vmatpush1.bf16.msra.mxu0 %v1596
        %2032 = vmatprep.subr.bf16.mxu0 0
        %2033 = vmatpush1.bf16.msra.mxu0 %v1597
        %2034 = vmatprep.subr.bf16.mxu0 0
        %2035 = vmatpush1.bf16.msra.mxu0 %v1598
        %2036 = vmatprep.subr.bf16.mxu0 0
        %2037 = vmatpush1.bf16.msra.mxu0 %v1599
        %2038 = vmatprep.subr.bf16.mxu0 0
        %2039 = vmatpush1.bf16.msra.mxu0 %v1600
        %2040 = vmatprep.subr.bf16.mxu0 0
        %2041 = vmatpush1.bf16.msra.mxu0 %v1601
        %2042 = vmatprep.subr.bf16.mxu0 0
        %2043 = vmatpush1.bf16.msra.mxu0 %v1602
        %2044 = vmatprep.subr.bf16.mxu0 0
        %2045 = vmatpush1.bf16.msra.mxu0 %v1603
        %2046 = vmatprep.subr.bf16.mxu0 0
        %2047 = vmatpush1.bf16.msra.mxu0 %v1604
        %2048 = vmatprep.subr.bf16.mxu0 0
        %2049 = vmatpush1.bf16.msra.mxu0 %v1605
        %2050 = vmatprep.subr.bf16.mxu0 0
        %2051 = vmatpush1.bf16.msra.mxu0 %v1606
        %2052 = vmatprep.subr.bf16.mxu0 0
        %2053 = vmatpush1.bf16.msra.mxu0 %v1607
        %2054 = vmatprep.subr.bf16.mxu0 0
        %2055 = vmatpush1.bf16.msra.mxu0 %v1608
        %2056 = vmatprep.subr.bf16.mxu0 0
        %2057 = vmatpush1.bf16.msra.mxu0 %v1609
        %2058 = vmatprep.subr.bf16.mxu0 0
        %2059 = vmatpush1.bf16.msra.mxu0 %v1610
        %2060 = vmatprep.subr.bf16.mxu0 0
        %2061 = vmatpush1.bf16.msra.mxu0 %v1611
        %2062 = vmatprep.mubr.bf16.mxu0 %v993
        %2063 = vmatmul.mubr.bf16.gmra.mrb[0].mxu0 %v992
        %v2064 = vpop.f32.mrb[0].mxu0
        %v2065 = vadd.f32 %v1904, %v2064
        %v2066 = vpop.f32.mrb[0].mxu0
        %v2067 = vpop.f32.mrb[0].mxu0
        %v2068 = vadd.f32 %v1907, %v2067
        %v2069 = vpop.f32.mrb[0].mxu0
        %2070 = vmatprep.mubr.bf16.mxu0 %v1002
        %2071 = vmatmul.mubr.bf16.gmra.mrb[0].mxu0 %v1001
        %v2072 = vpop.f32.mrb[0].mxu0
        %v2073 = vadd.f32 %v1912, %v2072
        %v2074 = vpop.f32.mrb[0].mxu0
        %v2075 = vpop.f32.mrb[0].mxu0
        %v2076 = vadd.f32 %v1915, %v2075
        %v2077 = vpop.f32.mrb[0].mxu0
        %2078 = vmatprep.mubr.bf16.mxu0 %v1011
        %2079 = vmatmul.mubr.bf16.gmra.mrb[0].mxu0 %v1010
        %v2080 = vpop.f32.mrb[0].mxu0
        %v2081 = vadd.f32 %v1920, %v2080
        %v2082 = vpop.f32.mrb[0].mxu0
        %v2083 = vpop.f32.mrb[0].mxu0
        %v2084 = vadd.f32 %v1923, %v2083
        %v2085 = vpop.f32.mrb[0].mxu0
        %2086 = vmatprep.mubr.bf16.mxu0 %v1020
        %2087 = vmatmul.mubr.bf16.gmra.mrb[0].mxu0 %v1019
        %v2088 = vpop.f32.mrb[0].mxu0
        %v2089 = vadd.f32 %v1928, %v2088
        %v2090 = vpop.f32.mrb[0].mxu0
        %v2091 = vpop.f32.mrb[0].mxu0
        %v2092 = vadd.f32 %v1931, %v2091
        %v2093 = vpop.f32.mrb[0].mxu0
        %2094 = vmatprep.mubr.bf16.mxu0 %v1029
        %2095 = vmatmul.mubr.bf16.gmra.mrb[0].mxu0 %v1028
        %v2096 = vpop.f32.mrb[0].mxu0
        %v2097 = vadd.f32 %v1936, %v2096
        %v2098 = vpop.f32.mrb[0].mxu0
        %v2099 = vpop.f32.mrb[0].mxu0
        %v2100 = vadd.f32 %v1939, %v2099
        %v2101 = vpop.f32.mrb[0].mxu0
        %2102 = vmatprep.mubr.bf16.mxu0 %v1038
        %2103 = vmatmul.mubr.bf16.gmra.mrb[0].mxu0 %v1037
        %v2104 = vpop.f32.mrb[0].mxu0
        %v2105 = vadd.f32 %v1944, %v2104
        %v2106 = vpop.f32.mrb[0].mxu0
        %v2107 = vpop.f32.mrb[0].mxu0
        %v2108 = vadd.f32 %v1947, %v2107
        %v2109 = vpop.f32.mrb[0].mxu0
        %2110 = vmatprep.mubr.bf16.mxu0 %v1047
        %2111 = vmatmul.mubr.bf16.gmra.mrb[0].mxu0 %v1046
        %v2112 = vpop.f32.mrb[0].mxu0
        %v2113 = vadd.f32 %v1952, %v2112
        %v2114 = vpop.f32.mrb[0].mxu0
        %v2115 = vpop.f32.mrb[0].mxu0
        %v2116 = vadd.f32 %v1955, %v2115
        %v2117 = vpop.f32.mrb[0].mxu0
        %2118 = vmatprep.mubr.bf16.mxu0 %v1056
        %2119 = vmatmul.mubr.bf16.gmra.mrb[0].mxu0 %v1055
        %v2120 = vpop.f32.mrb[0].mxu0
        %v2121 = vadd.f32 %v1960, %v2120
        %v2122 = vpop.f32.mrb[0].mxu0
        %v2123 = vpop.f32.mrb[0].mxu0
        %v2124 = vadd.f32 %v1963, %v2123
        %v2125 = vpop.f32.mrb[0].mxu0
        %2126 = vmatprep.mubr.bf16.mxu0 %v1065
        %2127 = vmatmul.mubr.bf16.gmra.mrb[0].mxu0 %v1064
        %v2128 = vpop.f32.mrb[0].mxu0
        %v2129 = vadd.f32 %v1968, %v2128
        %v2130 = vpop.f32.mrb[0].mxu0
        %v2131 = vpop.f32.mrb[0].mxu0
        %v2132 = vadd.f32 %v1971, %v2131
        %v2133 = vpop.f32.mrb[0].mxu0
        %2134 = vmatprep.mubr.bf16.mxu0 %v1074
        %2135 = vmatmul.mubr.bf16.gmra.mrb[0].mxu0 %v1073
        %v2136 = vpop.f32.mrb[0].mxu0
        %v2137 = vadd.f32 %v1976, %v2136
        %v2138 = vpop.f32.mrb[0].mxu0
        %v2139 = vpop.f32.mrb[0].mxu0
        %v2140 = vadd.f32 %v1979, %v2139
        %v2141 = vpop.f32.mrb[0].mxu0
        %2142 = vmatprep.mubr.bf16.mxu0 %v1083
        %2143 = vmatmul.mubr.bf16.gmra.mrb[0].mxu0 %v1082
        %v2144 = vpop.f32.mrb[0].mxu0
        %v2145 = vadd.f32 %v1984, %v2144
        %v2146 = vpop.f32.mrb[0].mxu0
        %v2147 = vpop.f32.mrb[0].mxu0
        %v2148 = vadd.f32 %v1987, %v2147
        %v2149 = vpop.f32.mrb[0].mxu0
        %2150 = vmatprep.mubr.bf16.mxu0 %v1092
        %2151 = vmatmul.mubr.bf16.gmra.mrb[0].mxu0 %v1091
        %v2152 = vpop.f32.mrb[0].mxu0
        %v2153 = vadd.f32 %v1992, %v2152
        %v2154 = vpop.f32.mrb[0].mxu0
        %v2155 = vpop.f32.mrb[0].mxu0
        %v2156 = vadd.f32 %v1995, %v2155
        %v2157 = vpop.f32.mrb[0].mxu0
        %2158 = vmatprep.mubr.bf16.mxu0 %v1101
        %2159 = vmatmul.mubr.bf16.gmra.mrb[0].mxu0 %v1100
        %v2160 = vpop.f32.mrb[0].mxu0
        %v2161 = vadd.f32 %v2000, %v2160
        %v2162 = vpop.f32.mrb[0].mxu0
        %v2163 = vpop.f32.mrb[0].mxu0
        %v2164 = vadd.f32 %v2003, %v2163
        %v2165 = vpop.f32.mrb[0].mxu0
        %2166 = vmatprep.mubr.bf16.mxu0 %v1110
        %2167 = vmatmul.mubr.bf16.gmra.mrb[0].mxu0 %v1109
        %v2168 = vpop.f32.mrb[0].mxu0
        %v2169 = vadd.f32 %v2008, %v2168
        %v2170 = vpop.f32.mrb[0].mxu0
        %v2171 = vpop.f32.mrb[0].mxu0
        %v2172 = vadd.f32 %v2011, %v2171
        %v2173 = vpop.f32.mrb[0].mxu0
        %2174 = vmatprep.mubr.bf16.mxu0 %v1119
        %2175 = vmatmul.mubr.bf16.gmra.mrb[0].mxu0 %v1118
        %v2176 = vpop.f32.mrb[0].mxu0
        %v2177 = vadd.f32 %v2016, %v2176
        %v2178 = vpop.f32.mrb[0].mxu0
        %v2179 = vpop.f32.mrb[0].mxu0
        %v2180 = vadd.f32 %v2019, %v2179
        %v2181 = vpop.f32.mrb[0].mxu0
        %2182 = vmatprep.mubr.bf16.mxu0 %v1128
        %2183 = vmatmul.mubr.bf16.gmra.mrb[0].mxu0 %v1127
        %v2184 = vpop.f32.mrb[0].mxu0
        %v2185 = vadd.f32 %v2024, %v2184
        %v2186 = vpop.f32.mrb[0].mxu0
        %v2187 = vpop.f32.mrb[0].mxu0
        %v2188 = vadd.f32 %v2027, %v2187
        %v2189 = vpop.f32.mrb[0].mxu0
        %2190 = vdwg.mxu0
        %2191 = vmatprep.subr.bf16.mxu0 0
        %2192 = vmatpush1.bf16.msra.mxu0 %v1612
        %2193 = vmatprep.subr.bf16.mxu0 0
        %2194 = vmatpush1.bf16.msra.mxu0 %v1613
        %2195 = vmatprep.subr.bf16.mxu0 0
        %2196 = vmatpush1.bf16.msra.mxu0 %v1614
        %2197 = vmatprep.subr.bf16.mxu0 0
        %2198 = vmatpush1.bf16.msra.mxu0 %v1615
        %2199 = vmatprep.subr.bf16.mxu0 0
        %2200 = vmatpush1.bf16.msra.mxu0 %v1616
        %2201 = vmatprep.subr.bf16.mxu0 0
        %2202 = vmatpush1.bf16.msra.mxu0 %v1617
        %2203 = vmatprep.subr.bf16.mxu0 0
        %2204 = vmatpush1.bf16.msra.mxu0 %v1618
        %2205 = vmatprep.subr.bf16.mxu0 0
        %2206 = vmatpush1.bf16.msra.mxu0 %v1619
        %2207 = vmatprep.subr.bf16.mxu0 0
        %2208 = vmatpush1.bf16.msra.mxu0 %v1620
        %2209 = vmatprep.subr.bf16.mxu0 0
        %2210 = vmatpush1.bf16.msra.mxu0 %v1621
        %2211 = vmatprep.subr.bf16.mxu0 0
        %2212 = vmatpush1.bf16.msra.mxu0 %v1622
        %2213 = vmatprep.subr.bf16.mxu0 0
        %2214 = vmatpush1.bf16.msra.mxu0 %v1623
        %2215 = vmatprep.subr.bf16.mxu0 0
        %2216 = vmatpush1.bf16.msra.mxu0 %v1624
        %2217 = vmatprep.subr.bf16.mxu0 0
        %2218 = vmatpush1.bf16.msra.mxu0 %v1625
        %2219 = vmatprep.subr.bf16.mxu0 0
        %2220 = vmatpush1.bf16.msra.mxu0 %v1626
        %2221 = vmatprep.subr.bf16.mxu0 0
        %2222 = vmatpush1.bf16.msra.mxu0 %v1627
        %2223 = vmatprep.mubr.bf16.mxu0 %v995
        %2224 = vmatmul.mubr.bf16.gmra.mrb[0].mxu0 %v994
        %v2225 = vpop.f32.mrb[0].mxu0
        %v2226 = vadd.f32 %v2065, %v2225
        %v2227 = vpop.f32.mrb[0].mxu0
        %v2228 = vpop.f32.mrb[0].mxu0
        %v2229 = vadd.f32 %v2068, %v2228
        %v2230 = vpop.f32.mrb[0].mxu0
        %2231 = vmatprep.mubr.bf16.mxu0 %v1004
        %2232 = vmatmul.mubr.bf16.gmra.mrb[0].mxu0 %v1003
        %v2233 = vpop.f32.mrb[0].mxu0
        %v2234 = vadd.f32 %v2073, %v2233
        %v2235 = vpop.f32.mrb[0].mxu0
        %v2236 = vpop.f32.mrb[0].mxu0
        %v2237 = vadd.f32 %v2076, %v2236
        %v2238 = vpop.f32.mrb[0].mxu0
        %2239 = vmatprep.mubr.bf16.mxu0 %v1013
        %2240 = vmatmul.mubr.bf16.gmra.mrb[0].mxu0 %v1012
        %v2241 = vpop.f32.mrb[0].mxu0
        %v2242 = vadd.f32 %v2081, %v2241
        %v2243 = vpop.f32.mrb[0].mxu0
        %v2244 = vpop.f32.mrb[0].mxu0
        %v2245 = vadd.f32 %v2084, %v2244
        %v2246 = vpop.f32.mrb[0].mxu0
        %2247 = vmatprep.mubr.bf16.mxu0 %v1022
        %2248 = vmatmul.mubr.bf16.gmra.mrb[0].mxu0 %v1021
        %v2249 = vpop.f32.mrb[0].mxu0
        %v2250 = vadd.f32 %v2089, %v2249
        %v2251 = vpop.f32.mrb[0].mxu0
        %v2252 = vpop.f32.mrb[0].mxu0
        %v2253 = vadd.f32 %v2092, %v2252
        %v2254 = vpop.f32.mrb[0].mxu0
        %2255 = vmatprep.mubr.bf16.mxu0 %v1031
        %2256 = vmatmul.mubr.bf16.gmra.mrb[0].mxu0 %v1030
        %v2257 = vpop.f32.mrb[0].mxu0
        %v2258 = vadd.f32 %v2097, %v2257
        %v2259 = vpop.f32.mrb[0].mxu0
        %v2260 = vpop.f32.mrb[0].mxu0
        %v2261 = vadd.f32 %v2100, %v2260
        %v2262 = vpop.f32.mrb[0].mxu0
        %2263 = vmatprep.mubr.bf16.mxu0 %v1040
        %2264 = vmatmul.mubr.bf16.gmra.mrb[0].mxu0 %v1039
        %v2265 = vpop.f32.mrb[0].mxu0
        %v2266 = vadd.f32 %v2105, %v2265
        %v2267 = vpop.f32.mrb[0].mxu0
        %v2268 = vpop.f32.mrb[0].mxu0
        %v2269 = vadd.f32 %v2108, %v2268
        %v2270 = vpop.f32.mrb[0].mxu0
        %2271 = vmatprep.mubr.bf16.mxu0 %v1049
        %2272 = vmatmul.mubr.bf16.gmra.mrb[0].mxu0 %v1048
        %v2273 = vpop.f32.mrb[0].mxu0
        %v2274 = vadd.f32 %v2113, %v2273
        %v2275 = vpop.f32.mrb[0].mxu0
        %v2276 = vpop.f32.mrb[0].mxu0
        %v2277 = vadd.f32 %v2116, %v2276
        %v2278 = vpop.f32.mrb[0].mxu0
        %2279 = vmatprep.mubr.bf16.mxu0 %v1058
        %2280 = vmatmul.mubr.bf16.gmra.mrb[0].mxu0 %v1057
        %v2281 = vpop.f32.mrb[0].mxu0
        %v2282 = vadd.f32 %v2121, %v2281
        %v2283 = vpop.f32.mrb[0].mxu0
        %v2284 = vpop.f32.mrb[0].mxu0
        %v2285 = vadd.f32 %v2124, %v2284
        %v2286 = vpop.f32.mrb[0].mxu0
        %2287 = vmatprep.mubr.bf16.mxu0 %v1067
        %2288 = vmatmul.mubr.bf16.gmra.mrb[0].mxu0 %v1066
        %v2289 = vpop.f32.mrb[0].mxu0
        %v2290 = vadd.f32 %v2129, %v2289
        %v2291 = vpop.f32.mrb[0].mxu0
        %v2292 = vpop.f32.mrb[0].mxu0
        %v2293 = vadd.f32 %v2132, %v2292
        %v2294 = vpop.f32.mrb[0].mxu0
        %2295 = vmatprep.mubr.bf16.mxu0 %v1076
        %2296 = vmatmul.mubr.bf16.gmra.mrb[0].mxu0 %v1075
        %v2297 = vpop.f32.mrb[0].mxu0
        %v2298 = vadd.f32 %v2137, %v2297
        %v2299 = vpop.f32.mrb[0].mxu0
        %v2300 = vpop.f32.mrb[0].mxu0
        %v2301 = vadd.f32 %v2140, %v2300
        %v2302 = vpop.f32.mrb[0].mxu0
        %2303 = vmatprep.mubr.bf16.mxu0 %v1085
        %2304 = vmatmul.mubr.bf16.gmra.mrb[0].mxu0 %v1084
        %v2305 = vpop.f32.mrb[0].mxu0
        %v2306 = vadd.f32 %v2145, %v2305
        %v2307 = vpop.f32.mrb[0].mxu0
        %v2308 = vpop.f32.mrb[0].mxu0
        %v2309 = vadd.f32 %v2148, %v2308
        %v2310 = vpop.f32.mrb[0].mxu0
        %2311 = vmatprep.mubr.bf16.mxu0 %v1094
        %2312 = vmatmul.mubr.bf16.gmra.mrb[0].mxu0 %v1093
        %v2313 = vpop.f32.mrb[0].mxu0
        %v2314 = vadd.f32 %v2153, %v2313
        %v2315 = vpop.f32.mrb[0].mxu0
        %v2316 = vpop.f32.mrb[0].mxu0
        %v2317 = vadd.f32 %v2156, %v2316
        %v2318 = vpop.f32.mrb[0].mxu0
        %2319 = vmatprep.mubr.bf16.mxu0 %v1103
        %2320 = vmatmul.mubr.bf16.gmra.mrb[0].mxu0 %v1102
        %v2321 = vpop.f32.mrb[0].mxu0
        %v2322 = vadd.f32 %v2161, %v2321
        %v2323 = vpop.f32.mrb[0].mxu0
        %v2324 = vpop.f32.mrb[0].mxu0
        %v2325 = vadd.f32 %v2164, %v2324
        %v2326 = vpop.f32.mrb[0].mxu0
        %2327 = vmatprep.mubr.bf16.mxu0 %v1112
        %2328 = vmatmul.mubr.bf16.gmra.mrb[0].mxu0 %v1111
        %v2329 = vpop.f32.mrb[0].mxu0
        %v2330 = vadd.f32 %v2169, %v2329
        %v2331 = vpop.f32.mrb[0].mxu0
        %v2332 = vpop.f32.mrb[0].mxu0
        %v2333 = vadd.f32 %v2172, %v2332
        %v2334 = vpop.f32.mrb[0].mxu0
        %2335 = vmatprep.mubr.bf16.mxu0 %v1121
        %2336 = vmatmul.mubr.bf16.gmra.mrb[0].mxu0 %v1120
        %v2337 = vpop.f32.mrb[0].mxu0
        %v2338 = vadd.f32 %v2177, %v2337
        %v2339 = vpop.f32.mrb[0].mxu0
        %v2340 = vpop.f32.mrb[0].mxu0
        %v2341 = vadd.f32 %v2180, %v2340
        %v2342 = vpop.f32.mrb[0].mxu0
        %2343 = vmatprep.mubr.bf16.mxu0 %v1130
        %2344 = vmatmul.mubr.bf16.gmra.mrb[0].mxu0 %v1129
        %v2345 = vpop.f32.mrb[0].mxu0
        %v2346 = vadd.f32 %v2185, %v2345
        %v2347 = vpop.f32.mrb[0].mxu0
        %v2348 = vpop.f32.mrb[0].mxu0
        %v2349 = vadd.f32 %v2188, %v2348
        %v2350 = vpop.f32.mrb[0].mxu0
        %2351 = vdwg.mxu0
        %2352 = vmatprep.subr.bf16.mxu0 0
        %2353 = vmatpush1.bf16.msra.mxu0 %v1628
        %2354 = vmatprep.subr.bf16.mxu0 0
        %2355 = vmatpush1.bf16.msra.mxu0 %v1629
        %2356 = vmatprep.subr.bf16.mxu0 0
        %2357 = vmatpush1.bf16.msra.mxu0 %v1630
        %2358 = vmatprep.subr.bf16.mxu0 0
        %2359 = vmatpush1.bf16.msra.mxu0 %v1631
        %2360 = vmatprep.subr.bf16.mxu0 0
        %2361 = vmatpush1.bf16.msra.mxu0 %v1632
        %2362 = vmatprep.subr.bf16.mxu0 0
        %2363 = vmatpush1.bf16.msra.mxu0 %v1633
        %2364 = vmatprep.subr.bf16.mxu0 0
        %2365 = vmatpush1.bf16.msra.mxu0 %v1634
        %2366 = vmatprep.subr.bf16.mxu0 0
        %2367 = vmatpush1.bf16.msra.mxu0 %v1635
        %2368 = vmatprep.subr.bf16.mxu0 0
        %2369 = vmatpush1.bf16.msra.mxu0 0
        %2370 = vmatprep.subr.bf16.mxu0 0
        %2371 = vmatpush1.bf16.msra.mxu0 0
        %2372 = vmatprep.subr.bf16.mxu0 0
        %2373 = vmatpush1.bf16.msra.mxu0 0
        %2374 = vmatprep.subr.bf16.mxu0 0
        %2375 = vmatpush1.bf16.msra.mxu0 0
        %2376 = vmatprep.subr.bf16.mxu0 0
        %2377 = vmatpush1.bf16.msra.mxu0 0
        %2378 = vmatprep.subr.bf16.mxu0 0
        %2379 = vmatpush1.bf16.msra.mxu0 0
        %2380 = vmatprep.subr.bf16.mxu0 0
        %2381 = vmatpush1.bf16.msra.mxu0 0
        %2382 = vmatprep.subr.bf16.mxu0 0
        %2383 = vmatpush1.bf16.msra.mxu0 0
        %2384 = vmatprep.mubr.bf16.mxu0 0
        %2385 = vmatmul.mubr.bf16.gmra.mrb[0].mxu0 %v996
        %v2386 = vpop.f32.mrb[0].mxu0
        %v2387 = vadd.f32 %v2226, %v2386
        %v2388 = vpop.f32.mrb[0].mxu0
        %v2389 = vpop.f32.mrb[0].mxu0
        %v2390 = vadd.f32 %v2229, %v2389
        %v2391 = vpop.f32.mrb[0].mxu0
        %2392 = vmatprep.mubr.bf16.mxu0 0
        %2393 = vmatmul.mubr.bf16.gmra.mrb[0].mxu0 %v1005
        %v2394 = vpop.f32.mrb[0].mxu0
        %v2395 = vadd.f32 %v2234, %v2394
        %v2396 = vpop.f32.mrb[0].mxu0
        %v2397 = vpop.f32.mrb[0].mxu0
        %v2398 = vadd.f32 %v2237, %v2397
        %v2399 = vpop.f32.mrb[0].mxu0
        %2400 = vmatprep.mubr.bf16.mxu0 0
        %2401 = vmatmul.mubr.bf16.gmra.mrb[0].mxu0 %v1014
        %v2402 = vpop.f32.mrb[0].mxu0
        %v2403 = vadd.f32 %v2242, %v2402
        %v2404 = vpop.f32.mrb[0].mxu0
        %v2405 = vpop.f32.mrb[0].mxu0
        %v2406 = vadd.f32 %v2245, %v2405
        %v2407 = vpop.f32.mrb[0].mxu0
        %2408 = vmatprep.mubr.bf16.mxu0 0
        %2409 = vmatmul.mubr.bf16.gmra.mrb[0].mxu0 %v1023
        %v2410 = vpop.f32.mrb[0].mxu0
        %v2411 = vadd.f32 %v2250, %v2410
        %v2412 = vpop.f32.mrb[0].mxu0
        %v2413 = vpop.f32.mrb[0].mxu0
        %v2414 = vadd.f32 %v2253, %v2413
        %v2415 = vpop.f32.mrb[0].mxu0
        %2416 = vmatprep.mubr.bf16.mxu0 0
        %2417 = vmatmul.mubr.bf16.gmra.mrb[0].mxu0 %v1032
        %v2418 = vpop.f32.mrb[0].mxu0
        %v2419 = vadd.f32 %v2258, %v2418
        %v2420 = vpop.f32.mrb[0].mxu0
        %v2421 = vpop.f32.mrb[0].mxu0
        %v2422 = vadd.f32 %v2261, %v2421
        %v2423 = vpop.f32.mrb[0].mxu0
        %2424 = vmatprep.mubr.bf16.mxu0 0
        %2425 = vmatmul.mubr.bf16.gmra.mrb[0].mxu0 %v1041
        %v2426 = vpop.f32.mrb[0].mxu0
        %v2427 = vadd.f32 %v2266, %v2426
        %v2428 = vpop.f32.mrb[0].mxu0
        %v2429 = vpop.f32.mrb[0].mxu0
        %v2430 = vadd.f32 %v2269, %v2429
        %v2431 = vpop.f32.mrb[0].mxu0
        %2432 = vmatprep.mubr.bf16.mxu0 0
        %2433 = vmatmul.mubr.bf16.gmra.mrb[0].mxu0 %v1050
        %v2434 = vpop.f32.mrb[0].mxu0
        %v2435 = vadd.f32 %v2274, %v2434
        %v2436 = vpop.f32.mrb[0].mxu0
        %v2437 = vpop.f32.mrb[0].mxu0
        %v2438 = vadd.f32 %v2277, %v2437
        %v2439 = vpop.f32.mrb[0].mxu0
        %2440 = vmatprep.mubr.bf16.mxu0 0
        %2441 = vmatmul.mubr.bf16.gmra.mrb[0].mxu0 %v1059
        %v2442 = vpop.f32.mrb[0].mxu0
        %v2443 = vadd.f32 %v2282, %v2442
        %v2444 = vpop.f32.mrb[0].mxu0
        %v2445 = vpop.f32.mrb[0].mxu0
        %v2446 = vadd.f32 %v2285, %v2445
        %v2447 = vpop.f32.mrb[0].mxu0
        %2448 = vmatprep.mubr.bf16.mxu0 0
        %2449 = vmatmul.mubr.bf16.gmra.mrb[0].mxu0 %v1068
        %v2450 = vpop.f32.mrb[0].mxu0
        %v2451 = vadd.f32 %v2290, %v2450
        %v2452 = vpop.f32.mrb[0].mxu0
        %v2453 = vpop.f32.mrb[0].mxu0
        %v2454 = vadd.f32 %v2293, %v2453
        %v2455 = vpop.f32.mrb[0].mxu0
        %2456 = vmatprep.mubr.bf16.mxu0 0
        %2457 = vmatmul.mubr.bf16.gmra.mrb[0].mxu0 %v1077
        %v2458 = vpop.f32.mrb[0].mxu0
        %v2459 = vadd.f32 %v2298, %v2458
        %v2460 = vpop.f32.mrb[0].mxu0
        %v2461 = vpop.f32.mrb[0].mxu0
        %v2462 = vadd.f32 %v2301, %v2461
        %v2463 = vpop.f32.mrb[0].mxu0
        %2464 = vmatprep.mubr.bf16.mxu0 0
        %2465 = vmatmul.mubr.bf16.gmra.mrb[0].mxu0 %v1086
        %v2466 = vpop.f32.mrb[0].mxu0
        %v2467 = vadd.f32 %v2306, %v2466
        %v2468 = vpop.f32.mrb[0].mxu0
        %v2469 = vpop.f32.mrb[0].mxu0
        %v2470 = vadd.f32 %v2309, %v2469
        %v2471 = vpop.f32.mrb[0].mxu0
        %2472 = vmatprep.mubr.bf16.mxu0 0
        %2473 = vmatmul.mubr.bf16.gmra.mrb[0].mxu0 %v1095
        %v2474 = vpop.f32.mrb[0].mxu0
        %v2475 = vadd.f32 %v2314, %v2474
        %v2476 = vpop.f32.mrb[0].mxu0
        %v2477 = vpop.f32.mrb[0].mxu0
        %v2478 = vadd.f32 %v2317, %v2477
        %v2479 = vpop.f32.mrb[0].mxu0
        %2480 = vmatprep.mubr.bf16.mxu0 0
        %2481 = vmatmul.mubr.bf16.gmra.mrb[0].mxu0 %v1104
        %v2482 = vpop.f32.mrb[0].mxu0
        %v2483 = vadd.f32 %v2322, %v2482
        %v2484 = vpop.f32.mrb[0].mxu0
        %v2485 = vpop.f32.mrb[0].mxu0
        %v2486 = vadd.f32 %v2325, %v2485
        %v2487 = vpop.f32.mrb[0].mxu0
        %2488 = vmatprep.mubr.bf16.mxu0 0
        %2489 = vmatmul.mubr.bf16.gmra.mrb[0].mxu0 %v1113
        %v2490 = vpop.f32.mrb[0].mxu0
        %v2491 = vadd.f32 %v2330, %v2490
        %v2492 = vpop.f32.mrb[0].mxu0
        %v2493 = vpop.f32.mrb[0].mxu0
        %v2494 = vadd.f32 %v2333, %v2493
        %v2495 = vpop.f32.mrb[0].mxu0
        %2496 = vmatprep.mubr.bf16.mxu0 0
        %2497 = vmatmul.mubr.bf16.gmra.mrb[0].mxu0 %v1122
        %v2498 = vpop.f32.mrb[0].mxu0
        %v2499 = vadd.f32 %v2338, %v2498
        %v2500 = vpop.f32.mrb[0].mxu0
        %v2501 = vpop.f32.mrb[0].mxu0
        %v2502 = vadd.f32 %v2341, %v2501
        %v2503 = vpop.f32.mrb[0].mxu0
        %2504 = vmatprep.mubr.bf16.mxu0 0
        %2505 = vmatmul.mubr.bf16.gmra.mrb[0].mxu0 %v1131
        %v2506 = vpop.f32.mrb[0].mxu0
        %v2507 = vadd.f32 %v2346, %v2506
        %v2508 = vpop.f32.mrb[0].mxu0
        %v2509 = vpop.f32.mrb[0].mxu0
        %v2510 = vadd.f32 %v2349, %v2509
        %v2511 = vpop.f32.mrb[0].mxu0
        %2512 = vdwg.mxu0
        %v2513 = vld [vmem:[%s2] sm:$0x1]
        %v2515 = vlaneseq
        %v2516 = vshrl.u32 %v2515, 7
        %v2517 = vsub.s32 0, %v2516
        %v2518 = vrot.slane %v2513, %v2517
        %v2520 = vmul.f32 %v2387, %v2518
        %v2521 = vmul.f32 %v2390, %v2518
        %v2522 = vmul.f32 %v2395, %v2518
        %v2523 = vmul.f32 %v2398, %v2518
        %v2524 = vmul.f32 %v2403, %v2518
        %v2525 = vmul.f32 %v2406, %v2518
        %v2526 = vmul.f32 %v2411, %v2518
        %v2527 = vmul.f32 %v2414, %v2518
        %v2528 = vmul.f32 %v2419, %v2518
        %v2529 = vmul.f32 %v2422, %v2518
        %v2530 = vmul.f32 %v2427, %v2518
        %v2531 = vmul.f32 %v2430, %v2518
        %v2532 = vmul.f32 %v2435, %v2518
        %v2533 = vmul.f32 %v2438, %v2518
        %v2534 = vmul.f32 %v2443, %v2518
        %v2535 = vmul.f32 %v2446, %v2518
        %v2536 = vmul.f32 %v2451, %v2518
        %v2537 = vmul.f32 %v2454, %v2518
        %v2538 = vmul.f32 %v2459, %v2518
        %v2539 = vmul.f32 %v2462, %v2518
        %v2540 = vmul.f32 %v2467, %v2518
        %v2541 = vmul.f32 %v2470, %v2518
        %v2542 = vmul.f32 %v2475, %v2518
        %v2543 = vmul.f32 %v2478, %v2518
        %v2544 = vmul.f32 %v2483, %v2518
        %v2545 = vmul.f32 %v2486, %v2518
        %v2546 = vmul.f32 %v2491, %v2518
        %v2547 = vmul.f32 %v2494, %v2518
        %v2548 = vmul.f32 %v2499, %v2518
        %v2549 = vmul.f32 %v2502, %v2518
        %v2550 = vmul.f32 %v2507, %v2518
        %v2551 = vmul.f32 %v2510, %v2518
        %v2552 = vld [vmem:[%s3] sm:$0x1]
        %v2554 = vlaneseq
        %v2555 = vshrl.u32 %v2554, 7
        %v2556 = vsub.s32 0, %v2555
        %v2557 = vrot.slane %v2552, %v2556
        %v2559 = vadd.f32 %v2520, %v2557
        %v2560 = vadd.f32 %v2521, %v2557
        %v2561 = vadd.f32 %v2522, %v2557
        %v2562 = vadd.f32 %v2523, %v2557
        %v2563 = vadd.f32 %v2524, %v2557
        %v2564 = vadd.f32 %v2525, %v2557
        %v2565 = vadd.f32 %v2526, %v2557
        %v2566 = vadd.f32 %v2527, %v2557
        %v2567 = vadd.f32 %v2528, %v2557
        %v2568 = vadd.f32 %v2529, %v2557
        %v2569 = vadd.f32 %v2530, %v2557
        %v2570 = vadd.f32 %v2531, %v2557
        %v2571 = vadd.f32 %v2532, %v2557
        %v2572 = vadd.f32 %v2533, %v2557
        %v2573 = vadd.f32 %v2534, %v2557
        %v2574 = vadd.f32 %v2535, %v2557
        %v2575 = vadd.f32 %v2536, %v2557
        %v2576 = vadd.f32 %v2537, %v2557
        %v2577 = vadd.f32 %v2538, %v2557
        %v2578 = vadd.f32 %v2539, %v2557
        %v2579 = vadd.f32 %v2540, %v2557
        %v2580 = vadd.f32 %v2541, %v2557
        %v2581 = vadd.f32 %v2542, %v2557
        %v2582 = vadd.f32 %v2543, %v2557
        %v2583 = vadd.f32 %v2544, %v2557
        %v2584 = vadd.f32 %v2545, %v2557
        %v2585 = vadd.f32 %v2546, %v2557
        %v2586 = vadd.f32 %v2547, %v2557
        %v2587 = vadd.f32 %v2548, %v2557
        %v2588 = vadd.f32 %v2549, %v2557
        %v2589 = vadd.f32 %v2550, %v2557
        %v2590 = vadd.f32 %v2551, %v2557
        %v2591 = vadd.f32 %v2559, %v2560
        %v2592 = vadd.f32 %v2591, %v2561
        %v2593 = vadd.f32 %v2592, %v2562
        %v2594 = vadd.f32 %v2593, %v2563
        %v2595 = vadd.f32 %v2594, %v2564
        %v2596 = vadd.f32 %v2595, %v2565
        %v2597 = vadd.f32 %v2596, %v2566
        %v2598 = vadd.f32 %v2597, %v2567
        %v2599 = vadd.f32 %v2598, %v2568
        %v2600 = vadd.f32 %v2599, %v2569
        %v2601 = vadd.f32 %v2600, %v2570
        %v2602 = vadd.f32 %v2601, %v2571
        %v2603 = vadd.f32 %v2602, %v2572
        %v2604 = vadd.f32 %v2603, %v2573
        %v2605 = vadd.f32 %v2604, %v2574
        %v2606 = vadd.f32 %v2605, %v2575
        %v2607 = vadd.f32 %v2606, %v2576
        %v2608 = vadd.f32 %v2607, %v2577
        %v2609 = vadd.f32 %v2608, %v2578
        %v2610 = vadd.f32 %v2609, %v2579
        %v2611 = vadd.f32 %v2610, %v2580
        %v2612 = vadd.f32 %v2611, %v2581
        %v2613 = vadd.f32 %v2612, %v2582
        %v2614 = vadd.f32 %v2613, %v2583
        %v2615 = vadd.f32 %v2614, %v2584
        %v2616 = vadd.f32 %v2615, %v2585
        %v2617 = vadd.f32 %v2616, %v2586
        %v2618 = vadd.f32 %v2617, %v2587
        %v2619 = vadd.f32 %v2618, %v2588
        %v2620 = vadd.f32 %v2619, %v2589
        %v2621 = vadd.f32 %v2620, %v2590
        %v2622 = vrot.slane %v2621, 4
        %v2623 = vadd.f32 %v2621, %v2622
        %v2624 = vrot.slane %v2623, 2
        %v2625 = vadd.f32 %v2623, %v2624
        %v2626 = vrot.slane %v2625, 1
        %v2627 = vadd.f32 %v2625, %v2626
        %v2628 = vrcp.pop 256.0
        %v2629 = vmul.f32 %v2627, %v2628
        %v2630 = vld [vmem:[%s4] sm:$0xff]
        %v2631 = vld [vmem:[%s4 + $0x8] sm:$0xff]
        %v2632 = vld [vmem:[%s4 + $0x10] sm:$0xff]
        %v2633 = vld [vmem:[%s4 + $0x18] sm:$0xff]
        %v2634 = vld [vmem:[%s4 + $0x20] sm:$0xff]
        %v2635 = vld [vmem:[%s4 + $0x28] sm:$0xff]
        %v2636 = vld [vmem:[%s4 + $0x30] sm:$0xff]
        %v2637 = vld [vmem:[%s4 + $0x38] sm:$0xff]
        %v2638 = vld [vmem:[%s4 + $0x40] sm:$0xff]
        %v2639 = vld [vmem:[%s4 + $0x48] sm:$0xff]
        %v2640 = vld [vmem:[%s4 + $0x50] sm:$0xff]
        %v2641 = vld [vmem:[%s4 + $0x58] sm:$0xff]
        %v2642 = vld [vmem:[%s4 + $0x60] sm:$0xff]
        %v2643 = vld [vmem:[%s4 + $0x68] sm:$0xff]
        %v2644 = vld [vmem:[%s4 + $0x70] sm:$0xff]
        %v2645 = vld [vmem:[%s4 + $0x78] sm:$0xff]
        %2646 = vmatprep.subr.mxu0 0.0
        %2647 = vmatpush1.msra.mxu0 %v2630
        %2648 = vmatprep.subr.mxu0 0.0
        %2649 = vmatpush1.msra.mxu0 %v2631
        %2650 = vmatprep.subr.mxu0 0.0
        %2651 = vmatpush1.msra.mxu0 %v2632
        %2652 = vmatprep.subr.mxu0 0.0
        %2653 = vmatpush1.msra.mxu0 %v2633
        %2654 = vmatprep.subr.mxu0 0.0
        %2655 = vmatpush1.msra.mxu0 %v2634
        %2656 = vmatprep.subr.mxu0 0.0
        %2657 = vmatpush1.msra.mxu0 %v2635
        %2658 = vmatprep.subr.mxu0 0.0
        %2659 = vmatpush1.msra.mxu0 %v2636
        %2660 = vmatprep.subr.mxu0 0.0
        %2661 = vmatpush1.msra.mxu0 %v2637
        %2662 = vmatprep.subr.mxu0 0.0
        %2663 = vmatpush1.msra.mxu0 %v2638
        %2664 = vmatprep.subr.mxu0 0.0
        %2665 = vmatpush1.msra.mxu0 %v2639
        %2666 = vmatprep.subr.mxu0 0.0
        %2667 = vmatpush1.msra.mxu0 %v2640
        %2668 = vmatprep.subr.mxu0 0.0
        %2669 = vmatpush1.msra.mxu0 %v2641
        %2670 = vmatprep.subr.mxu0 0.0
        %2671 = vmatpush1.msra.mxu0 %v2642
        %2672 = vmatprep.subr.mxu0 0.0
        %2673 = vmatpush1.msra.mxu0 %v2643
        %2674 = vmatprep.subr.mxu0 0.0
        %2675 = vmatpush1.msra.mxu0 %v2644
        %2676 = vmatprep.subr.mxu0 0.0
        %2677 = vmatpush1.msra.mxu0 %v2645
        %2678 = vmatprep.subr.mxu0 0.0
        %2679 = vmatpush1.msra.mxu0 0.0
        %2680 = vmatprep.subr.mxu0 0.0
        %2681 = vmatpush1.msra.mxu0 0.0
        %2682 = vmatprep.subr.mxu0 0.0
        %2683 = vmatpush1.msra.mxu0 0.0
        %2684 = vmatprep.subr.mxu0 0.0
        %2685 = vmatpush1.msra.mxu0 0.0
        %2686 = vmatprep.subr.mxu0 0.0
        %2687 = vmatpush1.msra.mxu0 0.0
        %2688 = vmatprep.subr.mxu0 0.0
        %2689 = vmatpush1.msra.mxu0 0.0
        %2690 = vmatprep.subr.mxu0 0.0
        %2691 = vmatpush1.msra.mxu0 0.0
        %2692 = vmatprep.subr.mxu0 0.0
        %2693 = vmatpush1.msra.mxu0 0.0
        %2694 = vmatprep.subr.mxu0 0.0
        %2695 = vmatpush1.msra.mxu0 0.0
        %2696 = vmatprep.subr.mxu0 0.0
        %2697 = vmatpush1.msra.mxu0 0.0
        %2698 = vmatprep.subr.mxu0 0.0
        %2699 = vmatpush1.msra.mxu0 0.0
        %2700 = vmatprep.subr.mxu0 0.0
        %2701 = vmatpush1.msra.mxu0 0.0
        %2702 = vmatprep.subr.mxu0 0.0
        %2703 = vmatpush1.msra.mxu0 0.0
        %2704 = vmatprep.subr.mxu0 0.0
        %2705 = vmatpush1.msra.mxu0 0.0
        %2706 = vmatprep.subr.mxu0 0.0
        %2707 = vmatpush1.msra.mxu0 0.0
        %2708 = vmatprep.subr.mxu0 0.0
        %2709 = vmatpush1.msra.mxu0 0.0
        %2710 = vmatprep.mubr.f32.mxu0 0.0
        %2711 = vmatmul.mubr.f32.gmra.mrb[0].mxu0 %v2629
        %v2712 = vpop.f32.mrb[0].mxu0
        %v2713 = vadd.f32 0.0, %v2712
        %v2714 = vpop.f32.mrb[0].mxu0
        %2715 = vdwg.mxu0
        %v2716 = vmax.f32 %v2713, 0.0
        %v2717 = vld [vmem:[%s5] sm:$0xff]
        %vm2718 = vcmask 64512
        %v2720 = vsel %vm2718, %v2716, 0
        %2722 = vmatprep.subr.mxu0 0.0
        %2723 = vmatpush1.msra.mxu0 %v2717
        %2724 = vmatprep.subr.mxu0 0.0
        %2725 = vmatpush1.msra.mxu0 0.0
        %2726 = vmatprep.subr.mxu0 0.0
        %2727 = vmatpush1.msra.mxu0 0.0
        %2728 = vmatprep.subr.mxu0 0.0
        %2729 = vmatpush1.msra.mxu0 0.0
        %2730 = vmatprep.subr.mxu0 0.0
        %2731 = vmatpush1.msra.mxu0 0.0
        %2732 = vmatprep.subr.mxu0 0.0
        %2733 = vmatpush1.msra.mxu0 0.0
        %2734 = vmatprep.subr.mxu0 0.0
        %2735 = vmatpush1.msra.mxu0 0.0
        %2736 = vmatprep.subr.mxu0 0.0
        %2737 = vmatpush1.msra.mxu0 0.0
        %2738 = vmatprep.subr.mxu0 0.0
        %2739 = vmatpush1.msra.mxu0 0.0
        %2740 = vmatprep.subr.mxu0 0.0
        %2741 = vmatpush1.msra.mxu0 0.0
        %2742 = vmatprep.subr.mxu0 0.0
        %2743 = vmatpush1.msra.mxu0 0.0
        %2744 = vmatprep.subr.mxu0 0.0
        %2745 = vmatpush1.msra.mxu0 0.0
        %2746 = vmatprep.subr.mxu0 0.0
        %2747 = vmatpush1.msra.mxu0 0.0
        %2748 = vmatprep.subr.mxu0 0.0
        %2749 = vmatpush1.msra.mxu0 0.0
        %2750 = vmatprep.subr.mxu0 0.0
        %2751 = vmatpush1.msra.mxu0 0.0
        %2752 = vmatprep.subr.mxu0 0.0
        %2753 = vmatpush1.msra.mxu0 0.0
        %2754 = vmatprep.subr.mxu0 0.0
        %2755 = vmatpush1.msra.mxu0 0.0
        %2756 = vmatprep.subr.mxu0 0.0
        %2757 = vmatpush1.msra.mxu0 0.0
        %2758 = vmatprep.subr.mxu0 0.0
        %2759 = vmatpush1.msra.mxu0 0.0
        %2760 = vmatprep.subr.mxu0 0.0
        %2761 = vmatpush1.msra.mxu0 0.0
        %2762 = vmatprep.subr.mxu0 0.0
        %2763 = vmatpush1.msra.mxu0 0.0
        %2764 = vmatprep.subr.mxu0 0.0
        %2765 = vmatpush1.msra.mxu0 0.0
        %2766 = vmatprep.subr.mxu0 0.0
        %2767 = vmatpush1.msra.mxu0 0.0
        %2768 = vmatprep.subr.mxu0 0.0
        %2769 = vmatpush1.msra.mxu0 0.0
        %2770 = vmatprep.subr.mxu0 0.0
        %2771 = vmatpush1.msra.mxu0 0.0
        %2772 = vmatprep.subr.mxu0 0.0
        %2773 = vmatpush1.msra.mxu0 0.0
        %2774 = vmatprep.subr.mxu0 0.0
        %2775 = vmatpush1.msra.mxu0 0.0
        %2776 = vmatprep.subr.mxu0 0.0
        %2777 = vmatpush1.msra.mxu0 0.0
        %2778 = vmatprep.subr.mxu0 0.0
        %2779 = vmatpush1.msra.mxu0 0.0
        %2780 = vmatprep.subr.mxu0 0.0
        %2781 = vmatpush1.msra.mxu0 0.0
        %2782 = vmatprep.subr.mxu0 0.0
        %2783 = vmatpush1.msra.mxu0 0.0
        %2784 = vmatprep.subr.mxu0 0.0
        %2785 = vmatpush1.msra.mxu0 0.0
        %2786 = vmatprep.mubr.f32.mxu0 0.0
        %2787 = vmatmul.mubr.f32.gmra.mrb[0].mxu0 %v2720
        %v2788 = vpop.f32.mrb[0].mxu0
        %v2789 = vadd.f32 0.0, %v2788
        %v2790 = vpop.f32.mrb[0].mxu0
        %2791 = vdwg.mxu0
        %v2792 = vxor.u32 %v2789, 2147483648
        %v2793 = vmul.f32 %v2792, 1.442695
        %v2794 = vpow.pop %v2793
        %v2795 = vadd.f32 %v2794, 1.0
        %v2796 = vrcp.pop %v2795
        %v2797 = vmul.f32 1.0, %v2796
        %v2798 = vld [vmem:[%s378 + $0x1] sm:$0xff]
        %v2799 = vld [vmem:[%s378 + $0x9] sm:$0xff]
        %v2800 = vld [vmem:[%s378 + $0x19] sm:$0xff]
        %v2801 = vld [vmem:[%s378 + $0x21] sm:$0xff]
        %v2802 = vld [vmem:[%s378 + $0x31] sm:$0xff]
        %v2803 = vld [vmem:[%s378 + $0x39] sm:$0xff]
        %v2804 = vld [vmem:[%s378 + $0x49] sm:$0xff]
        %v2805 = vld [vmem:[%s378 + $0x51] sm:$0xff]
        %v2806 = vld [vmem:[%s378 + $0x61] sm:$0xff]
        %v2807 = vld [vmem:[%s378 + $0x69] sm:$0xff]
        %v2808 = vld [vmem:[%s378 + $0x79] sm:$0xff]
        %v2809 = vld [vmem:[%s378 + $0x81] sm:$0xff]
        %v2810 = vld [vmem:[%s378 + $0x91] sm:$0xff]
        %v2811 = vld [vmem:[%s378 + $0x99] sm:$0xff]
        %v2812 = vld [vmem:[%s378 + $0xa9] sm:$0xff]
        %v2813 = vld [vmem:[%s378 + $0xb1] sm:$0xff]
        %v2814 = vld [vmem:[%s378 + $0xc1] sm:$0xff]
        %v2815 = vld [vmem:[%s378 + $0xc9] sm:$0xff]
        %v2816 = vld [vmem:[%s378 + $0xd9] sm:$0xff]
        %v2817 = vld [vmem:[%s378 + $0xe1] sm:$0xff]
        %v2818 = vld [vmem:[%s378 + $0xf1] sm:$0xff]
        %v2819 = vld [vmem:[%s378 + $0xf9] sm:$0xff]
        %v2820 = vld [vmem:[%s378 + $0x109] sm:$0xff]
        %v2821 = vld [vmem:[%s378 + $0x111] sm:$0xff]
        %v2822 = vld [vmem:[%s378 + $0x121] sm:$0xff]
        %v2823 = vld [vmem:[%s378 + $0x129] sm:$0xff]
        %v2824 = vld [vmem:[%s378 + $0x139] sm:$0xff]
        %v2825 = vld [vmem:[%s378 + $0x141] sm:$0xff]
        %v2826 = vld [vmem:[%s378 + $0x151] sm:$0xff]
        %v2827 = vld [vmem:[%s378 + $0x159] sm:$0xff]
        %v2828 = vld [vmem:[%s378 + $0x169] sm:$0xff]
        %v2829 = vld [vmem:[%s378 + $0x171] sm:$0xff]
        %v2830 = vlaneseq
        %v2831 = vshrl.u32 %v2830, 7
        %v2832 = vsub.s32 0, %v2831
        %v2833 = vrot.slane %v2797, %v2832
        %v2834 = vmul.f32 %v2559, %v2833
        %v2835 = vmul.f32 %v2560, %v2833
        %v2836 = vmul.f32 %v2561, %v2833
        %v2837 = vmul.f32 %v2562, %v2833
        %v2838 = vmul.f32 %v2563, %v2833
        %v2839 = vmul.f32 %v2564, %v2833
        %v2840 = vmul.f32 %v2565, %v2833
        %v2841 = vmul.f32 %v2566, %v2833
        %v2842 = vmul.f32 %v2567, %v2833
        %v2843 = vmul.f32 %v2568, %v2833
        %v2844 = vmul.f32 %v2569, %v2833
        %v2845 = vmul.f32 %v2570, %v2833
        %v2846 = vmul.f32 %v2571, %v2833
        %v2847 = vmul.f32 %v2572, %v2833
        %v2848 = vmul.f32 %v2573, %v2833
        %v2849 = vmul.f32 %v2574, %v2833
        %v2850 = vmul.f32 %v2575, %v2833
        %v2851 = vmul.f32 %v2576, %v2833
        %v2852 = vmul.f32 %v2577, %v2833
        %v2853 = vmul.f32 %v2578, %v2833
        %v2854 = vmul.f32 %v2579, %v2833
        %v2855 = vmul.f32 %v2580, %v2833
        %v2856 = vmul.f32 %v2581, %v2833
        %v2857 = vmul.f32 %v2582, %v2833
        %v2858 = vmul.f32 %v2583, %v2833
        %v2859 = vmul.f32 %v2584, %v2833
        %v2860 = vmul.f32 %v2585, %v2833
        %v2861 = vmul.f32 %v2586, %v2833
        %v2862 = vmul.f32 %v2587, %v2833
        %v2863 = vmul.f32 %v2588, %v2833
        %v2864 = vmul.f32 %v2589, %v2833
        %v2865 = vmul.f32 %v2590, %v2833
        %v2866 = vadd.f32 %v2834, %v2798
        %v2867 = vadd.f32 %v2835, %v2799
        %v2868 = vadd.f32 %v2836, %v2800
        %v2869 = vadd.f32 %v2837, %v2801
        %v2870 = vadd.f32 %v2838, %v2802
        %v2871 = vadd.f32 %v2839, %v2803
        %v2872 = vadd.f32 %v2840, %v2804
        %v2873 = vadd.f32 %v2841, %v2805
        %v2874 = vadd.f32 %v2842, %v2806
        %v2875 = vadd.f32 %v2843, %v2807
        %v2876 = vadd.f32 %v2844, %v2808
        %v2877 = vadd.f32 %v2845, %v2809
        %v2878 = vadd.f32 %v2846, %v2810
        %v2879 = vadd.f32 %v2847, %v2811
        %v2880 = vadd.f32 %v2848, %v2812
        %v2881 = vadd.f32 %v2849, %v2813
        %v2882 = vadd.f32 %v2850, %v2814
        %v2883 = vadd.f32 %v2851, %v2815
        %v2884 = vadd.f32 %v2852, %v2816
        %v2885 = vadd.f32 %v2853, %v2817
        %v2886 = vadd.f32 %v2854, %v2818
        %v2887 = vadd.f32 %v2855, %v2819
        %v2888 = vadd.f32 %v2856, %v2820
        %v2889 = vadd.f32 %v2857, %v2821
        %v2890 = vadd.f32 %v2858, %v2822
        %v2891 = vadd.f32 %v2859, %v2823
        %v2892 = vadd.f32 %v2860, %v2824
        %v2893 = vadd.f32 %v2861, %v2825
        %v2894 = vadd.f32 %v2862, %v2826
        %v2895 = vadd.f32 %v2863, %v2827
        %v2896 = vadd.f32 %v2864, %v2828
        %v2897 = vadd.f32 %v2865, %v2829
        %s2898 = sld [smem:[#allocation4]]
        %vm2899 = vcmp.ge.f32.partialorder %v2866, 0.0
        %vm2900 = vcmp.ge.f32.partialorder %v2867, 0.0
        %vm2901 = vcmp.ge.f32.partialorder %v2868, 0.0
        %vm2902 = vcmp.ge.f32.partialorder %v2869, 0.0
        %vm2903 = vcmp.ge.f32.partialorder %v2870, 0.0
        %vm2904 = vcmp.ge.f32.partialorder %v2871, 0.0
        %vm2905 = vcmp.ge.f32.partialorder %v2872, 0.0
        %vm2906 = vcmp.ge.f32.partialorder %v2873, 0.0
        %vm2907 = vcmp.ge.f32.partialorder %v2874, 0.0
        %vm2908 = vcmp.ge.f32.partialorder %v2875, 0.0
        %vm2909 = vcmp.ge.f32.partialorder %v2876, 0.0
        %vm2910 = vcmp.ge.f32.partialorder %v2877, 0.0
        %vm2911 = vcmp.ge.f32.partialorder %v2878, 0.0
        %vm2912 = vcmp.ge.f32.partialorder %v2879, 0.0
        %vm2913 = vcmp.ge.f32.partialorder %v2880, 0.0
        %vm2914 = vcmp.ge.f32.partialorder %v2881, 0.0
        %vm2915 = vcmp.ge.f32.partialorder %v2882, 0.0
        %vm2916 = vcmp.ge.f32.partialorder %v2883, 0.0
        %vm2917 = vcmp.ge.f32.partialorder %v2884, 0.0
        %vm2918 = vcmp.ge.f32.partialorder %v2885, 0.0
        %vm2919 = vcmp.ge.f32.partialorder %v2886, 0.0
        %vm2920 = vcmp.ge.f32.partialorder %v2887, 0.0
        %vm2921 = vcmp.ge.f32.partialorder %v2888, 0.0
        %vm2922 = vcmp.ge.f32.partialorder %v2889, 0.0
        %vm2923 = vcmp.ge.f32.partialorder %v2890, 0.0
        %vm2924 = vcmp.ge.f32.partialorder %v2891, 0.0
        %vm2925 = vcmp.ge.f32.partialorder %v2892, 0.0
        %vm2926 = vcmp.ge.f32.partialorder %v2893, 0.0
        %vm2927 = vcmp.ge.f32.partialorder %v2894, 0.0
        %vm2928 = vcmp.ge.f32.partialorder %v2895, 0.0
        %vm2929 = vcmp.ge.f32.partialorder %v2896, 0.0
        %vm2930 = vcmp.ge.f32.partialorder %v2897, 0.0
        %v2931 = vstv %s2898
        %v2932 = vmul.f32 %v2931, %v2866
        %v2933 = vmul.f32 %v2931, %v2867
        %v2934 = vmul.f32 %v2931, %v2868
        %v2935 = vmul.f32 %v2931, %v2869
        %v2936 = vmul.f32 %v2931, %v2870
        %v2937 = vmul.f32 %v2931, %v2871
        %v2938 = vmul.f32 %v2931, %v2872
        %v2939 = vmul.f32 %v2931, %v2873
        %v2940 = vmul.f32 %v2931, %v2874
        %v2941 = vmul.f32 %v2931, %v2875
        %v2942 = vmul.f32 %v2931, %v2876
        %v2943 = vmul.f32 %v2931, %v2877
        %v2944 = vmul.f32 %v2931, %v2878
        %v2945 = vmul.f32 %v2931, %v2879
        %v2946 = vmul.f32 %v2931, %v2880
        %v2947 = vmul.f32 %v2931, %v2881
        %v2948 = vmul.f32 %v2931, %v2882
        %v2949 = vmul.f32 %v2931, %v2883
        %v2950 = vmul.f32 %v2931, %v2884
        %v2951 = vmul.f32 %v2931, %v2885
        %v2952 = vmul.f32 %v2931, %v2886
        %v2953 = vmul.f32 %v2931, %v2887
        %v2954 = vmul.f32 %v2931, %v2888
        %v2955 = vmul.f32 %v2931, %v2889
        %v2956 = vmul.f32 %v2931, %v2890
        %v2957 = vmul.f32 %v2931, %v2891
        %v2958 = vmul.f32 %v2931, %v2892
        %v2959 = vmul.f32 %v2931, %v2893
        %v2960 = vmul.f32 %v2931, %v2894
        %v2961 = vmul.f32 %v2931, %v2895
        %v2962 = vmul.f32 %v2931, %v2896
        %v2963 = vmul.f32 %v2931, %v2897
        %v2964 = vsel %vm2899, %v2866, %v2932
        %v2965 = vsel %vm2900, %v2867, %v2933
        %v2966 = vsel %vm2901, %v2868, %v2934
        %v2967 = vsel %vm2902, %v2869, %v2935
        %v2968 = vsel %vm2903, %v2870, %v2936
        %v2969 = vsel %vm2904, %v2871, %v2937
        %v2970 = vsel %vm2905, %v2872, %v2938
        %v2971 = vsel %vm2906, %v2873, %v2939
        %v2972 = vsel %vm2907, %v2874, %v2940
        %v2973 = vsel %vm2908, %v2875, %v2941
        %v2974 = vsel %vm2909, %v2876, %v2942
        %v2975 = vsel %vm2910, %v2877, %v2943
        %v2976 = vsel %vm2911, %v2878, %v2944
        %v2977 = vsel %vm2912, %v2879, %v2945
        %v2978 = vsel %vm2913, %v2880, %v2946
        %v2979 = vsel %vm2914, %v2881, %v2947
        %v2980 = vsel %vm2915, %v2882, %v2948
        %v2981 = vsel %vm2916, %v2883, %v2949
        %v2982 = vsel %vm2917, %v2884, %v2950
        %v2983 = vsel %vm2918, %v2885, %v2951
        %v2984 = vsel %vm2919, %v2886, %v2952
        %v2985 = vsel %vm2920, %v2887, %v2953
        %v2986 = vsel %vm2921, %v2888, %v2954
        %v2987 = vsel %vm2922, %v2889, %v2955
        %v2988 = vsel %vm2923, %v2890, %v2956
        %v2989 = vsel %vm2924, %v2891, %v2957
        %v2990 = vsel %vm2925, %v2892, %v2958
        %v2991 = vsel %vm2926, %v2893, %v2959
        %v2992 = vsel %vm2927, %v2894, %v2960
        %v2993 = vsel %vm2928, %v2895, %v2961
        %v2994 = vsel %vm2929, %v2896, %v2962
        %v2995 = vsel %vm2930, %v2897, %v2963
        %2996 = vst [vmem:[%s378 + $0x1] sm:$0xff] %v2964
        %2997 = vst [vmem:[%s378 + $0x9] sm:$0xff] %v2965
        %2998 = vst [vmem:[%s378 + $0x19] sm:$0xff] %v2966
        %2999 = vst [vmem:[%s378 + $0x21] sm:$0xff] %v2967
        %3000 = vst [vmem:[%s378 + $0x31] sm:$0xff] %v2968
        %3001 = vst [vmem:[%s378 + $0x39] sm:$0xff] %v2969
        %3002 = vst [vmem:[%s378 + $0x49] sm:$0xff] %v2970
        %3003 = vst [vmem:[%s378 + $0x51] sm:$0xff] %v2971
        %3004 = vst [vmem:[%s378 + $0x61] sm:$0xff] %v2972
        %3005 = vst [vmem:[%s378 + $0x69] sm:$0xff] %v2973
        %3006 = vst [vmem:[%s378 + $0x79] sm:$0xff] %v2974
        %3007 = vst [vmem:[%s378 + $0x81] sm:$0xff] %v2975
        %3008 = vst [vmem:[%s378 + $0x91] sm:$0xff] %v2976
        %3009 = vst [vmem:[%s378 + $0x99] sm:$0xff] %v2977
        %3010 = vst [vmem:[%s378 + $0xa9] sm:$0xff] %v2978
        %3011 = vst [vmem:[%s378 + $0xb1] sm:$0xff] %v2979
        %3012 = vst [vmem:[%s378 + $0xc1] sm:$0xff] %v2980
        %3013 = vst [vmem:[%s378 + $0xc9] sm:$0xff] %v2981
        %3014 = vst [vmem:[%s378 + $0xd9] sm:$0xff] %v2982
        %3015 = vst [vmem:[%s378 + $0xe1] sm:$0xff] %v2983
        %3016 = vst [vmem:[%s378 + $0xf1] sm:$0xff] %v2984
        %3017 = vst [vmem:[%s378 + $0xf9] sm:$0xff] %v2985
        %3018 = vst [vmem:[%s378 + $0x109] sm:$0xff] %v2986
        %3019 = vst [vmem:[%s378 + $0x111] sm:$0xff] %v2987
        %3020 = vst [vmem:[%s378 + $0x121] sm:$0xff] %v2988
        %3021 = vst [vmem:[%s378 + $0x129] sm:$0xff] %v2989
        %3022 = vst [vmem:[%s378 + $0x139] sm:$0xff] %v2990
        %3023 = vst [vmem:[%s378 + $0x141] sm:$0xff] %v2991
        %3024 = vst [vmem:[%s378 + $0x151] sm:$0xff] %v2992
        %3025 = vst [vmem:[%s378 + $0x159] sm:$0xff] %v2993
        %3026 = vst [vmem:[%s378 + $0x169] sm:$0xff] %v2994
        %3027 = vst [vmem:[%s378 + $0x171] sm:$0xff] %v2995
        %v3028 = vld [vmem:[#allocation2] sm:$0xff]
        %v3029 = vld [vmem:[#allocation2 + $0x8] sm:$0xff]
        %v3030 = vld [vmem:[#allocation2 + $0x18] sm:$0xff]
        %v3031 = vld [vmem:[#allocation2 + $0x20] sm:$0xff]
        %v3032 = vld [vmem:[#allocation2 + $0x30] sm:$0xff]
        %v3033 = vld [vmem:[#allocation2 + $0x38] sm:$0xff]
        %v3034 = vld [vmem:[#allocation2 + $0x48] sm:$0xff]
        %v3035 = vld [vmem:[#allocation2 + $0x50] sm:$0xff]
        %v3036 = vld [vmem:[#allocation2 + $0x60] sm:$0xff]
        %v3037 = vld [vmem:[#allocation2 + $0x68] sm:$0xff]
        %v3038 = vld [vmem:[#allocation2 + $0x78] sm:$0xff]
        %v3039 = vld [vmem:[#allocation2 + $0x80] sm:$0xff]
        %v3040 = vld [vmem:[#allocation2 + $0x90] sm:$0xff]
        %v3041 = vld [vmem:[#allocation2 + $0x98] sm:$0xff]
        %v3042 = vld [vmem:[#allocation2 + $0xa8] sm:$0xff]
        %v3043 = vld [vmem:[#allocation2 + $0xb0] sm:$0xff]
        %v3044 = vld [vmem:[#allocation2 + $0xc0] sm:$0xff]
        %v3045 = vld [vmem:[#allocation2 + $0xc8] sm:$0xff]
        %v3046 = vld [vmem:[#allocation2 + $0xd8] sm:$0xff]
        %v3047 = vld [vmem:[#allocation2 + $0xe0] sm:$0xff]
        %v3048 = vld [vmem:[#allocation2 + $0xf0] sm:$0xff]
        %v3049 = vld [vmem:[#allocation2 + $0xf8] sm:$0xff]
        %v3050 = vld [vmem:[#allocation2 + $0x108] sm:$0xff]
        %v3051 = vld [vmem:[#allocation2 + $0x110] sm:$0xff]
        %v3052 = vld [vmem:[#allocation2 + $0x120] sm:$0xff]
        %v3053 = vld [vmem:[#allocation2 + $0x128] sm:$0xff]
        %v3054 = vld [vmem:[#allocation2 + $0x138] sm:$0xff]
        %v3055 = vld [vmem:[#allocation2 + $0x140] sm:$0xff]
        %v3056 = vld [vmem:[#allocation2 + $0x150] sm:$0xff]
        %v3057 = vld [vmem:[#allocation2 + $0x158] sm:$0xff]
        %v3058 = vld [vmem:[#allocation2 + $0x168] sm:$0xff]
        %v3059 = vld [vmem:[#allocation2 + $0x170] sm:$0xff]
        %v3060 = vpack.c.bf16 %v3029, %v3028
        %v3061 = vpack.c.bf16 %v3031, %v3030
        %v3062 = vpack.c.bf16 %v3033, %v3032
        %v3063 = vpack.c.bf16 %v3035, %v3034
        %v3064 = vpack.c.bf16 %v3037, %v3036
        %v3065 = vpack.c.bf16 %v3039, %v3038
        %v3066 = vpack.c.bf16 %v3041, %v3040
        %v3067 = vpack.c.bf16 %v3043, %v3042
        %v3068 = vpack.c.bf16 %v3045, %v3044
        %v3069 = vpack.c.bf16 %v3047, %v3046
        %v3070 = vpack.c.bf16 %v3049, %v3048
        %v3071 = vpack.c.bf16 %v3051, %v3050
        %v3072 = vpack.c.bf16 %v3053, %v3052
        %v3073 = vpack.c.bf16 %v3055, %v3054
        %v3074 = vpack.c.bf16 %v3057, %v3056
        %v3075 = vpack.c.bf16 %v3059, %v3058
        %3076 = vst [vmem:[#allocation3] sm:$0xff] %v3060
        %3077 = vst [vmem:[#allocation3 + $0x48] sm:$0xff] %v3061
        %3078 = vst [vmem:[#allocation3 + $0x90] sm:$0xff] %v3062
        %3079 = vst [vmem:[#allocation3 + $0xd8] sm:$0xff] %v3063
        %3080 = vst [vmem:[#allocation3 + $0x120] sm:$0xff] %v3064
        %3081 = vst [vmem:[#allocation3 + $0x168] sm:$0xff] %v3065
        %3082 = vst [vmem:[#allocation3 + $0x1b0] sm:$0xff] %v3066
        %3083 = vst [vmem:[#allocation3 + $0x1f8] sm:$0xff] %v3067
        %3084 = vst [vmem:[#allocation3 + $0x240] sm:$0xff] %v3068
        %3085 = vst [vmem:[#allocation3 + $0x288] sm:$0xff] %v3069
        %3086 = vst [vmem:[#allocation3 + $0x2d0] sm:$0xff] %v3070
        %3087 = vst [vmem:[#allocation3 + $0x318] sm:$0xff] %v3071
        %3088 = vst [vmem:[#allocation3 + $0x360] sm:$0xff] %v3072
        %3089 = vst [vmem:[#allocation3 + $0x3a8] sm:$0xff] %v3073
        %3090 = vst [vmem:[#allocation3 + $0x3f0] sm:$0xff] %v3074
        %3091 = vst [vmem:[#allocation3 + $0x438] sm:$0xff] %v3075
        %v3092 = vld [vmem:[#allocation2 + $0x1] sm:$0xff]
        %v3093 = vld [vmem:[#allocation2 + $0x9] sm:$0xff]
        %v3094 = vld [vmem:[#allocation2 + $0x19] sm:$0xff]
        %v3095 = vld [vmem:[#allocation2 + $0x21] sm:$0xff]
        %v3096 = vld [vmem:[#allocation2 + $0x31] sm:$0xff]
        %v3097 = vld [vmem:[#allocation2 + $0x39] sm:$0xff]
        %v3098 = vld [vmem:[#allocation2 + $0x49] sm:$0xff]
        %v3099 = vld [vmem:[#allocation2 + $0x51] sm:$0xff]
        %v3100 = vld [vmem:[#allocation2 + $0x61] sm:$0xff]
        %v3101 = vld [vmem:[#allocation2 + $0x69] sm:$0xff]
        %v3102 = vld [vmem:[#allocation2 + $0x79] sm:$0xff]
        %v3103 = vld [vmem:[#allocation2 + $0x81] sm:$0xff]
        %v3104 = vld [vmem:[#allocation2 + $0x91] sm:$0xff]
        %v3105 = vld [vmem:[#allocation2 + $0x99] sm:$0xff]
        %v3106 = vld [vmem:[#allocation2 + $0xa9] sm:$0xff]
        %v3107 = vld [vmem:[#allocation2 + $0xb1] sm:$0xff]
        %v3108 = vld [vmem:[#allocation2 + $0xc1] sm:$0xff]
        %v3109 = vld [vmem:[#allocation2 + $0xc9] sm:$0xff]
        %v3110 = vld [vmem:[#allocation2 + $0xd9] sm:$0xff]
        %v3111 = vld [vmem:[#allocation2 + $0xe1] sm:$0xff]
        %v3112 = vld [vmem:[#allocation2 + $0xf1] sm:$0xff]
        %v3113 = vld [vmem:[#allocation2 + $0xf9] sm:$0xff]
        %v3114 = vld [vmem:[#allocation2 + $0x109] sm:$0xff]
        %v3115 = vld [vmem:[#allocation2 + $0x111] sm:$0xff]
        %v3116 = vld [vmem:[#allocation2 + $0x121] sm:$0xff]
        %v3117 = vld [vmem:[#allocation2 + $0x129] sm:$0xff]
        %v3118 = vld [vmem:[#allocation2 + $0x139] sm:$0xff]
        %v3119 = vld [vmem:[#allocation2 + $0x141] sm:$0xff]
        %v3120 = vld [vmem:[#allocation2 + $0x151] sm:$0xff]
        %v3121 = vld [vmem:[#allocation2 + $0x159] sm:$0xff]
        %v3122 = vld [vmem:[#allocation2 + $0x169] sm:$0xff]
        %v3123 = vld [vmem:[#allocation2 + $0x171] sm:$0xff]
        %v3124 = vpack.c.bf16 %v3093, %v3092
        %v3125 = vpack.c.bf16 %v3095, %v3094
        %v3126 = vpack.c.bf16 %v3097, %v3096
        %v3127 = vpack.c.bf16 %v3099, %v3098
        %v3128 = vpack.c.bf16 %v3101, %v3100
        %v3129 = vpack.c.bf16 %v3103, %v3102
        %v3130 = vpack.c.bf16 %v3105, %v3104
        %v3131 = vpack.c.bf16 %v3107, %v3106
        %v3132 = vpack.c.bf16 %v3109, %v3108
        %v3133 = vpack.c.bf16 %v3111, %v3110
        %v3134 = vpack.c.bf16 %v3113, %v3112
        %v3135 = vpack.c.bf16 %v3115, %v3114
        %v3136 = vpack.c.bf16 %v3117, %v3116
        %v3137 = vpack.c.bf16 %v3119, %v3118
        %v3138 = vpack.c.bf16 %v3121, %v3120
        %v3139 = vpack.c.bf16 %v3123, %v3122
        %3140 = vst [vmem:[#allocation3 + $0x8] sm:$0xff] %v3124
        %3141 = vst [vmem:[#allocation3 + $0x50] sm:$0xff] %v3125
        %3142 = vst [vmem:[#allocation3 + $0x98] sm:$0xff] %v3126
        %3143 = vst [vmem:[#allocation3 + $0xe0] sm:$0xff] %v3127
        %3144 = vst [vmem:[#allocation3 + $0x128] sm:$0xff] %v3128
        %3145 = vst [vmem:[#allocation3 + $0x170] sm:$0xff] %v3129
        %3146 = vst [vmem:[#allocation3 + $0x1b8] sm:$0xff] %v3130
        %3147 = vst [vmem:[#allocation3 + $0x200] sm:$0xff] %v3131
        %3148 = vst [vmem:[#allocation3 + $0x248] sm:$0xff] %v3132
        %3149 = vst [vmem:[#allocation3 + $0x290] sm:$0xff] %v3133
        %3150 = vst [vmem:[#allocation3 + $0x2d8] sm:$0xff] %v3134
        %3151 = vst [vmem:[#allocation3 + $0x320] sm:$0xff] %v3135
        %3152 = vst [vmem:[#allocation3 + $0x368] sm:$0xff] %v3136
        %3153 = vst [vmem:[#allocation3 + $0x3b0] sm:$0xff] %v3137
        %3154 = vst [vmem:[#allocation3 + $0x3f8] sm:$0xff] %v3138
        %3155 = vst [vmem:[#allocation3 + $0x440] sm:$0xff] %v3139
        %v3156 = vld [vmem:[#allocation2 + $0x2] sm:$0xff]
        %v3157 = vld [vmem:[#allocation2 + $0xa] sm:$0xff]
        %v3158 = vld [vmem:[#allocation2 + $0x1a] sm:$0xff]
        %v3159 = vld [vmem:[#allocation2 + $0x22] sm:$0xff]
        %v3160 = vld [vmem:[#allocation2 + $0x32] sm:$0xff]
        %v3161 = vld [vmem:[#allocation2 + $0x3a] sm:$0xff]
        %v3162 = vld [vmem:[#allocation2 + $0x4a] sm:$0xff]
        %v3163 = vld [vmem:[#allocation2 + $0x52] sm:$0xff]
        %v3164 = vld [vmem:[#allocation2 + $0x62] sm:$0xff]
        %v3165 = vld [vmem:[#allocation2 + $0x6a] sm:$0xff]
        %v3166 = vld [vmem:[#allocation2 + $0x7a] sm:$0xff]
        %v3167 = vld [vmem:[#allocation2 + $0x82] sm:$0xff]
        %v3168 = vld [vmem:[#allocation2 + $0x92] sm:$0xff]
        %v3169 = vld [vmem:[#allocation2 + $0x9a] sm:$0xff]
        %v3170 = vld [vmem:[#allocation2 + $0xaa] sm:$0xff]
        %v3171 = vld [vmem:[#allocation2 + $0xb2] sm:$0xff]
        %v3172 = vld [vmem:[#allocation2 + $0xc2] sm:$0xff]
        %v3173 = vld [vmem:[#allocation2 + $0xca] sm:$0xff]
        %v3174 = vld [vmem:[#allocation2 + $0xda] sm:$0xff]
        %v3175 = vld [vmem:[#allocation2 + $0xe2] sm:$0xff]
        %v3176 = vld [vmem:[#allocation2 + $0xf2] sm:$0xff]
        %v3177 = vld [vmem:[#allocation2 + $0xfa] sm:$0xff]
        %v3178 = vld [vmem:[#allocation2 + $0x10a] sm:$0xff]
        %v3179 = vld [vmem:[#allocation2 + $0x112] sm:$0xff]
        %v3180 = vld [vmem:[#allocation2 + $0x122] sm:$0xff]
        %v3181 = vld [vmem:[#allocation2 + $0x12a] sm:$0xff]
        %v3182 = vld [vmem:[#allocation2 + $0x13a] sm:$0xff]
        %v3183 = vld [vmem:[#allocation2 + $0x142] sm:$0xff]
        %v3184 = vld [vmem:[#allocation2 + $0x152] sm:$0xff]
        %v3185 = vld [vmem:[#allocation2 + $0x15a] sm:$0xff]
        %v3186 = vld [vmem:[#allocation2 + $0x16a] sm:$0xff]
        %v3187 = vld [vmem:[#allocation2 + $0x172] sm:$0xff]
        %v3188 = vpack.c.bf16 %v3157, %v3156
        %v3189 = vpack.c.bf16 %v3159, %v3158
        %v3190 = vpack.c.bf16 %v3161, %v3160
        %v3191 = vpack.c.bf16 %v3163, %v3162
        %v3192 = vpack.c.bf16 %v3165, %v3164
        %v3193 = vpack.c.bf16 %v3167, %v3166
        %v3194 = vpack.c.bf16 %v3169, %v3168
        %v3195 = vpack.c.bf16 %v3171, %v3170
        %v3196 = vpack.c.bf16 %v3173, %v3172
        %v3197 = vpack.c.bf16 %v3175, %v3174
        %v3198 = vpack.c.bf16 %v3177, %v3176
        %v3199 = vpack.c.bf16 %v3179, %v3178
        %v3200 = vpack.c.bf16 %v3181, %v3180
        %v3201 = vpack.c.bf16 %v3183, %v3182
        %v3202 = vpack.c.bf16 %v3185, %v3184
        %v3203 = vpack.c.bf16 %v3187, %v3186
        %3204 = vst [vmem:[#allocation3 + $0x10] sm:$0xff] %v3188
        %3205 = vst [vmem:[#allocation3 + $0x58] sm:$0xff] %v3189
        %3206 = vst [vmem:[#allocation3 + $0xa0] sm:$0xff] %v3190
        %3207 = vst [vmem:[#allocation3 + $0xe8] sm:$0xff] %v3191
        %3208 = vst [vmem:[#allocation3 + $0x130] sm:$0xff] %v3192
        %3209 = vst [vmem:[#allocation3 + $0x178] sm:$0xff] %v3193
        %3210 = vst [vmem:[#allocation3 + $0x1c0] sm:$0xff] %v3194
        %3211 = vst [vmem:[#allocation3 + $0x208] sm:$0xff] %v3195
        %3212 = vst [vmem:[#allocation3 + $0x250] sm:$0xff] %v3196
        %3213 = vst [vmem:[#allocation3 + $0x298] sm:$0xff] %v3197
        %3214 = vst [vmem:[#allocation3 + $0x2e0] sm:$0xff] %v3198
        %3215 = vst [vmem:[#allocation3 + $0x328] sm:$0xff] %v3199
        %3216 = vst [vmem:[#allocation3 + $0x370] sm:$0xff] %v3200
        %3217 = vst [vmem:[#allocation3 + $0x3b8] sm:$0xff] %v3201
        %3218 = vst [vmem:[#allocation3 + $0x400] sm:$0xff] %v3202
        %3219 = vst [vmem:[#allocation3 + $0x448] sm:$0xff] %v3203
        %v3220 = vld [vmem:[%s378] sm:$0xff]
        %v3221 = vld [vmem:[%s378 + $0x8] sm:$0xff]
        %v3222 = vld [vmem:[%s378 + $0x18] sm:$0xff]
        %v3223 = vld [vmem:[%s378 + $0x20] sm:$0xff]
        %v3224 = vld [vmem:[%s378 + $0x30] sm:$0xff]
        %v3225 = vld [vmem:[%s378 + $0x38] sm:$0xff]
        %v3226 = vld [vmem:[%s378 + $0x48] sm:$0xff]
        %v3227 = vld [vmem:[%s378 + $0x50] sm:$0xff]
        %v3228 = vld [vmem:[%s378 + $0x60] sm:$0xff]
        %v3229 = vld [vmem:[%s378 + $0x68] sm:$0xff]
        %v3230 = vld [vmem:[%s378 + $0x78] sm:$0xff]
        %v3231 = vld [vmem:[%s378 + $0x80] sm:$0xff]
        %v3232 = vld [vmem:[%s378 + $0x90] sm:$0xff]
        %v3233 = vld [vmem:[%s378 + $0x98] sm:$0xff]
        %v3234 = vld [vmem:[%s378 + $0xa8] sm:$0xff]
        %v3235 = vld [vmem:[%s378 + $0xb0] sm:$0xff]
        %v3236 = vld [vmem:[%s378 + $0xc0] sm:$0xff]
        %v3237 = vld [vmem:[%s378 + $0xc8] sm:$0xff]
        %v3238 = vld [vmem:[%s378 + $0xd8] sm:$0xff]
        %v3239 = vld [vmem:[%s378 + $0xe0] sm:$0xff]
        %v3240 = vld [vmem:[%s378 + $0xf0] sm:$0xff]
        %v3241 = vld [vmem:[%s378 + $0xf8] sm:$0xff]
        %v3242 = vld [vmem:[%s378 + $0x108] sm:$0xff]
        %v3243 = vld [vmem:[%s378 + $0x110] sm:$0xff]
        %v3244 = vld [vmem:[%s378 + $0x120] sm:$0xff]
        %v3245 = vld [vmem:[%s378 + $0x128] sm:$0xff]
        %v3246 = vld [vmem:[%s378 + $0x138] sm:$0xff]
        %v3247 = vld [vmem:[%s378 + $0x140] sm:$0xff]
        %v3248 = vld [vmem:[%s378 + $0x150] sm:$0xff]
        %v3249 = vld [vmem:[%s378 + $0x158] sm:$0xff]
        %v3250 = vld [vmem:[%s378 + $0x168] sm:$0xff]
        %v3251 = vld [vmem:[%s378 + $0x170] sm:$0xff]
        %v3252 = vpack.c.bf16 %v3221, %v3220
        %v3253 = vpack.c.bf16 %v3223, %v3222
        %v3254 = vpack.c.bf16 %v3225, %v3224
        %v3255 = vpack.c.bf16 %v3227, %v3226
        %v3256 = vpack.c.bf16 %v3229, %v3228
        %v3257 = vpack.c.bf16 %v3231, %v3230
        %v3258 = vpack.c.bf16 %v3233, %v3232
        %v3259 = vpack.c.bf16 %v3235, %v3234
        %v3260 = vpack.c.bf16 %v3237, %v3236
        %v3261 = vpack.c.bf16 %v3239, %v3238
        %v3262 = vpack.c.bf16 %v3241, %v3240
        %v3263 = vpack.c.bf16 %v3243, %v3242
        %v3264 = vpack.c.bf16 %v3245, %v3244
        %v3265 = vpack.c.bf16 %v3247, %v3246
        %v3266 = vpack.c.bf16 %v3249, %v3248
        %v3267 = vpack.c.bf16 %v3251, %v3250
        %3268 = vst [vmem:[#allocation3 + $0x18] sm:$0xff] %v3252
        %3269 = vst [vmem:[#allocation3 + $0x60] sm:$0xff] %v3253
        %3270 = vst [vmem:[#allocation3 + $0xa8] sm:$0xff] %v3254
        %3271 = vst [vmem:[#allocation3 + $0xf0] sm:$0xff] %v3255
        %3272 = vst [vmem:[#allocation3 + $0x138] sm:$0xff] %v3256
        %3273 = vst [vmem:[#allocation3 + $0x180] sm:$0xff] %v3257
        %3274 = vst [vmem:[#allocation3 + $0x1c8] sm:$0xff] %v3258
        %3275 = vst [vmem:[#allocation3 + $0x210] sm:$0xff] %v3259
        %3276 = vst [vmem:[#allocation3 + $0x258] sm:$0xff] %v3260
        %3277 = vst [vmem:[#allocation3 + $0x2a0] sm:$0xff] %v3261
        %3278 = vst [vmem:[#allocation3 + $0x2e8] sm:$0xff] %v3262
        %3279 = vst [vmem:[#allocation3 + $0x330] sm:$0xff] %v3263
        %3280 = vst [vmem:[#allocation3 + $0x378] sm:$0xff] %v3264
        %3281 = vst [vmem:[#allocation3 + $0x3c0] sm:$0xff] %v3265
        %3282 = vst [vmem:[#allocation3 + $0x408] sm:$0xff] %v3266
        %3283 = vst [vmem:[#allocation3 + $0x450] sm:$0xff] %v3267
        %v3284 = vld [vmem:[%s378 + $0x1] sm:$0xff]
        %v3285 = vld [vmem:[%s378 + $0x9] sm:$0xff]
        %v3286 = vld [vmem:[%s378 + $0x19] sm:$0xff]
        %v3287 = vld [vmem:[%s378 + $0x21] sm:$0xff]
        %v3288 = vld [vmem:[%s378 + $0x31] sm:$0xff]
        %v3289 = vld [vmem:[%s378 + $0x39] sm:$0xff]
        %v3290 = vld [vmem:[%s378 + $0x49] sm:$0xff]
        %v3291 = vld [vmem:[%s378 + $0x51] sm:$0xff]
        %v3292 = vld [vmem:[%s378 + $0x61] sm:$0xff]
        %v3293 = vld [vmem:[%s378 + $0x69] sm:$0xff]
        %v3294 = vld [vmem:[%s378 + $0x79] sm:$0xff]
        %v3295 = vld [vmem:[%s378 + $0x81] sm:$0xff]
        %v3296 = vld [vmem:[%s378 + $0x91] sm:$0xff]
        %v3297 = vld [vmem:[%s378 + $0x99] sm:$0xff]
        %v3298 = vld [vmem:[%s378 + $0xa9] sm:$0xff]
        %v3299 = vld [vmem:[%s378 + $0xb1] sm:$0xff]
        %v3300 = vld [vmem:[%s378 + $0xc1] sm:$0xff]
        %v3301 = vld [vmem:[%s378 + $0xc9] sm:$0xff]
        %v3302 = vld [vmem:[%s378 + $0xd9] sm:$0xff]
        %v3303 = vld [vmem:[%s378 + $0xe1] sm:$0xff]
        %v3304 = vld [vmem:[%s378 + $0xf1] sm:$0xff]
        %v3305 = vld [vmem:[%s378 + $0xf9] sm:$0xff]
        %v3306 = vld [vmem:[%s378 + $0x109] sm:$0xff]
        %v3307 = vld [vmem:[%s378 + $0x111] sm:$0xff]
        %v3308 = vld [vmem:[%s378 + $0x121] sm:$0xff]
        %v3309 = vld [vmem:[%s378 + $0x129] sm:$0xff]
        %v3310 = vld [vmem:[%s378 + $0x139] sm:$0xff]
        %v3311 = vld [vmem:[%s378 + $0x141] sm:$0xff]
        %v3312 = vld [vmem:[%s378 + $0x151] sm:$0xff]
        %v3313 = vld [vmem:[%s378 + $0x159] sm:$0xff]
        %v3314 = vld [vmem:[%s378 + $0x169] sm:$0xff]
        %v3315 = vld [vmem:[%s378 + $0x171] sm:$0xff]
        %v3316 = vpack.c.bf16 %v3285, %v3284
        %v3317 = vpack.c.bf16 %v3287, %v3286
        %v3318 = vpack.c.bf16 %v3289, %v3288
        %v3319 = vpack.c.bf16 %v3291, %v3290
        %v3320 = vpack.c.bf16 %v3293, %v3292
        %v3321 = vpack.c.bf16 %v3295, %v3294
        %v3322 = vpack.c.bf16 %v3297, %v3296
        %v3323 = vpack.c.bf16 %v3299, %v3298
        %v3324 = vpack.c.bf16 %v3301, %v3300
        %v3325 = vpack.c.bf16 %v3303, %v3302
        %v3326 = vpack.c.bf16 %v3305, %v3304
        %v3327 = vpack.c.bf16 %v3307, %v3306
        %v3328 = vpack.c.bf16 %v3309, %v3308
        %v3329 = vpack.c.bf16 %v3311, %v3310
        %v3330 = vpack.c.bf16 %v3313, %v3312
        %v3331 = vpack.c.bf16 %v3315, %v3314
        %3332 = vst [vmem:[#allocation3 + $0x20] sm:$0xff] %v3316
        %3333 = vst [vmem:[#allocation3 + $0x68] sm:$0xff] %v3317
        %3334 = vst [vmem:[#allocation3 + $0xb0] sm:$0xff] %v3318
        %3335 = vst [vmem:[#allocation3 + $0xf8] sm:$0xff] %v3319
        %3336 = vst [vmem:[#allocation3 + $0x140] sm:$0xff] %v3320
        %3337 = vst [vmem:[#allocation3 + $0x188] sm:$0xff] %v3321
        %3338 = vst [vmem:[#allocation3 + $0x1d0] sm:$0xff] %v3322
        %3339 = vst [vmem:[#allocation3 + $0x218] sm:$0xff] %v3323
        %3340 = vst [vmem:[#allocation3 + $0x260] sm:$0xff] %v3324
        %3341 = vst [vmem:[#allocation3 + $0x2a8] sm:$0xff] %v3325
        %3342 = vst [vmem:[#allocation3 + $0x2f0] sm:$0xff] %v3326
        %3343 = vst [vmem:[#allocation3 + $0x338] sm:$0xff] %v3327
        %3344 = vst [vmem:[#allocation3 + $0x380] sm:$0xff] %v3328
        %3345 = vst [vmem:[#allocation3 + $0x3c8] sm:$0xff] %v3329
        %3346 = vst [vmem:[#allocation3 + $0x410] sm:$0xff] %v3330
        %3347 = vst [vmem:[#allocation3 + $0x458] sm:$0xff] %v3331
        %v3348 = vld [vmem:[%s378 + $0x2] sm:$0xff]
        %v3349 = vld [vmem:[%s378 + $0xa] sm:$0xff]
        %v3350 = vld [vmem:[%s378 + $0x1a] sm:$0xff]
        %v3351 = vld [vmem:[%s378 + $0x22] sm:$0xff]
        %v3352 = vld [vmem:[%s378 + $0x32] sm:$0xff]
        %v3353 = vld [vmem:[%s378 + $0x3a] sm:$0xff]
        %v3354 = vld [vmem:[%s378 + $0x4a] sm:$0xff]
        %v3355 = vld [vmem:[%s378 + $0x52] sm:$0xff]
        %v3356 = vld [vmem:[%s378 + $0x62] sm:$0xff]
        %v3357 = vld [vmem:[%s378 + $0x6a] sm:$0xff]
        %v3358 = vld [vmem:[%s378 + $0x7a] sm:$0xff]
        %v3359 = vld [vmem:[%s378 + $0x82] sm:$0xff]
        %v3360 = vld [vmem:[%s378 + $0x92] sm:$0xff]
        %v3361 = vld [vmem:[%s378 + $0x9a] sm:$0xff]
        %v3362 = vld [vmem:[%s378 + $0xaa] sm:$0xff]
        %v3363 = vld [vmem:[%s378 + $0xb2] sm:$0xff]
        %v3364 = vld [vmem:[%s378 + $0xc2] sm:$0xff]
        %v3365 = vld [vmem:[%s378 + $0xca] sm:$0xff]
        %v3366 = vld [vmem:[%s378 + $0xda] sm:$0xff]
        %v3367 = vld [vmem:[%s378 + $0xe2] sm:$0xff]
        %v3368 = vld [vmem:[%s378 + $0xf2] sm:$0xff]
        %v3369 = vld [vmem:[%s378 + $0xfa] sm:$0xff]
        %v3370 = vld [vmem:[%s378 + $0x10a] sm:$0xff]
        %v3371 = vld [vmem:[%s378 + $0x112] sm:$0xff]
        %v3372 = vld [vmem:[%s378 + $0x122] sm:$0xff]
        %v3373 = vld [vmem:[%s378 + $0x12a] sm:$0xff]
        %v3374 = vld [vmem:[%s378 + $0x13a] sm:$0xff]
        %v3375 = vld [vmem:[%s378 + $0x142] sm:$0xff]
        %v3376 = vld [vmem:[%s378 + $0x152] sm:$0xff]
        %v3377 = vld [vmem:[%s378 + $0x15a] sm:$0xff]
        %v3378 = vld [vmem:[%s378 + $0x16a] sm:$0xff]
        %v3379 = vld [vmem:[%s378 + $0x172] sm:$0xff]
        %v3380 = vpack.c.bf16 %v3349, %v3348
        %v3381 = vpack.c.bf16 %v3351, %v3350
        %v3382 = vpack.c.bf16 %v3353, %v3352
        %v3383 = vpack.c.bf16 %v3355, %v3354
        %v3384 = vpack.c.bf16 %v3357, %v3356
        %v3385 = vpack.c.bf16 %v3359, %v3358
        %v3386 = vpack.c.bf16 %v3361, %v3360
        %v3387 = vpack.c.bf16 %v3363, %v3362
        %v3388 = vpack.c.bf16 %v3365, %v3364
        %v3389 = vpack.c.bf16 %v3367, %v3366
        %v3390 = vpack.c.bf16 %v3369, %v3368
        %v3391 = vpack.c.bf16 %v3371, %v3370
        %v3392 = vpack.c.bf16 %v3373, %v3372
        %v3393 = vpack.c.bf16 %v3375, %v3374
        %v3394 = vpack.c.bf16 %v3377, %v3376
        %v3395 = vpack.c.bf16 %v3379, %v3378
        %3396 = vst [vmem:[#allocation3 + $0x28] sm:$0xff] %v3380
        %3397 = vst [vmem:[#allocation3 + $0x70] sm:$0xff] %v3381
        %3398 = vst [vmem:[#allocation3 + $0xb8] sm:$0xff] %v3382
        %3399 = vst [vmem:[#allocation3 + $0x100] sm:$0xff] %v3383
        %3400 = vst [vmem:[#allocation3 + $0x148] sm:$0xff] %v3384
        %3401 = vst [vmem:[#allocation3 + $0x190] sm:$0xff] %v3385
        %3402 = vst [vmem:[#allocation3 + $0x1d8] sm:$0xff] %v3386
        %3403 = vst [vmem:[#allocation3 + $0x220] sm:$0xff] %v3387
        %3404 = vst [vmem:[#allocation3 + $0x268] sm:$0xff] %v3388
        %3405 = vst [vmem:[#allocation3 + $0x2b0] sm:$0xff] %v3389
        %3406 = vst [vmem:[#allocation3 + $0x2f8] sm:$0xff] %v3390
        %3407 = vst [vmem:[#allocation3 + $0x340] sm:$0xff] %v3391
        %3408 = vst [vmem:[#allocation3 + $0x388] sm:$0xff] %v3392
        %3409 = vst [vmem:[#allocation3 + $0x3d0] sm:$0xff] %v3393
        %3410 = vst [vmem:[#allocation3 + $0x418] sm:$0xff] %v3394
        %3411 = vst [vmem:[#allocation3 + $0x460] sm:$0xff] %v3395
        %v3412 = vld [vmem:[%s795] sm:$0xff]
        %v3413 = vld [vmem:[%s795 + $0x8] sm:$0xff]
        %v3414 = vld [vmem:[%s795 + $0x18] sm:$0xff]
        %v3415 = vld [vmem:[%s795 + $0x20] sm:$0xff]
        %v3416 = vld [vmem:[%s795 + $0x30] sm:$0xff]
        %v3417 = vld [vmem:[%s795 + $0x38] sm:$0xff]
        %v3418 = vld [vmem:[%s795 + $0x48] sm:$0xff]
        %v3419 = vld [vmem:[%s795 + $0x50] sm:$0xff]
        %v3420 = vld [vmem:[%s795 + $0x60] sm:$0xff]
        %v3421 = vld [vmem:[%s795 + $0x68] sm:$0xff]
        %v3422 = vld [vmem:[%s795 + $0x78] sm:$0xff]
        %v3423 = vld [vmem:[%s795 + $0x80] sm:$0xff]
        %v3424 = vld [vmem:[%s795 + $0x90] sm:$0xff]
        %v3425 = vld [vmem:[%s795 + $0x98] sm:$0xff]
        %v3426 = vld [vmem:[%s795 + $0xa8] sm:$0xff]
        %v3427 = vld [vmem:[%s795 + $0xb0] sm:$0xff]
        %v3428 = vld [vmem:[%s795 + $0xc0] sm:$0xff]
        %v3429 = vld [vmem:[%s795 + $0xc8] sm:$0xff]
        %v3430 = vld [vmem:[%s795 + $0xd8] sm:$0xff]
        %v3431 = vld [vmem:[%s795 + $0xe0] sm:$0xff]
        %v3432 = vld [vmem:[%s795 + $0xf0] sm:$0xff]
        %v3433 = vld [vmem:[%s795 + $0xf8] sm:$0xff]
        %v3434 = vld [vmem:[%s795 + $0x108] sm:$0xff]
        %v3435 = vld [vmem:[%s795 + $0x110] sm:$0xff]
        %v3436 = vld [vmem:[%s795 + $0x120] sm:$0xff]
        %v3437 = vld [vmem:[%s795 + $0x128] sm:$0xff]
        %v3438 = vld [vmem:[%s795 + $0x138] sm:$0xff]
        %v3439 = vld [vmem:[%s795 + $0x140] sm:$0xff]
        %v3440 = vld [vmem:[%s795 + $0x150] sm:$0xff]
        %v3441 = vld [vmem:[%s795 + $0x158] sm:$0xff]
        %v3442 = vld [vmem:[%s795 + $0x168] sm:$0xff]
        %v3443 = vld [vmem:[%s795 + $0x170] sm:$0xff]
        %v3444 = vpack.c.bf16 %v3413, %v3412
        %v3445 = vpack.c.bf16 %v3415, %v3414
        %v3446 = vpack.c.bf16 %v3417, %v3416
        %v3447 = vpack.c.bf16 %v3419, %v3418
        %v3448 = vpack.c.bf16 %v3421, %v3420
        %v3449 = vpack.c.bf16 %v3423, %v3422
        %v3450 = vpack.c.bf16 %v3425, %v3424
        %v3451 = vpack.c.bf16 %v3427, %v3426
        %v3452 = vpack.c.bf16 %v3429, %v3428
        %v3453 = vpack.c.bf16 %v3431, %v3430
        %v3454 = vpack.c.bf16 %v3433, %v3432
        %v3455 = vpack.c.bf16 %v3435, %v3434
        %v3456 = vpack.c.bf16 %v3437, %v3436
        %v3457 = vpack.c.bf16 %v3439, %v3438
        %v3458 = vpack.c.bf16 %v3441, %v3440
        %v3459 = vpack.c.bf16 %v3443, %v3442
        %3460 = vst [vmem:[#allocation3 + $0x30] sm:$0xff] %v3444
        %3461 = vst [vmem:[#allocation3 + $0x78] sm:$0xff] %v3445
        %3462 = vst [vmem:[#allocation3 + $0xc0] sm:$0xff] %v3446
        %3463 = vst [vmem:[#allocation3 + $0x108] sm:$0xff] %v3447
        %3464 = vst [vmem:[#allocation3 + $0x150] sm:$0xff] %v3448
        %3465 = vst [vmem:[#allocation3 + $0x198] sm:$0xff] %v3449
        %3466 = vst [vmem:[#allocation3 + $0x1e0] sm:$0xff] %v3450
        %3467 = vst [vmem:[#allocation3 + $0x228] sm:$0xff] %v3451
        %3468 = vst [vmem:[#allocation3 + $0x270] sm:$0xff] %v3452
        %3469 = vst [vmem:[#allocation3 + $0x2b8] sm:$0xff] %v3453
        %3470 = vst [vmem:[#allocation3 + $0x300] sm:$0xff] %v3454
        %3471 = vst [vmem:[#allocation3 + $0x348] sm:$0xff] %v3455
        %3472 = vst [vmem:[#allocation3 + $0x390] sm:$0xff] %v3456
        %3473 = vst [vmem:[#allocation3 + $0x3d8] sm:$0xff] %v3457
        %3474 = vst [vmem:[#allocation3 + $0x420] sm:$0xff] %v3458
        %3475 = vst [vmem:[#allocation3 + $0x468] sm:$0xff] %v3459
        %v3476 = vld [vmem:[%s795 + $0x1] sm:$0xff]
        %v3477 = vld [vmem:[%s795 + $0x9] sm:$0xff]
        %v3478 = vld [vmem:[%s795 + $0x19] sm:$0xff]
        %v3479 = vld [vmem:[%s795 + $0x21] sm:$0xff]
        %v3480 = vld [vmem:[%s795 + $0x31] sm:$0xff]
        %v3481 = vld [vmem:[%s795 + $0x39] sm:$0xff]
        %v3482 = vld [vmem:[%s795 + $0x49] sm:$0xff]
        %v3483 = vld [vmem:[%s795 + $0x51] sm:$0xff]
        %v3484 = vld [vmem:[%s795 + $0x61] sm:$0xff]
        %v3485 = vld [vmem:[%s795 + $0x69] sm:$0xff]
        %v3486 = vld [vmem:[%s795 + $0x79] sm:$0xff]
        %v3487 = vld [vmem:[%s795 + $0x81] sm:$0xff]
        %v3488 = vld [vmem:[%s795 + $0x91] sm:$0xff]
        %v3489 = vld [vmem:[%s795 + $0x99] sm:$0xff]
        %v3490 = vld [vmem:[%s795 + $0xa9] sm:$0xff]
        %v3491 = vld [vmem:[%s795 + $0xb1] sm:$0xff]
        %v3492 = vld [vmem:[%s795 + $0xc1] sm:$0xff]
        %v3493 = vld [vmem:[%s795 + $0xc9] sm:$0xff]
        %v3494 = vld [vmem:[%s795 + $0xd9] sm:$0xff]
        %v3495 = vld [vmem:[%s795 + $0xe1] sm:$0xff]
        %v3496 = vld [vmem:[%s795 + $0xf1] sm:$0xff]
        %v3497 = vld [vmem:[%s795 + $0xf9] sm:$0xff]
        %v3498 = vld [vmem:[%s795 + $0x109] sm:$0xff]
        %v3499 = vld [vmem:[%s795 + $0x111] sm:$0xff]
        %v3500 = vld [vmem:[%s795 + $0x121] sm:$0xff]
        %v3501 = vld [vmem:[%s795 + $0x129] sm:$0xff]
        %v3502 = vld [vmem:[%s795 + $0x139] sm:$0xff]
        %v3503 = vld [vmem:[%s795 + $0x141] sm:$0xff]
        %v3504 = vld [vmem:[%s795 + $0x151] sm:$0xff]
        %v3505 = vld [vmem:[%s795 + $0x159] sm:$0xff]
        %v3506 = vld [vmem:[%s795 + $0x169] sm:$0xff]
        %v3507 = vld [vmem:[%s795 + $0x171] sm:$0xff]
        %v3508 = vpack.c.bf16 %v3477, %v3476
        %v3509 = vpack.c.bf16 %v3479, %v3478
        %v3510 = vpack.c.bf16 %v3481, %v3480
        %v3511 = vpack.c.bf16 %v3483, %v3482
        %v3512 = vpack.c.bf16 %v3485, %v3484
        %v3513 = vpack.c.bf16 %v3487, %v3486
        %v3514 = vpack.c.bf16 %v3489, %v3488
        %v3515 = vpack.c.bf16 %v3491, %v3490
        %v3516 = vpack.c.bf16 %v3493, %v3492
        %v3517 = vpack.c.bf16 %v3495, %v3494
        %v3518 = vpack.c.bf16 %v3497, %v3496
        %v3519 = vpack.c.bf16 %v3499, %v3498
        %v3520 = vpack.c.bf16 %v3501, %v3500
        %v3521 = vpack.c.bf16 %v3503, %v3502
        %v3522 = vpack.c.bf16 %v3505, %v3504
        %v3523 = vpack.c.bf16 %v3507, %v3506
        %3524 = vst [vmem:[#allocation3 + $0x38] sm:$0xff] %v3508
        %3525 = vst [vmem:[#allocation3 + $0x80] sm:$0xff] %v3509
        %3526 = vst [vmem:[#allocation3 + $0xc8] sm:$0xff] %v3510
        %3527 = vst [vmem:[#allocation3 + $0x110] sm:$0xff] %v3511
        %3528 = vst [vmem:[#allocation3 + $0x158] sm:$0xff] %v3512
        %3529 = vst [vmem:[#allocation3 + $0x1a0] sm:$0xff] %v3513
        %3530 = vst [vmem:[#allocation3 + $0x1e8] sm:$0xff] %v3514
        %3531 = vst [vmem:[#allocation3 + $0x230] sm:$0xff] %v3515
        %3532 = vst [vmem:[#allocation3 + $0x278] sm:$0xff] %v3516
        %3533 = vst [vmem:[#allocation3 + $0x2c0] sm:$0xff] %v3517
        %3534 = vst [vmem:[#allocation3 + $0x308] sm:$0xff] %v3518
        %3535 = vst [vmem:[#allocation3 + $0x350] sm:$0xff] %v3519
        %3536 = vst [vmem:[#allocation3 + $0x398] sm:$0xff] %v3520
        %3537 = vst [vmem:[#allocation3 + $0x3e0] sm:$0xff] %v3521
        %3538 = vst [vmem:[#allocation3 + $0x428] sm:$0xff] %v3522
        %3539 = vst [vmem:[#allocation3 + $0x470] sm:$0xff] %v3523
        %v3540 = vld [vmem:[%s795 + $0x2] sm:$0xff]
        %v3541 = vld [vmem:[%s795 + $0xa] sm:$0xff]
        %v3542 = vld [vmem:[%s795 + $0x1a] sm:$0xff]
        %v3543 = vld [vmem:[%s795 + $0x22] sm:$0xff]
        %v3544 = vld [vmem:[%s795 + $0x32] sm:$0xff]
        %v3545 = vld [vmem:[%s795 + $0x3a] sm:$0xff]
        %v3546 = vld [vmem:[%s795 + $0x4a] sm:$0xff]
        %v3547 = vld [vmem:[%s795 + $0x52] sm:$0xff]
        %v3548 = vld [vmem:[%s795 + $0x62] sm:$0xff]
        %v3549 = vld [vmem:[%s795 + $0x6a] sm:$0xff]
        %v3550 = vld [vmem:[%s795 + $0x7a] sm:$0xff]
        %v3551 = vld [vmem:[%s795 + $0x82] sm:$0xff]
        %v3552 = vld [vmem:[%s795 + $0x92] sm:$0xff]
        %v3553 = vld [vmem:[%s795 + $0x9a] sm:$0xff]
        %v3554 = vld [vmem:[%s795 + $0xaa] sm:$0xff]
        %v3555 = vld [vmem:[%s795 + $0xb2] sm:$0xff]
        %v3556 = vld [vmem:[%s795 + $0xc2] sm:$0xff]
        %v3557 = vld [vmem:[%s795 + $0xca] sm:$0xff]
        %v3558 = vld [vmem:[%s795 + $0xda] sm:$0xff]
        %v3559 = vld [vmem:[%s795 + $0xe2] sm:$0xff]
        %v3560 = vld [vmem:[%s795 + $0xf2] sm:$0xff]
        %v3561 = vld [vmem:[%s795 + $0xfa] sm:$0xff]
        %v3562 = vld [vmem:[%s795 + $0x10a] sm:$0xff]
        %v3563 = vld [vmem:[%s795 + $0x112] sm:$0xff]
        %v3564 = vld [vmem:[%s795 + $0x122] sm:$0xff]
        %v3565 = vld [vmem:[%s795 + $0x12a] sm:$0xff]
        %v3566 = vld [vmem:[%s795 + $0x13a] sm:$0xff]
        %v3567 = vld [vmem:[%s795 + $0x142] sm:$0xff]
        %v3568 = vld [vmem:[%s795 + $0x152] sm:$0xff]
        %v3569 = vld [vmem:[%s795 + $0x15a] sm:$0xff]
        %v3570 = vld [vmem:[%s795 + $0x16a] sm:$0xff]
        %v3571 = vld [vmem:[%s795 + $0x172] sm:$0xff]
        %v3572 = vpack.c.bf16 %v3541, %v3540
        %v3573 = vpack.c.bf16 %v3543, %v3542
        %v3574 = vpack.c.bf16 %v3545, %v3544
        %v3575 = vpack.c.bf16 %v3547, %v3546
        %v3576 = vpack.c.bf16 %v3549, %v3548
        %v3577 = vpack.c.bf16 %v3551, %v3550
        %v3578 = vpack.c.bf16 %v3553, %v3552
        %v3579 = vpack.c.bf16 %v3555, %v3554
        %v3580 = vpack.c.bf16 %v3557, %v3556
        %v3581 = vpack.c.bf16 %v3559, %v3558
        %v3582 = vpack.c.bf16 %v3561, %v3560
        %v3583 = vpack.c.bf16 %v3563, %v3562
        %v3584 = vpack.c.bf16 %v3565, %v3564
        %v3585 = vpack.c.bf16 %v3567, %v3566
        %v3586 = vpack.c.bf16 %v3569, %v3568
        %v3587 = vpack.c.bf16 %v3571, %v3570
        %3588 = vst [vmem:[#allocation3 + $0x40] sm:$0xff] %v3572
        %3589 = vst [vmem:[#allocation3 + $0x88] sm:$0xff] %v3573
        %3590 = vst [vmem:[#allocation3 + $0xd0] sm:$0xff] %v3574
        %3591 = vst [vmem:[#allocation3 + $0x118] sm:$0xff] %v3575
        %3592 = vst [vmem:[#allocation3 + $0x160] sm:$0xff] %v3576
        %3593 = vst [vmem:[#allocation3 + $0x1a8] sm:$0xff] %v3577
        %3594 = vst [vmem:[#allocation3 + $0x1f0] sm:$0xff] %v3578
        %3595 = vst [vmem:[#allocation3 + $0x238] sm:$0xff] %v3579
        %3596 = vst [vmem:[#allocation3 + $0x280] sm:$0xff] %v3580
        %3597 = vst [vmem:[#allocation3 + $0x2c8] sm:$0xff] %v3581
        %3598 = vst [vmem:[#allocation3 + $0x310] sm:$0xff] %v3582
        %3599 = vst [vmem:[#allocation3 + $0x358] sm:$0xff] %v3583
        %3600 = vst [vmem:[#allocation3 + $0x3a0] sm:$0xff] %v3584
        %3601 = vst [vmem:[#allocation3 + $0x3e8] sm:$0xff] %v3585
        %3602 = vst [vmem:[#allocation3 + $0x430] sm:$0xff] %v3586
        %3603 = vst [vmem:[#allocation3 + $0x478] sm:$0xff] %v3587
        %v3604 = vld [vmem:[#allocation3] sm:$0xff]
        %v3605 = vld [vmem:[#allocation3 + $0x8] sm:$0xff]
        %v3606 = vld [vmem:[#allocation3 + $0x10] sm:$0xff]
        %v3607 = vld [vmem:[#allocation3 + $0x18] sm:$0xff]
        %v3608 = vld [vmem:[#allocation3 + $0x20] sm:$0xff]
        %v3609 = vld [vmem:[#allocation3 + $0x28] sm:$0xff]
        %v3610 = vld [vmem:[#allocation3 + $0x30] sm:$0xff]
        %v3611 = vld [vmem:[#allocation3 + $0x38] sm:$0xff]
        %v3612 = vld [vmem:[#allocation3 + $0x40] sm:$0xff]
        %v3613 = vld [vmem:[#allocation3 + $0x48] sm:$0xff]
        %v3614 = vld [vmem:[#allocation3 + $0x50] sm:$0xff]
        %v3615 = vld [vmem:[#allocation3 + $0x58] sm:$0xff]
        %v3616 = vld [vmem:[#allocation3 + $0x60] sm:$0xff]
        %v3617 = vld [vmem:[#allocation3 + $0x68] sm:$0xff]
        %v3618 = vld [vmem:[#allocation3 + $0x70] sm:$0xff]
        %v3619 = vld [vmem:[#allocation3 + $0x78] sm:$0xff]
        %v3620 = vld [vmem:[#allocation3 + $0x80] sm:$0xff]
        %v3621 = vld [vmem:[#allocation3 + $0x88] sm:$0xff]
        %v3622 = vld [vmem:[#allocation3 + $0x90] sm:$0xff]
        %v3623 = vld [vmem:[#allocation3 + $0x98] sm:$0xff]
        %v3624 = vld [vmem:[#allocation3 + $0xa0] sm:$0xff]
        %v3625 = vld [vmem:[#allocation3 + $0xa8] sm:$0xff]
        %v3626 = vld [vmem:[#allocation3 + $0xb0] sm:$0xff]
        %v3627 = vld [vmem:[#allocation3 + $0xb8] sm:$0xff]
        %v3628 = vld [vmem:[#allocation3 + $0xc0] sm:$0xff]
        %v3629 = vld [vmem:[#allocation3 + $0xc8] sm:$0xff]
        %v3630 = vld [vmem:[#allocation3 + $0xd0] sm:$0xff]
        %v3631 = vld [vmem:[#allocation3 + $0xd8] sm:$0xff]
        %v3632 = vld [vmem:[#allocation3 + $0xe0] sm:$0xff]
        %v3633 = vld [vmem:[#allocation3 + $0xe8] sm:$0xff]
        %v3634 = vld [vmem:[#allocation3 + $0xf0] sm:$0xff]
        %v3635 = vld [vmem:[#allocation3 + $0xf8] sm:$0xff]
        %v3636 = vld [vmem:[#allocation3 + $0x100] sm:$0xff]
        %v3637 = vld [vmem:[#allocation3 + $0x108] sm:$0xff]
        %v3638 = vld [vmem:[#allocation3 + $0x110] sm:$0xff]
        %v3639 = vld [vmem:[#allocation3 + $0x118] sm:$0xff]
        %v3640 = vld [vmem:[#allocation3 + $0x120] sm:$0xff]
        %v3641 = vld [vmem:[#allocation3 + $0x128] sm:$0xff]
        %v3642 = vld [vmem:[#allocation3 + $0x130] sm:$0xff]
        %v3643 = vld [vmem:[#allocation3 + $0x138] sm:$0xff]
        %v3644 = vld [vmem:[#allocation3 + $0x140] sm:$0xff]
        %v3645 = vld [vmem:[#allocation3 + $0x148] sm:$0xff]
        %v3646 = vld [vmem:[#allocation3 + $0x150] sm:$0xff]
        %v3647 = vld [vmem:[#allocation3 + $0x158] sm:$0xff]
        %v3648 = vld [vmem:[#allocation3 + $0x160] sm:$0xff]
        %v3649 = vld [vmem:[#allocation3 + $0x168] sm:$0xff]
        %v3650 = vld [vmem:[#allocation3 + $0x170] sm:$0xff]
        %v3651 = vld [vmem:[#allocation3 + $0x178] sm:$0xff]
        %v3652 = vld [vmem:[#allocation3 + $0x180] sm:$0xff]
        %v3653 = vld [vmem:[#allocation3 + $0x188] sm:$0xff]
        %v3654 = vld [vmem:[#allocation3 + $0x190] sm:$0xff]
        %v3655 = vld [vmem:[#allocation3 + $0x198] sm:$0xff]
        %v3656 = vld [vmem:[#allocation3 + $0x1a0] sm:$0xff]
        %v3657 = vld [vmem:[#allocation3 + $0x1a8] sm:$0xff]
        %v3658 = vld [vmem:[#allocation3 + $0x1b0] sm:$0xff]
        %v3659 = vld [vmem:[#allocation3 + $0x1b8] sm:$0xff]
        %v3660 = vld [vmem:[#allocation3 + $0x1c0] sm:$0xff]
        %v3661 = vld [vmem:[#allocation3 + $0x1c8] sm:$0xff]
        %v3662 = vld [vmem:[#allocation3 + $0x1d0] sm:$0xff]
        %v3663 = vld [vmem:[#allocation3 + $0x1d8] sm:$0xff]
        %v3664 = vld [vmem:[#allocation3 + $0x1e0] sm:$0xff]
        %v3665 = vld [vmem:[#allocation3 + $0x1e8] sm:$0xff]
        %v3666 = vld [vmem:[#allocation3 + $0x1f0] sm:$0xff]
        %v3667 = vld [vmem:[#allocation3 + $0x1f8] sm:$0xff]
        %v3668 = vld [vmem:[#allocation3 + $0x200] sm:$0xff]
        %v3669 = vld [vmem:[#allocation3 + $0x208] sm:$0xff]
        %v3670 = vld [vmem:[#allocation3 + $0x210] sm:$0xff]
        %v3671 = vld [vmem:[#allocation3 + $0x218] sm:$0xff]
        %v3672 = vld [vmem:[#allocation3 + $0x220] sm:$0xff]
        %v3673 = vld [vmem:[#allocation3 + $0x228] sm:$0xff]
        %v3674 = vld [vmem:[#allocation3 + $0x230] sm:$0xff]
        %v3675 = vld [vmem:[#allocation3 + $0x238] sm:$0xff]
        %v3676 = vld [vmem:[#allocation3 + $0x240] sm:$0xff]
        %v3677 = vld [vmem:[#allocation3 + $0x248] sm:$0xff]
        %v3678 = vld [vmem:[#allocation3 + $0x250] sm:$0xff]
        %v3679 = vld [vmem:[#allocation3 + $0x258] sm:$0xff]
        %v3680 = vld [vmem:[#allocation3 + $0x260] sm:$0xff]
        %v3681 = vld [vmem:[#allocation3 + $0x268] sm:$0xff]
        %v3682 = vld [vmem:[#allocation3 + $0x270] sm:$0xff]
        %v3683 = vld [vmem:[#allocation3 + $0x278] sm:$0xff]
        %v3684 = vld [vmem:[#allocation3 + $0x280] sm:$0xff]
        %v3685 = vld [vmem:[#allocation3 + $0x288] sm:$0xff]
        %v3686 = vld [vmem:[#allocation3 + $0x290] sm:$0xff]
        %v3687 = vld [vmem:[#allocation3 + $0x298] sm:$0xff]
        %v3688 = vld [vmem:[#allocation3 + $0x2a0] sm:$0xff]
        %v3689 = vld [vmem:[#allocation3 + $0x2a8] sm:$0xff]
        %v3690 = vld [vmem:[#allocation3 + $0x2b0] sm:$0xff]
        %v3691 = vld [vmem:[#allocation3 + $0x2b8] sm:$0xff]
        %v3692 = vld [vmem:[#allocation3 + $0x2c0] sm:$0xff]
        %v3693 = vld [vmem:[#allocation3 + $0x2c8] sm:$0xff]
        %v3694 = vld [vmem:[#allocation3 + $0x2d0] sm:$0xff]
        %v3695 = vld [vmem:[#allocation3 + $0x2d8] sm:$0xff]
        %v3696 = vld [vmem:[#allocation3 + $0x2e0] sm:$0xff]
        %v3697 = vld [vmem:[#allocation3 + $0x2e8] sm:$0xff]
        %v3698 = vld [vmem:[#allocation3 + $0x2f0] sm:$0xff]
        %v3699 = vld [vmem:[#allocation3 + $0x2f8] sm:$0xff]
        %v3700 = vld [vmem:[#allocation3 + $0x300] sm:$0xff]
        %v3701 = vld [vmem:[#allocation3 + $0x308] sm:$0xff]
        %v3702 = vld [vmem:[#allocation3 + $0x310] sm:$0xff]
        %v3703 = vld [vmem:[#allocation3 + $0x318] sm:$0xff]
        %v3704 = vld [vmem:[#allocation3 + $0x320] sm:$0xff]
        %v3705 = vld [vmem:[#allocation3 + $0x328] sm:$0xff]
        %v3706 = vld [vmem:[#allocation3 + $0x330] sm:$0xff]
        %v3707 = vld [vmem:[#allocation3 + $0x338] sm:$0xff]
        %v3708 = vld [vmem:[#allocation3 + $0x340] sm:$0xff]
        %v3709 = vld [vmem:[#allocation3 + $0x348] sm:$0xff]
        %v3710 = vld [vmem:[#allocation3 + $0x350] sm:$0xff]
        %v3711 = vld [vmem:[#allocation3 + $0x358] sm:$0xff]
        %v3712 = vld [vmem:[#allocation3 + $0x360] sm:$0xff]
        %v3713 = vld [vmem:[#allocation3 + $0x368] sm:$0xff]
        %v3714 = vld [vmem:[#allocation3 + $0x370] sm:$0xff]
        %v3715 = vld [vmem:[#allocation3 + $0x378] sm:$0xff]
        %v3716 = vld [vmem:[#allocation3 + $0x380] sm:$0xff]
        %v3717 = vld [vmem:[#allocation3 + $0x388] sm:$0xff]
        %v3718 = vld [vmem:[#allocation3 + $0x390] sm:$0xff]
        %v3719 = vld [vmem:[#allocation3 + $0x398] sm:$0xff]
        %v3720 = vld [vmem:[#allocation3 + $0x3a0] sm:$0xff]
        %v3721 = vld [vmem:[#allocation3 + $0x3a8] sm:$0xff]
        %v3722 = vld [vmem:[#allocation3 + $0x3b0] sm:$0xff]
        %v3723 = vld [vmem:[#allocation3 + $0x3b8] sm:$0xff]
        %v3724 = vld [vmem:[#allocation3 + $0x3c0] sm:$0xff]
        %v3725 = vld [vmem:[#allocation3 + $0x3c8] sm:$0xff]
        %v3726 = vld [vmem:[#allocation3 + $0x3d0] sm:$0xff]
        %v3727 = vld [vmem:[#allocation3 + $0x3d8] sm:$0xff]
        %v3728 = vld [vmem:[#allocation3 + $0x3e0] sm:$0xff]
        %v3729 = vld [vmem:[#allocation3 + $0x3e8] sm:$0xff]
        %v3730 = vld [vmem:[#allocation3 + $0x3f0] sm:$0xff]
        %v3731 = vld [vmem:[#allocation3 + $0x3f8] sm:$0xff]
        %v3732 = vld [vmem:[#allocation3 + $0x400] sm:$0xff]
        %v3733 = vld [vmem:[#allocation3 + $0x408] sm:$0xff]
        %v3734 = vld [vmem:[#allocation3 + $0x410] sm:$0xff]
        %v3735 = vld [vmem:[#allocation3 + $0x418] sm:$0xff]
        %v3736 = vld [vmem:[#allocation3 + $0x420] sm:$0xff]
        %v3737 = vld [vmem:[#allocation3 + $0x428] sm:$0xff]
        %v3738 = vld [vmem:[#allocation3 + $0x430] sm:$0xff]
        %v3739 = vld [vmem:[#allocation3 + $0x438] sm:$0xff]
        %v3740 = vld [vmem:[#allocation3 + $0x440] sm:$0xff]
        %v3741 = vld [vmem:[#allocation3 + $0x448] sm:$0xff]
        %v3742 = vld [vmem:[#allocation3 + $0x450] sm:$0xff]
        %v3743 = vld [vmem:[#allocation3 + $0x458] sm:$0xff]
        %v3744 = vld [vmem:[#allocation3 + $0x460] sm:$0xff]
        %v3745 = vld [vmem:[#allocation3 + $0x468] sm:$0xff]
        %v3746 = vld [vmem:[#allocation3 + $0x470] sm:$0xff]
        %v3747 = vld [vmem:[#allocation3 + $0x478] sm:$0xff]
        %s3748 = scalar_lea.vmem %s1, 576
        %v3749 = vld [vmem:[%s3748] sm:$0xf]
        %v3750 = vld [vmem:[%s3748 + $0x4] sm:$0xf]
        %v3751 = vld [vmem:[%s3748 + $0x8] sm:$0xf]
        %v3752 = vld [vmem:[%s3748 + $0xc] sm:$0xf]
        %v3753 = vld [vmem:[%s3748 + $0x10] sm:$0xf]
        %v3754 = vld [vmem:[%s3748 + $0x14] sm:$0xf]
        %v3755 = vld [vmem:[%s3748 + $0x18] sm:$0xf]
        %v3756 = vld [vmem:[%s3748 + $0x1c] sm:$0xf]
        %v3757 = vld [vmem:[%s3748 + $0x20] sm:$0xf]
        %v3758 = vld [vmem:[%s3748 + $0x24] sm:$0xf]
        %v3759 = vld [vmem:[%s3748 + $0x28] sm:$0xf]
        %v3760 = vld [vmem:[%s3748 + $0x2c] sm:$0xf]
        %v3761 = vld [vmem:[%s3748 + $0x30] sm:$0xf]
        %v3762 = vld [vmem:[%s3748 + $0x34] sm:$0xf]
        %v3763 = vld [vmem:[%s3748 + $0x38] sm:$0xf]
        %v3764 = vld [vmem:[%s3748 + $0x3c] sm:$0xf]
        %v3765 = vld [vmem:[%s3748 + $0x40] sm:$0xf]
        %v3766 = vld [vmem:[%s3748 + $0x44] sm:$0xf]
        %v3767 = vld [vmem:[%s3748 + $0x48] sm:$0xf]
        %v3768 = vld [vmem:[%s3748 + $0x4c] sm:$0xf]
        %v3769 = vld [vmem:[%s3748 + $0x50] sm:$0xf]
        %v3770 = vld [vmem:[%s3748 + $0x54] sm:$0xf]
        %v3771 = vld [vmem:[%s3748 + $0x58] sm:$0xf]
        %v3772 = vld [vmem:[%s3748 + $0x5c] sm:$0xf]
        %v3773 = vld [vmem:[%s3748 + $0x60] sm:$0xf]
        %v3774 = vld [vmem:[%s3748 + $0x64] sm:$0xf]
        %v3775 = vld [vmem:[%s3748 + $0x68] sm:$0xf]
        %v3776 = vld [vmem:[%s3748 + $0x6c] sm:$0xf]
        %v3777 = vld [vmem:[%s3748 + $0x70] sm:$0xf]
        %v3778 = vld [vmem:[%s3748 + $0x74] sm:$0xf]
        %v3779 = vld [vmem:[%s3748 + $0x78] sm:$0xf]
        %v3780 = vld [vmem:[%s3748 + $0x7c] sm:$0xf]
        %v3781 = vld [vmem:[%s3748 + $0x80] sm:$0xf]
        %v3782 = vld [vmem:[%s3748 + $0x84] sm:$0xf]
        %v3783 = vld [vmem:[%s3748 + $0x88] sm:$0xf]
        %v3784 = vld [vmem:[%s3748 + $0x8c] sm:$0xf]
        %v3785 = vld [vmem:[%s3748 + $0x90] sm:$0xf]
        %v3786 = vld [vmem:[%s3748 + $0x94] sm:$0xf]
        %v3787 = vld [vmem:[%s3748 + $0x98] sm:$0xf]
        %v3788 = vld [vmem:[%s3748 + $0x9c] sm:$0xf]
        %v3789 = vld [vmem:[%s3748 + $0xa0] sm:$0xf]
        %v3790 = vld [vmem:[%s3748 + $0xa4] sm:$0xf]
        %v3791 = vld [vmem:[%s3748 + $0xa8] sm:$0xf]
        %v3792 = vld [vmem:[%s3748 + $0xac] sm:$0xf]
        %v3793 = vld [vmem:[%s3748 + $0xb0] sm:$0xf]
        %v3794 = vld [vmem:[%s3748 + $0xb4] sm:$0xf]
        %v3795 = vld [vmem:[%s3748 + $0xb8] sm:$0xf]
        %v3796 = vld [vmem:[%s3748 + $0xbc] sm:$0xf]
        %v3797 = vld [vmem:[%s3748 + $0xc0] sm:$0xf]
        %v3798 = vld [vmem:[%s3748 + $0xc4] sm:$0xf]
        %v3799 = vld [vmem:[%s3748 + $0xc8] sm:$0xf]
        %v3800 = vld [vmem:[%s3748 + $0xcc] sm:$0xf]
        %v3801 = vld [vmem:[%s3748 + $0xd0] sm:$0xf]
        %v3802 = vld [vmem:[%s3748 + $0xd4] sm:$0xf]
        %v3803 = vld [vmem:[%s3748 + $0xd8] sm:$0xf]
        %v3804 = vld [vmem:[%s3748 + $0xdc] sm:$0xf]
        %v3805 = vld [vmem:[%s3748 + $0xe0] sm:$0xf]
        %v3806 = vld [vmem:[%s3748 + $0xe4] sm:$0xf]
        %v3807 = vld [vmem:[%s3748 + $0xe8] sm:$0xf]
        %v3808 = vld [vmem:[%s3748 + $0xec] sm:$0xf]
        %v3809 = vld [vmem:[%s3748 + $0xf0] sm:$0xf]
        %v3810 = vld [vmem:[%s3748 + $0xf4] sm:$0xf]
        %v3811 = vld [vmem:[%s3748 + $0xf8] sm:$0xf]
        %v3812 = vld [vmem:[%s3748 + $0xfc] sm:$0xf]
        %v3813 = vld [vmem:[%s3748 + $0x100] sm:$0xf]
        %v3814 = vld [vmem:[%s3748 + $0x104] sm:$0xf]
        %v3815 = vld [vmem:[%s3748 + $0x108] sm:$0xf]
        %v3816 = vld [vmem:[%s3748 + $0x10c] sm:$0xf]
        %v3817 = vld [vmem:[%s3748 + $0x110] sm:$0xf]
        %v3818 = vld [vmem:[%s3748 + $0x114] sm:$0xf]
        %v3819 = vld [vmem:[%s3748 + $0x118] sm:$0xf]
        %v3820 = vld [vmem:[%s3748 + $0x11c] sm:$0xf]
        %v3821 = vld [vmem:[%s3748 + $0x120] sm:$0xf]
        %v3822 = vld [vmem:[%s3748 + $0x124] sm:$0xf]
        %v3823 = vld [vmem:[%s3748 + $0x128] sm:$0xf]
        %v3824 = vld [vmem:[%s3748 + $0x12c] sm:$0xf]
        %v3825 = vld [vmem:[%s3748 + $0x130] sm:$0xf]
        %v3826 = vld [vmem:[%s3748 + $0x134] sm:$0xf]
        %v3827 = vld [vmem:[%s3748 + $0x138] sm:$0xf]
        %v3828 = vld [vmem:[%s3748 + $0x13c] sm:$0xf]
        %v3829 = vld [vmem:[%s3748 + $0x140] sm:$0xf]
        %v3830 = vld [vmem:[%s3748 + $0x144] sm:$0xf]
        %v3831 = vld [vmem:[%s3748 + $0x148] sm:$0xf]
        %v3832 = vld [vmem:[%s3748 + $0x14c] sm:$0xf]
        %v3833 = vld [vmem:[%s3748 + $0x150] sm:$0xf]
        %v3834 = vld [vmem:[%s3748 + $0x154] sm:$0xf]
        %v3835 = vld [vmem:[%s3748 + $0x158] sm:$0xf]
        %v3836 = vld [vmem:[%s3748 + $0x15c] sm:$0xf]
        %v3837 = vld [vmem:[%s3748 + $0x160] sm:$0xf]
        %v3838 = vld [vmem:[%s3748 + $0x164] sm:$0xf]
        %v3839 = vld [vmem:[%s3748 + $0x168] sm:$0xf]
        %v3840 = vld [vmem:[%s3748 + $0x16c] sm:$0xf]
        %v3841 = vld [vmem:[%s3748 + $0x170] sm:$0xf]
        %v3842 = vld [vmem:[%s3748 + $0x174] sm:$0xf]
        %v3843 = vld [vmem:[%s3748 + $0x178] sm:$0xf]
        %v3844 = vld [vmem:[%s3748 + $0x17c] sm:$0xf]
        %v3845 = vld [vmem:[%s3748 + $0x180] sm:$0xf]
        %v3846 = vld [vmem:[%s3748 + $0x184] sm:$0xf]
        %v3847 = vld [vmem:[%s3748 + $0x188] sm:$0xf]
        %v3848 = vld [vmem:[%s3748 + $0x18c] sm:$0xf]
        %v3849 = vld [vmem:[%s3748 + $0x190] sm:$0xf]
        %v3850 = vld [vmem:[%s3748 + $0x194] sm:$0xf]
        %v3851 = vld [vmem:[%s3748 + $0x198] sm:$0xf]
        %v3852 = vld [vmem:[%s3748 + $0x19c] sm:$0xf]
        %v3853 = vld [vmem:[%s3748 + $0x1a0] sm:$0xf]
        %v3854 = vld [vmem:[%s3748 + $0x1a4] sm:$0xf]
        %v3855 = vld [vmem:[%s3748 + $0x1a8] sm:$0xf]
        %v3856 = vld [vmem:[%s3748 + $0x1ac] sm:$0xf]
        %v3857 = vld [vmem:[%s3748 + $0x1b0] sm:$0xf]
        %v3858 = vld [vmem:[%s3748 + $0x1b4] sm:$0xf]
        %v3859 = vld [vmem:[%s3748 + $0x1b8] sm:$0xf]
        %v3860 = vld [vmem:[%s3748 + $0x1bc] sm:$0xf]
        %v3861 = vld [vmem:[%s3748 + $0x1c0] sm:$0xf]
        %v3862 = vld [vmem:[%s3748 + $0x1c4] sm:$0xf]
        %v3863 = vld [vmem:[%s3748 + $0x1c8] sm:$0xf]
        %v3864 = vld [vmem:[%s3748 + $0x1cc] sm:$0xf]
        %v3865 = vld [vmem:[%s3748 + $0x1d0] sm:$0xf]
        %v3866 = vld [vmem:[%s3748 + $0x1d4] sm:$0xf]
        %v3867 = vld [vmem:[%s3748 + $0x1d8] sm:$0xf]
        %v3868 = vld [vmem:[%s3748 + $0x1dc] sm:$0xf]
        %v3869 = vld [vmem:[%s3748 + $0x1e0] sm:$0xf]
        %v3870 = vld [vmem:[%s3748 + $0x1e4] sm:$0xf]
        %v3871 = vld [vmem:[%s3748 + $0x1e8] sm:$0xf]
        %v3872 = vld [vmem:[%s3748 + $0x1ec] sm:$0xf]
        %v3873 = vld [vmem:[%s3748 + $0x1f0] sm:$0xf]
        %v3874 = vld [vmem:[%s3748 + $0x1f4] sm:$0xf]
        %v3875 = vld [vmem:[%s3748 + $0x1f8] sm:$0xf]
        %v3876 = vld [vmem:[%s3748 + $0x1fc] sm:$0xf]
        %v3877 = vld [vmem:[%s3748 + $0x200] sm:$0xf]
        %v3878 = vld [vmem:[%s3748 + $0x204] sm:$0xf]
        %v3879 = vld [vmem:[%s3748 + $0x208] sm:$0xf]
        %v3880 = vld [vmem:[%s3748 + $0x20c] sm:$0xf]
        %v3881 = vld [vmem:[%s3748 + $0x210] sm:$0xf]
        %v3882 = vld [vmem:[%s3748 + $0x214] sm:$0xf]
        %v3883 = vld [vmem:[%s3748 + $0x218] sm:$0xf]
        %v3884 = vld [vmem:[%s3748 + $0x21c] sm:$0xf]
        %v3885 = vld [vmem:[%s3748 + $0x220] sm:$0xf]
        %v3886 = vld [vmem:[%s3748 + $0x224] sm:$0xf]
        %v3887 = vld [vmem:[%s3748 + $0x228] sm:$0xf]
        %v3888 = vld [vmem:[%s3748 + $0x22c] sm:$0xf]
        %v3889 = vld [vmem:[%s3748 + $0x230] sm:$0xf]
        %v3890 = vld [vmem:[%s3748 + $0x234] sm:$0xf]
        %v3891 = vld [vmem:[%s3748 + $0x238] sm:$0xf]
        %v3892 = vld [vmem:[%s3748 + $0x23c] sm:$0xf]
        %v4037 = vunpack.c.l.b16 %v3749
        %v4038 = vunpack.c.l.b16 %v3750
        %v4039 = vunpack.c.l.b16 %v3751
        %v4040 = vunpack.c.l.b16 %v3752
        %v4041 = vunpack.c.l.b16 %v3753
        %v4042 = vunpack.c.l.b16 %v3754
        %v4043 = vunpack.c.l.b16 %v3755
        %v4044 = vunpack.c.l.b16 %v3756
        %v4045 = vunpack.c.l.b16 %v3757
        %v4046 = vunpack.c.l.b16 %v3758
        %v4047 = vunpack.c.l.b16 %v3759
        %v4048 = vunpack.c.l.b16 %v3760
        %v4049 = vunpack.c.l.b16 %v3761
        %v4050 = vunpack.c.l.b16 %v3762
        %v4051 = vunpack.c.l.b16 %v3763
        %v4052 = vunpack.c.l.b16 %v3764
        %v4053 = vunpack.c.l.b16 %v3765
        %v4054 = vunpack.c.l.b16 %v3766
        %v4055 = vunpack.c.l.b16 %v3767
        %v4056 = vunpack.c.l.b16 %v3768
        %v4057 = vunpack.c.l.b16 %v3769
        %v4058 = vunpack.c.l.b16 %v3770
        %v4059 = vunpack.c.l.b16 %v3771
        %v4060 = vunpack.c.l.b16 %v3772
        %v4061 = vunpack.c.l.b16 %v3773
        %v4062 = vunpack.c.l.b16 %v3774
        %v4063 = vunpack.c.l.b16 %v3775
        %v4064 = vunpack.c.l.b16 %v3776
        %v4065 = vunpack.c.l.b16 %v3777
        %v4066 = vunpack.c.l.b16 %v3778
        %v4067 = vunpack.c.l.b16 %v3779
        %v4068 = vunpack.c.l.b16 %v3780
        %v4069 = vunpack.c.l.b16 %v3781
        %v4070 = vunpack.c.l.b16 %v3782
        %v4071 = vunpack.c.l.b16 %v3783
        %v4072 = vunpack.c.l.b16 %v3784
        %v4073 = vunpack.c.l.b16 %v3785
        %v4074 = vunpack.c.l.b16 %v3786
        %v4075 = vunpack.c.l.b16 %v3787
        %v4076 = vunpack.c.l.b16 %v3788
        %v4077 = vunpack.c.l.b16 %v3789
        %v4078 = vunpack.c.l.b16 %v3790
        %v4079 = vunpack.c.l.b16 %v3791
        %v4080 = vunpack.c.l.b16 %v3792
        %v4081 = vunpack.c.l.b16 %v3793
        %v4082 = vunpack.c.l.b16 %v3794
        %v4083 = vunpack.c.l.b16 %v3795
        %v4084 = vunpack.c.l.b16 %v3796
        %v4085 = vunpack.c.l.b16 %v3797
        %v4086 = vunpack.c.l.b16 %v3798
        %v4087 = vunpack.c.l.b16 %v3799
        %v4088 = vunpack.c.l.b16 %v3800
        %v4089 = vunpack.c.l.b16 %v3801
        %v4090 = vunpack.c.l.b16 %v3802
        %v4091 = vunpack.c.l.b16 %v3803
        %v4092 = vunpack.c.l.b16 %v3804
        %v4093 = vunpack.c.l.b16 %v3805
        %v4094 = vunpack.c.l.b16 %v3806
        %v4095 = vunpack.c.l.b16 %v3807
        %v4096 = vunpack.c.l.b16 %v3808
        %v4097 = vunpack.c.l.b16 %v3809
        %v4098 = vunpack.c.l.b16 %v3810
        %v4099 = vunpack.c.l.b16 %v3811
        %v4100 = vunpack.c.l.b16 %v3812
        %v4101 = vunpack.c.l.b16 %v3813
        %v4102 = vunpack.c.l.b16 %v3814
        %v4103 = vunpack.c.l.b16 %v3815
        %v4104 = vunpack.c.l.b16 %v3816
        %v4105 = vunpack.c.l.b16 %v3817
        %v4106 = vunpack.c.l.b16 %v3818
        %v4107 = vunpack.c.l.b16 %v3819
        %v4108 = vunpack.c.l.b16 %v3820
        %v4109 = vunpack.c.l.b16 %v3821
        %v4110 = vunpack.c.l.b16 %v3822
        %v4111 = vunpack.c.l.b16 %v3823
        %v4112 = vunpack.c.l.b16 %v3824
        %v4113 = vunpack.c.l.b16 %v3825
        %v4114 = vunpack.c.l.b16 %v3826
        %v4115 = vunpack.c.l.b16 %v3827
        %v4116 = vunpack.c.l.b16 %v3828
        %v4117 = vunpack.c.l.b16 %v3829
        %v4118 = vunpack.c.l.b16 %v3830
        %v4119 = vunpack.c.l.b16 %v3831
        %v4120 = vunpack.c.l.b16 %v3832
        %v4121 = vunpack.c.l.b16 %v3833
        %v4122 = vunpack.c.l.b16 %v3834
        %v4123 = vunpack.c.l.b16 %v3835
        %v4124 = vunpack.c.l.b16 %v3836
        %v4125 = vunpack.c.l.b16 %v3837
        %v4126 = vunpack.c.l.b16 %v3838
        %v4127 = vunpack.c.l.b16 %v3839
        %v4128 = vunpack.c.l.b16 %v3840
        %v4129 = vunpack.c.l.b16 %v3841
        %v4130 = vunpack.c.l.b16 %v3842
        %v4131 = vunpack.c.l.b16 %v3843
        %v4132 = vunpack.c.l.b16 %v3844
        %v4133 = vunpack.c.l.b16 %v3845
        %v4134 = vunpack.c.l.b16 %v3846
        %v4135 = vunpack.c.l.b16 %v3847
        %v4136 = vunpack.c.l.b16 %v3848
        %v4137 = vunpack.c.l.b16 %v3849
        %v4138 = vunpack.c.l.b16 %v3850
        %v4139 = vunpack.c.l.b16 %v3851
        %v4140 = vunpack.c.l.b16 %v3852
        %v4141 = vunpack.c.l.b16 %v3853
        %v4142 = vunpack.c.l.b16 %v3854
        %v4143 = vunpack.c.l.b16 %v3855
        %v4144 = vunpack.c.l.b16 %v3856
        %v4145 = vunpack.c.l.b16 %v3857
        %v4146 = vunpack.c.l.b16 %v3858
        %v4147 = vunpack.c.l.b16 %v3859
        %v4148 = vunpack.c.l.b16 %v3860
        %v4149 = vunpack.c.l.b16 %v3861
        %v4150 = vunpack.c.l.b16 %v3862
        %v4151 = vunpack.c.l.b16 %v3863
        %v4152 = vunpack.c.l.b16 %v3864
        %v4153 = vunpack.c.l.b16 %v3865
        %v4154 = vunpack.c.l.b16 %v3866
        %v4155 = vunpack.c.l.b16 %v3867
        %v4156 = vunpack.c.l.b16 %v3868
        %v4157 = vunpack.c.l.b16 %v3869
        %v4158 = vunpack.c.l.b16 %v3870
        %v4159 = vunpack.c.l.b16 %v3871
        %v4160 = vunpack.c.l.b16 %v3872
        %v4161 = vunpack.c.l.b16 %v3873
        %v4162 = vunpack.c.l.b16 %v3874
        %v4163 = vunpack.c.l.b16 %v3875
        %v4164 = vunpack.c.l.b16 %v3876
        %v4165 = vunpack.c.l.b16 %v3877
        %v4166 = vunpack.c.l.b16 %v3878
        %v4167 = vunpack.c.l.b16 %v3879
        %v4168 = vunpack.c.l.b16 %v3880
        %v4169 = vunpack.c.l.b16 %v3881
        %v4170 = vunpack.c.l.b16 %v3882
        %v4171 = vunpack.c.l.b16 %v3883
        %v4172 = vunpack.c.l.b16 %v3884
        %v4173 = vunpack.c.l.b16 %v3885
        %v4174 = vunpack.c.l.b16 %v3886
        %v4175 = vunpack.c.l.b16 %v3887
        %v4176 = vunpack.c.l.b16 %v3888
        %v4177 = vunpack.c.l.b16 %v3889
        %v4178 = vunpack.c.l.b16 %v3890
        %v4179 = vunpack.c.l.b16 %v3891
        %v4180 = vunpack.c.l.b16 %v3892
        %v4181 = vpack.c.b16 %v4038, %v4037
        %v4182 = vpack.c.b16 %v4040, %v4039
        %v4183 = vpack.c.b16 %v4042, %v4041
        %v4184 = vpack.c.b16 %v4044, %v4043
        %v4185 = vpack.c.b16 %v4046, %v4045
        %v4186 = vpack.c.b16 %v4048, %v4047
        %v4187 = vpack.c.b16 %v4050, %v4049
        %v4188 = vpack.c.b16 %v4052, %v4051
        %v4189 = vpack.c.b16 %v4054, %v4053
        %v4190 = vpack.c.b16 %v4056, %v4055
        %v4191 = vpack.c.b16 %v4058, %v4057
        %v4192 = vpack.c.b16 %v4060, %v4059
        %v4193 = vpack.c.b16 %v4062, %v4061
        %v4194 = vpack.c.b16 %v4064, %v4063
        %v4195 = vpack.c.b16 %v4066, %v4065
        %v4196 = vpack.c.b16 %v4068, %v4067
        %v4197 = vpack.c.b16 %v4070, %v4069
        %v4198 = vpack.c.b16 %v4072, %v4071
        %v4199 = vpack.c.b16 %v4074, %v4073
        %v4200 = vpack.c.b16 %v4076, %v4075
        %v4201 = vpack.c.b16 %v4078, %v4077
        %v4202 = vpack.c.b16 %v4080, %v4079
        %v4203 = vpack.c.b16 %v4082, %v4081
        %v4204 = vpack.c.b16 %v4084, %v4083
        %v4205 = vpack.c.b16 %v4086, %v4085
        %v4206 = vpack.c.b16 %v4088, %v4087
        %v4207 = vpack.c.b16 %v4090, %v4089
        %v4208 = vpack.c.b16 %v4092, %v4091
        %v4209 = vpack.c.b16 %v4094, %v4093
        %v4210 = vpack.c.b16 %v4096, %v4095
        %v4211 = vpack.c.b16 %v4098, %v4097
        %v4212 = vpack.c.b16 %v4100, %v4099
        %v4213 = vpack.c.b16 %v4102, %v4101
        %v4214 = vpack.c.b16 %v4104, %v4103
        %v4215 = vpack.c.b16 %v4106, %v4105
        %v4216 = vpack.c.b16 %v4108, %v4107
        %v4217 = vpack.c.b16 %v4110, %v4109
        %v4218 = vpack.c.b16 %v4112, %v4111
        %v4219 = vpack.c.b16 %v4114, %v4113
        %v4220 = vpack.c.b16 %v4116, %v4115
        %v4221 = vpack.c.b16 %v4118, %v4117
        %v4222 = vpack.c.b16 %v4120, %v4119
        %v4223 = vpack.c.b16 %v4122, %v4121
        %v4224 = vpack.c.b16 %v4124, %v4123
        %v4225 = vpack.c.b16 %v4126, %v4125
        %v4226 = vpack.c.b16 %v4128, %v4127
        %v4227 = vpack.c.b16 %v4130, %v4129
        %v4228 = vpack.c.b16 %v4132, %v4131
        %v4229 = vpack.c.b16 %v4134, %v4133
        %v4230 = vpack.c.b16 %v4136, %v4135
        %v4231 = vpack.c.b16 %v4138, %v4137
        %v4232 = vpack.c.b16 %v4140, %v4139
        %v4233 = vpack.c.b16 %v4142, %v4141
        %v4234 = vpack.c.b16 %v4144, %v4143
        %v4235 = vpack.c.b16 %v4146, %v4145
        %v4236 = vpack.c.b16 %v4148, %v4147
        %v4237 = vpack.c.b16 %v4150, %v4149
        %v4238 = vpack.c.b16 %v4152, %v4151
        %v4239 = vpack.c.b16 %v4154, %v4153
        %v4240 = vpack.c.b16 %v4156, %v4155
        %v4241 = vpack.c.b16 %v4158, %v4157
        %v4242 = vpack.c.b16 %v4160, %v4159
        %v4243 = vpack.c.b16 %v4162, %v4161
        %v4244 = vpack.c.b16 %v4164, %v4163
        %v4245 = vpack.c.b16 %v4166, %v4165
        %v4246 = vpack.c.b16 %v4168, %v4167
        %v4247 = vpack.c.b16 %v4170, %v4169
        %v4248 = vpack.c.b16 %v4172, %v4171
        %v4249 = vpack.c.b16 %v4174, %v4173
        %v4250 = vpack.c.b16 %v4176, %v4175
        %v4251 = vpack.c.b16 %v4178, %v4177
        %v4252 = vpack.c.b16 %v4180, %v4179
        %4325 = vmatprep.subr.bf16.mxu0 0
        %4326 = vmatpush1.bf16.msra.mxu0 %v4181
        %4327 = vmatprep.subr.bf16.mxu0 0
        %4328 = vmatpush1.bf16.msra.mxu0 %v4182
        %4329 = vmatprep.subr.bf16.mxu0 0
        %4330 = vmatpush1.bf16.msra.mxu0 %v4183
        %4331 = vmatprep.subr.bf16.mxu0 0
        %4332 = vmatpush1.bf16.msra.mxu0 %v4184
        %4333 = vmatprep.subr.bf16.mxu0 0
        %4334 = vmatpush1.bf16.msra.mxu0 %v4185
        %4335 = vmatprep.subr.bf16.mxu0 0
        %4336 = vmatpush1.bf16.msra.mxu0 %v4186
        %4337 = vmatprep.subr.bf16.mxu0 0
        %4338 = vmatpush1.bf16.msra.mxu0 %v4187
        %4339 = vmatprep.subr.bf16.mxu0 0
        %4340 = vmatpush1.bf16.msra.mxu0 %v4188
        %4341 = vmatprep.subr.bf16.mxu0 0
        %4342 = vmatpush1.bf16.msra.mxu0 %v4189
        %4343 = vmatprep.subr.bf16.mxu0 0
        %4344 = vmatpush1.bf16.msra.mxu0 %v4190
        %4345 = vmatprep.subr.bf16.mxu0 0
        %4346 = vmatpush1.bf16.msra.mxu0 %v4191
        %4347 = vmatprep.subr.bf16.mxu0 0
        %4348 = vmatpush1.bf16.msra.mxu0 %v4192
        %4349 = vmatprep.subr.bf16.mxu0 0
        %4350 = vmatpush1.bf16.msra.mxu0 %v4193
        %4351 = vmatprep.subr.bf16.mxu0 0
        %4352 = vmatpush1.bf16.msra.mxu0 %v4194
        %4353 = vmatprep.subr.bf16.mxu0 0
        %4354 = vmatpush1.bf16.msra.mxu0 %v4195
        %4355 = vmatprep.subr.bf16.mxu0 0
        %4356 = vmatpush1.bf16.msra.mxu0 %v4196
        %4357 = vmatprep.mubr.bf16.mxu0 %v3605
        %4358 = vmatmul.mubr.bf16.gmra.mrb[0].mxu0 %v3604
        %v4359 = vpop.f32.mrb[0].mxu0
        %v4360 = vadd.f32 0.0, %v4359
        %v4361 = vpop.f32.mrb[0].mxu0
        %v4362 = vpop.f32.mrb[0].mxu0
        %v4363 = vadd.f32 0.0, %v4362
        %v4364 = vpop.f32.mrb[0].mxu0
        %4365 = vmatprep.mubr.bf16.mxu0 %v3614
        %4366 = vmatmul.mubr.bf16.gmra.mrb[0].mxu0 %v3613
        %v4367 = vpop.f32.mrb[0].mxu0
        %v4368 = vadd.f32 0.0, %v4367
        %v4369 = vpop.f32.mrb[0].mxu0
        %v4370 = vpop.f32.mrb[0].mxu0
        %v4371 = vadd.f32 0.0, %v4370
        %v4372 = vpop.f32.mrb[0].mxu0
        %4373 = vmatprep.mubr.bf16.mxu0 %v3623
        %4374 = vmatmul.mubr.bf16.gmra.mrb[0].mxu0 %v3622
        %v4375 = vpop.f32.mrb[0].mxu0
        %v4376 = vadd.f32 0.0, %v4375
        %v4377 = vpop.f32.mrb[0].mxu0
        %v4378 = vpop.f32.mrb[0].mxu0
        %v4379 = vadd.f32 0.0, %v4378
        %v4380 = vpop.f32.mrb[0].mxu0
        %4381 = vmatprep.mubr.bf16.mxu0 %v3632
        %4382 = vmatmul.mubr.bf16.gmra.mrb[0].mxu0 %v3631
        %v4383 = vpop.f32.mrb[0].mxu0
        %v4384 = vadd.f32 0.0, %v4383
        %v4385 = vpop.f32.mrb[0].mxu0
        %v4386 = vpop.f32.mrb[0].mxu0
        %v4387 = vadd.f32 0.0, %v4386
        %v4388 = vpop.f32.mrb[0].mxu0
        %4389 = vmatprep.mubr.bf16.mxu0 %v3641
        %4390 = vmatmul.mubr.bf16.gmra.mrb[0].mxu0 %v3640
        %v4391 = vpop.f32.mrb[0].mxu0
        %v4392 = vadd.f32 0.0, %v4391
        %v4393 = vpop.f32.mrb[0].mxu0
        %v4394 = vpop.f32.mrb[0].mxu0
        %v4395 = vadd.f32 0.0, %v4394
        %v4396 = vpop.f32.mrb[0].mxu0
        %4397 = vmatprep.mubr.bf16.mxu0 %v3650
        %4398 = vmatmul.mubr.bf16.gmra.mrb[0].mxu0 %v3649
        %v4399 = vpop.f32.mrb[0].mxu0
        %v4400 = vadd.f32 0.0, %v4399
        %v4401 = vpop.f32.mrb[0].mxu0
        %v4402 = vpop.f32.mrb[0].mxu0
        %v4403 = vadd.f32 0.0, %v4402
        %v4404 = vpop.f32.mrb[0].mxu0
        %4405 = vmatprep.mubr.bf16.mxu0 %v3659
        %4406 = vmatmul.mubr.bf16.gmra.mrb[0].mxu0 %v3658
        %v4407 = vpop.f32.mrb[0].mxu0
        %v4408 = vadd.f32 0.0, %v4407
        %v4409 = vpop.f32.mrb[0].mxu0
        %v4410 = vpop.f32.mrb[0].mxu0
        %v4411 = vadd.f32 0.0, %v4410
        %v4412 = vpop.f32.mrb[0].mxu0
        %4413 = vmatprep.mubr.bf16.mxu0 %v3668
        %4414 = vmatmul.mubr.bf16.gmra.mrb[0].mxu0 %v3667
        %v4415 = vpop.f32.mrb[0].mxu0
        %v4416 = vadd.f32 0.0, %v4415
        %v4417 = vpop.f32.mrb[0].mxu0
        %v4418 = vpop.f32.mrb[0].mxu0
        %v4419 = vadd.f32 0.0, %v4418
        %v4420 = vpop.f32.mrb[0].mxu0
        %4421 = vmatprep.mubr.bf16.mxu0 %v3677
        %4422 = vmatmul.mubr.bf16.gmra.mrb[0].mxu0 %v3676
        %v4423 = vpop.f32.mrb[0].mxu0
        %v4424 = vadd.f32 0.0, %v4423
        %v4425 = vpop.f32.mrb[0].mxu0
        %v4426 = vpop.f32.mrb[0].mxu0
        %v4427 = vadd.f32 0.0, %v4426
        %v4428 = vpop.f32.mrb[0].mxu0
        %4429 = vmatprep.mubr.bf16.mxu0 %v3686
        %4430 = vmatmul.mubr.bf16.gmra.mrb[0].mxu0 %v3685
        %v4431 = vpop.f32.mrb[0].mxu0
        %v4432 = vadd.f32 0.0, %v4431
        %v4433 = vpop.f32.mrb[0].mxu0
        %v4434 = vpop.f32.mrb[0].mxu0
        %v4435 = vadd.f32 0.0, %v4434
        %v4436 = vpop.f32.mrb[0].mxu0
        %4437 = vmatprep.mubr.bf16.mxu0 %v3695
        %4438 = vmatmul.mubr.bf16.gmra.mrb[0].mxu0 %v3694
        %v4439 = vpop.f32.mrb[0].mxu0
        %v4440 = vadd.f32 0.0, %v4439
        %v4441 = vpop.f32.mrb[0].mxu0
        %v4442 = vpop.f32.mrb[0].mxu0
        %v4443 = vadd.f32 0.0, %v4442
        %v4444 = vpop.f32.mrb[0].mxu0
        %4445 = vmatprep.mubr.bf16.mxu0 %v3704
        %4446 = vmatmul.mubr.bf16.gmra.mrb[0].mxu0 %v3703
        %v4447 = vpop.f32.mrb[0].mxu0
        %v4448 = vadd.f32 0.0, %v4447
        %v4449 = vpop.f32.mrb[0].mxu0
        %v4450 = vpop.f32.mrb[0].mxu0
        %v4451 = vadd.f32 0.0, %v4450
        %v4452 = vpop.f32.mrb[0].mxu0
        %4453 = vmatprep.mubr.bf16.mxu0 %v3713
        %4454 = vmatmul.mubr.bf16.gmra.mrb[0].mxu0 %v3712
        %v4455 = vpop.f32.mrb[0].mxu0
        %v4456 = vadd.f32 0.0, %v4455
        %v4457 = vpop.f32.mrb[0].mxu0
        %v4458 = vpop.f32.mrb[0].mxu0
        %v4459 = vadd.f32 0.0, %v4458
        %v4460 = vpop.f32.mrb[0].mxu0
        %4461 = vmatprep.mubr.bf16.mxu0 %v3722
        %4462 = vmatmul.mubr.bf16.gmra.mrb[0].mxu0 %v3721
        %v4463 = vpop.f32.mrb[0].mxu0
        %v4464 = vadd.f32 0.0, %v4463
        %v4465 = vpop.f32.mrb[0].mxu0
        %v4466 = vpop.f32.mrb[0].mxu0
        %v4467 = vadd.f32 0.0, %v4466
        %v4468 = vpop.f32.mrb[0].mxu0
        %4469 = vmatprep.mubr.bf16.mxu0 %v3731
        %4470 = vmatmul.mubr.bf16.gmra.mrb[0].mxu0 %v3730
        %v4471 = vpop.f32.mrb[0].mxu0
        %v4472 = vadd.f32 0.0, %v4471
        %v4473 = vpop.f32.mrb[0].mxu0
        %v4474 = vpop.f32.mrb[0].mxu0
        %v4475 = vadd.f32 0.0, %v4474
        %v4476 = vpop.f32.mrb[0].mxu0
        %4477 = vmatprep.mubr.bf16.mxu0 %v3740
        %4478 = vmatmul.mubr.bf16.gmra.mrb[0].mxu0 %v3739
        %v4479 = vpop.f32.mrb[0].mxu0
        %v4480 = vadd.f32 0.0, %v4479
        %v4481 = vpop.f32.mrb[0].mxu0
        %v4482 = vpop.f32.mrb[0].mxu0
        %v4483 = vadd.f32 0.0, %v4482
        %v4484 = vpop.f32.mrb[0].mxu0
        %4485 = vdwg.mxu0
        %4486 = vmatprep.subr.bf16.mxu0 0
        %4487 = vmatpush1.bf16.msra.mxu0 %v4197
        %4488 = vmatprep.subr.bf16.mxu0 0
        %4489 = vmatpush1.bf16.msra.mxu0 %v4198
        %4490 = vmatprep.subr.bf16.mxu0 0
        %4491 = vmatpush1.bf16.msra.mxu0 %v4199
        %4492 = vmatprep.subr.bf16.mxu0 0
        %4493 = vmatpush1.bf16.msra.mxu0 %v4200
        %4494 = vmatprep.subr.bf16.mxu0 0
        %4495 = vmatpush1.bf16.msra.mxu0 %v4201
        %4496 = vmatprep.subr.bf16.mxu0 0
        %4497 = vmatpush1.bf16.msra.mxu0 %v4202
        %4498 = vmatprep.subr.bf16.mxu0 0
        %4499 = vmatpush1.bf16.msra.mxu0 %v4203
        %4500 = vmatprep.subr.bf16.mxu0 0
        %4501 = vmatpush1.bf16.msra.mxu0 %v4204
        %4502 = vmatprep.subr.bf16.mxu0 0
        %4503 = vmatpush1.bf16.msra.mxu0 %v4205
        %4504 = vmatprep.subr.bf16.mxu0 0
        %4505 = vmatpush1.bf16.msra.mxu0 %v4206
        %4506 = vmatprep.subr.bf16.mxu0 0
        %4507 = vmatpush1.bf16.msra.mxu0 %v4207
        %4508 = vmatprep.subr.bf16.mxu0 0
        %4509 = vmatpush1.bf16.msra.mxu0 %v4208
        %4510 = vmatprep.subr.bf16.mxu0 0
        %4511 = vmatpush1.bf16.msra.mxu0 %v4209
        %4512 = vmatprep.subr.bf16.mxu0 0
        %4513 = vmatpush1.bf16.msra.mxu0 %v4210
        %4514 = vmatprep.subr.bf16.mxu0 0
        %4515 = vmatpush1.bf16.msra.mxu0 %v4211
        %4516 = vmatprep.subr.bf16.mxu0 0
        %4517 = vmatpush1.bf16.msra.mxu0 %v4212
        %4518 = vmatprep.mubr.bf16.mxu0 %v3607
        %4519 = vmatmul.mubr.bf16.gmra.mrb[0].mxu0 %v3606
        %v4520 = vpop.f32.mrb[0].mxu0
        %v4521 = vadd.f32 %v4360, %v4520
        %v4522 = vpop.f32.mrb[0].mxu0
        %v4523 = vpop.f32.mrb[0].mxu0
        %v4524 = vadd.f32 %v4363, %v4523
        %v4525 = vpop.f32.mrb[0].mxu0
        %4526 = vmatprep.mubr.bf16.mxu0 %v3616
        %4527 = vmatmul.mubr.bf16.gmra.mrb[0].mxu0 %v3615
        %v4528 = vpop.f32.mrb[0].mxu0
        %v4529 = vadd.f32 %v4368, %v4528
        %v4530 = vpop.f32.mrb[0].mxu0
        %v4531 = vpop.f32.mrb[0].mxu0
        %v4532 = vadd.f32 %v4371, %v4531
        %v4533 = vpop.f32.mrb[0].mxu0
        %4534 = vmatprep.mubr.bf16.mxu0 %v3625
        %4535 = vmatmul.mubr.bf16.gmra.mrb[0].mxu0 %v3624
        %v4536 = vpop.f32.mrb[0].mxu0
        %v4537 = vadd.f32 %v4376, %v4536
        %v4538 = vpop.f32.mrb[0].mxu0
        %v4539 = vpop.f32.mrb[0].mxu0
        %v4540 = vadd.f32 %v4379, %v4539
        %v4541 = vpop.f32.mrb[0].mxu0
        %4542 = vmatprep.mubr.bf16.mxu0 %v3634
        %4543 = vmatmul.mubr.bf16.gmra.mrb[0].mxu0 %v3633
        %v4544 = vpop.f32.mrb[0].mxu0
        %v4545 = vadd.f32 %v4384, %v4544
        %v4546 = vpop.f32.mrb[0].mxu0
        %v4547 = vpop.f32.mrb[0].mxu0
        %v4548 = vadd.f32 %v4387, %v4547
        %v4549 = vpop.f32.mrb[0].mxu0
        %4550 = vmatprep.mubr.bf16.mxu0 %v3643
        %4551 = vmatmul.mubr.bf16.gmra.mrb[0].mxu0 %v3642
        %v4552 = vpop.f32.mrb[0].mxu0
        %v4553 = vadd.f32 %v4392, %v4552
        %v4554 = vpop.f32.mrb[0].mxu0
        %v4555 = vpop.f32.mrb[0].mxu0
        %v4556 = vadd.f32 %v4395, %v4555
        %v4557 = vpop.f32.mrb[0].mxu0
        %4558 = vmatprep.mubr.bf16.mxu0 %v3652
        %4559 = vmatmul.mubr.bf16.gmra.mrb[0].mxu0 %v3651
        %v4560 = vpop.f32.mrb[0].mxu0
        %v4561 = vadd.f32 %v4400, %v4560
        %v4562 = vpop.f32.mrb[0].mxu0
        %v4563 = vpop.f32.mrb[0].mxu0
        %v4564 = vadd.f32 %v4403, %v4563
        %v4565 = vpop.f32.mrb[0].mxu0
        %4566 = vmatprep.mubr.bf16.mxu0 %v3661
        %4567 = vmatmul.mubr.bf16.gmra.mrb[0].mxu0 %v3660
        %v4568 = vpop.f32.mrb[0].mxu0
        %v4569 = vadd.f32 %v4408, %v4568
        %v4570 = vpop.f32.mrb[0].mxu0
        %v4571 = vpop.f32.mrb[0].mxu0
        %v4572 = vadd.f32 %v4411, %v4571
        %v4573 = vpop.f32.mrb[0].mxu0
        %4574 = vmatprep.mubr.bf16.mxu0 %v3670
        %4575 = vmatmul.mubr.bf16.gmra.mrb[0].mxu0 %v3669
        %v4576 = vpop.f32.mrb[0].mxu0
        %v4577 = vadd.f32 %v4416, %v4576
        %v4578 = vpop.f32.mrb[0].mxu0
        %v4579 = vpop.f32.mrb[0].mxu0
        %v4580 = vadd.f32 %v4419, %v4579
        %v4581 = vpop.f32.mrb[0].mxu0
        %4582 = vmatprep.mubr.bf16.mxu0 %v3679
        %4583 = vmatmul.mubr.bf16.gmra.mrb[0].mxu0 %v3678
        %v4584 = vpop.f32.mrb[0].mxu0
        %v4585 = vadd.f32 %v4424, %v4584
        %v4586 = vpop.f32.mrb[0].mxu0
        %v4587 = vpop.f32.mrb[0].mxu0
        %v4588 = vadd.f32 %v4427, %v4587
        %v4589 = vpop.f32.mrb[0].mxu0
        %4590 = vmatprep.mubr.bf16.mxu0 %v3688
        %4591 = vmatmul.mubr.bf16.gmra.mrb[0].mxu0 %v3687
        %v4592 = vpop.f32.mrb[0].mxu0
        %v4593 = vadd.f32 %v4432, %v4592
        %v4594 = vpop.f32.mrb[0].mxu0
        %v4595 = vpop.f32.mrb[0].mxu0
        %v4596 = vadd.f32 %v4435, %v4595
        %v4597 = vpop.f32.mrb[0].mxu0
        %4598 = vmatprep.mubr.bf16.mxu0 %v3697
        %4599 = vmatmul.mubr.bf16.gmra.mrb[0].mxu0 %v3696
        %v4600 = vpop.f32.mrb[0].mxu0
        %v4601 = vadd.f32 %v4440, %v4600
        %v4602 = vpop.f32.mrb[0].mxu0
        %v4603 = vpop.f32.mrb[0].mxu0
        %v4604 = vadd.f32 %v4443, %v4603
        %v4605 = vpop.f32.mrb[0].mxu0
        %4606 = vmatprep.mubr.bf16.mxu0 %v3706
        %4607 = vmatmul.mubr.bf16.gmra.mrb[0].mxu0 %v3705
        %v4608 = vpop.f32.mrb[0].mxu0
        %v4609 = vadd.f32 %v4448, %v4608
        %v4610 = vpop.f32.mrb[0].mxu0
        %v4611 = vpop.f32.mrb[0].mxu0
        %v4612 = vadd.f32 %v4451, %v4611
        %v4613 = vpop.f32.mrb[0].mxu0
        %4614 = vmatprep.mubr.bf16.mxu0 %v3715
        %4615 = vmatmul.mubr.bf16.gmra.mrb[0].mxu0 %v3714
        %v4616 = vpop.f32.mrb[0].mxu0
        %v4617 = vadd.f32 %v4456, %v4616
        %v4618 = vpop.f32.mrb[0].mxu0
        %v4619 = vpop.f32.mrb[0].mxu0
        %v4620 = vadd.f32 %v4459, %v4619
        %v4621 = vpop.f32.mrb[0].mxu0
        %4622 = vmatprep.mubr.bf16.mxu0 %v3724
        %4623 = vmatmul.mubr.bf16.gmra.mrb[0].mxu0 %v3723
        %v4624 = vpop.f32.mrb[0].mxu0
        %v4625 = vadd.f32 %v4464, %v4624
        %v4626 = vpop.f32.mrb[0].mxu0
        %v4627 = vpop.f32.mrb[0].mxu0
        %v4628 = vadd.f32 %v4467, %v4627
        %v4629 = vpop.f32.mrb[0].mxu0
        %4630 = vmatprep.mubr.bf16.mxu0 %v3733
        %4631 = vmatmul.mubr.bf16.gmra.mrb[0].mxu0 %v3732
        %v4632 = vpop.f32.mrb[0].mxu0
        %v4633 = vadd.f32 %v4472, %v4632
        %v4634 = vpop.f32.mrb[0].mxu0
        %v4635 = vpop.f32.mrb[0].mxu0
        %v4636 = vadd.f32 %v4475, %v4635
        %v4637 = vpop.f32.mrb[0].mxu0
        %4638 = vmatprep.mubr.bf16.mxu0 %v3742
        %4639 = vmatmul.mubr.bf16.gmra.mrb[0].mxu0 %v3741
        %v4640 = vpop.f32.mrb[0].mxu0
        %v4641 = vadd.f32 %v4480, %v4640
        %v4642 = vpop.f32.mrb[0].mxu0
        %v4643 = vpop.f32.mrb[0].mxu0
        %v4644 = vadd.f32 %v4483, %v4643
        %v4645 = vpop.f32.mrb[0].mxu0
        %4646 = vdwg.mxu0
        %4647 = vmatprep.subr.bf16.mxu0 0
        %4648 = vmatpush1.bf16.msra.mxu0 %v4213
        %4649 = vmatprep.subr.bf16.mxu0 0
        %4650 = vmatpush1.bf16.msra.mxu0 %v4214
        %4651 = vmatprep.subr.bf16.mxu0 0
        %4652 = vmatpush1.bf16.msra.mxu0 %v4215
        %4653 = vmatprep.subr.bf16.mxu0 0
        %4654 = vmatpush1.bf16.msra.mxu0 %v4216
        %4655 = vmatprep.subr.bf16.mxu0 0
        %4656 = vmatpush1.bf16.msra.mxu0 %v4217
        %4657 = vmatprep.subr.bf16.mxu0 0
        %4658 = vmatpush1.bf16.msra.mxu0 %v4218
        %4659 = vmatprep.subr.bf16.mxu0 0
        %4660 = vmatpush1.bf16.msra.mxu0 %v4219
        %4661 = vmatprep.subr.bf16.mxu0 0
        %4662 = vmatpush1.bf16.msra.mxu0 %v4220
        %4663 = vmatprep.subr.bf16.mxu0 0
        %4664 = vmatpush1.bf16.msra.mxu0 %v4221
        %4665 = vmatprep.subr.bf16.mxu0 0
        %4666 = vmatpush1.bf16.msra.mxu0 %v4222
        %4667 = vmatprep.subr.bf16.mxu0 0
        %4668 = vmatpush1.bf16.msra.mxu0 %v4223
        %4669 = vmatprep.subr.bf16.mxu0 0
        %4670 = vmatpush1.bf16.msra.mxu0 %v4224
        %4671 = vmatprep.subr.bf16.mxu0 0
        %4672 = vmatpush1.bf16.msra.mxu0 %v4225
        %4673 = vmatprep.subr.bf16.mxu0 0
        %4674 = vmatpush1.bf16.msra.mxu0 %v4226
        %4675 = vmatprep.subr.bf16.mxu0 0
        %4676 = vmatpush1.bf16.msra.mxu0 %v4227
        %4677 = vmatprep.subr.bf16.mxu0 0
        %4678 = vmatpush1.bf16.msra.mxu0 %v4228
        %4679 = vmatprep.mubr.bf16.mxu0 %v3609
        %4680 = vmatmul.mubr.bf16.gmra.mrb[0].mxu0 %v3608
        %v4681 = vpop.f32.mrb[0].mxu0
        %v4682 = vadd.f32 %v4521, %v4681
        %v4683 = vpop.f32.mrb[0].mxu0
        %v4684 = vpop.f32.mrb[0].mxu0
        %v4685 = vadd.f32 %v4524, %v4684
        %v4686 = vpop.f32.mrb[0].mxu0
        %4687 = vmatprep.mubr.bf16.mxu0 %v3618
        %4688 = vmatmul.mubr.bf16.gmra.mrb[0].mxu0 %v3617
        %v4689 = vpop.f32.mrb[0].mxu0
        %v4690 = vadd.f32 %v4529, %v4689
        %v4691 = vpop.f32.mrb[0].mxu0
        %v4692 = vpop.f32.mrb[0].mxu0
        %v4693 = vadd.f32 %v4532, %v4692
        %v4694 = vpop.f32.mrb[0].mxu0
        %4695 = vmatprep.mubr.bf16.mxu0 %v3627
        %4696 = vmatmul.mubr.bf16.gmra.mrb[0].mxu0 %v3626
        %v4697 = vpop.f32.mrb[0].mxu0
        %v4698 = vadd.f32 %v4537, %v4697
        %v4699 = vpop.f32.mrb[0].mxu0
        %v4700 = vpop.f32.mrb[0].mxu0
        %v4701 = vadd.f32 %v4540, %v4700
        %v4702 = vpop.f32.mrb[0].mxu0
        %4703 = vmatprep.mubr.bf16.mxu0 %v3636
        %4704 = vmatmul.mubr.bf16.gmra.mrb[0].mxu0 %v3635
        %v4705 = vpop.f32.mrb[0].mxu0
        %v4706 = vadd.f32 %v4545, %v4705
        %v4707 = vpop.f32.mrb[0].mxu0
        %v4708 = vpop.f32.mrb[0].mxu0
        %v4709 = vadd.f32 %v4548, %v4708
        %v4710 = vpop.f32.mrb[0].mxu0
        %4711 = vmatprep.mubr.bf16.mxu0 %v3645
        %4712 = vmatmul.mubr.bf16.gmra.mrb[0].mxu0 %v3644
        %v4713 = vpop.f32.mrb[0].mxu0
        %v4714 = vadd.f32 %v4553, %v4713
        %v4715 = vpop.f32.mrb[0].mxu0
        %v4716 = vpop.f32.mrb[0].mxu0
        %v4717 = vadd.f32 %v4556, %v4716
        %v4718 = vpop.f32.mrb[0].mxu0
        %4719 = vmatprep.mubr.bf16.mxu0 %v3654
        %4720 = vmatmul.mubr.bf16.gmra.mrb[0].mxu0 %v3653
        %v4721 = vpop.f32.mrb[0].mxu0
        %v4722 = vadd.f32 %v4561, %v4721
        %v4723 = vpop.f32.mrb[0].mxu0
        %v4724 = vpop.f32.mrb[0].mxu0
        %v4725 = vadd.f32 %v4564, %v4724
        %v4726 = vpop.f32.mrb[0].mxu0
        %4727 = vmatprep.mubr.bf16.mxu0 %v3663
        %4728 = vmatmul.mubr.bf16.gmra.mrb[0].mxu0 %v3662
        %v4729 = vpop.f32.mrb[0].mxu0
        %v4730 = vadd.f32 %v4569, %v4729
        %v4731 = vpop.f32.mrb[0].mxu0
        %v4732 = vpop.f32.mrb[0].mxu0
        %v4733 = vadd.f32 %v4572, %v4732
        %v4734 = vpop.f32.mrb[0].mxu0
        %4735 = vmatprep.mubr.bf16.mxu0 %v3672
        %4736 = vmatmul.mubr.bf16.gmra.mrb[0].mxu0 %v3671
        %v4737 = vpop.f32.mrb[0].mxu0
        %v4738 = vadd.f32 %v4577, %v4737
        %v4739 = vpop.f32.mrb[0].mxu0
        %v4740 = vpop.f32.mrb[0].mxu0
        %v4741 = vadd.f32 %v4580, %v4740
        %v4742 = vpop.f32.mrb[0].mxu0
        %4743 = vmatprep.mubr.bf16.mxu0 %v3681
        %4744 = vmatmul.mubr.bf16.gmra.mrb[0].mxu0 %v3680
        %v4745 = vpop.f32.mrb[0].mxu0
        %v4746 = vadd.f32 %v4585, %v4745
        %v4747 = vpop.f32.mrb[0].mxu0
        %v4748 = vpop.f32.mrb[0].mxu0
        %v4749 = vadd.f32 %v4588, %v4748
        %v4750 = vpop.f32.mrb[0].mxu0
        %4751 = vmatprep.mubr.bf16.mxu0 %v3690
        %4752 = vmatmul.mubr.bf16.gmra.mrb[0].mxu0 %v3689
        %v4753 = vpop.f32.mrb[0].mxu0
        %v4754 = vadd.f32 %v4593, %v4753
        %v4755 = vpop.f32.mrb[0].mxu0
        %v4756 = vpop.f32.mrb[0].mxu0
        %v4757 = vadd.f32 %v4596, %v4756
        %v4758 = vpop.f32.mrb[0].mxu0
        %4759 = vmatprep.mubr.bf16.mxu0 %v3699
        %4760 = vmatmul.mubr.bf16.gmra.mrb[0].mxu0 %v3698
        %v4761 = vpop.f32.mrb[0].mxu0
        %v4762 = vadd.f32 %v4601, %v4761
        %v4763 = vpop.f32.mrb[0].mxu0
        %v4764 = vpop.f32.mrb[0].mxu0
        %v4765 = vadd.f32 %v4604, %v4764
        %v4766 = vpop.f32.mrb[0].mxu0
        %4767 = vmatprep.mubr.bf16.mxu0 %v3708
        %4768 = vmatmul.mubr.bf16.gmra.mrb[0].mxu0 %v3707
        %v4769 = vpop.f32.mrb[0].mxu0
        %v4770 = vadd.f32 %v4609, %v4769
        %v4771 = vpop.f32.mrb[0].mxu0
        %v4772 = vpop.f32.mrb[0].mxu0
        %v4773 = vadd.f32 %v4612, %v4772
        %v4774 = vpop.f32.mrb[0].mxu0
        %4775 = vmatprep.mubr.bf16.mxu0 %v3717
        %4776 = vmatmul.mubr.bf16.gmra.mrb[0].mxu0 %v3716
        %v4777 = vpop.f32.mrb[0].mxu0
        %v4778 = vadd.f32 %v4617, %v4777
        %v4779 = vpop.f32.mrb[0].mxu0
        %v4780 = vpop.f32.mrb[0].mxu0
        %v4781 = vadd.f32 %v4620, %v4780
        %v4782 = vpop.f32.mrb[0].mxu0
        %4783 = vmatprep.mubr.bf16.mxu0 %v3726
        %4784 = vmatmul.mubr.bf16.gmra.mrb[0].mxu0 %v3725
        %v4785 = vpop.f32.mrb[0].mxu0
        %v4786 = vadd.f32 %v4625, %v4785
        %v4787 = vpop.f32.mrb[0].mxu0
        %v4788 = vpop.f32.mrb[0].mxu0
        %v4789 = vadd.f32 %v4628, %v4788
        %v4790 = vpop.f32.mrb[0].mxu0
        %4791 = vmatprep.mubr.bf16.mxu0 %v3735
        %4792 = vmatmul.mubr.bf16.gmra.mrb[0].mxu0 %v3734
        %v4793 = vpop.f32.mrb[0].mxu0
        %v4794 = vadd.f32 %v4633, %v4793
        %v4795 = vpop.f32.mrb[0].mxu0
        %v4796 = vpop.f32.mrb[0].mxu0
        %v4797 = vadd.f32 %v4636, %v4796
        %v4798 = vpop.f32.mrb[0].mxu0
        %4799 = vmatprep.mubr.bf16.mxu0 %v3744
        %4800 = vmatmul.mubr.bf16.gmra.mrb[0].mxu0 %v3743
        %v4801 = vpop.f32.mrb[0].mxu0
        %v4802 = vadd.f32 %v4641, %v4801
        %v4803 = vpop.f32.mrb[0].mxu0
        %v4804 = vpop.f32.mrb[0].mxu0
        %v4805 = vadd.f32 %v4644, %v4804
        %v4806 = vpop.f32.mrb[0].mxu0
        %4807 = vdwg.mxu0
        %4808 = vmatprep.subr.bf16.mxu0 0
        %4809 = vmatpush1.bf16.msra.mxu0 %v4229
        %4810 = vmatprep.subr.bf16.mxu0 0
        %4811 = vmatpush1.bf16.msra.mxu0 %v4230
        %4812 = vmatprep.subr.bf16.mxu0 0
        %4813 = vmatpush1.bf16.msra.mxu0 %v4231
        %4814 = vmatprep.subr.bf16.mxu0 0
        %4815 = vmatpush1.bf16.msra.mxu0 %v4232
        %4816 = vmatprep.subr.bf16.mxu0 0
        %4817 = vmatpush1.bf16.msra.mxu0 %v4233
        %4818 = vmatprep.subr.bf16.mxu0 0
        %4819 = vmatpush1.bf16.msra.mxu0 %v4234
        %4820 = vmatprep.subr.bf16.mxu0 0
        %4821 = vmatpush1.bf16.msra.mxu0 %v4235
        %4822 = vmatprep.subr.bf16.mxu0 0
        %4823 = vmatpush1.bf16.msra.mxu0 %v4236
        %4824 = vmatprep.subr.bf16.mxu0 0
        %4825 = vmatpush1.bf16.msra.mxu0 %v4237
        %4826 = vmatprep.subr.bf16.mxu0 0
        %4827 = vmatpush1.bf16.msra.mxu0 %v4238
        %4828 = vmatprep.subr.bf16.mxu0 0
        %4829 = vmatpush1.bf16.msra.mxu0 %v4239
        %4830 = vmatprep.subr.bf16.mxu0 0
        %4831 = vmatpush1.bf16.msra.mxu0 %v4240
        %4832 = vmatprep.subr.bf16.mxu0 0
        %4833 = vmatpush1.bf16.msra.mxu0 %v4241
        %4834 = vmatprep.subr.bf16.mxu0 0
        %4835 = vmatpush1.bf16.msra.mxu0 %v4242
        %4836 = vmatprep.subr.bf16.mxu0 0
        %4837 = vmatpush1.bf16.msra.mxu0 %v4243
        %4838 = vmatprep.subr.bf16.mxu0 0
        %4839 = vmatpush1.bf16.msra.mxu0 %v4244
        %4840 = vmatprep.mubr.bf16.mxu0 %v3611
        %4841 = vmatmul.mubr.bf16.gmra.mrb[0].mxu0 %v3610
        %v4842 = vpop.f32.mrb[0].mxu0
        %v4843 = vadd.f32 %v4682, %v4842
        %v4844 = vpop.f32.mrb[0].mxu0
        %v4845 = vpop.f32.mrb[0].mxu0
        %v4846 = vadd.f32 %v4685, %v4845
        %v4847 = vpop.f32.mrb[0].mxu0
        %4848 = vmatprep.mubr.bf16.mxu0 %v3620
        %4849 = vmatmul.mubr.bf16.gmra.mrb[0].mxu0 %v3619
        %v4850 = vpop.f32.mrb[0].mxu0
        %v4851 = vadd.f32 %v4690, %v4850
        %v4852 = vpop.f32.mrb[0].mxu0
        %v4853 = vpop.f32.mrb[0].mxu0
        %v4854 = vadd.f32 %v4693, %v4853
        %v4855 = vpop.f32.mrb[0].mxu0
        %4856 = vmatprep.mubr.bf16.mxu0 %v3629
        %4857 = vmatmul.mubr.bf16.gmra.mrb[0].mxu0 %v3628
        %v4858 = vpop.f32.mrb[0].mxu0
        %v4859 = vadd.f32 %v4698, %v4858
        %v4860 = vpop.f32.mrb[0].mxu0
        %v4861 = vpop.f32.mrb[0].mxu0
        %v4862 = vadd.f32 %v4701, %v4861
        %v4863 = vpop.f32.mrb[0].mxu0
        %4864 = vmatprep.mubr.bf16.mxu0 %v3638
        %4865 = vmatmul.mubr.bf16.gmra.mrb[0].mxu0 %v3637
        %v4866 = vpop.f32.mrb[0].mxu0
        %v4867 = vadd.f32 %v4706, %v4866
        %v4868 = vpop.f32.mrb[0].mxu0
        %v4869 = vpop.f32.mrb[0].mxu0
        %v4870 = vadd.f32 %v4709, %v4869
        %v4871 = vpop.f32.mrb[0].mxu0
        %4872 = vmatprep.mubr.bf16.mxu0 %v3647
        %4873 = vmatmul.mubr.bf16.gmra.mrb[0].mxu0 %v3646
        %v4874 = vpop.f32.mrb[0].mxu0
        %v4875 = vadd.f32 %v4714, %v4874
        %v4876 = vpop.f32.mrb[0].mxu0
        %v4877 = vpop.f32.mrb[0].mxu0
        %v4878 = vadd.f32 %v4717, %v4877
        %v4879 = vpop.f32.mrb[0].mxu0
        %4880 = vmatprep.mubr.bf16.mxu0 %v3656
        %4881 = vmatmul.mubr.bf16.gmra.mrb[0].mxu0 %v3655
        %v4882 = vpop.f32.mrb[0].mxu0
        %v4883 = vadd.f32 %v4722, %v4882
        %v4884 = vpop.f32.mrb[0].mxu0
        %v4885 = vpop.f32.mrb[0].mxu0
        %v4886 = vadd.f32 %v4725, %v4885
        %v4887 = vpop.f32.mrb[0].mxu0
        %4888 = vmatprep.mubr.bf16.mxu0 %v3665
        %4889 = vmatmul.mubr.bf16.gmra.mrb[0].mxu0 %v3664
        %v4890 = vpop.f32.mrb[0].mxu0
        %v4891 = vadd.f32 %v4730, %v4890
        %v4892 = vpop.f32.mrb[0].mxu0
        %v4893 = vpop.f32.mrb[0].mxu0
        %v4894 = vadd.f32 %v4733, %v4893
        %v4895 = vpop.f32.mrb[0].mxu0
        %4896 = vmatprep.mubr.bf16.mxu0 %v3674
        %4897 = vmatmul.mubr.bf16.gmra.mrb[0].mxu0 %v3673
        %v4898 = vpop.f32.mrb[0].mxu0
        %v4899 = vadd.f32 %v4738, %v4898
        %v4900 = vpop.f32.mrb[0].mxu0
        %v4901 = vpop.f32.mrb[0].mxu0
        %v4902 = vadd.f32 %v4741, %v4901
        %v4903 = vpop.f32.mrb[0].mxu0
        %4904 = vmatprep.mubr.bf16.mxu0 %v3683
        %4905 = vmatmul.mubr.bf16.gmra.mrb[0].mxu0 %v3682
        %v4906 = vpop.f32.mrb[0].mxu0
        %v4907 = vadd.f32 %v4746, %v4906
        %v4908 = vpop.f32.mrb[0].mxu0
        %v4909 = vpop.f32.mrb[0].mxu0
        %v4910 = vadd.f32 %v4749, %v4909
        %v4911 = vpop.f32.mrb[0].mxu0
        %4912 = vmatprep.mubr.bf16.mxu0 %v3692
        %4913 = vmatmul.mubr.bf16.gmra.mrb[0].mxu0 %v3691
        %v4914 = vpop.f32.mrb[0].mxu0
        %v4915 = vadd.f32 %v4754, %v4914
        %v4916 = vpop.f32.mrb[0].mxu0
        %v4917 = vpop.f32.mrb[0].mxu0
        %v4918 = vadd.f32 %v4757, %v4917
        %v4919 = vpop.f32.mrb[0].mxu0
        %4920 = vmatprep.mubr.bf16.mxu0 %v3701
        %4921 = vmatmul.mubr.bf16.gmra.mrb[0].mxu0 %v3700
        %v4922 = vpop.f32.mrb[0].mxu0
        %v4923 = vadd.f32 %v4762, %v4922
        %v4924 = vpop.f32.mrb[0].mxu0
        %v4925 = vpop.f32.mrb[0].mxu0
        %v4926 = vadd.f32 %v4765, %v4925
        %v4927 = vpop.f32.mrb[0].mxu0
        %4928 = vmatprep.mubr.bf16.mxu0 %v3710
        %4929 = vmatmul.mubr.bf16.gmra.mrb[0].mxu0 %v3709
        %v4930 = vpop.f32.mrb[0].mxu0
        %v4931 = vadd.f32 %v4770, %v4930
        %v4932 = vpop.f32.mrb[0].mxu0
        %v4933 = vpop.f32.mrb[0].mxu0
        %v4934 = vadd.f32 %v4773, %v4933
        %v4935 = vpop.f32.mrb[0].mxu0
        %4936 = vmatprep.mubr.bf16.mxu0 %v3719
        %4937 = vmatmul.mubr.bf16.gmra.mrb[0].mxu0 %v3718
        %v4938 = vpop.f32.mrb[0].mxu0
        %v4939 = vadd.f32 %v4778, %v4938
        %v4940 = vpop.f32.mrb[0].mxu0
        %v4941 = vpop.f32.mrb[0].mxu0
        %v4942 = vadd.f32 %v4781, %v4941
        %v4943 = vpop.f32.mrb[0].mxu0
        %4944 = vmatprep.mubr.bf16.mxu0 %v3728
        %4945 = vmatmul.mubr.bf16.gmra.mrb[0].mxu0 %v3727
        %v4946 = vpop.f32.mrb[0].mxu0
        %v4947 = vadd.f32 %v4786, %v4946
        %v4948 = vpop.f32.mrb[0].mxu0
        %v4949 = vpop.f32.mrb[0].mxu0
        %v4950 = vadd.f32 %v4789, %v4949
        %v4951 = vpop.f32.mrb[0].mxu0
        %4952 = vmatprep.mubr.bf16.mxu0 %v3737
        %4953 = vmatmul.mubr.bf16.gmra.mrb[0].mxu0 %v3736
        %v4954 = vpop.f32.mrb[0].mxu0
        %v4955 = vadd.f32 %v4794, %v4954
        %v4956 = vpop.f32.mrb[0].mxu0
        %v4957 = vpop.f32.mrb[0].mxu0
        %v4958 = vadd.f32 %v4797, %v4957
        %v4959 = vpop.f32.mrb[0].mxu0
        %4960 = vmatprep.mubr.bf16.mxu0 %v3746
        %4961 = vmatmul.mubr.bf16.gmra.mrb[0].mxu0 %v3745
        %v4962 = vpop.f32.mrb[0].mxu0
        %v4963 = vadd.f32 %v4802, %v4962
        %v4964 = vpop.f32.mrb[0].mxu0
        %v4965 = vpop.f32.mrb[0].mxu0
        %v4966 = vadd.f32 %v4805, %v4965
        %v4967 = vpop.f32.mrb[0].mxu0
        %4968 = vdwg.mxu0
        %4969 = vmatprep.subr.bf16.mxu0 0
        %4970 = vmatpush1.bf16.msra.mxu0 %v4245
        %4971 = vmatprep.subr.bf16.mxu0 0
        %4972 = vmatpush1.bf16.msra.mxu0 %v4246
        %4973 = vmatprep.subr.bf16.mxu0 0
        %4974 = vmatpush1.bf16.msra.mxu0 %v4247
        %4975 = vmatprep.subr.bf16.mxu0 0
        %4976 = vmatpush1.bf16.msra.mxu0 %v4248
        %4977 = vmatprep.subr.bf16.mxu0 0
        %4978 = vmatpush1.bf16.msra.mxu0 %v4249
        %4979 = vmatprep.subr.bf16.mxu0 0
        %4980 = vmatpush1.bf16.msra.mxu0 %v4250
        %4981 = vmatprep.subr.bf16.mxu0 0
        %4982 = vmatpush1.bf16.msra.mxu0 %v4251
        %4983 = vmatprep.subr.bf16.mxu0 0
        %4984 = vmatpush1.bf16.msra.mxu0 %v4252
        %4985 = vmatprep.subr.bf16.mxu0 0
        %4986 = vmatpush1.bf16.msra.mxu0 0
        %4987 = vmatprep.subr.bf16.mxu0 0
        %4988 = vmatpush1.bf16.msra.mxu0 0
        %4989 = vmatprep.subr.bf16.mxu0 0
        %4990 = vmatpush1.bf16.msra.mxu0 0
        %4991 = vmatprep.subr.bf16.mxu0 0
        %4992 = vmatpush1.bf16.msra.mxu0 0
        %4993 = vmatprep.subr.bf16.mxu0 0
        %4994 = vmatpush1.bf16.msra.mxu0 0
        %4995 = vmatprep.subr.bf16.mxu0 0
        %4996 = vmatpush1.bf16.msra.mxu0 0
        %4997 = vmatprep.subr.bf16.mxu0 0
        %4998 = vmatpush1.bf16.msra.mxu0 0
        %4999 = vmatprep.subr.bf16.mxu0 0
        %5000 = vmatpush1.bf16.msra.mxu0 0
        %5001 = vmatprep.mubr.bf16.mxu0 0
        %5002 = vmatmul.mubr.bf16.gmra.mrb[0].mxu0 %v3612
        %v5003 = vpop.f32.mrb[0].mxu0
        %v5004 = vadd.f32 %v4843, %v5003
        %v5005 = vpop.f32.mrb[0].mxu0
        %v5006 = vpop.f32.mrb[0].mxu0
        %v5007 = vadd.f32 %v4846, %v5006
        %v5008 = vpop.f32.mrb[0].mxu0
        %5009 = vmatprep.mubr.bf16.mxu0 0
        %5010 = vmatmul.mubr.bf16.gmra.mrb[0].mxu0 %v3621
        %v5011 = vpop.f32.mrb[0].mxu0
        %v5012 = vadd.f32 %v4851, %v5011
        %v5013 = vpop.f32.mrb[0].mxu0
        %v5014 = vpop.f32.mrb[0].mxu0
        %v5015 = vadd.f32 %v4854, %v5014
        %v5016 = vpop.f32.mrb[0].mxu0
        %5017 = vmatprep.mubr.bf16.mxu0 0
        %5018 = vmatmul.mubr.bf16.gmra.mrb[0].mxu0 %v3630
        %v5019 = vpop.f32.mrb[0].mxu0
        %v5020 = vadd.f32 %v4859, %v5019
        %v5021 = vpop.f32.mrb[0].mxu0
        %v5022 = vpop.f32.mrb[0].mxu0
        %v5023 = vadd.f32 %v4862, %v5022
        %v5024 = vpop.f32.mrb[0].mxu0
        %5025 = vmatprep.mubr.bf16.mxu0 0
        %5026 = vmatmul.mubr.bf16.gmra.mrb[0].mxu0 %v3639
        %v5027 = vpop.f32.mrb[0].mxu0
        %v5028 = vadd.f32 %v4867, %v5027
        %v5029 = vpop.f32.mrb[0].mxu0
        %v5030 = vpop.f32.mrb[0].mxu0
        %v5031 = vadd.f32 %v4870, %v5030
        %v5032 = vpop.f32.mrb[0].mxu0
        %5033 = vmatprep.mubr.bf16.mxu0 0
        %5034 = vmatmul.mubr.bf16.gmra.mrb[0].mxu0 %v3648
        %v5035 = vpop.f32.mrb[0].mxu0
        %v5036 = vadd.f32 %v4875, %v5035
        %v5037 = vpop.f32.mrb[0].mxu0
        %v5038 = vpop.f32.mrb[0].mxu0
        %v5039 = vadd.f32 %v4878, %v5038
        %v5040 = vpop.f32.mrb[0].mxu0
        %5041 = vmatprep.mubr.bf16.mxu0 0
        %5042 = vmatmul.mubr.bf16.gmra.mrb[0].mxu0 %v3657
        %v5043 = vpop.f32.mrb[0].mxu0
        %v5044 = vadd.f32 %v4883, %v5043
        %v5045 = vpop.f32.mrb[0].mxu0
        %v5046 = vpop.f32.mrb[0].mxu0
        %v5047 = vadd.f32 %v4886, %v5046
        %v5048 = vpop.f32.mrb[0].mxu0
        %5049 = vmatprep.mubr.bf16.mxu0 0
        %5050 = vmatmul.mubr.bf16.gmra.mrb[0].mxu0 %v3666
        %v5051 = vpop.f32.mrb[0].mxu0
        %v5052 = vadd.f32 %v4891, %v5051
        %v5053 = vpop.f32.mrb[0].mxu0
        %v5054 = vpop.f32.mrb[0].mxu0
        %v5055 = vadd.f32 %v4894, %v5054
        %v5056 = vpop.f32.mrb[0].mxu0
        %5057 = vmatprep.mubr.bf16.mxu0 0
        %5058 = vmatmul.mubr.bf16.gmra.mrb[0].mxu0 %v3675
        %v5059 = vpop.f32.mrb[0].mxu0
        %v5060 = vadd.f32 %v4899, %v5059
        %v5061 = vpop.f32.mrb[0].mxu0
        %v5062 = vpop.f32.mrb[0].mxu0
        %v5063 = vadd.f32 %v4902, %v5062
        %v5064 = vpop.f32.mrb[0].mxu0
        %5065 = vmatprep.mubr.bf16.mxu0 0
        %5066 = vmatmul.mubr.bf16.gmra.mrb[0].mxu0 %v3684
        %v5067 = vpop.f32.mrb[0].mxu0
        %v5068 = vadd.f32 %v4907, %v5067
        %v5069 = vpop.f32.mrb[0].mxu0
        %v5070 = vpop.f32.mrb[0].mxu0
        %v5071 = vadd.f32 %v4910, %v5070
        %v5072 = vpop.f32.mrb[0].mxu0
        %5073 = vmatprep.mubr.bf16.mxu0 0
        %5074 = vmatmul.mubr.bf16.gmra.mrb[0].mxu0 %v3693
        %v5075 = vpop.f32.mrb[0].mxu0
        %v5076 = vadd.f32 %v4915, %v5075
        %v5077 = vpop.f32.mrb[0].mxu0
        %v5078 = vpop.f32.mrb[0].mxu0
        %v5079 = vadd.f32 %v4918, %v5078
        %v5080 = vpop.f32.mrb[0].mxu0
        %5081 = vmatprep.mubr.bf16.mxu0 0
        %5082 = vmatmul.mubr.bf16.gmra.mrb[0].mxu0 %v3702
        %v5083 = vpop.f32.mrb[0].mxu0
        %v5084 = vadd.f32 %v4923, %v5083
        %v5085 = vpop.f32.mrb[0].mxu0
        %v5086 = vpop.f32.mrb[0].mxu0
        %v5087 = vadd.f32 %v4926, %v5086
        %v5088 = vpop.f32.mrb[0].mxu0
        %5089 = vmatprep.mubr.bf16.mxu0 0
        %5090 = vmatmul.mubr.bf16.gmra.mrb[0].mxu0 %v3711
        %v5091 = vpop.f32.mrb[0].mxu0
        %v5092 = vadd.f32 %v4931, %v5091
        %v5093 = vpop.f32.mrb[0].mxu0
        %v5094 = vpop.f32.mrb[0].mxu0
        %v5095 = vadd.f32 %v4934, %v5094
        %v5096 = vpop.f32.mrb[0].mxu0
        %5097 = vmatprep.mubr.bf16.mxu0 0
        %5098 = vmatmul.mubr.bf16.gmra.mrb[0].mxu0 %v3720
        %v5099 = vpop.f32.mrb[0].mxu0
        %v5100 = vadd.f32 %v4939, %v5099
        %v5101 = vpop.f32.mrb[0].mxu0
        %v5102 = vpop.f32.mrb[0].mxu0
        %v5103 = vadd.f32 %v4942, %v5102
        %v5104 = vpop.f32.mrb[0].mxu0
        %5105 = vmatprep.mubr.bf16.mxu0 0
        %5106 = vmatmul.mubr.bf16.gmra.mrb[0].mxu0 %v3729
        %v5107 = vpop.f32.mrb[0].mxu0
        %v5108 = vadd.f32 %v4947, %v5107
        %v5109 = vpop.f32.mrb[0].mxu0
        %v5110 = vpop.f32.mrb[0].mxu0
        %v5111 = vadd.f32 %v4950, %v5110
        %v5112 = vpop.f32.mrb[0].mxu0
        %5113 = vmatprep.mubr.bf16.mxu0 0
        %5114 = vmatmul.mubr.bf16.gmra.mrb[0].mxu0 %v3738
        %v5115 = vpop.f32.mrb[0].mxu0
        %v5116 = vadd.f32 %v4955, %v5115
        %v5117 = vpop.f32.mrb[0].mxu0
        %v5118 = vpop.f32.mrb[0].mxu0
        %v5119 = vadd.f32 %v4958, %v5118
        %v5120 = vpop.f32.mrb[0].mxu0
        %5121 = vmatprep.mubr.bf16.mxu0 0
        %5122 = vmatmul.mubr.bf16.gmra.mrb[0].mxu0 %v3747
        %v5123 = vpop.f32.mrb[0].mxu0
        %v5124 = vadd.f32 %v4963, %v5123
        %v5125 = vpop.f32.mrb[0].mxu0
        %v5126 = vpop.f32.mrb[0].mxu0
        %v5127 = vadd.f32 %v4966, %v5126
        %v5128 = vpop.f32.mrb[0].mxu0
        %5129 = vdwg.mxu0
        %s5130 = scalar_lea.vmem %s2, 1
        %v5131 = vld [vmem:[%s5130] sm:$0x1]
        %v5133 = vlaneseq
        %v5134 = vshrl.u32 %v5133, 7
        %v5135 = vsub.s32 0, %v5134
        %v5136 = vrot.slane %v5131, %v5135
        %v5138 = vmul.f32 %v5004, %v5136
        %v5139 = vmul.f32 %v5007, %v5136
        %v5140 = vmul.f32 %v5012, %v5136
        %v5141 = vmul.f32 %v5015, %v5136
        %v5142 = vmul.f32 %v5020, %v5136
        %v5143 = vmul.f32 %v5023, %v5136
        %v5144 = vmul.f32 %v5028, %v5136
        %v5145 = vmul.f32 %v5031, %v5136
        %v5146 = vmul.f32 %v5036, %v5136
        %v5147 = vmul.f32 %v5039, %v5136
        %v5148 = vmul.f32 %v5044, %v5136
        %v5149 = vmul.f32 %v5047, %v5136
        %v5150 = vmul.f32 %v5052, %v5136
        %v5151 = vmul.f32 %v5055, %v5136
        %v5152 = vmul.f32 %v5060, %v5136
        %v5153 = vmul.f32 %v5063, %v5136
        %v5154 = vmul.f32 %v5068, %v5136
        %v5155 = vmul.f32 %v5071, %v5136
        %v5156 = vmul.f32 %v5076, %v5136
        %v5157 = vmul.f32 %v5079, %v5136
        %v5158 = vmul.f32 %v5084, %v5136
        %v5159 = vmul.f32 %v5087, %v5136
        %v5160 = vmul.f32 %v5092, %v5136
        %v5161 = vmul.f32 %v5095, %v5136
        %v5162 = vmul.f32 %v5100, %v5136
        %v5163 = vmul.f32 %v5103, %v5136
        %v5164 = vmul.f32 %v5108, %v5136
        %v5165 = vmul.f32 %v5111, %v5136
        %v5166 = vmul.f32 %v5116, %v5136
        %v5167 = vmul.f32 %v5119, %v5136
        %v5168 = vmul.f32 %v5124, %v5136
        %v5169 = vmul.f32 %v5127, %v5136
        %s5170 = scalar_lea.vmem %s3, 1
        %v5171 = vld [vmem:[%s5170] sm:$0x1]
        %v5173 = vlaneseq
        %v5174 = vshrl.u32 %v5173, 7
        %v5175 = vsub.s32 0, %v5174
        %v5176 = vrot.slane %v5171, %v5175
        %v5178 = vadd.f32 %v5138, %v5176
        %v5179 = vadd.f32 %v5139, %v5176
        %v5180 = vadd.f32 %v5140, %v5176
        %v5181 = vadd.f32 %v5141, %v5176
        %v5182 = vadd.f32 %v5142, %v5176
        %v5183 = vadd.f32 %v5143, %v5176
        %v5184 = vadd.f32 %v5144, %v5176
        %v5185 = vadd.f32 %v5145, %v5176
        %v5186 = vadd.f32 %v5146, %v5176
        %v5187 = vadd.f32 %v5147, %v5176
        %v5188 = vadd.f32 %v5148, %v5176
        %v5189 = vadd.f32 %v5149, %v5176
        %v5190 = vadd.f32 %v5150, %v5176
        %v5191 = vadd.f32 %v5151, %v5176
        %v5192 = vadd.f32 %v5152, %v5176
        %v5193 = vadd.f32 %v5153, %v5176
        %v5194 = vadd.f32 %v5154, %v5176
        %v5195 = vadd.f32 %v5155, %v5176
        %v5196 = vadd.f32 %v5156, %v5176
        %v5197 = vadd.f32 %v5157, %v5176
        %v5198 = vadd.f32 %v5158, %v5176
        %v5199 = vadd.f32 %v5159, %v5176
        %v5200 = vadd.f32 %v5160, %v5176
        %v5201 = vadd.f32 %v5161, %v5176
        %v5202 = vadd.f32 %v5162, %v5176
        %v5203 = vadd.f32 %v5163, %v5176
        %v5204 = vadd.f32 %v5164, %v5176
        %v5205 = vadd.f32 %v5165, %v5176
        %v5206 = vadd.f32 %v5166, %v5176
        %v5207 = vadd.f32 %v5167, %v5176
        %v5208 = vadd.f32 %v5168, %v5176
        %v5209 = vadd.f32 %v5169, %v5176
        %v5210 = vadd.f32 %v5178, %v5179
        %v5211 = vadd.f32 %v5210, %v5180
        %v5212 = vadd.f32 %v5211, %v5181
        %v5213 = vadd.f32 %v5212, %v5182
        %v5214 = vadd.f32 %v5213, %v5183
        %v5215 = vadd.f32 %v5214, %v5184
        %v5216 = vadd.f32 %v5215, %v5185
        %v5217 = vadd.f32 %v5216, %v5186
        %v5218 = vadd.f32 %v5217, %v5187
        %v5219 = vadd.f32 %v5218, %v5188
        %v5220 = vadd.f32 %v5219, %v5189
        %v5221 = vadd.f32 %v5220, %v5190
        %v5222 = vadd.f32 %v5221, %v5191
        %v5223 = vadd.f32 %v5222, %v5192
        %v5224 = vadd.f32 %v5223, %v5193
        %v5225 = vadd.f32 %v5224, %v5194
        %v5226 = vadd.f32 %v5225, %v5195
        %v5227 = vadd.f32 %v5226, %v5196
        %v5228 = vadd.f32 %v5227, %v5197
        %v5229 = vadd.f32 %v5228, %v5198
        %v5230 = vadd.f32 %v5229, %v5199
        %v5231 = vadd.f32 %v5230, %v5200
        %v5232 = vadd.f32 %v5231, %v5201
        %v5233 = vadd.f32 %v5232, %v5202
        %v5234 = vadd.f32 %v5233, %v5203
        %v5235 = vadd.f32 %v5234, %v5204
        %v5236 = vadd.f32 %v5235, %v5205
        %v5237 = vadd.f32 %v5236, %v5206
        %v5238 = vadd.f32 %v5237, %v5207
        %v5239 = vadd.f32 %v5238, %v5208
        %v5240 = vadd.f32 %v5239, %v5209
        %v5241 = vrot.slane %v5240, 4
        %v5242 = vadd.f32 %v5240, %v5241
        %v5243 = vrot.slane %v5242, 2
        %v5244 = vadd.f32 %v5242, %v5243
        %v5245 = vrot.slane %v5244, 1
        %v5246 = vadd.f32 %v5244, %v5245
        %v5247 = vmul.f32 %v5246, %v2628
        %s5248 = scalar_lea.vmem %s4, 128
        %v5249 = vld [vmem:[%s5248] sm:$0xff]
        %v5250 = vld [vmem:[%s5248 + $0x8] sm:$0xff]
        %v5251 = vld [vmem:[%s5248 + $0x10] sm:$0xff]
        %v5252 = vld [vmem:[%s5248 + $0x18] sm:$0xff]
        %v5253 = vld [vmem:[%s5248 + $0x20] sm:$0xff]
        %v5254 = vld [vmem:[%s5248 + $0x28] sm:$0xff]
        %v5255 = vld [vmem:[%s5248 + $0x30] sm:$0xff]
        %v5256 = vld [vmem:[%s5248 + $0x38] sm:$0xff]
        %v5257 = vld [vmem:[%s5248 + $0x40] sm:$0xff]
        %v5258 = vld [vmem:[%s5248 + $0x48] sm:$0xff]
        %v5259 = vld [vmem:[%s5248 + $0x50] sm:$0xff]
        %v5260 = vld [vmem:[%s5248 + $0x58] sm:$0xff]
        %v5261 = vld [vmem:[%s5248 + $0x60] sm:$0xff]
        %v5262 = vld [vmem:[%s5248 + $0x68] sm:$0xff]
        %v5263 = vld [vmem:[%s5248 + $0x70] sm:$0xff]
        %v5264 = vld [vmem:[%s5248 + $0x78] sm:$0xff]
        %5265 = vmatprep.subr.mxu0 0.0
        %5266 = vmatpush1.msra.mxu0 %v5249
        %5267 = vmatprep.subr.mxu0 0.0
        %5268 = vmatpush1.msra.mxu0 %v5250
        %5269 = vmatprep.subr.mxu0 0.0
        %5270 = vmatpush1.msra.mxu0 %v5251
        %5271 = vmatprep.subr.mxu0 0.0
        %5272 = vmatpush1.msra.mxu0 %v5252
        %5273 = vmatprep.subr.mxu0 0.0
        %5274 = vmatpush1.msra.mxu0 %v5253
        %5275 = vmatprep.subr.mxu0 0.0
        %5276 = vmatpush1.msra.mxu0 %v5254
        %5277 = vmatprep.subr.mxu0 0.0
        %5278 = vmatpush1.msra.mxu0 %v5255
        %5279 = vmatprep.subr.mxu0 0.0
        %5280 = vmatpush1.msra.mxu0 %v5256
        %5281 = vmatprep.subr.mxu0 0.0
        %5282 = vmatpush1.msra.mxu0 %v5257
        %5283 = vmatprep.subr.mxu0 0.0
        %5284 = vmatpush1.msra.mxu0 %v5258
        %5285 = vmatprep.subr.mxu0 0.0
        %5286 = vmatpush1.msra.mxu0 %v5259
        %5287 = vmatprep.subr.mxu0 0.0
        %5288 = vmatpush1.msra.mxu0 %v5260
        %5289 = vmatprep.subr.mxu0 0.0
        %5290 = vmatpush1.msra.mxu0 %v5261
        %5291 = vmatprep.subr.mxu0 0.0
        %5292 = vmatpush1.msra.mxu0 %v5262
        %5293 = vmatprep.subr.mxu0 0.0
        %5294 = vmatpush1.msra.mxu0 %v5263
        %5295 = vmatprep.subr.mxu0 0.0
        %5296 = vmatpush1.msra.mxu0 %v5264
        %5297 = vmatprep.subr.mxu0 0.0
        %5298 = vmatpush1.msra.mxu0 0.0
        %5299 = vmatprep.subr.mxu0 0.0
        %5300 = vmatpush1.msra.mxu0 0.0
        %5301 = vmatprep.subr.mxu0 0.0
        %5302 = vmatpush1.msra.mxu0 0.0
        %5303 = vmatprep.subr.mxu0 0.0
        %5304 = vmatpush1.msra.mxu0 0.0
        %5305 = vmatprep.subr.mxu0 0.0
        %5306 = vmatpush1.msra.mxu0 0.0
        %5307 = vmatprep.subr.mxu0 0.0
        %5308 = vmatpush1.msra.mxu0 0.0
        %5309 = vmatprep.subr.mxu0 0.0
        %5310 = vmatpush1.msra.mxu0 0.0
        %5311 = vmatprep.subr.mxu0 0.0
        %5312 = vmatpush1.msra.mxu0 0.0
        %5313 = vmatprep.subr.mxu0 0.0
        %5314 = vmatpush1.msra.mxu0 0.0
        %5315 = vmatprep.subr.mxu0 0.0
        %5316 = vmatpush1.msra.mxu0 0.0
        %5317 = vmatprep.subr.mxu0 0.0
        %5318 = vmatpush1.msra.mxu0 0.0
        %5319 = vmatprep.subr.mxu0 0.0
        %5320 = vmatpush1.msra.mxu0 0.0
        %5321 = vmatprep.subr.mxu0 0.0
        %5322 = vmatpush1.msra.mxu0 0.0
        %5323 = vmatprep.subr.mxu0 0.0
        %5324 = vmatpush1.msra.mxu0 0.0
        %5325 = vmatprep.subr.mxu0 0.0
        %5326 = vmatpush1.msra.mxu0 0.0
        %5327 = vmatprep.subr.mxu0 0.0
        %5328 = vmatpush1.msra.mxu0 0.0
        %5329 = vmatprep.mubr.f32.mxu0 0.0
        %5330 = vmatmul.mubr.f32.gmra.mrb[0].mxu0 %v5247
        %v5331 = vpop.f32.mrb[0].mxu0
        %v5332 = vadd.f32 0.0, %v5331
        %v5333 = vpop.f32.mrb[0].mxu0
        %5334 = vdwg.mxu0
        %v5335 = vmax.f32 %v5332, 0.0
        %s5336 = scalar_lea.vmem %s5, 8
        %v5337 = vld [vmem:[%s5336] sm:$0xff]
        %v5339 = vsel %vm2718, %v5335, 0
        %5341 = vmatprep.subr.mxu0 0.0
        %5342 = vmatpush1.msra.mxu0 %v5337
        %5343 = vmatprep.subr.mxu0 0.0
        %5344 = vmatpush1.msra.mxu0 0.0
        %5345 = vmatprep.subr.mxu0 0.0
        %5346 = vmatpush1.msra.mxu0 0.0
        %5347 = vmatprep.subr.mxu0 0.0
        %5348 = vmatpush1.msra.mxu0 0.0
        %5349 = vmatprep.subr.mxu0 0.0
        %5350 = vmatpush1.msra.mxu0 0.0
        %5351 = vmatprep.subr.mxu0 0.0
        %5352 = vmatpush1.msra.mxu0 0.0
        %5353 = vmatprep.subr.mxu0 0.0
        %5354 = vmatpush1.msra.mxu0 0.0
        %5355 = vmatprep.subr.mxu0 0.0
        %5356 = vmatpush1.msra.mxu0 0.0
        %5357 = vmatprep.subr.mxu0 0.0
        %5358 = vmatpush1.msra.mxu0 0.0
        %5359 = vmatprep.subr.mxu0 0.0
        %5360 = vmatpush1.msra.mxu0 0.0
        %5361 = vmatprep.subr.mxu0 0.0
        %5362 = vmatpush1.msra.mxu0 0.0
        %5363 = vmatprep.subr.mxu0 0.0
        %5364 = vmatpush1.msra.mxu0 0.0
        %5365 = vmatprep.subr.mxu0 0.0
        %5366 = vmatpush1.msra.mxu0 0.0
        %5367 = vmatprep.subr.mxu0 0.0
        %5368 = vmatpush1.msra.mxu0 0.0
        %5369 = vmatprep.subr.mxu0 0.0
        %5370 = vmatpush1.msra.mxu0 0.0
        %5371 = vmatprep.subr.mxu0 0.0
        %5372 = vmatpush1.msra.mxu0 0.0
        %5373 = vmatprep.subr.mxu0 0.0
        %5374 = vmatpush1.msra.mxu0 0.0
        %5375 = vmatprep.subr.mxu0 0.0
        %5376 = vmatpush1.msra.mxu0 0.0
        %5377 = vmatprep.subr.mxu0 0.0
        %5378 = vmatpush1.msra.mxu0 0.0
        %5379 = vmatprep.subr.mxu0 0.0
        %5380 = vmatpush1.msra.mxu0 0.0
        %5381 = vmatprep.subr.mxu0 0.0
        %5382 = vmatpush1.msra.mxu0 0.0
        %5383 = vmatprep.subr.mxu0 0.0
        %5384 = vmatpush1.msra.mxu0 0.0
        %5385 = vmatprep.subr.mxu0 0.0
        %5386 = vmatpush1.msra.mxu0 0.0
        %5387 = vmatprep.subr.mxu0 0.0
        %5388 = vmatpush1.msra.mxu0 0.0
        %5389 = vmatprep.subr.mxu0 0.0
        %5390 = vmatpush1.msra.mxu0 0.0
        %5391 = vmatprep.subr.mxu0 0.0
        %5392 = vmatpush1.msra.mxu0 0.0
        %5393 = vmatprep.subr.mxu0 0.0
        %5394 = vmatpush1.msra.mxu0 0.0
        %5395 = vmatprep.subr.mxu0 0.0
        %5396 = vmatpush1.msra.mxu0 0.0
        %5397 = vmatprep.subr.mxu0 0.0
        %5398 = vmatpush1.msra.mxu0 0.0
        %5399 = vmatprep.subr.mxu0 0.0
        %5400 = vmatpush1.msra.mxu0 0.0
        %5401 = vmatprep.subr.mxu0 0.0
        %5402 = vmatpush1.msra.mxu0 0.0
        %5403 = vmatprep.subr.mxu0 0.0
        %5404 = vmatpush1.msra.mxu0 0.0
        %5405 = vmatprep.mubr.f32.mxu0 0.0
        %5406 = vmatmul.mubr.f32.gmra.mrb[0].mxu0 %v5339
        %v5407 = vpop.f32.mrb[0].mxu0
        %v5408 = vadd.f32 0.0, %v5407
        %v5409 = vpop.f32.mrb[0].mxu0
        %5410 = vdwg.mxu0
        %v5411 = vxor.u32 %v5408, 2147483648
        %v5412 = vmul.f32 %v5411, 1.442695
        %v5413 = vpow.pop %v5412
        %v5414 = vadd.f32 %v5413, 1.0
        %v5415 = vrcp.pop %v5414
        %v5416 = vmul.f32 1.0, %v5415
        %v5417 = vld [vmem:[%s378 + $0x1] sm:$0xff]
        %v5418 = vld [vmem:[%s378 + $0x9] sm:$0xff]
        %v5419 = vld [vmem:[%s378 + $0x19] sm:$0xff]
        %v5420 = vld [vmem:[%s378 + $0x21] sm:$0xff]
        %v5421 = vld [vmem:[%s378 + $0x31] sm:$0xff]
        %v5422 = vld [vmem:[%s378 + $0x39] sm:$0xff]
        %v5423 = vld [vmem:[%s378 + $0x49] sm:$0xff]
        %v5424 = vld [vmem:[%s378 + $0x51] sm:$0xff]
        %v5425 = vld [vmem:[%s378 + $0x61] sm:$0xff]
        %v5426 = vld [vmem:[%s378 + $0x69] sm:$0xff]
        %v5427 = vld [vmem:[%s378 + $0x79] sm:$0xff]
        %v5428 = vld [vmem:[%s378 + $0x81] sm:$0xff]
        %v5429 = vld [vmem:[%s378 + $0x91] sm:$0xff]
        %v5430 = vld [vmem:[%s378 + $0x99] sm:$0xff]
        %v5431 = vld [vmem:[%s378 + $0xa9] sm:$0xff]
        %v5432 = vld [vmem:[%s378 + $0xb1] sm:$0xff]
        %v5433 = vld [vmem:[%s378 + $0xc1] sm:$0xff]
        %v5434 = vld [vmem:[%s378 + $0xc9] sm:$0xff]
        %v5435 = vld [vmem:[%s378 + $0xd9] sm:$0xff]
        %v5436 = vld [vmem:[%s378 + $0xe1] sm:$0xff]
        %v5437 = vld [vmem:[%s378 + $0xf1] sm:$0xff]
        %v5438 = vld [vmem:[%s378 + $0xf9] sm:$0xff]
        %v5439 = vld [vmem:[%s378 + $0x109] sm:$0xff]
        %v5440 = vld [vmem:[%s378 + $0x111] sm:$0xff]
        %v5441 = vld [vmem:[%s378 + $0x121] sm:$0xff]
        %v5442 = vld [vmem:[%s378 + $0x129] sm:$0xff]
        %v5443 = vld [vmem:[%s378 + $0x139] sm:$0xff]
        %v5444 = vld [vmem:[%s378 + $0x141] sm:$0xff]
        %v5445 = vld [vmem:[%s378 + $0x151] sm:$0xff]
        %v5446 = vld [vmem:[%s378 + $0x159] sm:$0xff]
        %v5447 = vld [vmem:[%s378 + $0x169] sm:$0xff]
        %v5448 = vld [vmem:[%s378 + $0x171] sm:$0xff]
        %v5449 = vlaneseq
        %v5450 = vshrl.u32 %v5449, 7
        %v5451 = vsub.s32 0, %v5450
        %v5452 = vrot.slane %v5416, %v5451
        %v5453 = vmul.f32 %v5178, %v5452
        %v5454 = vmul.f32 %v5179, %v5452
        %v5455 = vmul.f32 %v5180, %v5452
        %v5456 = vmul.f32 %v5181, %v5452
        %v5457 = vmul.f32 %v5182, %v5452
        %v5458 = vmul.f32 %v5183, %v5452
        %v5459 = vmul.f32 %v5184, %v5452
        %v5460 = vmul.f32 %v5185, %v5452
        %v5461 = vmul.f32 %v5186, %v5452
        %v5462 = vmul.f32 %v5187, %v5452
        %v5463 = vmul.f32 %v5188, %v5452
        %v5464 = vmul.f32 %v5189, %v5452
        %v5465 = vmul.f32 %v5190, %v5452
        %v5466 = vmul.f32 %v5191, %v5452
        %v5467 = vmul.f32 %v5192, %v5452
        %v5468 = vmul.f32 %v5193, %v5452
        %v5469 = vmul.f32 %v5194, %v5452
        %v5470 = vmul.f32 %v5195, %v5452
        %v5471 = vmul.f32 %v5196, %v5452
        %v5472 = vmul.f32 %v5197, %v5452
        %v5473 = vmul.f32 %v5198, %v5452
        %v5474 = vmul.f32 %v5199, %v5452
        %v5475 = vmul.f32 %v5200, %v5452
        %v5476 = vmul.f32 %v5201, %v5452
        %v5477 = vmul.f32 %v5202, %v5452
        %v5478 = vmul.f32 %v5203, %v5452
        %v5479 = vmul.f32 %v5204, %v5452
        %v5480 = vmul.f32 %v5205, %v5452
        %v5481 = vmul.f32 %v5206, %v5452
        %v5482 = vmul.f32 %v5207, %v5452
        %v5483 = vmul.f32 %v5208, %v5452
        %v5484 = vmul.f32 %v5209, %v5452
        %v5485 = vadd.f32 %v5453, %v5417
        %v5486 = vadd.f32 %v5454, %v5418
        %v5487 = vadd.f32 %v5455, %v5419
        %v5488 = vadd.f32 %v5456, %v5420
        %v5489 = vadd.f32 %v5457, %v5421
        %v5490 = vadd.f32 %v5458, %v5422
        %v5491 = vadd.f32 %v5459, %v5423
        %v5492 = vadd.f32 %v5460, %v5424
        %v5493 = vadd.f32 %v5461, %v5425
        %v5494 = vadd.f32 %v5462, %v5426
        %v5495 = vadd.f32 %v5463, %v5427
        %v5496 = vadd.f32 %v5464, %v5428
        %v5497 = vadd.f32 %v5465, %v5429
        %v5498 = vadd.f32 %v5466, %v5430
        %v5499 = vadd.f32 %v5467, %v5431
        %v5500 = vadd.f32 %v5468, %v5432
        %v5501 = vadd.f32 %v5469, %v5433
        %v5502 = vadd.f32 %v5470, %v5434
        %v5503 = vadd.f32 %v5471, %v5435
        %v5504 = vadd.f32 %v5472, %v5436
        %v5505 = vadd.f32 %v5473, %v5437
        %v5506 = vadd.f32 %v5474, %v5438
        %v5507 = vadd.f32 %v5475, %v5439
        %v5508 = vadd.f32 %v5476, %v5440
        %v5509 = vadd.f32 %v5477, %v5441
        %v5510 = vadd.f32 %v5478, %v5442
        %v5511 = vadd.f32 %v5479, %v5443
        %v5512 = vadd.f32 %v5480, %v5444
        %v5513 = vadd.f32 %v5481, %v5445
        %v5514 = vadd.f32 %v5482, %v5446
        %v5515 = vadd.f32 %v5483, %v5447
        %v5516 = vadd.f32 %v5484, %v5448
        %s5517 = sld [smem:[#allocation4 + $0x1]]
        %vm5518 = vcmp.ge.f32.partialorder %v5485, 0.0
        %vm5519 = vcmp.ge.f32.partialorder %v5486, 0.0
        %vm5520 = vcmp.ge.f32.partialorder %v5487, 0.0
        %vm5521 = vcmp.ge.f32.partialorder %v5488, 0.0
        %vm5522 = vcmp.ge.f32.partialorder %v5489, 0.0
        %vm5523 = vcmp.ge.f32.partialorder %v5490, 0.0
        %vm5524 = vcmp.ge.f32.partialorder %v5491, 0.0
        %vm5525 = vcmp.ge.f32.partialorder %v5492, 0.0
        %vm5526 = vcmp.ge.f32.partialorder %v5493, 0.0
        %vm5527 = vcmp.ge.f32.partialorder %v5494, 0.0
        %vm5528 = vcmp.ge.f32.partialorder %v5495, 0.0
        %vm5529 = vcmp.ge.f32.partialorder %v5496, 0.0
        %vm5530 = vcmp.ge.f32.partialorder %v5497, 0.0
        %vm5531 = vcmp.ge.f32.partialorder %v5498, 0.0
        %vm5532 = vcmp.ge.f32.partialorder %v5499, 0.0
        %vm5533 = vcmp.ge.f32.partialorder %v5500, 0.0
        %vm5534 = vcmp.ge.f32.partialorder %v5501, 0.0
        %vm5535 = vcmp.ge.f32.partialorder %v5502, 0.0
        %vm5536 = vcmp.ge.f32.partialorder %v5503, 0.0
        %vm5537 = vcmp.ge.f32.partialorder %v5504, 0.0
        %vm5538 = vcmp.ge.f32.partialorder %v5505, 0.0
        %vm5539 = vcmp.ge.f32.partialorder %v5506, 0.0
        %vm5540 = vcmp.ge.f32.partialorder %v5507, 0.0
        %vm5541 = vcmp.ge.f32.partialorder %v5508, 0.0
        %vm5542 = vcmp.ge.f32.partialorder %v5509, 0.0
        %vm5543 = vcmp.ge.f32.partialorder %v5510, 0.0
        %vm5544 = vcmp.ge.f32.partialorder %v5511, 0.0
        %vm5545 = vcmp.ge.f32.partialorder %v5512, 0.0
        %vm5546 = vcmp.ge.f32.partialorder %v5513, 0.0
        %vm5547 = vcmp.ge.f32.partialorder %v5514, 0.0
        %vm5548 = vcmp.ge.f32.partialorder %v5515, 0.0
        %vm5549 = vcmp.ge.f32.partialorder %v5516, 0.0
        %v5550 = vstv %s5517
        %v5551 = vmul.f32 %v5550, %v5485
        %v5552 = vmul.f32 %v5550, %v5486
        %v5553 = vmul.f32 %v5550, %v5487
        %v5554 = vmul.f32 %v5550, %v5488
        %v5555 = vmul.f32 %v5550, %v5489
        %v5556 = vmul.f32 %v5550, %v5490
        %v5557 = vmul.f32 %v5550, %v5491
        %v5558 = vmul.f32 %v5550, %v5492
        %v5559 = vmul.f32 %v5550, %v5493
        %v5560 = vmul.f32 %v5550, %v5494
        %v5561 = vmul.f32 %v5550, %v5495
        %v5562 = vmul.f32 %v5550, %v5496
        %v5563 = vmul.f32 %v5550, %v5497
        %v5564 = vmul.f32 %v5550, %v5498
        %v5565 = vmul.f32 %v5550, %v5499
        %v5566 = vmul.f32 %v5550, %v5500
        %v5567 = vmul.f32 %v5550, %v5501
        %v5568 = vmul.f32 %v5550, %v5502
        %v5569 = vmul.f32 %v5550, %v5503
        %v5570 = vmul.f32 %v5550, %v5504
        %v5571 = vmul.f32 %v5550, %v5505
        %v5572 = vmul.f32 %v5550, %v5506
        %v5573 = vmul.f32 %v5550, %v5507
        %v5574 = vmul.f32 %v5550, %v5508
        %v5575 = vmul.f32 %v5550, %v5509
        %v5576 = vmul.f32 %v5550, %v5510
        %v5577 = vmul.f32 %v5550, %v5511
        %v5578 = vmul.f32 %v5550, %v5512
        %v5579 = vmul.f32 %v5550, %v5513
        %v5580 = vmul.f32 %v5550, %v5514
        %v5581 = vmul.f32 %v5550, %v5515
        %v5582 = vmul.f32 %v5550, %v5516
        %v5583 = vsel %vm5518, %v5485, %v5551
        %v5584 = vsel %vm5519, %v5486, %v5552
        %v5585 = vsel %vm5520, %v5487, %v5553
        %v5586 = vsel %vm5521, %v5488, %v5554
        %v5587 = vsel %vm5522, %v5489, %v5555
        %v5588 = vsel %vm5523, %v5490, %v5556
        %v5589 = vsel %vm5524, %v5491, %v5557
        %v5590 = vsel %vm5525, %v5492, %v5558
        %v5591 = vsel %vm5526, %v5493, %v5559
        %v5592 = vsel %vm5527, %v5494, %v5560
        %v5593 = vsel %vm5528, %v5495, %v5561
        %v5594 = vsel %vm5529, %v5496, %v5562
        %v5595 = vsel %vm5530, %v5497, %v5563
        %v5596 = vsel %vm5531, %v5498, %v5564
        %v5597 = vsel %vm5532, %v5499, %v5565
        %v5598 = vsel %vm5533, %v5500, %v5566
        %v5599 = vsel %vm5534, %v5501, %v5567
        %v5600 = vsel %vm5535, %v5502, %v5568
        %v5601 = vsel %vm5536, %v5503, %v5569
        %v5602 = vsel %vm5537, %v5504, %v5570
        %v5603 = vsel %vm5538, %v5505, %v5571
        %v5604 = vsel %vm5539, %v5506, %v5572
        %v5605 = vsel %vm5540, %v5507, %v5573
        %v5606 = vsel %vm5541, %v5508, %v5574
        %v5607 = vsel %vm5542, %v5509, %v5575
        %v5608 = vsel %vm5543, %v5510, %v5576
        %v5609 = vsel %vm5544, %v5511, %v5577
        %v5610 = vsel %vm5545, %v5512, %v5578
        %v5611 = vsel %vm5546, %v5513, %v5579
        %v5612 = vsel %vm5547, %v5514, %v5580
        %v5613 = vsel %vm5548, %v5515, %v5581
        %v5614 = vsel %vm5549, %v5516, %v5582
        %5615 = vst [vmem:[%s378 + $0x1] sm:$0xff] %v5583
        %5616 = vst [vmem:[%s378 + $0x9] sm:$0xff] %v5584
        %5617 = vst [vmem:[%s378 + $0x19] sm:$0xff] %v5585
        %5618 = vst [vmem:[%s378 + $0x21] sm:$0xff] %v5586
        %5619 = vst [vmem:[%s378 + $0x31] sm:$0xff] %v5587
        %5620 = vst [vmem:[%s378 + $0x39] sm:$0xff] %v5588
        %5621 = vst [vmem:[%s378 + $0x49] sm:$0xff] %v5589
        %5622 = vst [vmem:[%s378 + $0x51] sm:$0xff] %v5590
        %5623 = vst [vmem:[%s378 + $0x61] sm:$0xff] %v5591
        %5624 = vst [vmem:[%s378 + $0x69] sm:$0xff] %v5592
        %5625 = vst [vmem:[%s378 + $0x79] sm:$0xff] %v5593
        %5626 = vst [vmem:[%s378 + $0x81] sm:$0xff] %v5594
        %5627 = vst [vmem:[%s378 + $0x91] sm:$0xff] %v5595
        %5628 = vst [vmem:[%s378 + $0x99] sm:$0xff] %v5596
        %5629 = vst [vmem:[%s378 + $0xa9] sm:$0xff] %v5597
        %5630 = vst [vmem:[%s378 + $0xb1] sm:$0xff] %v5598
        %5631 = vst [vmem:[%s378 + $0xc1] sm:$0xff] %v5599
        %5632 = vst [vmem:[%s378 + $0xc9] sm:$0xff] %v5600
        %5633 = vst [vmem:[%s378 + $0xd9] sm:$0xff] %v5601
        %5634 = vst [vmem:[%s378 + $0xe1] sm:$0xff] %v5602
        %5635 = vst [vmem:[%s378 + $0xf1] sm:$0xff] %v5603
        %5636 = vst [vmem:[%s378 + $0xf9] sm:$0xff] %v5604
        %5637 = vst [vmem:[%s378 + $0x109] sm:$0xff] %v5605
        %5638 = vst [vmem:[%s378 + $0x111] sm:$0xff] %v5606
        %5639 = vst [vmem:[%s378 + $0x121] sm:$0xff] %v5607
        %5640 = vst [vmem:[%s378 + $0x129] sm:$0xff] %v5608
        %5641 = vst [vmem:[%s378 + $0x139] sm:$0xff] %v5609
        %5642 = vst [vmem:[%s378 + $0x141] sm:$0xff] %v5610
        %5643 = vst [vmem:[%s378 + $0x151] sm:$0xff] %v5611
        %5644 = vst [vmem:[%s378 + $0x159] sm:$0xff] %v5612
        %5645 = vst [vmem:[%s378 + $0x169] sm:$0xff] %v5613
        %5646 = vst [vmem:[%s378 + $0x171] sm:$0xff] %v5614
        %v5647 = vld [vmem:[#allocation2] sm:$0xff]
        %v5648 = vld [vmem:[#allocation2 + $0x8] sm:$0xff]
        %v5649 = vld [vmem:[#allocation2 + $0x18] sm:$0xff]
        %v5650 = vld [vmem:[#allocation2 + $0x20] sm:$0xff]
        %v5651 = vld [vmem:[#allocation2 + $0x30] sm:$0xff]
        %v5652 = vld [vmem:[#allocation2 + $0x38] sm:$0xff]
        %v5653 = vld [vmem:[#allocation2 + $0x48] sm:$0xff]
        %v5654 = vld [vmem:[#allocation2 + $0x50] sm:$0xff]
        %v5655 = vld [vmem:[#allocation2 + $0x60] sm:$0xff]
        %v5656 = vld [vmem:[#allocation2 + $0x68] sm:$0xff]
        %v5657 = vld [vmem:[#allocation2 + $0x78] sm:$0xff]
        %v5658 = vld [vmem:[#allocation2 + $0x80] sm:$0xff]
        %v5659 = vld [vmem:[#allocation2 + $0x90] sm:$0xff]
        %v5660 = vld [vmem:[#allocation2 + $0x98] sm:$0xff]
        %v5661 = vld [vmem:[#allocation2 + $0xa8] sm:$0xff]
        %v5662 = vld [vmem:[#allocation2 + $0xb0] sm:$0xff]
        %v5663 = vld [vmem:[#allocation2 + $0xc0] sm:$0xff]
        %v5664 = vld [vmem:[#allocation2 + $0xc8] sm:$0xff]
        %v5665 = vld [vmem:[#allocation2 + $0xd8] sm:$0xff]
        %v5666 = vld [vmem:[#allocation2 + $0xe0] sm:$0xff]
        %v5667 = vld [vmem:[#allocation2 + $0xf0] sm:$0xff]
        %v5668 = vld [vmem:[#allocation2 + $0xf8] sm:$0xff]
        %v5669 = vld [vmem:[#allocation2 + $0x108] sm:$0xff]
        %v5670 = vld [vmem:[#allocation2 + $0x110] sm:$0xff]
        %v5671 = vld [vmem:[#allocation2 + $0x120] sm:$0xff]
        %v5672 = vld [vmem:[#allocation2 + $0x128] sm:$0xff]
        %v5673 = vld [vmem:[#allocation2 + $0x138] sm:$0xff]
        %v5674 = vld [vmem:[#allocation2 + $0x140] sm:$0xff]
        %v5675 = vld [vmem:[#allocation2 + $0x150] sm:$0xff]
        %v5676 = vld [vmem:[#allocation2 + $0x158] sm:$0xff]
        %v5677 = vld [vmem:[#allocation2 + $0x168] sm:$0xff]
        %v5678 = vld [vmem:[#allocation2 + $0x170] sm:$0xff]
        %v5679 = vpack.c.bf16 %v5648, %v5647
        %v5680 = vpack.c.bf16 %v5650, %v5649
        %v5681 = vpack.c.bf16 %v5652, %v5651
        %v5682 = vpack.c.bf16 %v5654, %v5653
        %v5683 = vpack.c.bf16 %v5656, %v5655
        %v5684 = vpack.c.bf16 %v5658, %v5657
        %v5685 = vpack.c.bf16 %v5660, %v5659
        %v5686 = vpack.c.bf16 %v5662, %v5661
        %v5687 = vpack.c.bf16 %v5664, %v5663
        %v5688 = vpack.c.bf16 %v5666, %v5665
        %v5689 = vpack.c.bf16 %v5668, %v5667
        %v5690 = vpack.c.bf16 %v5670, %v5669
        %v5691 = vpack.c.bf16 %v5672, %v5671
        %v5692 = vpack.c.bf16 %v5674, %v5673
        %v5693 = vpack.c.bf16 %v5676, %v5675
        %v5694 = vpack.c.bf16 %v5678, %v5677
        %5695 = vst [vmem:[#allocation3] sm:$0xff] %v5679
        %5696 = vst [vmem:[#allocation3 + $0x48] sm:$0xff] %v5680
        %5697 = vst [vmem:[#allocation3 + $0x90] sm:$0xff] %v5681
        %5698 = vst [vmem:[#allocation3 + $0xd8] sm:$0xff] %v5682
        %5699 = vst [vmem:[#allocation3 + $0x120] sm:$0xff] %v5683
        %5700 = vst [vmem:[#allocation3 + $0x168] sm:$0xff] %v5684
        %5701 = vst [vmem:[#allocation3 + $0x1b0] sm:$0xff] %v5685
        %5702 = vst [vmem:[#allocation3 + $0x1f8] sm:$0xff] %v5686
        %5703 = vst [vmem:[#allocation3 + $0x240] sm:$0xff] %v5687
        %5704 = vst [vmem:[#allocation3 + $0x288] sm:$0xff] %v5688
        %5705 = vst [vmem:[#allocation3 + $0x2d0] sm:$0xff] %v5689
        %5706 = vst [vmem:[#allocation3 + $0x318] sm:$0xff] %v5690
        %5707 = vst [vmem:[#allocation3 + $0x360] sm:$0xff] %v5691
        %5708 = vst [vmem:[#allocation3 + $0x3a8] sm:$0xff] %v5692
        %5709 = vst [vmem:[#allocation3 + $0x3f0] sm:$0xff] %v5693
        %5710 = vst [vmem:[#allocation3 + $0x438] sm:$0xff] %v5694
        %v5711 = vld [vmem:[#allocation2 + $0x1] sm:$0xff]
        %v5712 = vld [vmem:[#allocation2 + $0x9] sm:$0xff]
        %v5713 = vld [vmem:[#allocation2 + $0x19] sm:$0xff]
        %v5714 = vld [vmem:[#allocation2 + $0x21] sm:$0xff]
        %v5715 = vld [vmem:[#allocation2 + $0x31] sm:$0xff]
        %v5716 = vld [vmem:[#allocation2 + $0x39] sm:$0xff]
        %v5717 = vld [vmem:[#allocation2 + $0x49] sm:$0xff]
        %v5718 = vld [vmem:[#allocation2 + $0x51] sm:$0xff]
        %v5719 = vld [vmem:[#allocation2 + $0x61] sm:$0xff]
        %v5720 = vld [vmem:[#allocation2 + $0x69] sm:$0xff]
        %v5721 = vld [vmem:[#allocation2 + $0x79] sm:$0xff]
        %v5722 = vld [vmem:[#allocation2 + $0x81] sm:$0xff]
        %v5723 = vld [vmem:[#allocation2 + $0x91] sm:$0xff]
        %v5724 = vld [vmem:[#allocation2 + $0x99] sm:$0xff]
        %v5725 = vld [vmem:[#allocation2 + $0xa9] sm:$0xff]
        %v5726 = vld [vmem:[#allocation2 + $0xb1] sm:$0xff]
        %v5727 = vld [vmem:[#allocation2 + $0xc1] sm:$0xff]
        %v5728 = vld [vmem:[#allocation2 + $0xc9] sm:$0xff]
        %v5729 = vld [vmem:[#allocation2 + $0xd9] sm:$0xff]
        %v5730 = vld [vmem:[#allocation2 + $0xe1] sm:$0xff]
        %v5731 = vld [vmem:[#allocation2 + $0xf1] sm:$0xff]
        %v5732 = vld [vmem:[#allocation2 + $0xf9] sm:$0xff]
        %v5733 = vld [vmem:[#allocation2 + $0x109] sm:$0xff]
        %v5734 = vld [vmem:[#allocation2 + $0x111] sm:$0xff]
        %v5735 = vld [vmem:[#allocation2 + $0x121] sm:$0xff]
        %v5736 = vld [vmem:[#allocation2 + $0x129] sm:$0xff]
        %v5737 = vld [vmem:[#allocation2 + $0x139] sm:$0xff]
        %v5738 = vld [vmem:[#allocation2 + $0x141] sm:$0xff]
        %v5739 = vld [vmem:[#allocation2 + $0x151] sm:$0xff]
        %v5740 = vld [vmem:[#allocation2 + $0x159] sm:$0xff]
        %v5741 = vld [vmem:[#allocation2 + $0x169] sm:$0xff]
        %v5742 = vld [vmem:[#allocation2 + $0x171] sm:$0xff]
        %v5743 = vpack.c.bf16 %v5712, %v5711
        %v5744 = vpack.c.bf16 %v5714, %v5713
        %v5745 = vpack.c.bf16 %v5716, %v5715
        %v5746 = vpack.c.bf16 %v5718, %v5717
        %v5747 = vpack.c.bf16 %v5720, %v5719
        %v5748 = vpack.c.bf16 %v5722, %v5721
        %v5749 = vpack.c.bf16 %v5724, %v5723
        %v5750 = vpack.c.bf16 %v5726, %v5725
        %v5751 = vpack.c.bf16 %v5728, %v5727
        %v5752 = vpack.c.bf16 %v5730, %v5729
        %v5753 = vpack.c.bf16 %v5732, %v5731
        %v5754 = vpack.c.bf16 %v5734, %v5733
        %v5755 = vpack.c.bf16 %v5736, %v5735
        %v5756 = vpack.c.bf16 %v5738, %v5737
        %v5757 = vpack.c.bf16 %v5740, %v5739
        %v5758 = vpack.c.bf16 %v5742, %v5741
        %5759 = vst [vmem:[#allocation3 + $0x8] sm:$0xff] %v5743
        %5760 = vst [vmem:[#allocation3 + $0x50] sm:$0xff] %v5744
        %5761 = vst [vmem:[#allocation3 + $0x98] sm:$0xff] %v5745
        %5762 = vst [vmem:[#allocation3 + $0xe0] sm:$0xff] %v5746
        %5763 = vst [vmem:[#allocation3 + $0x128] sm:$0xff] %v5747
        %5764 = vst [vmem:[#allocation3 + $0x170] sm:$0xff] %v5748
        %5765 = vst [vmem:[#allocation3 + $0x1b8] sm:$0xff] %v5749
        %5766 = vst [vmem:[#allocation3 + $0x200] sm:$0xff] %v5750
        %5767 = vst [vmem:[#allocation3 + $0x248] sm:$0xff] %v5751
        %5768 = vst [vmem:[#allocation3 + $0x290] sm:$0xff] %v5752
        %5769 = vst [vmem:[#allocation3 + $0x2d8] sm:$0xff] %v5753
        %5770 = vst [vmem:[#allocation3 + $0x320] sm:$0xff] %v5754
        %5771 = vst [vmem:[#allocation3 + $0x368] sm:$0xff] %v5755
        %5772 = vst [vmem:[#allocation3 + $0x3b0] sm:$0xff] %v5756
        %5773 = vst [vmem:[#allocation3 + $0x3f8] sm:$0xff] %v5757
        %5774 = vst [vmem:[#allocation3 + $0x440] sm:$0xff] %v5758
        %v5775 = vld [vmem:[#allocation2 + $0x2] sm:$0xff]
        %v5776 = vld [vmem:[#allocation2 + $0xa] sm:$0xff]
        %v5777 = vld [vmem:[#allocation2 + $0x1a] sm:$0xff]
        %v5778 = vld [vmem:[#allocation2 + $0x22] sm:$0xff]
        %v5779 = vld [vmem:[#allocation2 + $0x32] sm:$0xff]
        %v5780 = vld [vmem:[#allocation2 + $0x3a] sm:$0xff]
        %v5781 = vld [vmem:[#allocation2 + $0x4a] sm:$0xff]
        %v5782 = vld [vmem:[#allocation2 + $0x52] sm:$0xff]
        %v5783 = vld [vmem:[#allocation2 + $0x62] sm:$0xff]
        %v5784 = vld [vmem:[#allocation2 + $0x6a] sm:$0xff]
        %v5785 = vld [vmem:[#allocation2 + $0x7a] sm:$0xff]
        %v5786 = vld [vmem:[#allocation2 + $0x82] sm:$0xff]
        %v5787 = vld [vmem:[#allocation2 + $0x92] sm:$0xff]
        %v5788 = vld [vmem:[#allocation2 + $0x9a] sm:$0xff]
        %v5789 = vld [vmem:[#allocation2 + $0xaa] sm:$0xff]
        %v5790 = vld [vmem:[#allocation2 + $0xb2] sm:$0xff]
        %v5791 = vld [vmem:[#allocation2 + $0xc2] sm:$0xff]
        %v5792 = vld [vmem:[#allocation2 + $0xca] sm:$0xff]
        %v5793 = vld [vmem:[#allocation2 + $0xda] sm:$0xff]
        %v5794 = vld [vmem:[#allocation2 + $0xe2] sm:$0xff]
        %v5795 = vld [vmem:[#allocation2 + $0xf2] sm:$0xff]
        %v5796 = vld [vmem:[#allocation2 + $0xfa] sm:$0xff]
        %v5797 = vld [vmem:[#allocation2 + $0x10a] sm:$0xff]
        %v5798 = vld [vmem:[#allocation2 + $0x112] sm:$0xff]
        %v5799 = vld [vmem:[#allocation2 + $0x122] sm:$0xff]
        %v5800 = vld [vmem:[#allocation2 + $0x12a] sm:$0xff]
        %v5801 = vld [vmem:[#allocation2 + $0x13a] sm:$0xff]
        %v5802 = vld [vmem:[#allocation2 + $0x142] sm:$0xff]
        %v5803 = vld [vmem:[#allocation2 + $0x152] sm:$0xff]
        %v5804 = vld [vmem:[#allocation2 + $0x15a] sm:$0xff]
        %v5805 = vld [vmem:[#allocation2 + $0x16a] sm:$0xff]
        %v5806 = vld [vmem:[#allocation2 + $0x172] sm:$0xff]
        %v5807 = vpack.c.bf16 %v5776, %v5775
        %v5808 = vpack.c.bf16 %v5778, %v5777
        %v5809 = vpack.c.bf16 %v5780, %v5779
        %v5810 = vpack.c.bf16 %v5782, %v5781
        %v5811 = vpack.c.bf16 %v5784, %v5783
        %v5812 = vpack.c.bf16 %v5786, %v5785
        %v5813 = vpack.c.bf16 %v5788, %v5787
        %v5814 = vpack.c.bf16 %v5790, %v5789
        %v5815 = vpack.c.bf16 %v5792, %v5791
        %v5816 = vpack.c.bf16 %v5794, %v5793
        %v5817 = vpack.c.bf16 %v5796, %v5795
        %v5818 = vpack.c.bf16 %v5798, %v5797
        %v5819 = vpack.c.bf16 %v5800, %v5799
        %v5820 = vpack.c.bf16 %v5802, %v5801
        %v5821 = vpack.c.bf16 %v5804, %v5803
        %v5822 = vpack.c.bf16 %v5806, %v5805
        %5823 = vst [vmem:[#allocation3 + $0x10] sm:$0xff] %v5807
        %5824 = vst [vmem:[#allocation3 + $0x58] sm:$0xff] %v5808
        %5825 = vst [vmem:[#allocation3 + $0xa0] sm:$0xff] %v5809
        %5826 = vst [vmem:[#allocation3 + $0xe8] sm:$0xff] %v5810
        %5827 = vst [vmem:[#allocation3 + $0x130] sm:$0xff] %v5811
        %5828 = vst [vmem:[#allocation3 + $0x178] sm:$0xff] %v5812
        %5829 = vst [vmem:[#allocation3 + $0x1c0] sm:$0xff] %v5813
        %5830 = vst [vmem:[#allocation3 + $0x208] sm:$0xff] %v5814
        %5831 = vst [vmem:[#allocation3 + $0x250] sm:$0xff] %v5815
        %5832 = vst [vmem:[#allocation3 + $0x298] sm:$0xff] %v5816
        %5833 = vst [vmem:[#allocation3 + $0x2e0] sm:$0xff] %v5817
        %5834 = vst [vmem:[#allocation3 + $0x328] sm:$0xff] %v5818
        %5835 = vst [vmem:[#allocation3 + $0x370] sm:$0xff] %v5819
        %5836 = vst [vmem:[#allocation3 + $0x3b8] sm:$0xff] %v5820
        %5837 = vst [vmem:[#allocation3 + $0x400] sm:$0xff] %v5821
        %5838 = vst [vmem:[#allocation3 + $0x448] sm:$0xff] %v5822
        %v5839 = vld [vmem:[%s378] sm:$0xff]
        %v5840 = vld [vmem:[%s378 + $0x8] sm:$0xff]
        %v5841 = vld [vmem:[%s378 + $0x18] sm:$0xff]
        %v5842 = vld [vmem:[%s378 + $0x20] sm:$0xff]
        %v5843 = vld [vmem:[%s378 + $0x30] sm:$0xff]
        %v5844 = vld [vmem:[%s378 + $0x38] sm:$0xff]
        %v5845 = vld [vmem:[%s378 + $0x48] sm:$0xff]
        %v5846 = vld [vmem:[%s378 + $0x50] sm:$0xff]
        %v5847 = vld [vmem:[%s378 + $0x60] sm:$0xff]
        %v5848 = vld [vmem:[%s378 + $0x68] sm:$0xff]
        %v5849 = vld [vmem:[%s378 + $0x78] sm:$0xff]
        %v5850 = vld [vmem:[%s378 + $0x80] sm:$0xff]
        %v5851 = vld [vmem:[%s378 + $0x90] sm:$0xff]
        %v5852 = vld [vmem:[%s378 + $0x98] sm:$0xff]
        %v5853 = vld [vmem:[%s378 + $0xa8] sm:$0xff]
        %v5854 = vld [vmem:[%s378 + $0xb0] sm:$0xff]
        %v5855 = vld [vmem:[%s378 + $0xc0] sm:$0xff]
        %v5856 = vld [vmem:[%s378 + $0xc8] sm:$0xff]
        %v5857 = vld [vmem:[%s378 + $0xd8] sm:$0xff]
        %v5858 = vld [vmem:[%s378 + $0xe0] sm:$0xff]
        %v5859 = vld [vmem:[%s378 + $0xf0] sm:$0xff]
        %v5860 = vld [vmem:[%s378 + $0xf8] sm:$0xff]
        %v5861 = vld [vmem:[%s378 + $0x108] sm:$0xff]
        %v5862 = vld [vmem:[%s378 + $0x110] sm:$0xff]
        %v5863 = vld [vmem:[%s378 + $0x120] sm:$0xff]
        %v5864 = vld [vmem:[%s378 + $0x128] sm:$0xff]
        %v5865 = vld [vmem:[%s378 + $0x138] sm:$0xff]
        %v5866 = vld [vmem:[%s378 + $0x140] sm:$0xff]
        %v5867 = vld [vmem:[%s378 + $0x150] sm:$0xff]
        %v5868 = vld [vmem:[%s378 + $0x158] sm:$0xff]
        %v5869 = vld [vmem:[%s378 + $0x168] sm:$0xff]
        %v5870 = vld [vmem:[%s378 + $0x170] sm:$0xff]
        %v5871 = vpack.c.bf16 %v5840, %v5839
        %v5872 = vpack.c.bf16 %v5842, %v5841
        %v5873 = vpack.c.bf16 %v5844, %v5843
        %v5874 = vpack.c.bf16 %v5846, %v5845
        %v5875 = vpack.c.bf16 %v5848, %v5847
        %v5876 = vpack.c.bf16 %v5850, %v5849
        %v5877 = vpack.c.bf16 %v5852, %v5851
        %v5878 = vpack.c.bf16 %v5854, %v5853
        %v5879 = vpack.c.bf16 %v5856, %v5855
        %v5880 = vpack.c.bf16 %v5858, %v5857
        %v5881 = vpack.c.bf16 %v5860, %v5859
        %v5882 = vpack.c.bf16 %v5862, %v5861
        %v5883 = vpack.c.bf16 %v5864, %v5863
        %v5884 = vpack.c.bf16 %v5866, %v5865
        %v5885 = vpack.c.bf16 %v5868, %v5867
        %v5886 = vpack.c.bf16 %v5870, %v5869
        %5887 = vst [vmem:[#allocation3 + $0x18] sm:$0xff] %v5871
        %5888 = vst [vmem:[#allocation3 + $0x60] sm:$0xff] %v5872
        %5889 = vst [vmem:[#allocation3 + $0xa8] sm:$0xff] %v5873
        %5890 = vst [vmem:[#allocation3 + $0xf0] sm:$0xff] %v5874
        %5891 = vst [vmem:[#allocation3 + $0x138] sm:$0xff] %v5875
        %5892 = vst [vmem:[#allocation3 + $0x180] sm:$0xff] %v5876
        %5893 = vst [vmem:[#allocation3 + $0x1c8] sm:$0xff] %v5877
        %5894 = vst [vmem:[#allocation3 + $0x210] sm:$0xff] %v5878
        %5895 = vst [vmem:[#allocation3 + $0x258] sm:$0xff] %v5879
        %5896 = vst [vmem:[#allocation3 + $0x2a0] sm:$0xff] %v5880
        %5897 = vst [vmem:[#allocation3 + $0x2e8] sm:$0xff] %v5881
        %5898 = vst [vmem:[#allocation3 + $0x330] sm:$0xff] %v5882
        %5899 = vst [vmem:[#allocation3 + $0x378] sm:$0xff] %v5883
        %5900 = vst [vmem:[#allocation3 + $0x3c0] sm:$0xff] %v5884
        %5901 = vst [vmem:[#allocation3 + $0x408] sm:$0xff] %v5885
        %5902 = vst [vmem:[#allocation3 + $0x450] sm:$0xff] %v5886
        %v5903 = vld [vmem:[%s378 + $0x1] sm:$0xff]
        %v5904 = vld [vmem:[%s378 + $0x9] sm:$0xff]
        %v5905 = vld [vmem:[%s378 + $0x19] sm:$0xff]
        %v5906 = vld [vmem:[%s378 + $0x21] sm:$0xff]
        %v5907 = vld [vmem:[%s378 + $0x31] sm:$0xff]
        %v5908 = vld [vmem:[%s378 + $0x39] sm:$0xff]
        %v5909 = vld [vmem:[%s378 + $0x49] sm:$0xff]
        %v5910 = vld [vmem:[%s378 + $0x51] sm:$0xff]
        %v5911 = vld [vmem:[%s378 + $0x61] sm:$0xff]
        %v5912 = vld [vmem:[%s378 + $0x69] sm:$0xff]
        %v5913 = vld [vmem:[%s378 + $0x79] sm:$0xff]
        %v5914 = vld [vmem:[%s378 + $0x81] sm:$0xff]
        %v5915 = vld [vmem:[%s378 + $0x91] sm:$0xff]
        %v5916 = vld [vmem:[%s378 + $0x99] sm:$0xff]
        %v5917 = vld [vmem:[%s378 + $0xa9] sm:$0xff]
        %v5918 = vld [vmem:[%s378 + $0xb1] sm:$0xff]
        %v5919 = vld [vmem:[%s378 + $0xc1] sm:$0xff]
        %v5920 = vld [vmem:[%s378 + $0xc9] sm:$0xff]
        %v5921 = vld [vmem:[%s378 + $0xd9] sm:$0xff]
        %v5922 = vld [vmem:[%s378 + $0xe1] sm:$0xff]
        %v5923 = vld [vmem:[%s378 + $0xf1] sm:$0xff]
        %v5924 = vld [vmem:[%s378 + $0xf9] sm:$0xff]
        %v5925 = vld [vmem:[%s378 + $0x109] sm:$0xff]
        %v5926 = vld [vmem:[%s378 + $0x111] sm:$0xff]
        %v5927 = vld [vmem:[%s378 + $0x121] sm:$0xff]
        %v5928 = vld [vmem:[%s378 + $0x129] sm:$0xff]
        %v5929 = vld [vmem:[%s378 + $0x139] sm:$0xff]
        %v5930 = vld [vmem:[%s378 + $0x141] sm:$0xff]
        %v5931 = vld [vmem:[%s378 + $0x151] sm:$0xff]
        %v5932 = vld [vmem:[%s378 + $0x159] sm:$0xff]
        %v5933 = vld [vmem:[%s378 + $0x169] sm:$0xff]
        %v5934 = vld [vmem:[%s378 + $0x171] sm:$0xff]
        %v5935 = vpack.c.bf16 %v5904, %v5903
        %v5936 = vpack.c.bf16 %v5906, %v5905
        %v5937 = vpack.c.bf16 %v5908, %v5907
        %v5938 = vpack.c.bf16 %v5910, %v5909
        %v5939 = vpack.c.bf16 %v5912, %v5911
        %v5940 = vpack.c.bf16 %v5914, %v5913
        %v5941 = vpack.c.bf16 %v5916, %v5915
        %v5942 = vpack.c.bf16 %v5918, %v5917
        %v5943 = vpack.c.bf16 %v5920, %v5919
        %v5944 = vpack.c.bf16 %v5922, %v5921
        %v5945 = vpack.c.bf16 %v5924, %v5923
        %v5946 = vpack.c.bf16 %v5926, %v5925
        %v5947 = vpack.c.bf16 %v5928, %v5927
        %v5948 = vpack.c.bf16 %v5930, %v5929
        %v5949 = vpack.c.bf16 %v5932, %v5931
        %v5950 = vpack.c.bf16 %v5934, %v5933
        %5951 = vst [vmem:[#allocation3 + $0x20] sm:$0xff] %v5935
        %5952 = vst [vmem:[#allocation3 + $0x68] sm:$0xff] %v5936
        %5953 = vst [vmem:[#allocation3 + $0xb0] sm:$0xff] %v5937
        %5954 = vst [vmem:[#allocation3 + $0xf8] sm:$0xff] %v5938
        %5955 = vst [vmem:[#allocation3 + $0x140] sm:$0xff] %v5939
        %5956 = vst [vmem:[#allocation3 + $0x188] sm:$0xff] %v5940
        %5957 = vst [vmem:[#allocation3 + $0x1d0] sm:$0xff] %v5941
        %5958 = vst [vmem:[#allocation3 + $0x218] sm:$0xff] %v5942
        %5959 = vst [vmem:[#allocation3 + $0x260] sm:$0xff] %v5943
        %5960 = vst [vmem:[#allocation3 + $0x2a8] sm:$0xff] %v5944
        %5961 = vst [vmem:[#allocation3 + $0x2f0] sm:$0xff] %v5945
        %5962 = vst [vmem:[#allocation3 + $0x338] sm:$0xff] %v5946
        %5963 = vst [vmem:[#allocation3 + $0x380] sm:$0xff] %v5947
        %5964 = vst [vmem:[#allocation3 + $0x3c8] sm:$0xff] %v5948
        %5965 = vst [vmem:[#allocation3 + $0x410] sm:$0xff] %v5949
        %5966 = vst [vmem:[#allocation3 + $0x458] sm:$0xff] %v5950
        %v5967 = vld [vmem:[%s378 + $0x2] sm:$0xff]
        %v5968 = vld [vmem:[%s378 + $0xa] sm:$0xff]
        %v5969 = vld [vmem:[%s378 + $0x1a] sm:$0xff]
        %v5970 = vld [vmem:[%s378 + $0x22] sm:$0xff]
        %v5971 = vld [vmem:[%s378 + $0x32] sm:$0xff]
        %v5972 = vld [vmem:[%s378 + $0x3a] sm:$0xff]
        %v5973 = vld [vmem:[%s378 + $0x4a] sm:$0xff]
        %v5974 = vld [vmem:[%s378 + $0x52] sm:$0xff]
        %v5975 = vld [vmem:[%s378 + $0x62] sm:$0xff]
        %v5976 = vld [vmem:[%s378 + $0x6a] sm:$0xff]
        %v5977 = vld [vmem:[%s378 + $0x7a] sm:$0xff]
        %v5978 = vld [vmem:[%s378 + $0x82] sm:$0xff]
        %v5979 = vld [vmem:[%s378 + $0x92] sm:$0xff]
        %v5980 = vld [vmem:[%s378 + $0x9a] sm:$0xff]
        %v5981 = vld [vmem:[%s378 + $0xaa] sm:$0xff]
        %v5982 = vld [vmem:[%s378 + $0xb2] sm:$0xff]
        %v5983 = vld [vmem:[%s378 + $0xc2] sm:$0xff]
        %v5984 = vld [vmem:[%s378 + $0xca] sm:$0xff]
        %v5985 = vld [vmem:[%s378 + $0xda] sm:$0xff]
        %v5986 = vld [vmem:[%s378 + $0xe2] sm:$0xff]
        %v5987 = vld [vmem:[%s378 + $0xf2] sm:$0xff]
        %v5988 = vld [vmem:[%s378 + $0xfa] sm:$0xff]
        %v5989 = vld [vmem:[%s378 + $0x10a] sm:$0xff]
        %v5990 = vld [vmem:[%s378 + $0x112] sm:$0xff]
        %v5991 = vld [vmem:[%s378 + $0x122] sm:$0xff]
        %v5992 = vld [vmem:[%s378 + $0x12a] sm:$0xff]
        %v5993 = vld [vmem:[%s378 + $0x13a] sm:$0xff]
        %v5994 = vld [vmem:[%s378 + $0x142] sm:$0xff]
        %v5995 = vld [vmem:[%s378 + $0x152] sm:$0xff]
        %v5996 = vld [vmem:[%s378 + $0x15a] sm:$0xff]
        %v5997 = vld [vmem:[%s378 + $0x16a] sm:$0xff]
        %v5998 = vld [vmem:[%s378 + $0x172] sm:$0xff]
        %v5999 = vpack.c.bf16 %v5968, %v5967
        %v6000 = vpack.c.bf16 %v5970, %v5969
        %v6001 = vpack.c.bf16 %v5972, %v5971
        %v6002 = vpack.c.bf16 %v5974, %v5973
        %v6003 = vpack.c.bf16 %v5976, %v5975
        %v6004 = vpack.c.bf16 %v5978, %v5977
        %v6005 = vpack.c.bf16 %v5980, %v5979
        %v6006 = vpack.c.bf16 %v5982, %v5981
        %v6007 = vpack.c.bf16 %v5984, %v5983
        %v6008 = vpack.c.bf16 %v5986, %v5985
        %v6009 = vpack.c.bf16 %v5988, %v5987
        %v6010 = vpack.c.bf16 %v5990, %v5989
        %v6011 = vpack.c.bf16 %v5992, %v5991
        %v6012 = vpack.c.bf16 %v5994, %v5993
        %v6013 = vpack.c.bf16 %v5996, %v5995
        %v6014 = vpack.c.bf16 %v5998, %v5997
        %6015 = vst [vmem:[#allocation3 + $0x28] sm:$0xff] %v5999
        %6016 = vst [vmem:[#allocation3 + $0x70] sm:$0xff] %v6000
        %6017 = vst [vmem:[#allocation3 + $0xb8] sm:$0xff] %v6001
        %6018 = vst [vmem:[#allocation3 + $0x100] sm:$0xff] %v6002
        %6019 = vst [vmem:[#allocation3 + $0x148] sm:$0xff] %v6003
        %6020 = vst [vmem:[#allocation3 + $0x190] sm:$0xff] %v6004
        %6021 = vst [vmem:[#allocation3 + $0x1d8] sm:$0xff] %v6005
        %6022 = vst [vmem:[#allocation3 + $0x220] sm:$0xff] %v6006
        %6023 = vst [vmem:[#allocation3 + $0x268] sm:$0xff] %v6007
        %6024 = vst [vmem:[#allocation3 + $0x2b0] sm:$0xff] %v6008
        %6025 = vst [vmem:[#allocation3 + $0x2f8] sm:$0xff] %v6009
        %6026 = vst [vmem:[#allocation3 + $0x340] sm:$0xff] %v6010
        %6027 = vst [vmem:[#allocation3 + $0x388] sm:$0xff] %v6011
        %6028 = vst [vmem:[#allocation3 + $0x3d0] sm:$0xff] %v6012
        %6029 = vst [vmem:[#allocation3 + $0x418] sm:$0xff] %v6013
        %6030 = vst [vmem:[#allocation3 + $0x460] sm:$0xff] %v6014
        %v6031 = vld [vmem:[%s795] sm:$0xff]
        %v6032 = vld [vmem:[%s795 + $0x8] sm:$0xff]
        %v6033 = vld [vmem:[%s795 + $0x18] sm:$0xff]
        %v6034 = vld [vmem:[%s795 + $0x20] sm:$0xff]
        %v6035 = vld [vmem:[%s795 + $0x30] sm:$0xff]
        %v6036 = vld [vmem:[%s795 + $0x38] sm:$0xff]
        %v6037 = vld [vmem:[%s795 + $0x48] sm:$0xff]
        %v6038 = vld [vmem:[%s795 + $0x50] sm:$0xff]
        %v6039 = vld [vmem:[%s795 + $0x60] sm:$0xff]
        %v6040 = vld [vmem:[%s795 + $0x68] sm:$0xff]
        %v6041 = vld [vmem:[%s795 + $0x78] sm:$0xff]
        %v6042 = vld [vmem:[%s795 + $0x80] sm:$0xff]
        %v6043 = vld [vmem:[%s795 + $0x90] sm:$0xff]
        %v6044 = vld [vmem:[%s795 + $0x98] sm:$0xff]
        %v6045 = vld [vmem:[%s795 + $0xa8] sm:$0xff]
        %v6046 = vld [vmem:[%s795 + $0xb0] sm:$0xff]
        %v6047 = vld [vmem:[%s795 + $0xc0] sm:$0xff]
        %v6048 = vld [vmem:[%s795 + $0xc8] sm:$0xff]
        %v6049 = vld [vmem:[%s795 + $0xd8] sm:$0xff]
        %v6050 = vld [vmem:[%s795 + $0xe0] sm:$0xff]
        %v6051 = vld [vmem:[%s795 + $0xf0] sm:$0xff]
        %v6052 = vld [vmem:[%s795 + $0xf8] sm:$0xff]
        %v6053 = vld [vmem:[%s795 + $0x108] sm:$0xff]
        %v6054 = vld [vmem:[%s795 + $0x110] sm:$0xff]
        %v6055 = vld [vmem:[%s795 + $0x120] sm:$0xff]
        %v6056 = vld [vmem:[%s795 + $0x128] sm:$0xff]
        %v6057 = vld [vmem:[%s795 + $0x138] sm:$0xff]
        %v6058 = vld [vmem:[%s795 + $0x140] sm:$0xff]
        %v6059 = vld [vmem:[%s795 + $0x150] sm:$0xff]
        %v6060 = vld [vmem:[%s795 + $0x158] sm:$0xff]
        %v6061 = vld [vmem:[%s795 + $0x168] sm:$0xff]
        %v6062 = vld [vmem:[%s795 + $0x170] sm:$0xff]
        %v6063 = vpack.c.bf16 %v6032, %v6031
        %v6064 = vpack.c.bf16 %v6034, %v6033
        %v6065 = vpack.c.bf16 %v6036, %v6035
        %v6066 = vpack.c.bf16 %v6038, %v6037
        %v6067 = vpack.c.bf16 %v6040, %v6039
        %v6068 = vpack.c.bf16 %v6042, %v6041
        %v6069 = vpack.c.bf16 %v6044, %v6043
        %v6070 = vpack.c.bf16 %v6046, %v6045
        %v6071 = vpack.c.bf16 %v6048, %v6047
        %v6072 = vpack.c.bf16 %v6050, %v6049
        %v6073 = vpack.c.bf16 %v6052, %v6051
        %v6074 = vpack.c.bf16 %v6054, %v6053
        %v6075 = vpack.c.bf16 %v6056, %v6055
        %v6076 = vpack.c.bf16 %v6058, %v6057
        %v6077 = vpack.c.bf16 %v6060, %v6059
        %v6078 = vpack.c.bf16 %v6062, %v6061
        %6079 = vst [vmem:[#allocation3 + $0x30] sm:$0xff] %v6063
        %6080 = vst [vmem:[#allocation3 + $0x78] sm:$0xff] %v6064
        %6081 = vst [vmem:[#allocation3 + $0xc0] sm:$0xff] %v6065
        %6082 = vst [vmem:[#allocation3 + $0x108] sm:$0xff] %v6066
        %6083 = vst [vmem:[#allocation3 + $0x150] sm:$0xff] %v6067
        %6084 = vst [vmem:[#allocation3 + $0x198] sm:$0xff] %v6068
        %6085 = vst [vmem:[#allocation3 + $0x1e0] sm:$0xff] %v6069
        %6086 = vst [vmem:[#allocation3 + $0x228] sm:$0xff] %v6070
        %6087 = vst [vmem:[#allocation3 + $0x270] sm:$0xff] %v6071
        %6088 = vst [vmem:[#allocation3 + $0x2b8] sm:$0xff] %v6072
        %6089 = vst [vmem:[#allocation3 + $0x300] sm:$0xff] %v6073
        %6090 = vst [vmem:[#allocation3 + $0x348] sm:$0xff] %v6074
        %6091 = vst [vmem:[#allocation3 + $0x390] sm:$0xff] %v6075
        %6092 = vst [vmem:[#allocation3 + $0x3d8] sm:$0xff] %v6076
        %6093 = vst [vmem:[#allocation3 + $0x420] sm:$0xff] %v6077
        %6094 = vst [vmem:[#allocation3 + $0x468] sm:$0xff] %v6078
        %v6095 = vld [vmem:[%s795 + $0x1] sm:$0xff]
        %v6096 = vld [vmem:[%s795 + $0x9] sm:$0xff]
        %v6097 = vld [vmem:[%s795 + $0x19] sm:$0xff]
        %v6098 = vld [vmem:[%s795 + $0x21] sm:$0xff]
        %v6099 = vld [vmem:[%s795 + $0x31] sm:$0xff]
        %v6100 = vld [vmem:[%s795 + $0x39] sm:$0xff]
        %v6101 = vld [vmem:[%s795 + $0x49] sm:$0xff]
        %v6102 = vld [vmem:[%s795 + $0x51] sm:$0xff]
        %v6103 = vld [vmem:[%s795 + $0x61] sm:$0xff]
        %v6104 = vld [vmem:[%s795 + $0x69] sm:$0xff]
        %v6105 = vld [vmem:[%s795 + $0x79] sm:$0xff]
        %v6106 = vld [vmem:[%s795 + $0x81] sm:$0xff]
        %v6107 = vld [vmem:[%s795 + $0x91] sm:$0xff]
        %v6108 = vld [vmem:[%s795 + $0x99] sm:$0xff]
        %v6109 = vld [vmem:[%s795 + $0xa9] sm:$0xff]
        %v6110 = vld [vmem:[%s795 + $0xb1] sm:$0xff]
        %v6111 = vld [vmem:[%s795 + $0xc1] sm:$0xff]
        %v6112 = vld [vmem:[%s795 + $0xc9] sm:$0xff]
        %v6113 = vld [vmem:[%s795 + $0xd9] sm:$0xff]
        %v6114 = vld [vmem:[%s795 + $0xe1] sm:$0xff]
        %v6115 = vld [vmem:[%s795 + $0xf1] sm:$0xff]
        %v6116 = vld [vmem:[%s795 + $0xf9] sm:$0xff]
        %v6117 = vld [vmem:[%s795 + $0x109] sm:$0xff]
        %v6118 = vld [vmem:[%s795 + $0x111] sm:$0xff]
        %v6119 = vld [vmem:[%s795 + $0x121] sm:$0xff]
        %v6120 = vld [vmem:[%s795 + $0x129] sm:$0xff]
        %v6121 = vld [vmem:[%s795 + $0x139] sm:$0xff]
        %v6122 = vld [vmem:[%s795 + $0x141] sm:$0xff]
        %v6123 = vld [vmem:[%s795 + $0x151] sm:$0xff]
        %v6124 = vld [vmem:[%s795 + $0x159] sm:$0xff]
        %v6125 = vld [vmem:[%s795 + $0x169] sm:$0xff]
        %v6126 = vld [vmem:[%s795 + $0x171] sm:$0xff]
        %v6127 = vpack.c.bf16 %v6096, %v6095
        %v6128 = vpack.c.bf16 %v6098, %v6097
        %v6129 = vpack.c.bf16 %v6100, %v6099
        %v6130 = vpack.c.bf16 %v6102, %v6101
        %v6131 = vpack.c.bf16 %v6104, %v6103
        %v6132 = vpack.c.bf16 %v6106, %v6105
        %v6133 = vpack.c.bf16 %v6108, %v6107
        %v6134 = vpack.c.bf16 %v6110, %v6109
        %v6135 = vpack.c.bf16 %v6112, %v6111
        %v6136 = vpack.c.bf16 %v6114, %v6113
        %v6137 = vpack.c.bf16 %v6116, %v6115
        %v6138 = vpack.c.bf16 %v6118, %v6117
        %v6139 = vpack.c.bf16 %v6120, %v6119
        %v6140 = vpack.c.bf16 %v6122, %v6121
        %v6141 = vpack.c.bf16 %v6124, %v6123
        %v6142 = vpack.c.bf16 %v6126, %v6125
        %6143 = vst [vmem:[#allocation3 + $0x38] sm:$0xff] %v6127
        %6144 = vst [vmem:[#allocation3 + $0x80] sm:$0xff] %v6128
        %6145 = vst [vmem:[#allocation3 + $0xc8] sm:$0xff] %v6129
        %6146 = vst [vmem:[#allocation3 + $0x110] sm:$0xff] %v6130
        %6147 = vst [vmem:[#allocation3 + $0x158] sm:$0xff] %v6131
        %6148 = vst [vmem:[#allocation3 + $0x1a0] sm:$0xff] %v6132
        %6149 = vst [vmem:[#allocation3 + $0x1e8] sm:$0xff] %v6133
        %6150 = vst [vmem:[#allocation3 + $0x230] sm:$0xff] %v6134
        %6151 = vst [vmem:[#allocation3 + $0x278] sm:$0xff] %v6135
        %6152 = vst [vmem:[#allocation3 + $0x2c0] sm:$0xff] %v6136
        %6153 = vst [vmem:[#allocation3 + $0x308] sm:$0xff] %v6137
        %6154 = vst [vmem:[#allocation3 + $0x350] sm:$0xff] %v6138
        %6155 = vst [vmem:[#allocation3 + $0x398] sm:$0xff] %v6139
        %6156 = vst [vmem:[#allocation3 + $0x3e0] sm:$0xff] %v6140
        %6157 = vst [vmem:[#allocation3 + $0x428] sm:$0xff] %v6141
        %6158 = vst [vmem:[#allocation3 + $0x470] sm:$0xff] %v6142
        %v6159 = vld [vmem:[%s795 + $0x2] sm:$0xff]
        %v6160 = vld [vmem:[%s795 + $0xa] sm:$0xff]
        %v6161 = vld [vmem:[%s795 + $0x1a] sm:$0xff]
        %v6162 = vld [vmem:[%s795 + $0x22] sm:$0xff]
        %v6163 = vld [vmem:[%s795 + $0x32] sm:$0xff]
        %v6164 = vld [vmem:[%s795 + $0x3a] sm:$0xff]
        %v6165 = vld [vmem:[%s795 + $0x4a] sm:$0xff]
        %v6166 = vld [vmem:[%s795 + $0x52] sm:$0xff]
        %v6167 = vld [vmem:[%s795 + $0x62] sm:$0xff]
        %v6168 = vld [vmem:[%s795 + $0x6a] sm:$0xff]
        %v6169 = vld [vmem:[%s795 + $0x7a] sm:$0xff]
        %v6170 = vld [vmem:[%s795 + $0x82] sm:$0xff]
        %v6171 = vld [vmem:[%s795 + $0x92] sm:$0xff]
        %v6172 = vld [vmem:[%s795 + $0x9a] sm:$0xff]
        %v6173 = vld [vmem:[%s795 + $0xaa] sm:$0xff]
        %v6174 = vld [vmem:[%s795 + $0xb2] sm:$0xff]
        %v6175 = vld [vmem:[%s795 + $0xc2] sm:$0xff]
        %v6176 = vld [vmem:[%s795 + $0xca] sm:$0xff]
        %v6177 = vld [vmem:[%s795 + $0xda] sm:$0xff]
        %v6178 = vld [vmem:[%s795 + $0xe2] sm:$0xff]
        %v6179 = vld [vmem:[%s795 + $0xf2] sm:$0xff]
        %v6180 = vld [vmem:[%s795 + $0xfa] sm:$0xff]
        %v6181 = vld [vmem:[%s795 + $0x10a] sm:$0xff]
        %v6182 = vld [vmem:[%s795 + $0x112] sm:$0xff]
        %v6183 = vld [vmem:[%s795 + $0x122] sm:$0xff]
        %v6184 = vld [vmem:[%s795 + $0x12a] sm:$0xff]
        %v6185 = vld [vmem:[%s795 + $0x13a] sm:$0xff]
        %v6186 = vld [vmem:[%s795 + $0x142] sm:$0xff]
        %v6187 = vld [vmem:[%s795 + $0x152] sm:$0xff]
        %v6188 = vld [vmem:[%s795 + $0x15a] sm:$0xff]
        %v6189 = vld [vmem:[%s795 + $0x16a] sm:$0xff]
        %v6190 = vld [vmem:[%s795 + $0x172] sm:$0xff]
        %v6191 = vpack.c.bf16 %v6160, %v6159
        %v6192 = vpack.c.bf16 %v6162, %v6161
        %v6193 = vpack.c.bf16 %v6164, %v6163
        %v6194 = vpack.c.bf16 %v6166, %v6165
        %v6195 = vpack.c.bf16 %v6168, %v6167
        %v6196 = vpack.c.bf16 %v6170, %v6169
        %v6197 = vpack.c.bf16 %v6172, %v6171
        %v6198 = vpack.c.bf16 %v6174, %v6173
        %v6199 = vpack.c.bf16 %v6176, %v6175
        %v6200 = vpack.c.bf16 %v6178, %v6177
        %v6201 = vpack.c.bf16 %v6180, %v6179
        %v6202 = vpack.c.bf16 %v6182, %v6181
        %v6203 = vpack.c.bf16 %v6184, %v6183
        %v6204 = vpack.c.bf16 %v6186, %v6185
        %v6205 = vpack.c.bf16 %v6188, %v6187
        %v6206 = vpack.c.bf16 %v6190, %v6189
        %6207 = vst [vmem:[#allocation3 + $0x40] sm:$0xff] %v6191
        %6208 = vst [vmem:[#allocation3 + $0x88] sm:$0xff] %v6192
        %6209 = vst [vmem:[#allocation3 + $0xd0] sm:$0xff] %v6193
        %6210 = vst [vmem:[#allocation3 + $0x118] sm:$0xff] %v6194
        %6211 = vst [vmem:[#allocation3 + $0x160] sm:$0xff] %v6195
        %6212 = vst [vmem:[#allocation3 + $0x1a8] sm:$0xff] %v6196
        %6213 = vst [vmem:[#allocation3 + $0x1f0] sm:$0xff] %v6197
        %6214 = vst [vmem:[#allocation3 + $0x238] sm:$0xff] %v6198
        %6215 = vst [vmem:[#allocation3 + $0x280] sm:$0xff] %v6199
        %6216 = vst [vmem:[#allocation3 + $0x2c8] sm:$0xff] %v6200
        %6217 = vst [vmem:[#allocation3 + $0x310] sm:$0xff] %v6201
        %6218 = vst [vmem:[#allocation3 + $0x358] sm:$0xff] %v6202
        %6219 = vst [vmem:[#allocation3 + $0x3a0] sm:$0xff] %v6203
        %6220 = vst [vmem:[#allocation3 + $0x3e8] sm:$0xff] %v6204
        %6221 = vst [vmem:[#allocation3 + $0x430] sm:$0xff] %v6205
        %6222 = vst [vmem:[#allocation3 + $0x478] sm:$0xff] %v6206
        %v6223 = vld [vmem:[#allocation3] sm:$0xff]
        %v6224 = vld [vmem:[#allocation3 + $0x8] sm:$0xff]
        %v6225 = vld [vmem:[#allocation3 + $0x10] sm:$0xff]
        %v6226 = vld [vmem:[#allocation3 + $0x18] sm:$0xff]
        %v6227 = vld [vmem:[#allocation3 + $0x20] sm:$0xff]
        %v6228 = vld [vmem:[#allocation3 + $0x28] sm:$0xff]
        %v6229 = vld [vmem:[#allocation3 + $0x30] sm:$0xff]
        %v6230 = vld [vmem:[#allocation3 + $0x38] sm:$0xff]
        %v6231 = vld [vmem:[#allocation3 + $0x40] sm:$0xff]
        %v6232 = vld [vmem:[#allocation3 + $0x48] sm:$0xff]
        %v6233 = vld [vmem:[#allocation3 + $0x50] sm:$0xff]
        %v6234 = vld [vmem:[#allocation3 + $0x58] sm:$0xff]
        %v6235 = vld [vmem:[#allocation3 + $0x60] sm:$0xff]
        %v6236 = vld [vmem:[#allocation3 + $0x68] sm:$0xff]
        %v6237 = vld [vmem:[#allocation3 + $0x70] sm:$0xff]
        %v6238 = vld [vmem:[#allocation3 + $0x78] sm:$0xff]
        %v6239 = vld [vmem:[#allocation3 + $0x80] sm:$0xff]
        %v6240 = vld [vmem:[#allocation3 + $0x88] sm:$0xff]
        %v6241 = vld [vmem:[#allocation3 + $0x90] sm:$0xff]
        %v6242 = vld [vmem:[#allocation3 + $0x98] sm:$0xff]
        %v6243 = vld [vmem:[#allocation3 + $0xa0] sm:$0xff]
        %v6244 = vld [vmem:[#allocation3 + $0xa8] sm:$0xff]
        %v6245 = vld [vmem:[#allocation3 + $0xb0] sm:$0xff]
        %v6246 = vld [vmem:[#allocation3 + $0xb8] sm:$0xff]
        %v6247 = vld [vmem:[#allocation3 + $0xc0] sm:$0xff]
        %v6248 = vld [vmem:[#allocation3 + $0xc8] sm:$0xff]
        %v6249 = vld [vmem:[#allocation3 + $0xd0] sm:$0xff]
        %v6250 = vld [vmem:[#allocation3 + $0xd8] sm:$0xff]
        %v6251 = vld [vmem:[#allocation3 + $0xe0] sm:$0xff]
        %v6252 = vld [vmem:[#allocation3 + $0xe8] sm:$0xff]
        %v6253 = vld [vmem:[#allocation3 + $0xf0] sm:$0xff]
        %v6254 = vld [vmem:[#allocation3 + $0xf8] sm:$0xff]
        %v6255 = vld [vmem:[#allocation3 + $0x100] sm:$0xff]
        %v6256 = vld [vmem:[#allocation3 + $0x108] sm:$0xff]
        %v6257 = vld [vmem:[#allocation3 + $0x110] sm:$0xff]
        %v6258 = vld [vmem:[#allocation3 + $0x118] sm:$0xff]
        %v6259 = vld [vmem:[#allocation3 + $0x120] sm:$0xff]
        %v6260 = vld [vmem:[#allocation3 + $0x128] sm:$0xff]
        %v6261 = vld [vmem:[#allocation3 + $0x130] sm:$0xff]
        %v6262 = vld [vmem:[#allocation3 + $0x138] sm:$0xff]
        %v6263 = vld [vmem:[#allocation3 + $0x140] sm:$0xff]
        %v6264 = vld [vmem:[#allocation3 + $0x148] sm:$0xff]
        %v6265 = vld [vmem:[#allocation3 + $0x150] sm:$0xff]
        %v6266 = vld [vmem:[#allocation3 + $0x158] sm:$0xff]
        %v6267 = vld [vmem:[#allocation3 + $0x160] sm:$0xff]
        %v6268 = vld [vmem:[#allocation3 + $0x168] sm:$0xff]
        %v6269 = vld [vmem:[#allocation3 + $0x170] sm:$0xff]
        %v6270 = vld [vmem:[#allocation3 + $0x178] sm:$0xff]
        %v6271 = vld [vmem:[#allocation3 + $0x180] sm:$0xff]
        %v6272 = vld [vmem:[#allocation3 + $0x188] sm:$0xff]
        %v6273 = vld [vmem:[#allocation3 + $0x190] sm:$0xff]
        %v6274 = vld [vmem:[#allocation3 + $0x198] sm:$0xff]
        %v6275 = vld [vmem:[#allocation3 + $0x1a0] sm:$0xff]
        %v6276 = vld [vmem:[#allocation3 + $0x1a8] sm:$0xff]
        %v6277 = vld [vmem:[#allocation3 + $0x1b0] sm:$0xff]
        %v6278 = vld [vmem:[#allocation3 + $0x1b8] sm:$0xff]
        %v6279 = vld [vmem:[#allocation3 + $0x1c0] sm:$0xff]
        %v6280 = vld [vmem:[#allocation3 + $0x1c8] sm:$0xff]
        %v6281 = vld [vmem:[#allocation3 + $0x1d0] sm:$0xff]
        %v6282 = vld [vmem:[#allocation3 + $0x1d8] sm:$0xff]
        %v6283 = vld [vmem:[#allocation3 + $0x1e0] sm:$0xff]
        %v6284 = vld [vmem:[#allocation3 + $0x1e8] sm:$0xff]
        %v6285 = vld [vmem:[#allocation3 + $0x1f0] sm:$0xff]
        %v6286 = vld [vmem:[#allocation3 + $0x1f8] sm:$0xff]
        %v6287 = vld [vmem:[#allocation3 + $0x200] sm:$0xff]
        %v6288 = vld [vmem:[#allocation3 + $0x208] sm:$0xff]
        %v6289 = vld [vmem:[#allocation3 + $0x210] sm:$0xff]
        %v6290 = vld [vmem:[#allocation3 + $0x218] sm:$0xff]
        %v6291 = vld [vmem:[#allocation3 + $0x220] sm:$0xff]
        %v6292 = vld [vmem:[#allocation3 + $0x228] sm:$0xff]
        %v6293 = vld [vmem:[#allocation3 + $0x230] sm:$0xff]
        %v6294 = vld [vmem:[#allocation3 + $0x238] sm:$0xff]
        %v6295 = vld [vmem:[#allocation3 + $0x240] sm:$0xff]
        %v6296 = vld [vmem:[#allocation3 + $0x248] sm:$0xff]
        %v6297 = vld [vmem:[#allocation3 + $0x250] sm:$0xff]
        %v6298 = vld [vmem:[#allocation3 + $0x258] sm:$0xff]
        %v6299 = vld [vmem:[#allocation3 + $0x260] sm:$0xff]
        %v6300 = vld [vmem:[#allocation3 + $0x268] sm:$0xff]
        %v6301 = vld [vmem:[#allocation3 + $0x270] sm:$0xff]
        %v6302 = vld [vmem:[#allocation3 + $0x278] sm:$0xff]
        %v6303 = vld [vmem:[#allocation3 + $0x280] sm:$0xff]
        %v6304 = vld [vmem:[#allocation3 + $0x288] sm:$0xff]
        %v6305 = vld [vmem:[#allocation3 + $0x290] sm:$0xff]
        %v6306 = vld [vmem:[#allocation3 + $0x298] sm:$0xff]
        %v6307 = vld [vmem:[#allocation3 + $0x2a0] sm:$0xff]
        %v6308 = vld [vmem:[#allocation3 + $0x2a8] sm:$0xff]
        %v6309 = vld [vmem:[#allocation3 + $0x2b0] sm:$0xff]
        %v6310 = vld [vmem:[#allocation3 + $0x2b8] sm:$0xff]
        %v6311 = vld [vmem:[#allocation3 + $0x2c0] sm:$0xff]
        %v6312 = vld [vmem:[#allocation3 + $0x2c8] sm:$0xff]
        %v6313 = vld [vmem:[#allocation3 + $0x2d0] sm:$0xff]
        %v6314 = vld [vmem:[#allocation3 + $0x2d8] sm:$0xff]
        %v6315 = vld [vmem:[#allocation3 + $0x2e0] sm:$0xff]
        %v6316 = vld [vmem:[#allocation3 + $0x2e8] sm:$0xff]
        %v6317 = vld [vmem:[#allocation3 + $0x2f0] sm:$0xff]
        %v6318 = vld [vmem:[#allocation3 + $0x2f8] sm:$0xff]
        %v6319 = vld [vmem:[#allocation3 + $0x300] sm:$0xff]
        %v6320 = vld [vmem:[#allocation3 + $0x308] sm:$0xff]
        %v6321 = vld [vmem:[#allocation3 + $0x310] sm:$0xff]
        %v6322 = vld [vmem:[#allocation3 + $0x318] sm:$0xff]
        %v6323 = vld [vmem:[#allocation3 + $0x320] sm:$0xff]
        %v6324 = vld [vmem:[#allocation3 + $0x328] sm:$0xff]
        %v6325 = vld [vmem:[#allocation3 + $0x330] sm:$0xff]
        %v6326 = vld [vmem:[#allocation3 + $0x338] sm:$0xff]
        %v6327 = vld [vmem:[#allocation3 + $0x340] sm:$0xff]
        %v6328 = vld [vmem:[#allocation3 + $0x348] sm:$0xff]
        %v6329 = vld [vmem:[#allocation3 + $0x350] sm:$0xff]
        %v6330 = vld [vmem:[#allocation3 + $0x358] sm:$0xff]
        %v6331 = vld [vmem:[#allocation3 + $0x360] sm:$0xff]
        %v6332 = vld [vmem:[#allocation3 + $0x368] sm:$0xff]
        %v6333 = vld [vmem:[#allocation3 + $0x370] sm:$0xff]
        %v6334 = vld [vmem:[#allocation3 + $0x378] sm:$0xff]
        %v6335 = vld [vmem:[#allocation3 + $0x380] sm:$0xff]
        %v6336 = vld [vmem:[#allocation3 + $0x388] sm:$0xff]
        %v6337 = vld [vmem:[#allocation3 + $0x390] sm:$0xff]
        %v6338 = vld [vmem:[#allocation3 + $0x398] sm:$0xff]
        %v6339 = vld [vmem:[#allocation3 + $0x3a0] sm:$0xff]
        %v6340 = vld [vmem:[#allocation3 + $0x3a8] sm:$0xff]
        %v6341 = vld [vmem:[#allocation3 + $0x3b0] sm:$0xff]
        %v6342 = vld [vmem:[#allocation3 + $0x3b8] sm:$0xff]
        %v6343 = vld [vmem:[#allocation3 + $0x3c0] sm:$0xff]
        %v6344 = vld [vmem:[#allocation3 + $0x3c8] sm:$0xff]
        %v6345 = vld [vmem:[#allocation3 + $0x3d0] sm:$0xff]
        %v6346 = vld [vmem:[#allocation3 + $0x3d8] sm:$0xff]
        %v6347 = vld [vmem:[#allocation3 + $0x3e0] sm:$0xff]
        %v6348 = vld [vmem:[#allocation3 + $0x3e8] sm:$0xff]
        %v6349 = vld [vmem:[#allocation3 + $0x3f0] sm:$0xff]
        %v6350 = vld [vmem:[#allocation3 + $0x3f8] sm:$0xff]
        %v6351 = vld [vmem:[#allocation3 + $0x400] sm:$0xff]
        %v6352 = vld [vmem:[#allocation3 + $0x408] sm:$0xff]
        %v6353 = vld [vmem:[#allocation3 + $0x410] sm:$0xff]
        %v6354 = vld [vmem:[#allocation3 + $0x418] sm:$0xff]
        %v6355 = vld [vmem:[#allocation3 + $0x420] sm:$0xff]
        %v6356 = vld [vmem:[#allocation3 + $0x428] sm:$0xff]
        %v6357 = vld [vmem:[#allocation3 + $0x430] sm:$0xff]
        %v6358 = vld [vmem:[#allocation3 + $0x438] sm:$0xff]
        %v6359 = vld [vmem:[#allocation3 + $0x440] sm:$0xff]
        %v6360 = vld [vmem:[#allocation3 + $0x448] sm:$0xff]
        %v6361 = vld [vmem:[#allocation3 + $0x450] sm:$0xff]
        %v6362 = vld [vmem:[#allocation3 + $0x458] sm:$0xff]
        %v6363 = vld [vmem:[#allocation3 + $0x460] sm:$0xff]
        %v6364 = vld [vmem:[#allocation3 + $0x468] sm:$0xff]
        %v6365 = vld [vmem:[#allocation3 + $0x470] sm:$0xff]
        %v6366 = vld [vmem:[#allocation3 + $0x478] sm:$0xff]
        %s6367 = scalar_lea.vmem %s1, 1152
        %v6368 = vld [vmem:[%s6367] sm:$0xf]
        %v6369 = vld [vmem:[%s6367 + $0x4] sm:$0xf]
        %v6370 = vld [vmem:[%s6367 + $0x8] sm:$0xf]
        %v6371 = vld [vmem:[%s6367 + $0xc] sm:$0xf]
        %v6372 = vld [vmem:[%s6367 + $0x10] sm:$0xf]
        %v6373 = vld [vmem:[%s6367 + $0x14] sm:$0xf]
        %v6374 = vld [vmem:[%s6367 + $0x18] sm:$0xf]
        %v6375 = vld [vmem:[%s6367 + $0x1c] sm:$0xf]
        %v6376 = vld [vmem:[%s6367 + $0x20] sm:$0xf]
        %v6377 = vld [vmem:[%s6367 + $0x24] sm:$0xf]
        %v6378 = vld [vmem:[%s6367 + $0x28] sm:$0xf]
        %v6379 = vld [vmem:[%s6367 + $0x2c] sm:$0xf]
        %v6380 = vld [vmem:[%s6367 + $0x30] sm:$0xf]
        %v6381 = vld [vmem:[%s6367 + $0x34] sm:$0xf]
        %v6382 = vld [vmem:[%s6367 + $0x38] sm:$0xf]
        %v6383 = vld [vmem:[%s6367 + $0x3c] sm:$0xf]
        %v6384 = vld [vmem:[%s6367 + $0x40] sm:$0xf]
        %v6385 = vld [vmem:[%s6367 + $0x44] sm:$0xf]
        %v6386 = vld [vmem:[%s6367 + $0x48] sm:$0xf]
        %v6387 = vld [vmem:[%s6367 + $0x4c] sm:$0xf]
        %v6388 = vld [vmem:[%s6367 + $0x50] sm:$0xf]
        %v6389 = vld [vmem:[%s6367 + $0x54] sm:$0xf]
        %v6390 = vld [vmem:[%s6367 + $0x58] sm:$0xf]
        %v6391 = vld [vmem:[%s6367 + $0x5c] sm:$0xf]
        %v6392 = vld [vmem:[%s6367 + $0x60] sm:$0xf]
        %v6393 = vld [vmem:[%s6367 + $0x64] sm:$0xf]
        %v6394 = vld [vmem:[%s6367 + $0x68] sm:$0xf]
        %v6395 = vld [vmem:[%s6367 + $0x6c] sm:$0xf]
        %v6396 = vld [vmem:[%s6367 + $0x70] sm:$0xf]
        %v6397 = vld [vmem:[%s6367 + $0x74] sm:$0xf]
        %v6398 = vld [vmem:[%s6367 + $0x78] sm:$0xf]
        %v6399 = vld [vmem:[%s6367 + $0x7c] sm:$0xf]
        %v6400 = vld [vmem:[%s6367 + $0x80] sm:$0xf]
        %v6401 = vld [vmem:[%s6367 + $0x84] sm:$0xf]
        %v6402 = vld [vmem:[%s6367 + $0x88] sm:$0xf]
        %v6403 = vld [vmem:[%s6367 + $0x8c] sm:$0xf]
        %v6404 = vld [vmem:[%s6367 + $0x90] sm:$0xf]
        %v6405 = vld [vmem:[%s6367 + $0x94] sm:$0xf]
        %v6406 = vld [vmem:[%s6367 + $0x98] sm:$0xf]
        %v6407 = vld [vmem:[%s6367 + $0x9c] sm:$0xf]
        %v6408 = vld [vmem:[%s6367 + $0xa0] sm:$0xf]
        %v6409 = vld [vmem:[%s6367 + $0xa4] sm:$0xf]
        %v6410 = vld [vmem:[%s6367 + $0xa8] sm:$0xf]
        %v6411 = vld [vmem:[%s6367 + $0xac] sm:$0xf]
        %v6412 = vld [vmem:[%s6367 + $0xb0] sm:$0xf]
        %v6413 = vld [vmem:[%s6367 + $0xb4] sm:$0xf]
        %v6414 = vld [vmem:[%s6367 + $0xb8] sm:$0xf]
        %v6415 = vld [vmem:[%s6367 + $0xbc] sm:$0xf]
        %v6416 = vld [vmem:[%s6367 + $0xc0] sm:$0xf]
        %v6417 = vld [vmem:[%s6367 + $0xc4] sm:$0xf]
        %v6418 = vld [vmem:[%s6367 + $0xc8] sm:$0xf]
        %v6419 = vld [vmem:[%s6367 + $0xcc] sm:$0xf]
        %v6420 = vld [vmem:[%s6367 + $0xd0] sm:$0xf]
        %v6421 = vld [vmem:[%s6367 + $0xd4] sm:$0xf]
        %v6422 = vld [vmem:[%s6367 + $0xd8] sm:$0xf]
        %v6423 = vld [vmem:[%s6367 + $0xdc] sm:$0xf]
        %v6424 = vld [vmem:[%s6367 + $0xe0] sm:$0xf]
        %v6425 = vld [vmem:[%s6367 + $0xe4] sm:$0xf]
        %v6426 = vld [vmem:[%s6367 + $0xe8] sm:$0xf]
        %v6427 = vld [vmem:[%s6367 + $0xec] sm:$0xf]
        %v6428 = vld [vmem:[%s6367 + $0xf0] sm:$0xf]
        %v6429 = vld [vmem:[%s6367 + $0xf4] sm:$0xf]
        %v6430 = vld [vmem:[%s6367 + $0xf8] sm:$0xf]
        %v6431 = vld [vmem:[%s6367 + $0xfc] sm:$0xf]
        %v6432 = vld [vmem:[%s6367 + $0x100] sm:$0xf]
        %v6433 = vld [vmem:[%s6367 + $0x104] sm:$0xf]
        %v6434 = vld [vmem:[%s6367 + $0x108] sm:$0xf]
        %v6435 = vld [vmem:[%s6367 + $0x10c] sm:$0xf]
        %v6436 = vld [vmem:[%s6367 + $0x110] sm:$0xf]
        %v6437 = vld [vmem:[%s6367 + $0x114] sm:$0xf]
        %v6438 = vld [vmem:[%s6367 + $0x118] sm:$0xf]
        %v6439 = vld [vmem:[%s6367 + $0x11c] sm:$0xf]
        %v6440 = vld [vmem:[%s6367 + $0x120] sm:$0xf]
        %v6441 = vld [vmem:[%s6367 + $0x124] sm:$0xf]
        %v6442 = vld [vmem:[%s6367 + $0x128] sm:$0xf]
        %v6443 = vld [vmem:[%s6367 + $0x12c] sm:$0xf]
        %v6444 = vld [vmem:[%s6367 + $0x130] sm:$0xf]
        %v6445 = vld [vmem:[%s6367 + $0x134] sm:$0xf]
        %v6446 = vld [vmem:[%s6367 + $0x138] sm:$0xf]
        %v6447 = vld [vmem:[%s6367 + $0x13c] sm:$0xf]
        %v6448 = vld [vmem:[%s6367 + $0x140] sm:$0xf]
        %v6449 = vld [vmem:[%s6367 + $0x144] sm:$0xf]
        %v6450 = vld [vmem:[%s6367 + $0x148] sm:$0xf]
        %v6451 = vld [vmem:[%s6367 + $0x14c] sm:$0xf]
        %v6452 = vld [vmem:[%s6367 + $0x150] sm:$0xf]
        %v6453 = vld [vmem:[%s6367 + $0x154] sm:$0xf]
        %v6454 = vld [vmem:[%s6367 + $0x158] sm:$0xf]
        %v6455 = vld [vmem:[%s6367 + $0x15c] sm:$0xf]
        %v6456 = vld [vmem:[%s6367 + $0x160] sm:$0xf]
        %v6457 = vld [vmem:[%s6367 + $0x164] sm:$0xf]
        %v6458 = vld [vmem:[%s6367 + $0x168] sm:$0xf]
        %v6459 = vld [vmem:[%s6367 + $0x16c] sm:$0xf]
        %v6460 = vld [vmem:[%s6367 + $0x170] sm:$0xf]
        %v6461 = vld [vmem:[%s6367 + $0x174] sm:$0xf]
        %v6462 = vld [vmem:[%s6367 + $0x178] sm:$0xf]
        %v6463 = vld [vmem:[%s6367 + $0x17c] sm:$0xf]
        %v6464 = vld [vmem:[%s6367 + $0x180] sm:$0xf]
        %v6465 = vld [vmem:[%s6367 + $0x184] sm:$0xf]
        %v6466 = vld [vmem:[%s6367 + $0x188] sm:$0xf]
        %v6467 = vld [vmem:[%s6367 + $0x18c] sm:$0xf]
        %v6468 = vld [vmem:[%s6367 + $0x190] sm:$0xf]
        %v6469 = vld [vmem:[%s6367 + $0x194] sm:$0xf]
        %v6470 = vld [vmem:[%s6367 + $0x198] sm:$0xf]
        %v6471 = vld [vmem:[%s6367 + $0x19c] sm:$0xf]
        %v6472 = vld [vmem:[%s6367 + $0x1a0] sm:$0xf]
        %v6473 = vld [vmem:[%s6367 + $0x1a4] sm:$0xf]
        %v6474 = vld [vmem:[%s6367 + $0x1a8] sm:$0xf]
        %v6475 = vld [vmem:[%s6367 + $0x1ac] sm:$0xf]
        %v6476 = vld [vmem:[%s6367 + $0x1b0] sm:$0xf]
        %v6477 = vld [vmem:[%s6367 + $0x1b4] sm:$0xf]
        %v6478 = vld [vmem:[%s6367 + $0x1b8] sm:$0xf]
        %v6479 = vld [vmem:[%s6367 + $0x1bc] sm:$0xf]
        %v6480 = vld [vmem:[%s6367 + $0x1c0] sm:$0xf]
        %v6481 = vld [vmem:[%s6367 + $0x1c4] sm:$0xf]
        %v6482 = vld [vmem:[%s6367 + $0x1c8] sm:$0xf]
        %v6483 = vld [vmem:[%s6367 + $0x1cc] sm:$0xf]
        %v6484 = vld [vmem:[%s6367 + $0x1d0] sm:$0xf]
        %v6485 = vld [vmem:[%s6367 + $0x1d4] sm:$0xf]
        %v6486 = vld [vmem:[%s6367 + $0x1d8] sm:$0xf]
        %v6487 = vld [vmem:[%s6367 + $0x1dc] sm:$0xf]
        %v6488 = vld [vmem:[%s6367 + $0x1e0] sm:$0xf]
        %v6489 = vld [vmem:[%s6367 + $0x1e4] sm:$0xf]
        %v6490 = vld [vmem:[%s6367 + $0x1e8] sm:$0xf]
        %v6491 = vld [vmem:[%s6367 + $0x1ec] sm:$0xf]
        %v6492 = vld [vmem:[%s6367 + $0x1f0] sm:$0xf]
        %v6493 = vld [vmem:[%s6367 + $0x1f4] sm:$0xf]
        %v6494 = vld [vmem:[%s6367 + $0x1f8] sm:$0xf]
        %v6495 = vld [vmem:[%s6367 + $0x1fc] sm:$0xf]
        %v6496 = vld [vmem:[%s6367 + $0x200] sm:$0xf]
        %v6497 = vld [vmem:[%s6367 + $0x204] sm:$0xf]
        %v6498 = vld [vmem:[%s6367 + $0x208] sm:$0xf]
        %v6499 = vld [vmem:[%s6367 + $0x20c] sm:$0xf]
        %v6500 = vld [vmem:[%s6367 + $0x210] sm:$0xf]
        %v6501 = vld [vmem:[%s6367 + $0x214] sm:$0xf]
        %v6502 = vld [vmem:[%s6367 + $0x218] sm:$0xf]
        %v6503 = vld [vmem:[%s6367 + $0x21c] sm:$0xf]
        %v6504 = vld [vmem:[%s6367 + $0x220] sm:$0xf]
        %v6505 = vld [vmem:[%s6367 + $0x224] sm:$0xf]
        %v6506 = vld [vmem:[%s6367 + $0x228] sm:$0xf]
        %v6507 = vld [vmem:[%s6367 + $0x22c] sm:$0xf]
        %v6508 = vld [vmem:[%s6367 + $0x230] sm:$0xf]
        %v6509 = vld [vmem:[%s6367 + $0x234] sm:$0xf]
        %v6510 = vld [vmem:[%s6367 + $0x238] sm:$0xf]
        %v6511 = vld [vmem:[%s6367 + $0x23c] sm:$0xf]
        %v6656 = vunpack.c.l.b16 %v6368
        %v6657 = vunpack.c.l.b16 %v6369
        %v6658 = vunpack.c.l.b16 %v6370
        %v6659 = vunpack.c.l.b16 %v6371
        %v6660 = vunpack.c.l.b16 %v6372
        %v6661 = vunpack.c.l.b16 %v6373
        %v6662 = vunpack.c.l.b16 %v6374
        %v6663 = vunpack.c.l.b16 %v6375
        %v6664 = vunpack.c.l.b16 %v6376
        %v6665 = vunpack.c.l.b16 %v6377
        %v6666 = vunpack.c.l.b16 %v6378
        %v6667 = vunpack.c.l.b16 %v6379
        %v6668 = vunpack.c.l.b16 %v6380
        %v6669 = vunpack.c.l.b16 %v6381
        %v6670 = vunpack.c.l.b16 %v6382
        %v6671 = vunpack.c.l.b16 %v6383
        %v6672 = vunpack.c.l.b16 %v6384
        %v6673 = vunpack.c.l.b16 %v6385
        %v6674 = vunpack.c.l.b16 %v6386
        %v6675 = vunpack.c.l.b16 %v6387
        %v6676 = vunpack.c.l.b16 %v6388
        %v6677 = vunpack.c.l.b16 %v6389
        %v6678 = vunpack.c.l.b16 %v6390
        %v6679 = vunpack.c.l.b16 %v6391
        %v6680 = vunpack.c.l.b16 %v6392
        %v6681 = vunpack.c.l.b16 %v6393
        %v6682 = vunpack.c.l.b16 %v6394
        %v6683 = vunpack.c.l.b16 %v6395
        %v6684 = vunpack.c.l.b16 %v6396
        %v6685 = vunpack.c.l.b16 %v6397
        %v6686 = vunpack.c.l.b16 %v6398
        %v6687 = vunpack.c.l.b16 %v6399
        %v6688 = vunpack.c.l.b16 %v6400
        %v6689 = vunpack.c.l.b16 %v6401
        %v6690 = vunpack.c.l.b16 %v6402
        %v6691 = vunpack.c.l.b16 %v6403
        %v6692 = vunpack.c.l.b16 %v6404
        %v6693 = vunpack.c.l.b16 %v6405
        %v6694 = vunpack.c.l.b16 %v6406
        %v6695 = vunpack.c.l.b16 %v6407
        %v6696 = vunpack.c.l.b16 %v6408
        %v6697 = vunpack.c.l.b16 %v6409
        %v6698 = vunpack.c.l.b16 %v6410
        %v6699 = vunpack.c.l.b16 %v6411
        %v6700 = vunpack.c.l.b16 %v6412
        %v6701 = vunpack.c.l.b16 %v6413
        %v6702 = vunpack.c.l.b16 %v6414
        %v6703 = vunpack.c.l.b16 %v6415
        %v6704 = vunpack.c.l.b16 %v6416
        %v6705 = vunpack.c.l.b16 %v6417
        %v6706 = vunpack.c.l.b16 %v6418
        %v6707 = vunpack.c.l.b16 %v6419
        %v6708 = vunpack.c.l.b16 %v6420
        %v6709 = vunpack.c.l.b16 %v6421
        %v6710 = vunpack.c.l.b16 %v6422
        %v6711 = vunpack.c.l.b16 %v6423
        %v6712 = vunpack.c.l.b16 %v6424
        %v6713 = vunpack.c.l.b16 %v6425
        %v6714 = vunpack.c.l.b16 %v6426
        %v6715 = vunpack.c.l.b16 %v6427
        %v6716 = vunpack.c.l.b16 %v6428
        %v6717 = vunpack.c.l.b16 %v6429
        %v6718 = vunpack.c.l.b16 %v6430
        %v6719 = vunpack.c.l.b16 %v6431
        %v6720 = vunpack.c.l.b16 %v6432
        %v6721 = vunpack.c.l.b16 %v6433
        %v6722 = vunpack.c.l.b16 %v6434
        %v6723 = vunpack.c.l.b16 %v6435
        %v6724 = vunpack.c.l.b16 %v6436
        %v6725 = vunpack.c.l.b16 %v6437
        %v6726 = vunpack.c.l.b16 %v6438
        %v6727 = vunpack.c.l.b16 %v6439
        %v6728 = vunpack.c.l.b16 %v6440
        %v6729 = vunpack.c.l.b16 %v6441
        %v6730 = vunpack.c.l.b16 %v6442
        %v6731 = vunpack.c.l.b16 %v6443
        %v6732 = vunpack.c.l.b16 %v6444
        %v6733 = vunpack.c.l.b16 %v6445
        %v6734 = vunpack.c.l.b16 %v6446
        %v6735 = vunpack.c.l.b16 %v6447
        %v6736 = vunpack.c.l.b16 %v6448
        %v6737 = vunpack.c.l.b16 %v6449
        %v6738 = vunpack.c.l.b16 %v6450
        %v6739 = vunpack.c.l.b16 %v6451
        %v6740 = vunpack.c.l.b16 %v6452
        %v6741 = vunpack.c.l.b16 %v6453
        %v6742 = vunpack.c.l.b16 %v6454
        %v6743 = vunpack.c.l.b16 %v6455
        %v6744 = vunpack.c.l.b16 %v6456
        %v6745 = vunpack.c.l.b16 %v6457
        %v6746 = vunpack.c.l.b16 %v6458
        %v6747 = vunpack.c.l.b16 %v6459
        %v6748 = vunpack.c.l.b16 %v6460
        %v6749 = vunpack.c.l.b16 %v6461
        %v6750 = vunpack.c.l.b16 %v6462
        %v6751 = vunpack.c.l.b16 %v6463
        %v6752 = vunpack.c.l.b16 %v6464
        %v6753 = vunpack.c.l.b16 %v6465
        %v6754 = vunpack.c.l.b16 %v6466
        %v6755 = vunpack.c.l.b16 %v6467
        %v6756 = vunpack.c.l.b16 %v6468
        %v6757 = vunpack.c.l.b16 %v6469
        %v6758 = vunpack.c.l.b16 %v6470
        %v6759 = vunpack.c.l.b16 %v6471
        %v6760 = vunpack.c.l.b16 %v6472
        %v6761 = vunpack.c.l.b16 %v6473
        %v6762 = vunpack.c.l.b16 %v6474
        %v6763 = vunpack.c.l.b16 %v6475
        %v6764 = vunpack.c.l.b16 %v6476
        %v6765 = vunpack.c.l.b16 %v6477
        %v6766 = vunpack.c.l.b16 %v6478
        %v6767 = vunpack.c.l.b16 %v6479
        %v6768 = vunpack.c.l.b16 %v6480
        %v6769 = vunpack.c.l.b16 %v6481
        %v6770 = vunpack.c.l.b16 %v6482
        %v6771 = vunpack.c.l.b16 %v6483
        %v6772 = vunpack.c.l.b16 %v6484
        %v6773 = vunpack.c.l.b16 %v6485
        %v6774 = vunpack.c.l.b16 %v6486
        %v6775 = vunpack.c.l.b16 %v6487
        %v6776 = vunpack.c.l.b16 %v6488
        %v6777 = vunpack.c.l.b16 %v6489
        %v6778 = vunpack.c.l.b16 %v6490
        %v6779 = vunpack.c.l.b16 %v6491
        %v6780 = vunpack.c.l.b16 %v6492
        %v6781 = vunpack.c.l.b16 %v6493
        %v6782 = vunpack.c.l.b16 %v6494
        %v6783 = vunpack.c.l.b16 %v6495
        %v6784 = vunpack.c.l.b16 %v6496
        %v6785 = vunpack.c.l.b16 %v6497
        %v6786 = vunpack.c.l.b16 %v6498
        %v6787 = vunpack.c.l.b16 %v6499
        %v6788 = vunpack.c.l.b16 %v6500
        %v6789 = vunpack.c.l.b16 %v6501
        %v6790 = vunpack.c.l.b16 %v6502
        %v6791 = vunpack.c.l.b16 %v6503
        %v6792 = vunpack.c.l.b16 %v6504
        %v6793 = vunpack.c.l.b16 %v6505
        %v6794 = vunpack.c.l.b16 %v6506
        %v6795 = vunpack.c.l.b16 %v6507
        %v6796 = vunpack.c.l.b16 %v6508
        %v6797 = vunpack.c.l.b16 %v6509
        %v6798 = vunpack.c.l.b16 %v6510
        %v6799 = vunpack.c.l.b16 %v6511
        %v6800 = vpack.c.b16 %v6657, %v6656
        %v6801 = vpack.c.b16 %v6659, %v6658
        %v6802 = vpack.c.b16 %v6661, %v6660
        %v6803 = vpack.c.b16 %v6663, %v6662
        %v6804 = vpack.c.b16 %v6665, %v6664
        %v6805 = vpack.c.b16 %v6667, %v6666
        %v6806 = vpack.c.b16 %v6669, %v6668
        %v6807 = vpack.c.b16 %v6671, %v6670
        %v6808 = vpack.c.b16 %v6673, %v6672
        %v6809 = vpack.c.b16 %v6675, %v6674
        %v6810 = vpack.c.b16 %v6677, %v6676
        %v6811 = vpack.c.b16 %v6679, %v6678
        %v6812 = vpack.c.b16 %v6681, %v6680
        %v6813 = vpack.c.b16 %v6683, %v6682
        %v6814 = vpack.c.b16 %v6685, %v6684
        %v6815 = vpack.c.b16 %v6687, %v6686
        %v6816 = vpack.c.b16 %v6689, %v6688
        %v6817 = vpack.c.b16 %v6691, %v6690
        %v6818 = vpack.c.b16 %v6693, %v6692
        %v6819 = vpack.c.b16 %v6695, %v6694
        %v6820 = vpack.c.b16 %v6697, %v6696
        %v6821 = vpack.c.b16 %v6699, %v6698
        %v6822 = vpack.c.b16 %v6701, %v6700
        %v6823 = vpack.c.b16 %v6703, %v6702
        %v6824 = vpack.c.b16 %v6705, %v6704
        %v6825 = vpack.c.b16 %v6707, %v6706
        %v6826 = vpack.c.b16 %v6709, %v6708
        %v6827 = vpack.c.b16 %v6711, %v6710
        %v6828 = vpack.c.b16 %v6713, %v6712
        %v6829 = vpack.c.b16 %v6715, %v6714
        %v6830 = vpack.c.b16 %v6717, %v6716
        %v6831 = vpack.c.b16 %v6719, %v6718
        %v6832 = vpack.c.b16 %v6721, %v6720
        %v6833 = vpack.c.b16 %v6723, %v6722
        %v6834 = vpack.c.b16 %v6725, %v6724
        %v6835 = vpack.c.b16 %v6727, %v6726
        %v6836 = vpack.c.b16 %v6729, %v6728
        %v6837 = vpack.c.b16 %v6731, %v6730
        %v6838 = vpack.c.b16 %v6733, %v6732
        %v6839 = vpack.c.b16 %v6735, %v6734
        %v6840 = vpack.c.b16 %v6737, %v6736
        %v6841 = vpack.c.b16 %v6739, %v6738
        %v6842 = vpack.c.b16 %v6741, %v6740
        %v6843 = vpack.c.b16 %v6743, %v6742
        %v6844 = vpack.c.b16 %v6745, %v6744
        %v6845 = vpack.c.b16 %v6747, %v6746
        %v6846 = vpack.c.b16 %v6749, %v6748
        %v6847 = vpack.c.b16 %v6751, %v6750
        %v6848 = vpack.c.b16 %v6753, %v6752
        %v6849 = vpack.c.b16 %v6755, %v6754
        %v6850 = vpack.c.b16 %v6757, %v6756
        %v6851 = vpack.c.b16 %v6759, %v6758
        %v6852 = vpack.c.b16 %v6761, %v6760
        %v6853 = vpack.c.b16 %v6763, %v6762
        %v6854 = vpack.c.b16 %v6765, %v6764
        %v6855 = vpack.c.b16 %v6767, %v6766
        %v6856 = vpack.c.b16 %v6769, %v6768
        %v6857 = vpack.c.b16 %v6771, %v6770
        %v6858 = vpack.c.b16 %v6773, %v6772
        %v6859 = vpack.c.b16 %v6775, %v6774
        %v6860 = vpack.c.b16 %v6777, %v6776
        %v6861 = vpack.c.b16 %v6779, %v6778
        %v6862 = vpack.c.b16 %v6781, %v6780
        %v6863 = vpack.c.b16 %v6783, %v6782
        %v6864 = vpack.c.b16 %v6785, %v6784
        %v6865 = vpack.c.b16 %v6787, %v6786
        %v6866 = vpack.c.b16 %v6789, %v6788
        %v6867 = vpack.c.b16 %v6791, %v6790
        %v6868 = vpack.c.b16 %v6793, %v6792
        %v6869 = vpack.c.b16 %v6795, %v6794
        %v6870 = vpack.c.b16 %v6797, %v6796
        %v6871 = vpack.c.b16 %v6799, %v6798
        %6944 = vmatprep.subr.bf16.mxu0 0
        %6945 = vmatpush1.bf16.msra.mxu0 %v6800
        %6946 = vmatprep.subr.bf16.mxu0 0
        %6947 = vmatpush1.bf16.msra.mxu0 %v6801
        %6948 = vmatprep.subr.bf16.mxu0 0
        %6949 = vmatpush1.bf16.msra.mxu0 %v6802
        %6950 = vmatprep.subr.bf16.mxu0 0
        %6951 = vmatpush1.bf16.msra.mxu0 %v6803
        %6952 = vmatprep.subr.bf16.mxu0 0
        %6953 = vmatpush1.bf16.msra.mxu0 %v6804
        %6954 = vmatprep.subr.bf16.mxu0 0
        %6955 = vmatpush1.bf16.msra.mxu0 %v6805
        %6956 = vmatprep.subr.bf16.mxu0 0
        %6957 = vmatpush1.bf16.msra.mxu0 %v6806
        %6958 = vmatprep.subr.bf16.mxu0 0
        %6959 = vmatpush1.bf16.msra.mxu0 %v6807
        %6960 = vmatprep.subr.bf16.mxu0 0
        %6961 = vmatpush1.bf16.msra.mxu0 %v6808
        %6962 = vmatprep.subr.bf16.mxu0 0
        %6963 = vmatpush1.bf16.msra.mxu0 %v6809
        %6964 = vmatprep.subr.bf16.mxu0 0
        %6965 = vmatpush1.bf16.msra.mxu0 %v6810
        %6966 = vmatprep.subr.bf16.mxu0 0
        %6967 = vmatpush1.bf16.msra.mxu0 %v6811
        %6968 = vmatprep.subr.bf16.mxu0 0
        %6969 = vmatpush1.bf16.msra.mxu0 %v6812
        %6970 = vmatprep.subr.bf16.mxu0 0
        %6971 = vmatpush1.bf16.msra.mxu0 %v6813
        %6972 = vmatprep.subr.bf16.mxu0 0
        %6973 = vmatpush1.bf16.msra.mxu0 %v6814
        %6974 = vmatprep.subr.bf16.mxu0 0
        %6975 = vmatpush1.bf16.msra.mxu0 %v6815
        %6976 = vmatprep.mubr.bf16.mxu0 %v6224
        %6977 = vmatmul.mubr.bf16.gmra.mrb[0].mxu0 %v6223
        %v6978 = vpop.f32.mrb[0].mxu0
        %v6979 = vadd.f32 0.0, %v6978
        %v6980 = vpop.f32.mrb[0].mxu0
        %v6981 = vpop.f32.mrb[0].mxu0
        %v6982 = vadd.f32 0.0, %v6981
        %v6983 = vpop.f32.mrb[0].mxu0
        %6984 = vmatprep.mubr.bf16.mxu0 %v6233
        %6985 = vmatmul.mubr.bf16.gmra.mrb[0].mxu0 %v6232
        %v6986 = vpop.f32.mrb[0].mxu0
        %v6987 = vadd.f32 0.0, %v6986
        %v6988 = vpop.f32.mrb[0].mxu0
        %v6989 = vpop.f32.mrb[0].mxu0
        %v6990 = vadd.f32 0.0, %v6989
        %v6991 = vpop.f32.mrb[0].mxu0
        %6992 = vmatprep.mubr.bf16.mxu0 %v6242
        %6993 = vmatmul.mubr.bf16.gmra.mrb[0].mxu0 %v6241
        %v6994 = vpop.f32.mrb[0].mxu0
        %v6995 = vadd.f32 0.0, %v6994
        %v6996 = vpop.f32.mrb[0].mxu0
        %v6997 = vpop.f32.mrb[0].mxu0
        %v6998 = vadd.f32 0.0, %v6997
        %v6999 = vpop.f32.mrb[0].mxu0
        %7000 = vmatprep.mubr.bf16.mxu0 %v6251
        %7001 = vmatmul.mubr.bf16.gmra.mrb[0].mxu0 %v6250
        %v7002 = vpop.f32.mrb[0].mxu0
        %v7003 = vadd.f32 0.0, %v7002
        %v7004 = vpop.f32.mrb[0].mxu0
        %v7005 = vpop.f32.mrb[0].mxu0
        %v7006 = vadd.f32 0.0, %v7005
        %v7007 = vpop.f32.mrb[0].mxu0
        %7008 = vmatprep.mubr.bf16.mxu0 %v6260
        %7009 = vmatmul.mubr.bf16.gmra.mrb[0].mxu0 %v6259
        %v7010 = vpop.f32.mrb[0].mxu0
        %v7011 = vadd.f32 0.0, %v7010
        %v7012 = vpop.f32.mrb[0].mxu0
        %v7013 = vpop.f32.mrb[0].mxu0
        %v7014 = vadd.f32 0.0, %v7013
        %v7015 = vpop.f32.mrb[0].mxu0
        %7016 = vmatprep.mubr.bf16.mxu0 %v6269
        %7017 = vmatmul.mubr.bf16.gmra.mrb[0].mxu0 %v6268
        %v7018 = vpop.f32.mrb[0].mxu0
        %v7019 = vadd.f32 0.0, %v7018
        %v7020 = vpop.f32.mrb[0].mxu0
        %v7021 = vpop.f32.mrb[0].mxu0
        %v7022 = vadd.f32 0.0, %v7021
        %v7023 = vpop.f32.mrb[0].mxu0
        %7024 = vmatprep.mubr.bf16.mxu0 %v6278
        %7025 = vmatmul.mubr.bf16.gmra.mrb[0].mxu0 %v6277
        %v7026 = vpop.f32.mrb[0].mxu0
        %v7027 = vadd.f32 0.0, %v7026
        %v7028 = vpop.f32.mrb[0].mxu0
        %v7029 = vpop.f32.mrb[0].mxu0
        %v7030 = vadd.f32 0.0, %v7029
        %v7031 = vpop.f32.mrb[0].mxu0
        %7032 = vmatprep.mubr.bf16.mxu0 %v6287
        %7033 = vmatmul.mubr.bf16.gmra.mrb[0].mxu0 %v6286
        %v7034 = vpop.f32.mrb[0].mxu0
        %v7035 = vadd.f32 0.0, %v7034
        %v7036 = vpop.f32.mrb[0].mxu0
        %v7037 = vpop.f32.mrb[0].mxu0
        %v7038 = vadd.f32 0.0, %v7037
        %v7039 = vpop.f32.mrb[0].mxu0
        %7040 = vmatprep.mubr.bf16.mxu0 %v6296
        %7041 = vmatmul.mubr.bf16.gmra.mrb[0].mxu0 %v6295
        %v7042 = vpop.f32.mrb[0].mxu0
        %v7043 = vadd.f32 0.0, %v7042
        %v7044 = vpop.f32.mrb[0].mxu0
        %v7045 = vpop.f32.mrb[0].mxu0
        %v7046 = vadd.f32 0.0, %v7045
        %v7047 = vpop.f32.mrb[0].mxu0
        %7048 = vmatprep.mubr.bf16.mxu0 %v6305
        %7049 = vmatmul.mubr.bf16.gmra.mrb[0].mxu0 %v6304
        %v7050 = vpop.f32.mrb[0].mxu0
        %v7051 = vadd.f32 0.0, %v7050
        %v7052 = vpop.f32.mrb[0].mxu0
        %v7053 = vpop.f32.mrb[0].mxu0
        %v7054 = vadd.f32 0.0, %v7053
        %v7055 = vpop.f32.mrb[0].mxu0
        %7056 = vmatprep.mubr.bf16.mxu0 %v6314
        %7057 = vmatmul.mubr.bf16.gmra.mrb[0].mxu0 %v6313
        %v7058 = vpop.f32.mrb[0].mxu0
        %v7059 = vadd.f32 0.0, %v7058
        %v7060 = vpop.f32.mrb[0].mxu0
        %v7061 = vpop.f32.mrb[0].mxu0
        %v7062 = vadd.f32 0.0, %v7061
        %v7063 = vpop.f32.mrb[0].mxu0
        %7064 = vmatprep.mubr.bf16.mxu0 %v6323
        %7065 = vmatmul.mubr.bf16.gmra.mrb[0].mxu0 %v6322
        %v7066 = vpop.f32.mrb[0].mxu0
        %v7067 = vadd.f32 0.0, %v7066
        %v7068 = vpop.f32.mrb[0].mxu0
        %v7069 = vpop.f32.mrb[0].mxu0
        %v7070 = vadd.f32 0.0, %v7069
        %v7071 = vpop.f32.mrb[0].mxu0
        %7072 = vmatprep.mubr.bf16.mxu0 %v6332
        %7073 = vmatmul.mubr.bf16.gmra.mrb[0].mxu0 %v6331
        %v7074 = vpop.f32.mrb[0].mxu0
        %v7075 = vadd.f32 0.0, %v7074
        %v7076 = vpop.f32.mrb[0].mxu0
        %v7077 = vpop.f32.mrb[0].mxu0
        %v7078 = vadd.f32 0.0, %v7077
        %v7079 = vpop.f32.mrb[0].mxu0
        %7080 = vmatprep.mubr.bf16.mxu0 %v6341
        %7081 = vmatmul.mubr.bf16.gmra.mrb[0].mxu0 %v6340
        %v7082 = vpop.f32.mrb[0].mxu0
        %v7083 = vadd.f32 0.0, %v7082
        %v7084 = vpop.f32.mrb[0].mxu0
        %v7085 = vpop.f32.mrb[0].mxu0
        %v7086 = vadd.f32 0.0, %v7085
        %v7087 = vpop.f32.mrb[0].mxu0
        %7088 = vmatprep.mubr.bf16.mxu0 %v6350
        %7089 = vmatmul.mubr.bf16.gmra.mrb[0].mxu0 %v6349
        %v7090 = vpop.f32.mrb[0].mxu0
        %v7091 = vadd.f32 0.0, %v7090
        %v7092 = vpop.f32.mrb[0].mxu0
        %v7093 = vpop.f32.mrb[0].mxu0
        %v7094 = vadd.f32 0.0, %v7093
        %v7095 = vpop.f32.mrb[0].mxu0
        %7096 = vmatprep.mubr.bf16.mxu0 %v6359
        %7097 = vmatmul.mubr.bf16.gmra.mrb[0].mxu0 %v6358
        %v7098 = vpop.f32.mrb[0].mxu0
        %v7099 = vadd.f32 0.0, %v7098
        %v7100 = vpop.f32.mrb[0].mxu0
        %v7101 = vpop.f32.mrb[0].mxu0
        %v7102 = vadd.f32 0.0, %v7101
        %v7103 = vpop.f32.mrb[0].mxu0
        %7104 = vdwg.mxu0
        %7105 = vmatprep.subr.bf16.mxu0 0
        %7106 = vmatpush1.bf16.msra.mxu0 %v6816
        %7107 = vmatprep.subr.bf16.mxu0 0
        %7108 = vmatpush1.bf16.msra.mxu0 %v6817
        %7109 = vmatprep.subr.bf16.mxu0 0
        %7110 = vmatpush1.bf16.msra.mxu0 %v6818
        %7111 = vmatprep.subr.bf16.mxu0 0
        %7112 = vmatpush1.bf16.msra.mxu0 %v6819
        %7113 = vmatprep.subr.bf16.mxu0 0
        %7114 = vmatpush1.bf16.msra.mxu0 %v6820
        %7115 = vmatprep.subr.bf16.mxu0 0
        %7116 = vmatpush1.bf16.msra.mxu0 %v6821
        %7117 = vmatprep.subr.bf16.mxu0 0
        %7118 = vmatpush1.bf16.msra.mxu0 %v6822
        %7119 = vmatprep.subr.bf16.mxu0 0
        %7120 = vmatpush1.bf16.msra.mxu0 %v6823
        %7121 = vmatprep.subr.bf16.mxu0 0
        %7122 = vmatpush1.bf16.msra.mxu0 %v6824
        %7123 = vmatprep.subr.bf16.mxu0 0
        %7124 = vmatpush1.bf16.msra.mxu0 %v6825
        %7125 = vmatprep.subr.bf16.mxu0 0
        %7126 = vmatpush1.bf16.msra.mxu0 %v6826
        %7127 = vmatprep.subr.bf16.mxu0 0
        %7128 = vmatpush1.bf16.msra.mxu0 %v6827
        %7129 = vmatprep.subr.bf16.mxu0 0
        %7130 = vmatpush1.bf16.msra.mxu0 %v6828
        %7131 = vmatprep.subr.bf16.mxu0 0
        %7132 = vmatpush1.bf16.msra.mxu0 %v6829
        %7133 = vmatprep.subr.bf16.mxu0 0
        %7134 = vmatpush1.bf16.msra.mxu0 %v6830
        %7135 = vmatprep.subr.bf16.mxu0 0
        %7136 = vmatpush1.bf16.msra.mxu0 %v6831
        %7137 = vmatprep.mubr.bf16.mxu0 %v6226
        %7138 = vmatmul.mubr.bf16.gmra.mrb[0].mxu0 %v6225
        %v7139 = vpop.f32.mrb[0].mxu0
        %v7140 = vadd.f32 %v6979, %v7139
        %v7141 = vpop.f32.mrb[0].mxu0
        %v7142 = vpop.f32.mrb[0].mxu0
        %v7143 = vadd.f32 %v6982, %v7142
        %v7144 = vpop.f32.mrb[0].mxu0
        %7145 = vmatprep.mubr.bf16.mxu0 %v6235
        %7146 = vmatmul.mubr.bf16.gmra.mrb[0].mxu0 %v6234
        %v7147 = vpop.f32.mrb[0].mxu0
        %v7148 = vadd.f32 %v6987, %v7147
        %v7149 = vpop.f32.mrb[0].mxu0
        %v7150 = vpop.f32.mrb[0].mxu0
        %v7151 = vadd.f32 %v6990, %v7150
        %v7152 = vpop.f32.mrb[0].mxu0
        %7153 = vmatprep.mubr.bf16.mxu0 %v6244
        %7154 = vmatmul.mubr.bf16.gmra.mrb[0].mxu0 %v6243
        %v7155 = vpop.f32.mrb[0].mxu0
        %v7156 = vadd.f32 %v6995, %v7155
        %v7157 = vpop.f32.mrb[0].mxu0
        %v7158 = vpop.f32.mrb[0].mxu0
        %v7159 = vadd.f32 %v6998, %v7158
        %v7160 = vpop.f32.mrb[0].mxu0
        %7161 = vmatprep.mubr.bf16.mxu0 %v6253
        %7162 = vmatmul.mubr.bf16.gmra.mrb[0].mxu0 %v6252
        %v7163 = vpop.f32.mrb[0].mxu0
        %v7164 = vadd.f32 %v7003, %v7163
        %v7165 = vpop.f32.mrb[0].mxu0
        %v7166 = vpop.f32.mrb[0].mxu0
        %v7167 = vadd.f32 %v7006, %v7166
        %v7168 = vpop.f32.mrb[0].mxu0
        %7169 = vmatprep.mubr.bf16.mxu0 %v6262
        %7170 = vmatmul.mubr.bf16.gmra.mrb[0].mxu0 %v6261
        %v7171 = vpop.f32.mrb[0].mxu0
        %v7172 = vadd.f32 %v7011, %v7171
        %v7173 = vpop.f32.mrb[0].mxu0
        %v7174 = vpop.f32.mrb[0].mxu0
        %v7175 = vadd.f32 %v7014, %v7174
        %v7176 = vpop.f32.mrb[0].mxu0
        %7177 = vmatprep.mubr.bf16.mxu0 %v6271
        %7178 = vmatmul.mubr.bf16.gmra.mrb[0].mxu0 %v6270
        %v7179 = vpop.f32.mrb[0].mxu0
        %v7180 = vadd.f32 %v7019, %v7179
        %v7181 = vpop.f32.mrb[0].mxu0
        %v7182 = vpop.f32.mrb[0].mxu0
        %v7183 = vadd.f32 %v7022, %v7182
        %v7184 = vpop.f32.mrb[0].mxu0
        %7185 = vmatprep.mubr.bf16.mxu0 %v6280
        %7186 = vmatmul.mubr.bf16.gmra.mrb[0].mxu0 %v6279
        %v7187 = vpop.f32.mrb[0].mxu0
        %v7188 = vadd.f32 %v7027, %v7187
        %v7189 = vpop.f32.mrb[0].mxu0
        %v7190 = vpop.f32.mrb[0].mxu0
        %v7191 = vadd.f32 %v7030, %v7190
        %v7192 = vpop.f32.mrb[0].mxu0
        %7193 = vmatprep.mubr.bf16.mxu0 %v6289
        %7194 = vmatmul.mubr.bf16.gmra.mrb[0].mxu0 %v6288
        %v7195 = vpop.f32.mrb[0].mxu0
        %v7196 = vadd.f32 %v7035, %v7195
        %v7197 = vpop.f32.mrb[0].mxu0
        %v7198 = vpop.f32.mrb[0].mxu0
        %v7199 = vadd.f32 %v7038, %v7198
        %v7200 = vpop.f32.mrb[0].mxu0
        %7201 = vmatprep.mubr.bf16.mxu0 %v6298
        %7202 = vmatmul.mubr.bf16.gmra.mrb[0].mxu0 %v6297
        %v7203 = vpop.f32.mrb[0].mxu0
        %v7204 = vadd.f32 %v7043, %v7203
        %v7205 = vpop.f32.mrb[0].mxu0
        %v7206 = vpop.f32.mrb[0].mxu0
        %v7207 = vadd.f32 %v7046, %v7206
        %v7208 = vpop.f32.mrb[0].mxu0
        %7209 = vmatprep.mubr.bf16.mxu0 %v6307
        %7210 = vmatmul.mubr.bf16.gmra.mrb[0].mxu0 %v6306
        %v7211 = vpop.f32.mrb[0].mxu0
        %v7212 = vadd.f32 %v7051, %v7211
        %v7213 = vpop.f32.mrb[0].mxu0
        %v7214 = vpop.f32.mrb[0].mxu0
        %v7215 = vadd.f32 %v7054, %v7214
        %v7216 = vpop.f32.mrb[0].mxu0
        %7217 = vmatprep.mubr.bf16.mxu0 %v6316
        %7218 = vmatmul.mubr.bf16.gmra.mrb[0].mxu0 %v6315
        %v7219 = vpop.f32.mrb[0].mxu0
        %v7220 = vadd.f32 %v7059, %v7219
        %v7221 = vpop.f32.mrb[0].mxu0
        %v7222 = vpop.f32.mrb[0].mxu0
        %v7223 = vadd.f32 %v7062, %v7222
        %v7224 = vpop.f32.mrb[0].mxu0
        %7225 = vmatprep.mubr.bf16.mxu0 %v6325
        %7226 = vmatmul.mubr.bf16.gmra.mrb[0].mxu0 %v6324
        %v7227 = vpop.f32.mrb[0].mxu0
        %v7228 = vadd.f32 %v7067, %v7227
        %v7229 = vpop.f32.mrb[0].mxu0
        %v7230 = vpop.f32.mrb[0].mxu0
        %v7231 = vadd.f32 %v7070, %v7230
        %v7232 = vpop.f32.mrb[0].mxu0
        %7233 = vmatprep.mubr.bf16.mxu0 %v6334
        %7234 = vmatmul.mubr.bf16.gmra.mrb[0].mxu0 %v6333
        %v7235 = vpop.f32.mrb[0].mxu0
        %v7236 = vadd.f32 %v7075, %v7235
        %v7237 = vpop.f32.mrb[0].mxu0
        %v7238 = vpop.f32.mrb[0].mxu0
        %v7239 = vadd.f32 %v7078, %v7238
        %v7240 = vpop.f32.mrb[0].mxu0
        %7241 = vmatprep.mubr.bf16.mxu0 %v6343
        %7242 = vmatmul.mubr.bf16.gmra.mrb[0].mxu0 %v6342
        %v7243 = vpop.f32.mrb[0].mxu0
        %v7244 = vadd.f32 %v7083, %v7243
        %v7245 = vpop.f32.mrb[0].mxu0
        %v7246 = vpop.f32.mrb[0].mxu0
        %v7247 = vadd.f32 %v7086, %v7246
        %v7248 = vpop.f32.mrb[0].mxu0
        %7249 = vmatprep.mubr.bf16.mxu0 %v6352
        %7250 = vmatmul.mubr.bf16.gmra.mrb[0].mxu0 %v6351
        %v7251 = vpop.f32.mrb[0].mxu0
        %v7252 = vadd.f32 %v7091, %v7251
        %v7253 = vpop.f32.mrb[0].mxu0
        %v7254 = vpop.f32.mrb[0].mxu0
        %v7255 = vadd.f32 %v7094, %v7254
        %v7256 = vpop.f32.mrb[0].mxu0
        %7257 = vmatprep.mubr.bf16.mxu0 %v6361
        %7258 = vmatmul.mubr.bf16.gmra.mrb[0].mxu0 %v6360
        %v7259 = vpop.f32.mrb[0].mxu0
        %v7260 = vadd.f32 %v7099, %v7259
        %v7261 = vpop.f32.mrb[0].mxu0
        %v7262 = vpop.f32.mrb[0].mxu0
        %v7263 = vadd.f32 %v7102, %v7262
        %v7264 = vpop.f32.mrb[0].mxu0
        %7265 = vdwg.mxu0
        %7266 = vmatprep.subr.bf16.mxu0 0
        %7267 = vmatpush1.bf16.msra.mxu0 %v6832
        %7268 = vmatprep.subr.bf16.mxu0 0
        %7269 = vmatpush1.bf16.msra.mxu0 %v6833
        %7270 = vmatprep.subr.bf16.mxu0 0
        %7271 = vmatpush1.bf16.msra.mxu0 %v6834
        %7272 = vmatprep.subr.bf16.mxu0 0
        %7273 = vmatpush1.bf16.msra.mxu0 %v6835
        %7274 = vmatprep.subr.bf16.mxu0 0
        %7275 = vmatpush1.bf16.msra.mxu0 %v6836
        %7276 = vmatprep.subr.bf16.mxu0 0
        %7277 = vmatpush1.bf16.msra.mxu0 %v6837
        %7278 = vmatprep.subr.bf16.mxu0 0
        %7279 = vmatpush1.bf16.msra.mxu0 %v6838
        %7280 = vmatprep.subr.bf16.mxu0 0
        %7281 = vmatpush1.bf16.msra.mxu0 %v6839
        %7282 = vmatprep.subr.bf16.mxu0 0
        %7283 = vmatpush1.bf16.msra.mxu0 %v6840
        %7284 = vmatprep.subr.bf16.mxu0 0
        %7285 = vmatpush1.bf16.msra.mxu0 %v6841
        %7286 = vmatprep.subr.bf16.mxu0 0
        %7287 = vmatpush1.bf16.msra.mxu0 %v6842
        %7288 = vmatprep.subr.bf16.mxu0 0
        %7289 = vmatpush1.bf16.msra.mxu0 %v6843
        %7290 = vmatprep.subr.bf16.mxu0 0
        %7291 = vmatpush1.bf16.msra.mxu0 %v6844
        %7292 = vmatprep.subr.bf16.mxu0 0
        %7293 = vmatpush1.bf16.msra.mxu0 %v6845
        %7294 = vmatprep.subr.bf16.mxu0 0
        %7295 = vmatpush1.bf16.msra.mxu0 %v6846
        %7296 = vmatprep.subr.bf16.mxu0 0
        %7297 = vmatpush1.bf16.msra.mxu0 %v6847
        %7298 = vmatprep.mubr.bf16.mxu0 %v6228
        %7299 = vmatmul.mubr.bf16.gmra.mrb[0].mxu0 %v6227
        %v7300 = vpop.f32.mrb[0].mxu0
        %v7301 = vadd.f32 %v7140, %v7300
        %v7302 = vpop.f32.mrb[0].mxu0
        %v7303 = vpop.f32.mrb[0].mxu0
        %v7304 = vadd.f32 %v7143, %v7303
        %v7305 = vpop.f32.mrb[0].mxu0
        %7306 = vmatprep.mubr.bf16.mxu0 %v6237
        %7307 = vmatmul.mubr.bf16.gmra.mrb[0].mxu0 %v6236
        %v7308 = vpop.f32.mrb[0].mxu0
        %v7309 = vadd.f32 %v7148, %v7308
        %v7310 = vpop.f32.mrb[0].mxu0
        %v7311 = vpop.f32.mrb[0].mxu0
        %v7312 = vadd.f32 %v7151, %v7311
        %v7313 = vpop.f32.mrb[0].mxu0
        %7314 = vmatprep.mubr.bf16.mxu0 %v6246
        %7315 = vmatmul.mubr.bf16.gmra.mrb[0].mxu0 %v6245
        %v7316 = vpop.f32.mrb[0].mxu0
        %v7317 = vadd.f32 %v7156, %v7316
        %v7318 = vpop.f32.mrb[0].mxu0
        %v7319 = vpop.f32.mrb[0].mxu0
        %v7320 = vadd.f32 %v7159, %v7319
        %v7321 = vpop.f32.mrb[0].mxu0
        %7322 = vmatprep.mubr.bf16.mxu0 %v6255
        %7323 = vmatmul.mubr.bf16.gmra.mrb[0].mxu0 %v6254
        %v7324 = vpop.f32.mrb[0].mxu0
        %v7325 = vadd.f32 %v7164, %v7324
        %v7326 = vpop.f32.mrb[0].mxu0
        %v7327 = vpop.f32.mrb[0].mxu0
        %v7328 = vadd.f32 %v7167, %v7327
        %v7329 = vpop.f32.mrb[0].mxu0
        %7330 = vmatprep.mubr.bf16.mxu0 %v6264
        %7331 = vmatmul.mubr.bf16.gmra.mrb[0].mxu0 %v6263
        %v7332 = vpop.f32.mrb[0].mxu0
        %v7333 = vadd.f32 %v7172, %v7332
        %v7334 = vpop.f32.mrb[0].mxu0
        %v7335 = vpop.f32.mrb[0].mxu0
        %v7336 = vadd.f32 %v7175, %v7335
        %v7337 = vpop.f32.mrb[0].mxu0
        %7338 = vmatprep.mubr.bf16.mxu0 %v6273
        %7339 = vmatmul.mubr.bf16.gmra.mrb[0].mxu0 %v6272
        %v7340 = vpop.f32.mrb[0].mxu0
        %v7341 = vadd.f32 %v7180, %v7340
        %v7342 = vpop.f32.mrb[0].mxu0
        %v7343 = vpop.f32.mrb[0].mxu0
        %v7344 = vadd.f32 %v7183, %v7343
        %v7345 = vpop.f32.mrb[0].mxu0
        %7346 = vmatprep.mubr.bf16.mxu0 %v6282
        %7347 = vmatmul.mubr.bf16.gmra.mrb[0].mxu0 %v6281
        %v7348 = vpop.f32.mrb[0].mxu0
        %v7349 = vadd.f32 %v7188, %v7348
        %v7350 = vpop.f32.mrb[0].mxu0
        %v7351 = vpop.f32.mrb[0].mxu0
        %v7352 = vadd.f32 %v7191, %v7351
        %v7353 = vpop.f32.mrb[0].mxu0
        %7354 = vmatprep.mubr.bf16.mxu0 %v6291
        %7355 = vmatmul.mubr.bf16.gmra.mrb[0].mxu0 %v6290
        %v7356 = vpop.f32.mrb[0].mxu0
        %v7357 = vadd.f32 %v7196, %v7356
        %v7358 = vpop.f32.mrb[0].mxu0
        %v7359 = vpop.f32.mrb[0].mxu0
        %v7360 = vadd.f32 %v7199, %v7359
        %v7361 = vpop.f32.mrb[0].mxu0
        %7362 = vmatprep.mubr.bf16.mxu0 %v6300
        %7363 = vmatmul.mubr.bf16.gmra.mrb[0].mxu0 %v6299
        %v7364 = vpop.f32.mrb[0].mxu0
        %v7365 = vadd.f32 %v7204, %v7364
        %v7366 = vpop.f32.mrb[0].mxu0
        %v7367 = vpop.f32.mrb[0].mxu0
        %v7368 = vadd.f32 %v7207, %v7367
        %v7369 = vpop.f32.mrb[0].mxu0
        %7370 = vmatprep.mubr.bf16.mxu0 %v6309
        %7371 = vmatmul.mubr.bf16.gmra.mrb[0].mxu0 %v6308
        %v7372 = vpop.f32.mrb[0].mxu0
        %v7373 = vadd.f32 %v7212, %v7372
        %v7374 = vpop.f32.mrb[0].mxu0
        %v7375 = vpop.f32.mrb[0].mxu0
        %v7376 = vadd.f32 %v7215, %v7375
        %v7377 = vpop.f32.mrb[0].mxu0
        %7378 = vmatprep.mubr.bf16.mxu0 %v6318
        %7379 = vmatmul.mubr.bf16.gmra.mrb[0].mxu0 %v6317
        %v7380 = vpop.f32.mrb[0].mxu0
        %v7381 = vadd.f32 %v7220, %v7380
        %v7382 = vpop.f32.mrb[0].mxu0
        %v7383 = vpop.f32.mrb[0].mxu0
        %v7384 = vadd.f32 %v7223, %v7383
        %v7385 = vpop.f32.mrb[0].mxu0
        %7386 = vmatprep.mubr.bf16.mxu0 %v6327
        %7387 = vmatmul.mubr.bf16.gmra.mrb[0].mxu0 %v6326
        %v7388 = vpop.f32.mrb[0].mxu0
        %v7389 = vadd.f32 %v7228, %v7388
        %v7390 = vpop.f32.mrb[0].mxu0
        %v7391 = vpop.f32.mrb[0].mxu0
        %v7392 = vadd.f32 %v7231, %v7391
        %v7393 = vpop.f32.mrb[0].mxu0
        %7394 = vmatprep.mubr.bf16.mxu0 %v6336
        %7395 = vmatmul.mubr.bf16.gmra.mrb[0].mxu0 %v6335
        %v7396 = vpop.f32.mrb[0].mxu0
        %v7397 = vadd.f32 %v7236, %v7396
        %v7398 = vpop.f32.mrb[0].mxu0
        %v7399 = vpop.f32.mrb[0].mxu0
        %v7400 = vadd.f32 %v7239, %v7399
        %v7401 = vpop.f32.mrb[0].mxu0
        %7402 = vmatprep.mubr.bf16.mxu0 %v6345
        %7403 = vmatmul.mubr.bf16.gmra.mrb[0].mxu0 %v6344
        %v7404 = vpop.f32.mrb[0].mxu0
        %v7405 = vadd.f32 %v7244, %v7404
        %v7406 = vpop.f32.mrb[0].mxu0
        %v7407 = vpop.f32.mrb[0].mxu0
        %v7408 = vadd.f32 %v7247, %v7407
        %v7409 = vpop.f32.mrb[0].mxu0
        %7410 = vmatprep.mubr.bf16.mxu0 %v6354
        %7411 = vmatmul.mubr.bf16.gmra.mrb[0].mxu0 %v6353
        %v7412 = vpop.f32.mrb[0].mxu0
        %v7413 = vadd.f32 %v7252, %v7412
        %v7414 = vpop.f32.mrb[0].mxu0
        %v7415 = vpop.f32.mrb[0].mxu0
        %v7416 = vadd.f32 %v7255, %v7415
        %v7417 = vpop.f32.mrb[0].mxu0
        %7418 = vmatprep.mubr.bf16.mxu0 %v6363
        %7419 = vmatmul.mubr.bf16.gmra.mrb[0].mxu0 %v6362
        %v7420 = vpop.f32.mrb[0].mxu0
        %v7421 = vadd.f32 %v7260, %v7420
        %v7422 = vpop.f32.mrb[0].mxu0
        %v7423 = vpop.f32.mrb[0].mxu0
        %v7424 = vadd.f32 %v7263, %v7423
        %v7425 = vpop.f32.mrb[0].mxu0
        %7426 = vdwg.mxu0
        %7427 = vmatprep.subr.bf16.mxu0 0
        %7428 = vmatpush1.bf16.msra.mxu0 %v6848
        %7429 = vmatprep.subr.bf16.mxu0 0
        %7430 = vmatpush1.bf16.msra.mxu0 %v6849
        %7431 = vmatprep.subr.bf16.mxu0 0
        %7432 = vmatpush1.bf16.msra.mxu0 %v6850
        %7433 = vmatprep.subr.bf16.mxu0 0
        %7434 = vmatpush1.bf16.msra.mxu0 %v6851
        %7435 = vmatprep.subr.bf16.mxu0 0
        %7436 = vmatpush1.bf16.msra.mxu0 %v6852
        %7437 = vmatprep.subr.bf16.mxu0 0
        %7438 = vmatpush1.bf16.msra.mxu0 %v6853
        %7439 = vmatprep.subr.bf16.mxu0 0
        %7440 = vmatpush1.bf16.msra.mxu0 %v6854
        %7441 = vmatprep.subr.bf16.mxu0 0
        %7442 = vmatpush1.bf16.msra.mxu0 %v6855
        %7443 = vmatprep.subr.bf16.mxu0 0
        %7444 = vmatpush1.bf16.msra.mxu0 %v6856
        %7445 = vmatprep.subr.bf16.mxu0 0
        %7446 = vmatpush1.bf16.msra.mxu0 %v6857
        %7447 = vmatprep.subr.bf16.mxu0 0
        %7448 = vmatpush1.bf16.msra.mxu0 %v6858
        %7449 = vmatprep.subr.bf16.mxu0 0
        %7450 = vmatpush1.bf16.msra.mxu0 %v6859
        %7451 = vmatprep.subr.bf16.mxu0 0
        %7452 = vmatpush1.bf16.msra.mxu0 %v6860
        %7453 = vmatprep.subr.bf16.mxu0 0
        %7454 = vmatpush1.bf16.msra.mxu0 %v6861
        %7455 = vmatprep.subr.bf16.mxu0 0
        %7456 = vmatpush1.bf16.msra.mxu0 %v6862
        %7457 = vmatprep.subr.bf16.mxu0 0
        %7458 = vmatpush1.bf16.msra.mxu0 %v6863
        %7459 = vmatprep.mubr.bf16.mxu0 %v6230
        %7460 = vmatmul.mubr.bf16.gmra.mrb[0].mxu0 %v6229
        %v7461 = vpop.f32.mrb[0].mxu0
        %v7462 = vadd.f32 %v7301, %v7461
        %v7463 = vpop.f32.mrb[0].mxu0
        %v7464 = vpop.f32.mrb[0].mxu0
        %v7465 = vadd.f32 %v7304, %v7464
        %v7466 = vpop.f32.mrb[0].mxu0
        %7467 = vmatprep.mubr.bf16.mxu0 %v6239
        %7468 = vmatmul.mubr.bf16.gmra.mrb[0].mxu0 %v6238
        %v7469 = vpop.f32.mrb[0].mxu0
        %v7470 = vadd.f32 %v7309, %v7469
        %v7471 = vpop.f32.mrb[0].mxu0
        %v7472 = vpop.f32.mrb[0].mxu0
        %v7473 = vadd.f32 %v7312, %v7472
        %v7474 = vpop.f32.mrb[0].mxu0
        %7475 = vmatprep.mubr.bf16.mxu0 %v6248
        %7476 = vmatmul.mubr.bf16.gmra.mrb[0].mxu0 %v6247
        %v7477 = vpop.f32.mrb[0].mxu0
        %v7478 = vadd.f32 %v7317, %v7477
        %v7479 = vpop.f32.mrb[0].mxu0
        %v7480 = vpop.f32.mrb[0].mxu0
        %v7481 = vadd.f32 %v7320, %v7480
        %v7482 = vpop.f32.mrb[0].mxu0
        %7483 = vmatprep.mubr.bf16.mxu0 %v6257
        %7484 = vmatmul.mubr.bf16.gmra.mrb[0].mxu0 %v6256
        %v7485 = vpop.f32.mrb[0].mxu0
        %v7486 = vadd.f32 %v7325, %v7485
        %v7487 = vpop.f32.mrb[0].mxu0
        %v7488 = vpop.f32.mrb[0].mxu0
        %v7489 = vadd.f32 %v7328, %v7488
        %v7490 = vpop.f32.mrb[0].mxu0
        %7491 = vmatprep.mubr.bf16.mxu0 %v6266
        %7492 = vmatmul.mubr.bf16.gmra.mrb[0].mxu0 %v6265
        %v7493 = vpop.f32.mrb[0].mxu0
        %v7494 = vadd.f32 %v7333, %v7493
        %v7495 = vpop.f32.mrb[0].mxu0
        %v7496 = vpop.f32.mrb[0].mxu0
        %v7497 = vadd.f32 %v7336, %v7496
        %v7498 = vpop.f32.mrb[0].mxu0
        %7499 = vmatprep.mubr.bf16.mxu0 %v6275
        %7500 = vmatmul.mubr.bf16.gmra.mrb[0].mxu0 %v6274
        %v7501 = vpop.f32.mrb[0].mxu0
        %v7502 = vadd.f32 %v7341, %v7501
        %v7503 = vpop.f32.mrb[0].mxu0
        %v7504 = vpop.f32.mrb[0].mxu0
        %v7505 = vadd.f32 %v7344, %v7504
        %v7506 = vpop.f32.mrb[0].mxu0
        %7507 = vmatprep.mubr.bf16.mxu0 %v6284
        %7508 = vmatmul.mubr.bf16.gmra.mrb[0].mxu0 %v6283
        %v7509 = vpop.f32.mrb[0].mxu0
        %v7510 = vadd.f32 %v7349, %v7509
        %v7511 = vpop.f32.mrb[0].mxu0
        %v7512 = vpop.f32.mrb[0].mxu0
        %v7513 = vadd.f32 %v7352, %v7512
        %v7514 = vpop.f32.mrb[0].mxu0
        %7515 = vmatprep.mubr.bf16.mxu0 %v6293
        %7516 = vmatmul.mubr.bf16.gmra.mrb[0].mxu0 %v6292
        %v7517 = vpop.f32.mrb[0].mxu0
        %v7518 = vadd.f32 %v7357, %v7517
        %v7519 = vpop.f32.mrb[0].mxu0
        %v7520 = vpop.f32.mrb[0].mxu0
        %v7521 = vadd.f32 %v7360, %v7520
        %v7522 = vpop.f32.mrb[0].mxu0
        %7523 = vmatprep.mubr.bf16.mxu0 %v6302
        %7524 = vmatmul.mubr.bf16.gmra.mrb[0].mxu0 %v6301
        %v7525 = vpop.f32.mrb[0].mxu0
        %v7526 = vadd.f32 %v7365, %v7525
        %v7527 = vpop.f32.mrb[0].mxu0
        %v7528 = vpop.f32.mrb[0].mxu0
        %v7529 = vadd.f32 %v7368, %v7528
        %v7530 = vpop.f32.mrb[0].mxu0
        %7531 = vmatprep.mubr.bf16.mxu0 %v6311
        %7532 = vmatmul.mubr.bf16.gmra.mrb[0].mxu0 %v6310
        %v7533 = vpop.f32.mrb[0].mxu0
        %v7534 = vadd.f32 %v7373, %v7533
        %v7535 = vpop.f32.mrb[0].mxu0
        %v7536 = vpop.f32.mrb[0].mxu0
        %v7537 = vadd.f32 %v7376, %v7536
        %v7538 = vpop.f32.mrb[0].mxu0
        %7539 = vmatprep.mubr.bf16.mxu0 %v6320
        %7540 = vmatmul.mubr.bf16.gmra.mrb[0].mxu0 %v6319
        %v7541 = vpop.f32.mrb[0].mxu0
        %v7542 = vadd.f32 %v7381, %v7541
        %v7543 = vpop.f32.mrb[0].mxu0
        %v7544 = vpop.f32.mrb[0].mxu0
        %v7545 = vadd.f32 %v7384, %v7544
        %v7546 = vpop.f32.mrb[0].mxu0
        %7547 = vmatprep.mubr.bf16.mxu0 %v6329
        %7548 = vmatmul.mubr.bf16.gmra.mrb[0].mxu0 %v6328
        %v7549 = vpop.f32.mrb[0].mxu0
        %v7550 = vadd.f32 %v7389, %v7549
        %v7551 = vpop.f32.mrb[0].mxu0
        %v7552 = vpop.f32.mrb[0].mxu0
        %v7553 = vadd.f32 %v7392, %v7552
        %v7554 = vpop.f32.mrb[0].mxu0
        %7555 = vmatprep.mubr.bf16.mxu0 %v6338
        %7556 = vmatmul.mubr.bf16.gmra.mrb[0].mxu0 %v6337
        %v7557 = vpop.f32.mrb[0].mxu0
        %v7558 = vadd.f32 %v7397, %v7557
        %v7559 = vpop.f32.mrb[0].mxu0
        %v7560 = vpop.f32.mrb[0].mxu0
        %v7561 = vadd.f32 %v7400, %v7560
        %v7562 = vpop.f32.mrb[0].mxu0
        %7563 = vmatprep.mubr.bf16.mxu0 %v6347
        %7564 = vmatmul.mubr.bf16.gmra.mrb[0].mxu0 %v6346
        %v7565 = vpop.f32.mrb[0].mxu0
        %v7566 = vadd.f32 %v7405, %v7565
        %v7567 = vpop.f32.mrb[0].mxu0
        %v7568 = vpop.f32.mrb[0].mxu0
        %v7569 = vadd.f32 %v7408, %v7568
        %v7570 = vpop.f32.mrb[0].mxu0
        %7571 = vmatprep.mubr.bf16.mxu0 %v6356
        %7572 = vmatmul.mubr.bf16.gmra.mrb[0].mxu0 %v6355
        %v7573 = vpop.f32.mrb[0].mxu0
        %v7574 = vadd.f32 %v7413, %v7573
        %v7575 = vpop.f32.mrb[0].mxu0
        %v7576 = vpop.f32.mrb[0].mxu0
        %v7577 = vadd.f32 %v7416, %v7576
        %v7578 = vpop.f32.mrb[0].mxu0
        %7579 = vmatprep.mubr.bf16.mxu0 %v6365
        %7580 = vmatmul.mubr.bf16.gmra.mrb[0].mxu0 %v6364
        %v7581 = vpop.f32.mrb[0].mxu0
        %v7582 = vadd.f32 %v7421, %v7581
        %v7583 = vpop.f32.mrb[0].mxu0
        %v7584 = vpop.f32.mrb[0].mxu0
        %v7585 = vadd.f32 %v7424, %v7584
        %v7586 = vpop.f32.mrb[0].mxu0
        %7587 = vdwg.mxu0
        %7588 = vmatprep.subr.bf16.mxu0 0
        %7589 = vmatpush1.bf16.msra.mxu0 %v6864
        %7590 = vmatprep.subr.bf16.mxu0 0
        %7591 = vmatpush1.bf16.msra.mxu0 %v6865
        %7592 = vmatprep.subr.bf16.mxu0 0
        %7593 = vmatpush1.bf16.msra.mxu0 %v6866
        %7594 = vmatprep.subr.bf16.mxu0 0
        %7595 = vmatpush1.bf16.msra.mxu0 %v6867
        %7596 = vmatprep.subr.bf16.mxu0 0
        %7597 = vmatpush1.bf16.msra.mxu0 %v6868
        %7598 = vmatprep.subr.bf16.mxu0 0
        %7599 = vmatpush1.bf16.msra.mxu0 %v6869
        %7600 = vmatprep.subr.bf16.mxu0 0
        %7601 = vmatpush1.bf16.msra.mxu0 %v6870
        %7602 = vmatprep.subr.bf16.mxu0 0
        %7603 = vmatpush1.bf16.msra.mxu0 %v6871
        %7604 = vmatprep.subr.bf16.mxu0 0
        %7605 = vmatpush1.bf16.msra.mxu0 0
        %7606 = vmatprep.subr.bf16.mxu0 0
        %7607 = vmatpush1.bf16.msra.mxu0 0
        %7608 = vmatprep.subr.bf16.mxu0 0
        %7609 = vmatpush1.bf16.msra.mxu0 0
        %7610 = vmatprep.subr.bf16.mxu0 0
        %7611 = vmatpush1.bf16.msra.mxu0 0
        %7612 = vmatprep.subr.bf16.mxu0 0
        %7613 = vmatpush1.bf16.msra.mxu0 0
        %7614 = vmatprep.subr.bf16.mxu0 0
        %7615 = vmatpush1.bf16.msra.mxu0 0
        %7616 = vmatprep.subr.bf16.mxu0 0
        %7617 = vmatpush1.bf16.msra.mxu0 0
        %7618 = vmatprep.subr.bf16.mxu0 0
        %7619 = vmatpush1.bf16.msra.mxu0 0
        %7620 = vmatprep.mubr.bf16.mxu0 0
        %7621 = vmatmul.mubr.bf16.gmra.mrb[0].mxu0 %v6231
        %v7622 = vpop.f32.mrb[0].mxu0
        %v7623 = vadd.f32 %v7462, %v7622
        %v7624 = vpop.f32.mrb[0].mxu0
        %v7625 = vpop.f32.mrb[0].mxu0
        %v7626 = vadd.f32 %v7465, %v7625
        %v7627 = vpop.f32.mrb[0].mxu0
        %7628 = vmatprep.mubr.bf16.mxu0 0
        %7629 = vmatmul.mubr.bf16.gmra.mrb[0].mxu0 %v6240
        %v7630 = vpop.f32.mrb[0].mxu0
        %v7631 = vadd.f32 %v7470, %v7630
        %v7632 = vpop.f32.mrb[0].mxu0
        %v7633 = vpop.f32.mrb[0].mxu0
        %v7634 = vadd.f32 %v7473, %v7633
        %v7635 = vpop.f32.mrb[0].mxu0
        %7636 = vmatprep.mubr.bf16.mxu0 0
        %7637 = vmatmul.mubr.bf16.gmra.mrb[0].mxu0 %v6249
        %v7638 = vpop.f32.mrb[0].mxu0
        %v7639 = vadd.f32 %v7478, %v7638
        %v7640 = vpop.f32.mrb[0].mxu0
        %v7641 = vpop.f32.mrb[0].mxu0
        %v7642 = vadd.f32 %v7481, %v7641
        %v7643 = vpop.f32.mrb[0].mxu0
        %7644 = vmatprep.mubr.bf16.mxu0 0
        %7645 = vmatmul.mubr.bf16.gmra.mrb[0].mxu0 %v6258
        %v7646 = vpop.f32.mrb[0].mxu0
        %v7647 = vadd.f32 %v7486, %v7646
        %v7648 = vpop.f32.mrb[0].mxu0
        %v7649 = vpop.f32.mrb[0].mxu0
        %v7650 = vadd.f32 %v7489, %v7649
        %v7651 = vpop.f32.mrb[0].mxu0
        %7652 = vmatprep.mubr.bf16.mxu0 0
        %7653 = vmatmul.mubr.bf16.gmra.mrb[0].mxu0 %v6267
        %v7654 = vpop.f32.mrb[0].mxu0
        %v7655 = vadd.f32 %v7494, %v7654
        %v7656 = vpop.f32.mrb[0].mxu0
        %v7657 = vpop.f32.mrb[0].mxu0
        %v7658 = vadd.f32 %v7497, %v7657
        %v7659 = vpop.f32.mrb[0].mxu0
        %7660 = vmatprep.mubr.bf16.mxu0 0
        %7661 = vmatmul.mubr.bf16.gmra.mrb[0].mxu0 %v6276
        %v7662 = vpop.f32.mrb[0].mxu0
        %v7663 = vadd.f32 %v7502, %v7662
        %v7664 = vpop.f32.mrb[0].mxu0
        %v7665 = vpop.f32.mrb[0].mxu0
        %v7666 = vadd.f32 %v7505, %v7665
        %v7667 = vpop.f32.mrb[0].mxu0
        %7668 = vmatprep.mubr.bf16.mxu0 0
        %7669 = vmatmul.mubr.bf16.gmra.mrb[0].mxu0 %v6285
        %v7670 = vpop.f32.mrb[0].mxu0
        %v7671 = vadd.f32 %v7510, %v7670
        %v7672 = vpop.f32.mrb[0].mxu0
        %v7673 = vpop.f32.mrb[0].mxu0
        %v7674 = vadd.f32 %v7513, %v7673
        %v7675 = vpop.f32.mrb[0].mxu0
        %7676 = vmatprep.mubr.bf16.mxu0 0
        %7677 = vmatmul.mubr.bf16.gmra.mrb[0].mxu0 %v6294
        %v7678 = vpop.f32.mrb[0].mxu0
        %v7679 = vadd.f32 %v7518, %v7678
        %v7680 = vpop.f32.mrb[0].mxu0
        %v7681 = vpop.f32.mrb[0].mxu0
        %v7682 = vadd.f32 %v7521, %v7681
        %v7683 = vpop.f32.mrb[0].mxu0
        %7684 = vmatprep.mubr.bf16.mxu0 0
        %7685 = vmatmul.mubr.bf16.gmra.mrb[0].mxu0 %v6303
        %v7686 = vpop.f32.mrb[0].mxu0
        %v7687 = vadd.f32 %v7526, %v7686
        %v7688 = vpop.f32.mrb[0].mxu0
        %v7689 = vpop.f32.mrb[0].mxu0
        %v7690 = vadd.f32 %v7529, %v7689
        %v7691 = vpop.f32.mrb[0].mxu0
        %7692 = vmatprep.mubr.bf16.mxu0 0
        %7693 = vmatmul.mubr.bf16.gmra.mrb[0].mxu0 %v6312
        %v7694 = vpop.f32.mrb[0].mxu0
        %v7695 = vadd.f32 %v7534, %v7694
        %v7696 = vpop.f32.mrb[0].mxu0
        %v7697 = vpop.f32.mrb[0].mxu0
        %v7698 = vadd.f32 %v7537, %v7697
        %v7699 = vpop.f32.mrb[0].mxu0
        %7700 = vmatprep.mubr.bf16.mxu0 0
        %7701 = vmatmul.mubr.bf16.gmra.mrb[0].mxu0 %v6321
        %v7702 = vpop.f32.mrb[0].mxu0
        %v7703 = vadd.f32 %v7542, %v7702
        %v7704 = vpop.f32.mrb[0].mxu0
        %v7705 = vpop.f32.mrb[0].mxu0
        %v7706 = vadd.f32 %v7545, %v7705
        %v7707 = vpop.f32.mrb[0].mxu0
        %7708 = vmatprep.mubr.bf16.mxu0 0
        %7709 = vmatmul.mubr.bf16.gmra.mrb[0].mxu0 %v6330
        %v7710 = vpop.f32.mrb[0].mxu0
        %v7711 = vadd.f32 %v7550, %v7710
        %v7712 = vpop.f32.mrb[0].mxu0
        %v7713 = vpop.f32.mrb[0].mxu0
        %v7714 = vadd.f32 %v7553, %v7713
        %v7715 = vpop.f32.mrb[0].mxu0
        %7716 = vmatprep.mubr.bf16.mxu0 0
        %7717 = vmatmul.mubr.bf16.gmra.mrb[0].mxu0 %v6339
        %v7718 = vpop.f32.mrb[0].mxu0
        %v7719 = vadd.f32 %v7558, %v7718
        %v7720 = vpop.f32.mrb[0].mxu0
        %v7721 = vpop.f32.mrb[0].mxu0
        %v7722 = vadd.f32 %v7561, %v7721
        %v7723 = vpop.f32.mrb[0].mxu0
        %7724 = vmatprep.mubr.bf16.mxu0 0
        %7725 = vmatmul.mubr.bf16.gmra.mrb[0].mxu0 %v6348
        %v7726 = vpop.f32.mrb[0].mxu0
        %v7727 = vadd.f32 %v7566, %v7726
        %v7728 = vpop.f32.mrb[0].mxu0
        %v7729 = vpop.f32.mrb[0].mxu0
        %v7730 = vadd.f32 %v7569, %v7729
        %v7731 = vpop.f32.mrb[0].mxu0
        %7732 = vmatprep.mubr.bf16.mxu0 0
        %7733 = vmatmul.mubr.bf16.gmra.mrb[0].mxu0 %v6357
        %v7734 = vpop.f32.mrb[0].mxu0
        %v7735 = vadd.f32 %v7574, %v7734
        %v7736 = vpop.f32.mrb[0].mxu0
        %v7737 = vpop.f32.mrb[0].mxu0
        %v7738 = vadd.f32 %v7577, %v7737
        %v7739 = vpop.f32.mrb[0].mxu0
        %7740 = vmatprep.mubr.bf16.mxu0 0
        %7741 = vmatmul.mubr.bf16.gmra.mrb[0].mxu0 %v6366
        %v7742 = vpop.f32.mrb[0].mxu0
        %v7743 = vadd.f32 %v7582, %v7742
        %v7744 = vpop.f32.mrb[0].mxu0
        %v7745 = vpop.f32.mrb[0].mxu0
        %v7746 = vadd.f32 %v7585, %v7745
        %v7747 = vpop.f32.mrb[0].mxu0
        %7748 = vdwg.mxu0
        %s7749 = scalar_lea.vmem %s2, 2
        %v7750 = vld [vmem:[%s7749] sm:$0x1]
        %v7752 = vlaneseq
        %v7753 = vshrl.u32 %v7752, 7
        %v7754 = vsub.s32 0, %v7753
        %v7755 = vrot.slane %v7750, %v7754
        %v7757 = vmul.f32 %v7623, %v7755
        %v7758 = vmul.f32 %v7626, %v7755
        %v7759 = vmul.f32 %v7631, %v7755
        %v7760 = vmul.f32 %v7634, %v7755
        %v7761 = vmul.f32 %v7639, %v7755
        %v7762 = vmul.f32 %v7642, %v7755
        %v7763 = vmul.f32 %v7647, %v7755
        %v7764 = vmul.f32 %v7650, %v7755
        %v7765 = vmul.f32 %v7655, %v7755
        %v7766 = vmul.f32 %v7658, %v7755
        %v7767 = vmul.f32 %v7663, %v7755
        %v7768 = vmul.f32 %v7666, %v7755
        %v7769 = vmul.f32 %v7671, %v7755
        %v7770 = vmul.f32 %v7674, %v7755
        %v7771 = vmul.f32 %v7679, %v7755
        %v7772 = vmul.f32 %v7682, %v7755
        %v7773 = vmul.f32 %v7687, %v7755
        %v7774 = vmul.f32 %v7690, %v7755
        %v7775 = vmul.f32 %v7695, %v7755
        %v7776 = vmul.f32 %v7698, %v7755
        %v7777 = vmul.f32 %v7703, %v7755
        %v7778 = vmul.f32 %v7706, %v7755
        %v7779 = vmul.f32 %v7711, %v7755
        %v7780 = vmul.f32 %v7714, %v7755
        %v7781 = vmul.f32 %v7719, %v7755
        %v7782 = vmul.f32 %v7722, %v7755
        %v7783 = vmul.f32 %v7727, %v7755
        %v7784 = vmul.f32 %v7730, %v7755
        %v7785 = vmul.f32 %v7735, %v7755
        %v7786 = vmul.f32 %v7738, %v7755
        %v7787 = vmul.f32 %v7743, %v7755
        %v7788 = vmul.f32 %v7746, %v7755
        %s7789 = scalar_lea.vmem %s3, 2
        %v7790 = vld [vmem:[%s7789] sm:$0x1]
        %v7792 = vlaneseq
        %v7793 = vshrl.u32 %v7792, 7
        %v7794 = vsub.s32 0, %v7793
        %v7795 = vrot.slane %v7790, %v7794
        %v7797 = vadd.f32 %v7757, %v7795
        %v7798 = vadd.f32 %v7758, %v7795
        %v7799 = vadd.f32 %v7759, %v7795
        %v7800 = vadd.f32 %v7760, %v7795
        %v7801 = vadd.f32 %v7761, %v7795
        %v7802 = vadd.f32 %v7762, %v7795
        %v7803 = vadd.f32 %v7763, %v7795
        %v7804 = vadd.f32 %v7764, %v7795
        %v7805 = vadd.f32 %v7765, %v7795
        %v7806 = vadd.f32 %v7766, %v7795
        %v7807 = vadd.f32 %v7767, %v7795
        %v7808 = vadd.f32 %v7768, %v7795
        %v7809 = vadd.f32 %v7769, %v7795
        %v7810 = vadd.f32 %v7770, %v7795
        %v7811 = vadd.f32 %v7771, %v7795
        %v7812 = vadd.f32 %v7772, %v7795
        %v7813 = vadd.f32 %v7773, %v7795
        %v7814 = vadd.f32 %v7774, %v7795
        %v7815 = vadd.f32 %v7775, %v7795
        %v7816 = vadd.f32 %v7776, %v7795
        %v7817 = vadd.f32 %v7777, %v7795
        %v7818 = vadd.f32 %v7778, %v7795
        %v7819 = vadd.f32 %v7779, %v7795
        %v7820 = vadd.f32 %v7780, %v7795
        %v7821 = vadd.f32 %v7781, %v7795
        %v7822 = vadd.f32 %v7782, %v7795
        %v7823 = vadd.f32 %v7783, %v7795
        %v7824 = vadd.f32 %v7784, %v7795
        %v7825 = vadd.f32 %v7785, %v7795
        %v7826 = vadd.f32 %v7786, %v7795
        %v7827 = vadd.f32 %v7787, %v7795
        %v7828 = vadd.f32 %v7788, %v7795
        %v7829 = vadd.f32 %v7797, %v7798
        %v7830 = vadd.f32 %v7829, %v7799
        %v7831 = vadd.f32 %v7830, %v7800
        %v7832 = vadd.f32 %v7831, %v7801
        %v7833 = vadd.f32 %v7832, %v7802
        %v7834 = vadd.f32 %v7833, %v7803
        %v7835 = vadd.f32 %v7834, %v7804
        %v7836 = vadd.f32 %v7835, %v7805
        %v7837 = vadd.f32 %v7836, %v7806
        %v7838 = vadd.f32 %v7837, %v7807
        %v7839 = vadd.f32 %v7838, %v7808
        %v7840 = vadd.f32 %v7839, %v7809
        %v7841 = vadd.f32 %v7840, %v7810
        %v7842 = vadd.f32 %v7841, %v7811
        %v7843 = vadd.f32 %v7842, %v7812
        %v7844 = vadd.f32 %v7843, %v7813
        %v7845 = vadd.f32 %v7844, %v7814
        %v7846 = vadd.f32 %v7845, %v7815
        %v7847 = vadd.f32 %v7846, %v7816
        %v7848 = vadd.f32 %v7847, %v7817
        %v7849 = vadd.f32 %v7848, %v7818
        %v7850 = vadd.f32 %v7849, %v7819
        %v7851 = vadd.f32 %v7850, %v7820
        %v7852 = vadd.f32 %v7851, %v7821
        %v7853 = vadd.f32 %v7852, %v7822
        %v7854 = vadd.f32 %v7853, %v7823
        %v7855 = vadd.f32 %v7854, %v7824
        %v7856 = vadd.f32 %v7855, %v7825
        %v7857 = vadd.f32 %v7856, %v7826
        %v7858 = vadd.f32 %v7857, %v7827
        %v7859 = vadd.f32 %v7858, %v7828
        %v7860 = vrot.slane %v7859, 4
        %v7861 = vadd.f32 %v7859, %v7860
        %v7862 = vrot.slane %v7861, 2
        %v7863 = vadd.f32 %v7861, %v7862
        %v7864 = vrot.slane %v7863, 1
        %v7865 = vadd.f32 %v7863, %v7864
        %v7866 = vmul.f32 %v7865, %v2628
        %s7867 = scalar_lea.vmem %s4, 256
        %v7868 = vld [vmem:[%s7867] sm:$0xff]
        %v7869 = vld [vmem:[%s7867 + $0x8] sm:$0xff]
        %v7870 = vld [vmem:[%s7867 + $0x10] sm:$0xff]
        %v7871 = vld [vmem:[%s7867 + $0x18] sm:$0xff]
        %v7872 = vld [vmem:[%s7867 + $0x20] sm:$0xff]
        %v7873 = vld [vmem:[%s7867 + $0x28] sm:$0xff]
        %v7874 = vld [vmem:[%s7867 + $0x30] sm:$0xff]
        %v7875 = vld [vmem:[%s7867 + $0x38] sm:$0xff]
        %v7876 = vld [vmem:[%s7867 + $0x40] sm:$0xff]
        %v7877 = vld [vmem:[%s7867 + $0x48] sm:$0xff]
        %v7878 = vld [vmem:[%s7867 + $0x50] sm:$0xff]
        %v7879 = vld [vmem:[%s7867 + $0x58] sm:$0xff]
        %v7880 = vld [vmem:[%s7867 + $0x60] sm:$0xff]
        %v7881 = vld [vmem:[%s7867 + $0x68] sm:$0xff]
        %v7882 = vld [vmem:[%s7867 + $0x70] sm:$0xff]
        %v7883 = vld [vmem:[%s7867 + $0x78] sm:$0xff]
        %7884 = vmatprep.subr.mxu0 0.0
        %7885 = vmatpush1.msra.mxu0 %v7868
        %7886 = vmatprep.subr.mxu0 0.0
        %7887 = vmatpush1.msra.mxu0 %v7869
        %7888 = vmatprep.subr.mxu0 0.0
        %7889 = vmatpush1.msra.mxu0 %v7870
        %7890 = vmatprep.subr.mxu0 0.0
        %7891 = vmatpush1.msra.mxu0 %v7871
        %7892 = vmatprep.subr.mxu0 0.0
        %7893 = vmatpush1.msra.mxu0 %v7872
        %7894 = vmatprep.subr.mxu0 0.0
        %7895 = vmatpush1.msra.mxu0 %v7873
        %7896 = vmatprep.subr.mxu0 0.0
        %7897 = vmatpush1.msra.mxu0 %v7874
        %7898 = vmatprep.subr.mxu0 0.0
        %7899 = vmatpush1.msra.mxu0 %v7875
        %7900 = vmatprep.subr.mxu0 0.0
        %7901 = vmatpush1.msra.mxu0 %v7876
        %7902 = vmatprep.subr.mxu0 0.0
        %7903 = vmatpush1.msra.mxu0 %v7877
        %7904 = vmatprep.subr.mxu0 0.0
        %7905 = vmatpush1.msra.mxu0 %v7878
        %7906 = vmatprep.subr.mxu0 0.0
        %7907 = vmatpush1.msra.mxu0 %v7879
        %7908 = vmatprep.subr.mxu0 0.0
        %7909 = vmatpush1.msra.mxu0 %v7880
        %7910 = vmatprep.subr.mxu0 0.0
        %7911 = vmatpush1.msra.mxu0 %v7881
        %7912 = vmatprep.subr.mxu0 0.0
        %7913 = vmatpush1.msra.mxu0 %v7882
        %7914 = vmatprep.subr.mxu0 0.0
        %7915 = vmatpush1.msra.mxu0 %v7883
        %7916 = vmatprep.subr.mxu0 0.0
        %7917 = vmatpush1.msra.mxu0 0.0
        %7918 = vmatprep.subr.mxu0 0.0
        %7919 = vmatpush1.msra.mxu0 0.0
        %7920 = vmatprep.subr.mxu0 0.0
        %7921 = vmatpush1.msra.mxu0 0.0
        %7922 = vmatprep.subr.mxu0 0.0
        %7923 = vmatpush1.msra.mxu0 0.0
        %7924 = vmatprep.subr.mxu0 0.0
        %7925 = vmatpush1.msra.mxu0 0.0
        %7926 = vmatprep.subr.mxu0 0.0
        %7927 = vmatpush1.msra.mxu0 0.0
        %7928 = vmatprep.subr.mxu0 0.0
        %7929 = vmatpush1.msra.mxu0 0.0
        %7930 = vmatprep.subr.mxu0 0.0
        %7931 = vmatpush1.msra.mxu0 0.0
        %7932 = vmatprep.subr.mxu0 0.0
        %7933 = vmatpush1.msra.mxu0 0.0
        %7934 = vmatprep.subr.mxu0 0.0
        %7935 = vmatpush1.msra.mxu0 0.0
        %7936 = vmatprep.subr.mxu0 0.0
        %7937 = vmatpush1.msra.mxu0 0.0
        %7938 = vmatprep.subr.mxu0 0.0
        %7939 = vmatpush1.msra.mxu0 0.0
        %7940 = vmatprep.subr.mxu0 0.0
        %7941 = vmatpush1.msra.mxu0 0.0
        %7942 = vmatprep.subr.mxu0 0.0
        %7943 = vmatpush1.msra.mxu0 0.0
        %7944 = vmatprep.subr.mxu0 0.0
        %7945 = vmatpush1.msra.mxu0 0.0
        %7946 = vmatprep.subr.mxu0 0.0
        %7947 = vmatpush1.msra.mxu0 0.0
        %7948 = vmatprep.mubr.f32.mxu0 0.0
        %7949 = vmatmul.mubr.f32.gmra.mrb[0].mxu0 %v7866
        %v7950 = vpop.f32.mrb[0].mxu0
        %v7951 = vadd.f32 0.0, %v7950
        %v7952 = vpop.f32.mrb[0].mxu0
        %7953 = vdwg.mxu0
        %v7954 = vmax.f32 %v7951, 0.0
        %s7955 = scalar_lea.vmem %s5, 16
        %v7956 = vld [vmem:[%s7955] sm:$0xff]
        %v7958 = vsel %vm2718, %v7954, 0
        %7960 = vmatprep.subr.mxu0 0.0
        %7961 = vmatpush1.msra.mxu0 %v7956
        %7962 = vmatprep.subr.mxu0 0.0
        %7963 = vmatpush1.msra.mxu0 0.0
        %7964 = vmatprep.subr.mxu0 0.0
        %7965 = vmatpush1.msra.mxu0 0.0
        %7966 = vmatprep.subr.mxu0 0.0
        %7967 = vmatpush1.msra.mxu0 0.0
        %7968 = vmatprep.subr.mxu0 0.0
        %7969 = vmatpush1.msra.mxu0 0.0
        %7970 = vmatprep.subr.mxu0 0.0
        %7971 = vmatpush1.msra.mxu0 0.0
        %7972 = vmatprep.subr.mxu0 0.0
        %7973 = vmatpush1.msra.mxu0 0.0
        %7974 = vmatprep.subr.mxu0 0.0
        %7975 = vmatpush1.msra.mxu0 0.0
        %7976 = vmatprep.subr.mxu0 0.0
        %7977 = vmatpush1.msra.mxu0 0.0
        %7978 = vmatprep.subr.mxu0 0.0
        %7979 = vmatpush1.msra.mxu0 0.0
        %7980 = vmatprep.subr.mxu0 0.0
        %7981 = vmatpush1.msra.mxu0 0.0
        %7982 = vmatprep.subr.mxu0 0.0
        %7983 = vmatpush1.msra.mxu0 0.0
        %7984 = vmatprep.subr.mxu0 0.0
        %7985 = vmatpush1.msra.mxu0 0.0
        %7986 = vmatprep.subr.mxu0 0.0
        %7987 = vmatpush1.msra.mxu0 0.0
        %7988 = vmatprep.subr.mxu0 0.0
        %7989 = vmatpush1.msra.mxu0 0.0
        %7990 = vmatprep.subr.mxu0 0.0
        %7991 = vmatpush1.msra.mxu0 0.0
        %7992 = vmatprep.subr.mxu0 0.0
        %7993 = vmatpush1.msra.mxu0 0.0
        %7994 = vmatprep.subr.mxu0 0.0
        %7995 = vmatpush1.msra.mxu0 0.0
        %7996 = vmatprep.subr.mxu0 0.0
        %7997 = vmatpush1.msra.mxu0 0.0
        %7998 = vmatprep.subr.mxu0 0.0
        %7999 = vmatpush1.msra.mxu0 0.0
        %8000 = vmatprep.subr.mxu0 0.0
        %8001 = vmatpush1.msra.mxu0 0.0
        %8002 = vmatprep.subr.mxu0 0.0
        %8003 = vmatpush1.msra.mxu0 0.0
        %8004 = vmatprep.subr.mxu0 0.0
        %8005 = vmatpush1.msra.mxu0 0.0
        %8006 = vmatprep.subr.mxu0 0.0
        %8007 = vmatpush1.msra.mxu0 0.0
        %8008 = vmatprep.subr.mxu0 0.0
        %8009 = vmatpush1.msra.mxu0 0.0
        %8010 = vmatprep.subr.mxu0 0.0
        %8011 = vmatpush1.msra.mxu0 0.0
        %8012 = vmatprep.subr.mxu0 0.0
        %8013 = vmatpush1.msra.mxu0 0.0
        %8014 = vmatprep.subr.mxu0 0.0
        %8015 = vmatpush1.msra.mxu0 0.0
        %8016 = vmatprep.subr.mxu0 0.0
        %8017 = vmatpush1.msra.mxu0 0.0
        %8018 = vmatprep.subr.mxu0 0.0
        %8019 = vmatpush1.msra.mxu0 0.0
        %8020 = vmatprep.subr.mxu0 0.0
        %8021 = vmatpush1.msra.mxu0 0.0
        %8022 = vmatprep.subr.mxu0 0.0
        %8023 = vmatpush1.msra.mxu0 0.0
        %8024 = vmatprep.mubr.f32.mxu0 0.0
        %8025 = vmatmul.mubr.f32.gmra.mrb[0].mxu0 %v7958
        %v8026 = vpop.f32.mrb[0].mxu0
        %v8027 = vadd.f32 0.0, %v8026
        %v8028 = vpop.f32.mrb[0].mxu0
        %8029 = vdwg.mxu0
        %v8030 = vxor.u32 %v8027, 2147483648
        %v8031 = vmul.f32 %v8030, 1.442695
        %v8032 = vpow.pop %v8031
        %v8033 = vadd.f32 %v8032, 1.0
        %v8034 = vrcp.pop %v8033
        %v8035 = vmul.f32 1.0, %v8034
        %v8036 = vld [vmem:[%s378 + $0x1] sm:$0xff]
        %v8037 = vld [vmem:[%s378 + $0x9] sm:$0xff]
        %v8038 = vld [vmem:[%s378 + $0x19] sm:$0xff]
        %v8039 = vld [vmem:[%s378 + $0x21] sm:$0xff]
        %v8040 = vld [vmem:[%s378 + $0x31] sm:$0xff]
        %v8041 = vld [vmem:[%s378 + $0x39] sm:$0xff]
        %v8042 = vld [vmem:[%s378 + $0x49] sm:$0xff]
        %v8043 = vld [vmem:[%s378 + $0x51] sm:$0xff]
        %v8044 = vld [vmem:[%s378 + $0x61] sm:$0xff]
        %v8045 = vld [vmem:[%s378 + $0x69] sm:$0xff]
        %v8046 = vld [vmem:[%s378 + $0x79] sm:$0xff]
        %v8047 = vld [vmem:[%s378 + $0x81] sm:$0xff]
        %v8048 = vld [vmem:[%s378 + $0x91] sm:$0xff]
        %v8049 = vld [vmem:[%s378 + $0x99] sm:$0xff]
        %v8050 = vld [vmem:[%s378 + $0xa9] sm:$0xff]
        %v8051 = vld [vmem:[%s378 + $0xb1] sm:$0xff]
        %v8052 = vld [vmem:[%s378 + $0xc1] sm:$0xff]
        %v8053 = vld [vmem:[%s378 + $0xc9] sm:$0xff]
        %v8054 = vld [vmem:[%s378 + $0xd9] sm:$0xff]
        %v8055 = vld [vmem:[%s378 + $0xe1] sm:$0xff]
        %v8056 = vld [vmem:[%s378 + $0xf1] sm:$0xff]
        %v8057 = vld [vmem:[%s378 + $0xf9] sm:$0xff]
        %v8058 = vld [vmem:[%s378 + $0x109] sm:$0xff]
        %v8059 = vld [vmem:[%s378 + $0x111] sm:$0xff]
        %v8060 = vld [vmem:[%s378 + $0x121] sm:$0xff]
        %v8061 = vld [vmem:[%s378 + $0x129] sm:$0xff]
        %v8062 = vld [vmem:[%s378 + $0x139] sm:$0xff]
        %v8063 = vld [vmem:[%s378 + $0x141] sm:$0xff]
        %v8064 = vld [vmem:[%s378 + $0x151] sm:$0xff]
        %v8065 = vld [vmem:[%s378 + $0x159] sm:$0xff]
        %v8066 = vld [vmem:[%s378 + $0x169] sm:$0xff]
        %v8067 = vld [vmem:[%s378 + $0x171] sm:$0xff]
        %v8068 = vlaneseq
        %v8069 = vshrl.u32 %v8068, 7
        %v8070 = vsub.s32 0, %v8069
        %v8071 = vrot.slane %v8035, %v8070
        %v8072 = vmul.f32 %v7797, %v8071
        %v8073 = vmul.f32 %v7798, %v8071
        %v8074 = vmul.f32 %v7799, %v8071
        %v8075 = vmul.f32 %v7800, %v8071
        %v8076 = vmul.f32 %v7801, %v8071
        %v8077 = vmul.f32 %v7802, %v8071
        %v8078 = vmul.f32 %v7803, %v8071
        %v8079 = vmul.f32 %v7804, %v8071
        %v8080 = vmul.f32 %v7805, %v8071
        %v8081 = vmul.f32 %v7806, %v8071
        %v8082 = vmul.f32 %v7807, %v8071
        %v8083 = vmul.f32 %v7808, %v8071
        %v8084 = vmul.f32 %v7809, %v8071
        %v8085 = vmul.f32 %v7810, %v8071
        %v8086 = vmul.f32 %v7811, %v8071
        %v8087 = vmul.f32 %v7812, %v8071
        %v8088 = vmul.f32 %v7813, %v8071
        %v8089 = vmul.f32 %v7814, %v8071
        %v8090 = vmul.f32 %v7815, %v8071
        %v8091 = vmul.f32 %v7816, %v8071
        %v8092 = vmul.f32 %v7817, %v8071
        %v8093 = vmul.f32 %v7818, %v8071
        %v8094 = vmul.f32 %v7819, %v8071
        %v8095 = vmul.f32 %v7820, %v8071
        %v8096 = vmul.f32 %v7821, %v8071
        %v8097 = vmul.f32 %v7822, %v8071
        %v8098 = vmul.f32 %v7823, %v8071
        %v8099 = vmul.f32 %v7824, %v8071
        %v8100 = vmul.f32 %v7825, %v8071
        %v8101 = vmul.f32 %v7826, %v8071
        %v8102 = vmul.f32 %v7827, %v8071
        %v8103 = vmul.f32 %v7828, %v8071
        %v8104 = vadd.f32 %v8072, %v8036
        %v8105 = vadd.f32 %v8073, %v8037
        %v8106 = vadd.f32 %v8074, %v8038
        %v8107 = vadd.f32 %v8075, %v8039
        %v8108 = vadd.f32 %v8076, %v8040
        %v8109 = vadd.f32 %v8077, %v8041
        %v8110 = vadd.f32 %v8078, %v8042
        %v8111 = vadd.f32 %v8079, %v8043
        %v8112 = vadd.f32 %v8080, %v8044
        %v8113 = vadd.f32 %v8081, %v8045
        %v8114 = vadd.f32 %v8082, %v8046
        %v8115 = vadd.f32 %v8083, %v8047
        %v8116 = vadd.f32 %v8084, %v8048
        %v8117 = vadd.f32 %v8085, %v8049
        %v8118 = vadd.f32 %v8086, %v8050
        %v8119 = vadd.f32 %v8087, %v8051
        %v8120 = vadd.f32 %v8088, %v8052
        %v8121 = vadd.f32 %v8089, %v8053
        %v8122 = vadd.f32 %v8090, %v8054
        %v8123 = vadd.f32 %v8091, %v8055
        %v8124 = vadd.f32 %v8092, %v8056
        %v8125 = vadd.f32 %v8093, %v8057
        %v8126 = vadd.f32 %v8094, %v8058
        %v8127 = vadd.f32 %v8095, %v8059
        %v8128 = vadd.f32 %v8096, %v8060
        %v8129 = vadd.f32 %v8097, %v8061
        %v8130 = vadd.f32 %v8098, %v8062
        %v8131 = vadd.f32 %v8099, %v8063
        %v8132 = vadd.f32 %v8100, %v8064
        %v8133 = vadd.f32 %v8101, %v8065
        %v8134 = vadd.f32 %v8102, %v8066
        %v8135 = vadd.f32 %v8103, %v8067
        %s8136 = sld [smem:[#allocation4 + $0x2]]
        %vm8137 = vcmp.ge.f32.partialorder %v8104, 0.0
        %vm8138 = vcmp.ge.f32.partialorder %v8105, 0.0
        %vm8139 = vcmp.ge.f32.partialorder %v8106, 0.0
        %vm8140 = vcmp.ge.f32.partialorder %v8107, 0.0
        %vm8141 = vcmp.ge.f32.partialorder %v8108, 0.0
        %vm8142 = vcmp.ge.f32.partialorder %v8109, 0.0
        %vm8143 = vcmp.ge.f32.partialorder %v8110, 0.0
        %vm8144 = vcmp.ge.f32.partialorder %v8111, 0.0
        %vm8145 = vcmp.ge.f32.partialorder %v8112, 0.0
        %vm8146 = vcmp.ge.f32.partialorder %v8113, 0.0
        %vm8147 = vcmp.ge.f32.partialorder %v8114, 0.0
        %vm8148 = vcmp.ge.f32.partialorder %v8115, 0.0
        %vm8149 = vcmp.ge.f32.partialorder %v8116, 0.0
        %vm8150 = vcmp.ge.f32.partialorder %v8117, 0.0
        %vm8151 = vcmp.ge.f32.partialorder %v8118, 0.0
        %vm8152 = vcmp.ge.f32.partialorder %v8119, 0.0
        %vm8153 = vcmp.ge.f32.partialorder %v8120, 0.0
        %vm8154 = vcmp.ge.f32.partialorder %v8121, 0.0
        %vm8155 = vcmp.ge.f32.partialorder %v8122, 0.0
        %vm8156 = vcmp.ge.f32.partialorder %v8123, 0.0
        %vm8157 = vcmp.ge.f32.partialorder %v8124, 0.0
        %vm8158 = vcmp.ge.f32.partialorder %v8125, 0.0
        %vm8159 = vcmp.ge.f32.partialorder %v8126, 0.0
        %vm8160 = vcmp.ge.f32.partialorder %v8127, 0.0
        %vm8161 = vcmp.ge.f32.partialorder %v8128, 0.0
        %vm8162 = vcmp.ge.f32.partialorder %v8129, 0.0
        %vm8163 = vcmp.ge.f32.partialorder %v8130, 0.0
        %vm8164 = vcmp.ge.f32.partialorder %v8131, 0.0
        %vm8165 = vcmp.ge.f32.partialorder %v8132, 0.0
        %vm8166 = vcmp.ge.f32.partialorder %v8133, 0.0
        %vm8167 = vcmp.ge.f32.partialorder %v8134, 0.0
        %vm8168 = vcmp.ge.f32.partialorder %v8135, 0.0
        %v8169 = vstv %s8136
        %v8170 = vmul.f32 %v8169, %v8104
        %v8171 = vmul.f32 %v8169, %v8105
        %v8172 = vmul.f32 %v8169, %v8106
        %v8173 = vmul.f32 %v8169, %v8107
        %v8174 = vmul.f32 %v8169, %v8108
        %v8175 = vmul.f32 %v8169, %v8109
        %v8176 = vmul.f32 %v8169, %v8110
        %v8177 = vmul.f32 %v8169, %v8111
        %v8178 = vmul.f32 %v8169, %v8112
        %v8179 = vmul.f32 %v8169, %v8113
        %v8180 = vmul.f32 %v8169, %v8114
        %v8181 = vmul.f32 %v8169, %v8115
        %v8182 = vmul.f32 %v8169, %v8116
        %v8183 = vmul.f32 %v8169, %v8117
        %v8184 = vmul.f32 %v8169, %v8118
        %v8185 = vmul.f32 %v8169, %v8119
        %v8186 = vmul.f32 %v8169, %v8120
        %v8187 = vmul.f32 %v8169, %v8121
        %v8188 = vmul.f32 %v8169, %v8122
        %v8189 = vmul.f32 %v8169, %v8123
        %v8190 = vmul.f32 %v8169, %v8124
        %v8191 = vmul.f32 %v8169, %v8125
        %v8192 = vmul.f32 %v8169, %v8126
        %v8193 = vmul.f32 %v8169, %v8127
        %v8194 = vmul.f32 %v8169, %v8128
        %v8195 = vmul.f32 %v8169, %v8129
        %v8196 = vmul.f32 %v8169, %v8130
        %v8197 = vmul.f32 %v8169, %v8131
        %v8198 = vmul.f32 %v8169, %v8132
        %v8199 = vmul.f32 %v8169, %v8133
        %v8200 = vmul.f32 %v8169, %v8134
        %v8201 = vmul.f32 %v8169, %v8135
        %v8202 = vsel %vm8137, %v8104, %v8170
        %v8203 = vsel %vm8138, %v8105, %v8171
        %v8204 = vsel %vm8139, %v8106, %v8172
        %v8205 = vsel %vm8140, %v8107, %v8173
        %v8206 = vsel %vm8141, %v8108, %v8174
        %v8207 = vsel %vm8142, %v8109, %v8175
        %v8208 = vsel %vm8143, %v8110, %v8176
        %v8209 = vsel %vm8144, %v8111, %v8177
        %v8210 = vsel %vm8145, %v8112, %v8178
        %v8211 = vsel %vm8146, %v8113, %v8179
        %v8212 = vsel %vm8147, %v8114, %v8180
        %v8213 = vsel %vm8148, %v8115, %v8181
        %v8214 = vsel %vm8149, %v8116, %v8182
        %v8215 = vsel %vm8150, %v8117, %v8183
        %v8216 = vsel %vm8151, %v8118, %v8184
        %v8217 = vsel %vm8152, %v8119, %v8185
        %v8218 = vsel %vm8153, %v8120, %v8186
        %v8219 = vsel %vm8154, %v8121, %v8187
        %v8220 = vsel %vm8155, %v8122, %v8188
        %v8221 = vsel %vm8156, %v8123, %v8189
        %v8222 = vsel %vm8157, %v8124, %v8190
        %v8223 = vsel %vm8158, %v8125, %v8191
        %v8224 = vsel %vm8159, %v8126, %v8192
        %v8225 = vsel %vm8160, %v8127, %v8193
        %v8226 = vsel %vm8161, %v8128, %v8194
        %v8227 = vsel %vm8162, %v8129, %v8195
        %v8228 = vsel %vm8163, %v8130, %v8196
        %v8229 = vsel %vm8164, %v8131, %v8197
        %v8230 = vsel %vm8165, %v8132, %v8198
        %v8231 = vsel %vm8166, %v8133, %v8199
        %v8232 = vsel %vm8167, %v8134, %v8200
        %v8233 = vsel %vm8168, %v8135, %v8201
        %8234 = vst [vmem:[%s285] sm:$0xff] %v8202
        %8235 = vst [vmem:[%s285 + $0x8] sm:$0xff] %v8203
        %8236 = vst [vmem:[%s285 + $0x10] sm:$0xff] %v8204
        %8237 = vst [vmem:[%s285 + $0x18] sm:$0xff] %v8205
        %8238 = vst [vmem:[%s285 + $0x20] sm:$0xff] %v8206
        %8239 = vst [vmem:[%s285 + $0x28] sm:$0xff] %v8207
        %8240 = vst [vmem:[%s285 + $0x30] sm:$0xff] %v8208
        %8241 = vst [vmem:[%s285 + $0x38] sm:$0xff] %v8209
        %8242 = vst [vmem:[%s285 + $0x40] sm:$0xff] %v8210
        %8243 = vst [vmem:[%s285 + $0x48] sm:$0xff] %v8211
        %8244 = vst [vmem:[%s285 + $0x50] sm:$0xff] %v8212
        %8245 = vst [vmem:[%s285 + $0x58] sm:$0xff] %v8213
        %8246 = vst [vmem:[%s285 + $0x60] sm:$0xff] %v8214
        %8247 = vst [vmem:[%s285 + $0x68] sm:$0xff] %v8215
        %8248 = vst [vmem:[%s285 + $0x70] sm:$0xff] %v8216
        %8249 = vst [vmem:[%s285 + $0x78] sm:$0xff] %v8217
        %8250 = vst [vmem:[%s285 + $0x80] sm:$0xff] %v8218
        %8251 = vst [vmem:[%s285 + $0x88] sm:$0xff] %v8219
        %8252 = vst [vmem:[%s285 + $0x90] sm:$0xff] %v8220
        %8253 = vst [vmem:[%s285 + $0x98] sm:$0xff] %v8221
        %8254 = vst [vmem:[%s285 + $0xa0] sm:$0xff] %v8222
        %8255 = vst [vmem:[%s285 + $0xa8] sm:$0xff] %v8223
        %8256 = vst [vmem:[%s285 + $0xb0] sm:$0xff] %v8224
        %8257 = vst [vmem:[%s285 + $0xb8] sm:$0xff] %v8225
        %8258 = vst [vmem:[%s285 + $0xc0] sm:$0xff] %v8226
        %8259 = vst [vmem:[%s285 + $0xc8] sm:$0xff] %v8227
        %8260 = vst [vmem:[%s285 + $0xd0] sm:$0xff] %v8228
        %8261 = vst [vmem:[%s285 + $0xd8] sm:$0xff] %v8229
        %8262 = vst [vmem:[%s285 + $0xe0] sm:$0xff] %v8230
        %8263 = vst [vmem:[%s285 + $0xe8] sm:$0xff] %v8231
        %8264 = vst [vmem:[%s285 + $0xf0] sm:$0xff] %v8232
        %8265 = vst [vmem:[%s285 + $0xf8] sm:$0xff] %v8233
        %s8266 = sand.u32 %s182, 1
        %s8267 = scalar_lea.sflag [#allocation5], %s8266
        %s8268 = sand.u32 %s182, 1
        %s8269 = smul.addr %s8268, 256
        %s8270 = scalar_lea.vmem [#allocation7], %s8269
        // Predicated region
        $region53: #{mcwnet_forward.1} parent=47 // pred_check
          %p8271 = pneg %p192
        $region54: #{mcwnet_forward.1} parent=47 // pred_check_branch
          %8273 = sbr.rel (%p8271) target = $region56
        $region55: #{mcwnet_forward.1} parent=47 // pred_region
          %s8275 = ssub.s32 4096, 4096
          %8276 = vsyncadd %s8267, %s8275
          %s8277 = smul.addr %s22, 32
          %s8278 = smul.addr %s8277, 128
          %s8279 = scalar_lea.hbm %s7, %s8278
          %s8280 = sshll.u32 %s8270, 4
          %s8281 = int_to_ptr.vmem [resolvable:$true] %s8280
          %8286 = dma.vmem_to_hbm [thread:$0]  %s8281, 4096, %s8279, %s8267, 128, 128, 8
        $region56: #{mcwnet_forward.1} parent=47 // pred_fallthru
          _
      $region48: #{mcwnet_forward.1} parent=5 // pred_fallthru
        _
      %p8287 = scmp.le.s32.totalorder 2, %s17
      // Predicated region
      $region57: #{mcwnet_forward.1} parent=5 // pred_check
        %p8288 = pneg %p8287
      $region58: #{mcwnet_forward.1} parent=5 // pred_check_branch
        %8290 = sbr.rel (%p8288) target = $region60
      $region59: #{mcwnet_forward.1} parent=5 // pred_region
        %s8291 = ssub.s32 %s17, 2
        // Predicated region
        $region61: #{mcwnet_forward.1} parent=59 // pred_check
          %p8292 = pneg %p198
        $region62: #{mcwnet_forward.1} parent=59 // pred_check_branch
          %8294 = sbr.rel (%p8292) target = $region64
        $region63: #{mcwnet_forward.1} parent=59 // pred_region
          %s8295 = sand.u32 %s183, 1
          %s8296 = scalar_lea.sflag [#allocation5], %s8295
          %s8297 = sand.u32 %s183, 1
          %s8298 = smul.addr %s8297, 256
          %s8299 = scalar_lea.vmem [#allocation7], %s8298
          %8300 = dma.done %s8296, 4096
        $region64: #{mcwnet_forward.1} parent=59 // pred_fallthru
          _
      $region60: #{mcwnet_forward.1} parent=5 // pred_fallthru
        _
    $region6: #{mcwnet_forward.1} parent=1 // loop_footer
      %s21 = sadd.s32 1, %s17
    $region7: #{mcwnet_forward.1} parent=1 // loop_footer_branch
      %16 = sbr.rel target = $region3
    $region8: #{mcwnet_forward.1} parent=1 // loop_exit
      _
    %8301 = vsyncpa [#allocation5], 1
    %s8302 = scalar_lea.sflag [#allocation5], 1
    %8303 = vsyncpa %s8302, 1
    %8304 = vsyncpa [#allocation6], 1
    %s8305 = scalar_lea.sflag [#allocation6], 1
    %8306 = vsyncpa %s8305, 1

</llo_original>
